<compile_context>
chip_gen: v7x
topology: tpu7x:2x2x1
jax: 0.10.0
libtpu: 0.0.40
codegen_flags: <defaults>
</compile_context>

<pallas_src>
import jax
import jax.numpy as jnp
from jax import lax
from jax.experimental import pallas as pl
from jax.experimental.pallas import tpu as pltpu

EPS = 1e-5
_HIGHEST = lax.Precision.HIGHEST  # keep f32 accuracy for the structural matmuls


def _conv_cn_stats_kernel(w_ref, sg_ref, sgt_ref, x_ref, z_ref, s1_ref, s2_ref):
    # Per grid step (all lane-dense, TP = TM*K spatial elements on lanes):
    #   w_ref   : (Cout, Cin)      1x1 conv weight
    #   sg_ref  : (TP, TM)         0/1 segment-sum matrix (column m <-> row m's K lanes)
    #   sgt_ref : (TM, TP)         its transpose (broadcast-back)
    #   x_ref   : (1, Cin, TP)     input tile (NCHW, spatial flattened)
    #   z_ref   : (1, Cout, TP)    instance-normalized conv output
    #   s1_ref  : (1, 1, Cout, 1)  per-channel sum(z)   for this tile
    #   s2_ref  : (1, 1, Cout, 1)  per-channel sum(z^2) for this tile
    x = x_ref[0]                       # (Cin, TP)
    w = w_ref[...]                     # (Cout, Cin)
    sg = sg_ref[...]                   # (TP, TM)
    sgt = sgt_ref[...]                 # (TM, TP)
    tp = x.shape[1]
    tm = sg.shape[1]
    inv_k = 1.0 / float(tp // tm)      # static

    # --- 1x1 conv (no bias): channel matmul, spatial stays on the lane axis ---
    y = jnp.dot(w, x, precision=_HIGHEST,
                preferred_element_type=jnp.float32)                    # (Cout, TP)

    # --- InstanceNorm1d over each K-length lane segment (per (n, c, m) over K) ---
    # One-pass sum / sum-of-squares via tiny 0/1 matmuls keeps everything lane-dense.
    s1 = jnp.dot(y, sg, precision=_HIGHEST,
                 preferred_element_type=jnp.float32)                   # (Cout, TM)
    s2 = jnp.dot(y * y, sg, precision=_HIGHEST,
                 preferred_element_type=jnp.float32)                   # (Cout, TM)
    mu = s1 * inv_k
    var = jnp.maximum(s2 * inv_k - mu * mu, 0.0)
    rsig = lax.rsqrt(var + EPS)
    a = rsig                           # per-(c, m) scale
    b = -mu * rsig                     # per-(c, m) shift
    a_b = jnp.dot(a, sgt, precision=_HIGHEST,
                  preferred_element_type=jnp.float32)                  # (Cout, TP)
    b_b = jnp.dot(b, sgt, precision=_HIGHEST,
                  preferred_element_type=jnp.float32)                  # (Cout, TP)
    z = y * a_b + b_b
    z_ref[0] = z.astype(z_ref.dtype)

    # --- per-tile partial sums for training-mode BatchNorm2d statistics ---
    s1_ref[0, 0] = jnp.sum(z, axis=1, keepdims=True)                   # (Cout, 1)
    s2_ref[0, 0] = jnp.sum(z * z, axis=1, keepdims=True)               # (Cout, 1)


def _bn_relu_kernel(scale_ref, shift_ref, z_ref, o_ref):
    # scale/shift: (Cout, 1) fused BatchNorm affine; broadcasts over lanes.
    z = z_ref[0]                                                       # (Cout, TP)
    o_ref[0] = jnp.maximum(z * scale_ref[...] + shift_ref[...], 0.0).astype(o_ref.dtype)


def _pick_m_tile(m, k, max_lanes):
    """Largest TM dividing M with TM*K <= max_lanes and lane-aligned blocks."""
    for tm in range(m, 0, -1):
        if m % tm:
            continue
        tp = tm * k
        if tp <= max_lanes and (tp % 128 == 0 or tm == m):
            return tm
    return m  # fallback: full M extent (block last dim == full array dim)


def context_norm_fcn(x_nchw, conv_w, bn_gamma, bn_beta, *, max_block_lanes=512):
    """x_nchw: (N, Cin, M, K) f32; conv_w: (Cout, Cin); returns (N, Cout, M, K) f32."""
    N, Cin, M, K = x_nchw.shape
    Cout = conv_w.shape[0]
    P = M * K

    # Free, layout-preserving views only (no HBM transpose round trips).
    x = x_nchw.reshape(N, Cin, P).astype(jnp.float32)
    w = conv_w.astype(jnp.float32)

    TM = _pick_m_tile(M, K, max_block_lanes)
    TP = TM * K
    MB = M // TM
    grid = (N, MB)

    # 0/1 segment matrices for the in-kernel InstanceNorm reduce / broadcast-back.
    seg = jnp.arange(TP, dtype=jnp.int32) // K
    sg = (seg[:, None] == jnp.arange(TM, dtype=jnp.int32)[None, :]).astype(jnp.float32)
    sgt = jnp.transpose(sg)

    cparams = pltpu.CompilerParams(
        dimension_semantics=("parallel", "parallel"),   # shard (N, M-blocks) across v7x TCs
        vmem_limit_bytes=32 * 1024 * 1024,              # safe on v5e/v6e/v7x (v7x: 64 MiB phys)
    )

    # ---- Phase 1: conv + InstanceNorm + per-tile BatchNorm partial sums ----
    z, s1, s2 = pl.pallas_call(
        _conv_cn_stats_kernel,
        out_shape=(
            jax.ShapeDtypeStruct((N, Cout, P), jnp.float32),
            jax.ShapeDtypeStruct((N, MB, Cout, 1), jnp.float32),
            jax.ShapeDtypeStruct((N, MB, Cout, 1), jnp.float32),
        ),
        grid_spec=pltpu.PrefetchScalarGridSpec(
            num_scalar_prefetch=0,
            grid=grid,
            in_specs=[
                pl.BlockSpec((Cout, Cin), lambda n, mb: (0, 0)),
                pl.BlockSpec((TP, TM), lambda n, mb: (0, 0)),
                pl.BlockSpec((TM, TP), lambda n, mb: (0, 0)),
                pl.BlockSpec((1, Cin, TP), lambda n, mb: (n, 0, mb)),
            ],
            out_specs=[
                pl.BlockSpec((1, Cout, TP), lambda n, mb: (n, 0, mb)),
                pl.BlockSpec((1, 1, Cout, 1), lambda n, mb: (n, mb, 0, 0)),
                pl.BlockSpec((1, 1, Cout, 1), lambda n, mb: (n, mb, 0, 0)),
            ],
        ),
        compiler_params=cparams,
    )(w, sg, sgt, x)

    # ---- Tiny glue: global batch stats -> fused per-channel scale/shift ----
    # TODO(synk): BatchNorm2d running-stat buffer updates (training bookkeeping) are
    # not emitted; the forward output in training mode does not depend on them.
    count = float(N * P)
    bmu = jnp.sum(s1, axis=(0, 1)) / count                              # (Cout, 1)
    bvar = jnp.maximum(jnp.sum(s2, axis=(0, 1)) / count - bmu * bmu, 0.0)
    scale = bn_gamma.reshape(Cout, 1).astype(jnp.float32) * lax.rsqrt(bvar + EPS)
    shift = bn_beta.reshape(Cout, 1).astype(jnp.float32) - bmu * scale

    # ---- Phase 2: fused BatchNorm affine + ReLU (in place over z) ----
    out = pl.pallas_call(
        _bn_relu_kernel,
        out_shape=jax.ShapeDtypeStruct((N, Cout, P), jnp.float32),
        grid_spec=pltpu.PrefetchScalarGridSpec(
            num_scalar_prefetch=0,
            grid=grid,
            in_specs=[
                pl.BlockSpec((Cout, 1), lambda n, mb: (0, 0)),
                pl.BlockSpec((Cout, 1), lambda n, mb: (0, 0)),
                pl.BlockSpec((1, Cout, TP), lambda n, mb: (n, 0, mb)),
            ],
            out_specs=pl.BlockSpec((1, Cout, TP), lambda n, mb: (n, 0, mb)),
        ),
        input_output_aliases={2: 0},   # reuse z's HBM buffer for the output
        compiler_params=cparams,
    )(scale, shift, z)

    return out.reshape(N, Cout, M, K)   # free view back to NCHW


def reference(x_nchw, conv_w, bn_gamma, bn_beta):
    """Pure-JAX mirror of the PyTorch forward (training-mode BatchNorm)."""
    N, Cin, M, K = x_nchw.shape
    Cout = conv_w.shape[0]
    y = jnp.einsum('oc,ncmk->nomk', conv_w, x_nchw, precision=_HIGHEST)
    yf = y.reshape(N, Cout * M, K)
    mu = yf.mean(-1, keepdims=True)
    var = ((yf - mu) ** 2).mean(-1, keepdims=True)
    z = ((yf - mu) / jnp.sqrt(var + EPS)).reshape(N, Cout, M, K)
    bmu = z.mean(axis=(0, 2, 3), keepdims=True)
    bvar = ((z - bmu) ** 2).mean(axis=(0, 2, 3), keepdims=True)
    zn = (z - bmu) / jnp.sqrt(bvar + EPS)
    out = bn_gamma.reshape(1, Cout, 1, 1) * zn + bn_beta.reshape(1, Cout, 1, 1)
    return jnp.maximum(out, 0.0)


if __name__ == "__main__":
    # Small shapes consistent with the module (n_channels=[Cin=8, Cout=4]).
    # M=64, K=16 -> P=1024, tile TP=512 -> grid (N=2, M-blocks=2): exercises both
    # the pipelined grid and the multi-tile BatchNorm partial-sum accumulation.
    N, Cin, M, K = 2, 8, 64, 16
    Cout = 4

    key = jax.random.PRNGKey(0)
    kx, kw, kg, kb = jax.random.split(key, 4)
    x = jax.random.normal(kx, (N, Cin, M, K), dtype=jnp.float32)
    conv_w = jax.random.normal(kw, (Cout, Cin), dtype=jnp.float32) * 0.1
    bn_gamma = 1.0 + 0.2 * jax.random.normal(kg, (Cout,), dtype=jnp.float32)
    bn_beta = 0.1 * jax.random.normal(kb, (Cout,), dtype=jnp.float32)

    out = context_norm_fcn(x, conv_w, bn_gamma, bn_beta)
    out = jax.block_until_ready(out)

    ref = reference(x, conv_w, bn_gamma, bn_beta)
    assert out.shape == (N, Cout, M, K)
    err = jnp.max(jnp.abs(out - ref))
    assert jnp.allclose(out, ref, atol=2e-4, rtol=2e-4), f"max abs err = {err}"

    print("KERNEL_OK")
</pallas_src>

<mosaic_0001>
module attributes {stable_mosaic.version = 11 : i64} {
  func.func @_conv_cn_stats_kernel(%arg0: i32, %arg1: i32, %arg2: memref<4x8xf32, #tpu.memory_space<vmem>>, %arg3: memref<512x32xf32, #tpu.memory_space<vmem>>, %arg4: memref<32x512xf32, #tpu.memory_space<vmem>>, %arg5: memref<1x8x512xf32, #tpu.memory_space<vmem>>, %arg6: memref<1x4x512xf32, #tpu.memory_space<vmem>>, %arg7: memref<1x1x4x1xf32, #tpu.memory_space<vmem>>, %arg8: memref<1x1x4x1xf32, #tpu.memory_space<vmem>>) attributes {dimension_semantics = [#tpu.dimension_semantics<parallel>, #tpu.dimension_semantics<parallel>], iteration_bounds = array<i64: 2, 2>, scalar_prefetch = 0 : i64, scratch_operands = 0 : i64, tpu.core_type = #tpu.core_type<tc>, window_params = [{pipeline_mode = #tpu.pipeline_mode<synchronous>, transform_indices = @transform_0, window_bounds = array<i64: 4, 8>}, {pipeline_mode = #tpu.pipeline_mode<synchronous>, transform_indices = @transform_1, window_bounds = array<i64: 512, 32>}, {pipeline_mode = #tpu.pipeline_mode<synchronous>, transform_indices = @transform_2, window_bounds = array<i64: 32, 512>}, {transform_indices = @transform_3, window_bounds = array<i64: 1, 8, 512>}, {transform_indices = @transform_4, window_bounds = array<i64: 1, 4, 512>}, {transform_indices = @transform_5, window_bounds = array<i64: 1, 1, 4, 1>}, {transform_indices = @transform_6, window_bounds = array<i64: 1, 1, 4, 1>}]} {
    %c0 = arith.constant 0 : index
    %c0_0 = arith.constant 0 : index
    %c0_1 = arith.constant 0 : index
    %0 = vector.load %arg5[%c0, %c0_0, %c0_1] : memref<1x8x512xf32, #tpu.memory_space<vmem>>, vector<1x8x512xf32>
    %1 = vector.shape_cast %0 : vector<1x8x512xf32> to vector<8x512xf32>
    %c0_2 = arith.constant 0 : index
    %c0_3 = arith.constant 0 : index
    %2 = vector.load %arg2[%c0_2, %c0_3] : memref<4x8xf32, #tpu.memory_space<vmem>>, vector<4x8xf32>
    %c0_4 = arith.constant 0 : index
    %c0_5 = arith.constant 0 : index
    %3 = vector.load %arg3[%c0_4, %c0_5] : memref<512x32xf32, #tpu.memory_space<vmem>>, vector<512x32xf32>
    %c0_6 = arith.constant 0 : index
    %c0_7 = arith.constant 0 : index
    %4 = vector.load %arg4[%c0_6, %c0_7] : memref<32x512xf32, #tpu.memory_space<vmem>>, vector<32x512xf32>
    %cst = arith.constant dense<0.000000e+00> : vector<4x512xf32>
    %5 = tpu.matmul %2, %1, %cst {dimension_numbers = #tpu.dot_dimension_numbers<[1], [0], [0], [1], [0, 0, 1, 1], [], []>, precision = #tpu.contract_precision<fp32>} : vector<4x8xf32>, vector<8x512xf32>, vector<4x512xf32> -> vector<4x512xf32>
    %cst_8 = arith.constant dense<0.000000e+00> : vector<4x32xf32>
    %6 = tpu.matmul %5, %3, %cst_8 {dimension_numbers = #tpu.dot_dimension_numbers<[1], [0], [0], [1], [0, 0, 1, 1], [], []>, precision = #tpu.contract_precision<fp32>} : vector<4x512xf32>, vector<512x32xf32>, vector<4x32xf32> -> vector<4x32xf32>
    %7 = arith.mulf %5, %5 : vector<4x512xf32>
    %cst_9 = arith.constant dense<0.000000e+00> : vector<4x32xf32>
    %8 = tpu.matmul %7, %3, %cst_9 {dimension_numbers = #tpu.dot_dimension_numbers<[1], [0], [0], [1], [0, 0, 1, 1], [], []>, precision = #tpu.contract_precision<fp32>} : vector<4x512xf32>, vector<512x32xf32>, vector<4x32xf32> -> vector<4x32xf32>
    %cst_10 = arith.constant 6.250000e-02 : f32
    %9 = vector.broadcast %cst_10 : f32 to vector<4x32xf32>
    %10 = arith.mulf %6, %9 : vector<4x32xf32>
    %cst_11 = arith.constant 6.250000e-02 : f32
    %11 = vector.broadcast %cst_11 : f32 to vector<4x32xf32>
    %12 = arith.mulf %8, %11 : vector<4x32xf32>
    %13 = arith.mulf %10, %10 : vector<4x32xf32>
    %14 = arith.subf %12, %13 : vector<4x32xf32>
    %cst_12 = arith.constant 0.000000e+00 : f32
    %15 = vector.broadcast %cst_12 : f32 to vector<4x32xf32>
    %16 = arith.maximumf %14, %15 : vector<4x32xf32>
    %cst_13 = arith.constant 9.99999974E-6 : f32
    %17 = vector.broadcast %cst_13 : f32 to vector<4x32xf32>
    %18 = arith.addf %16, %17 : vector<4x32xf32>
    %19 = math.rsqrt %18 : vector<4x32xf32>
    %cst_14 = arith.constant 0.000000e+00 : f32
    %20 = vector.broadcast %cst_14 : f32 to vector<4x32xf32>
    %21 = arith.subf %20, %10 : vector<4x32xf32>
    %22 = arith.mulf %21, %19 : vector<4x32xf32>
    %cst_15 = arith.constant dense<0.000000e+00> : vector<4x512xf32>
    %23 = tpu.matmul %19, %4, %cst_15 {dimension_numbers = #tpu.dot_dimension_numbers<[1], [0], [0], [1], [0, 0, 1, 1], [], []>, precision = #tpu.contract_precision<fp32>} : vector<4x32xf32>, vector<32x512xf32>, vector<4x512xf32> -> vector<4x512xf32>
    %cst_16 = arith.constant dense<0.000000e+00> : vector<4x512xf32>
    %24 = tpu.matmul %22, %4, %cst_16 {dimension_numbers = #tpu.dot_dimension_numbers<[1], [0], [0], [1], [0, 0, 1, 1], [], []>, precision = #tpu.contract_precision<fp32>} : vector<4x32xf32>, vector<32x512xf32>, vector<4x512xf32> -> vector<4x512xf32>
    %25 = arith.mulf %5, %23 : vector<4x512xf32>
    %26 = arith.addf %25, %24 : vector<4x512xf32>
    %c0_17 = arith.constant 0 : index
    %c0_18 = arith.constant 0 : index
    %c0_19 = arith.constant 0 : index
    %27 = vector.load %arg6[%c0_17, %c0_18, %c0_19] : memref<1x4x512xf32, #tpu.memory_space<vmem>>, vector<1x4x512xf32>
    %28 = vector.shape_cast %27 : vector<1x4x512xf32> to vector<4x512xf32>
    %29 = vector.shape_cast %26 : vector<4x512xf32> to vector<1x4x512xf32>
    tpu.vector_store %arg6[%c0_17, %c0_18, %c0_19], %29 {strides = array<i32>} : memref<1x4x512xf32, #tpu.memory_space<vmem>>, vector<1x4x512xf32>,
    %cst_20 = arith.constant dense<0.000000e+00> : vector<4xf32>
    %30 = vector.multi_reduction <add>, %26, %cst_20 [1] : vector<4x512xf32> to vector<4xf32>
    %31 = vector.shape_cast %30 : vector<4xf32> to vector<4x1xf32>
    %c0_21 = arith.constant 0 : index
    %c0_22 = arith.constant 0 : index
    %c0_23 = arith.constant 0 : index
    %c0_24 = arith.constant 0 : index
    %32 = vector.load %arg7[%c0_21, %c0_22, %c0_23, %c0_24] : memref<1x1x4x1xf32, #tpu.memory_space<vmem>>, vector<1x1x4x1xf32>
    %33 = vector.shape_cast %32 : vector<1x1x4x1xf32> to vector<4x1xf32>
    %34 = vector.shape_cast %31 : vector<4x1xf32> to vector<1x1x4x1xf32>
    tpu.vector_store %arg7[%c0_21, %c0_22, %c0_23, %c0_24], %34 {strides = array<i32>} : memref<1x1x4x1xf32, #tpu.memory_space<vmem>>, vector<1x1x4x1xf32>,
    %35 = arith.mulf %26, %26 : vector<4x512xf32>
    %cst_25 = arith.constant dense<0.000000e+00> : vector<4xf32>
    %36 = vector.multi_reduction <add>, %35, %cst_25 [1] : vector<4x512xf32> to vector<4xf32>
    %37 = vector.shape_cast %36 : vector<4xf32> to vector<4x1xf32>
    %c0_26 = arith.constant 0 : index
    %c0_27 = arith.constant 0 : index
    %c0_28 = arith.constant 0 : index
    %c0_29 = arith.constant 0 : index
    %38 = vector.load %arg8[%c0_26, %c0_27, %c0_28, %c0_29] : memref<1x1x4x1xf32, #tpu.memory_space<vmem>>, vector<1x1x4x1xf32>
    %39 = vector.shape_cast %38 : vector<1x1x4x1xf32> to vector<4x1xf32>
    %40 = vector.shape_cast %37 : vector<4x1xf32> to vector<1x1x4x1xf32>
    tpu.vector_store %arg8[%c0_26, %c0_27, %c0_28, %c0_29], %40 {strides = array<i32>} : memref<1x1x4x1xf32, #tpu.memory_space<vmem>>, vector<1x1x4x1xf32>,
    return
  }
  func.func @transform_0(%arg0: i32, %arg1: i32) -> (i32, i32) {
    %c0_i32 = arith.constant 0 : i32
    %c0_i32_0 = arith.constant 0 : i32
    %c0_i32_1 = arith.constant 0 : i32
    return %c0_i32, %c0_i32_0 : i32, i32
  }
  func.func @transform_1(%arg0: i32, %arg1: i32) -> (i32, i32) {
    %c0_i32 = arith.constant 0 : i32
    %c0_i32_0 = arith.constant 0 : i32
    %c0_i32_1 = arith.constant 0 : i32
    return %c0_i32, %c0_i32_0 : i32, i32
  }
  func.func @transform_2(%arg0: i32, %arg1: i32) -> (i32, i32) {
    %c0_i32 = arith.constant 0 : i32
    %c0_i32_0 = arith.constant 0 : i32
    %c0_i32_1 = arith.constant 0 : i32
    return %c0_i32, %c0_i32_0 : i32, i32
  }
  func.func @transform_3(%arg0: i32, %arg1: i32) -> (i32, i32, i32) {
    %c0_i32 = arith.constant 0 : i32
    %c0_i32_0 = arith.constant 0 : i32
    return %arg0, %c0_i32, %arg1 : i32, i32, i32
  }
  func.func @transform_4(%arg0: i32, %arg1: i32) -> (i32, i32, i32) {
    %c0_i32 = arith.constant 0 : i32
    %c0_i32_0 = arith.constant 0 : i32
    return %arg0, %c0_i32, %arg1 : i32, i32, i32
  }
  func.func @transform_5(%arg0: i32, %arg1: i32) -> (i32, i32, i32, i32) {
    %c0_i32 = arith.constant 0 : i32
    %c0_i32_0 = arith.constant 0 : i32
    %c0_i32_1 = arith.constant 0 : i32
    return %arg0, %arg1, %c0_i32, %c0_i32_0 : i32, i32, i32, i32
  }
  func.func @transform_6(%arg0: i32, %arg1: i32) -> (i32, i32, i32, i32) {
    %c0_i32 = arith.constant 0 : i32
    %c0_i32_0 = arith.constant 0 : i32
    %c0_i32_1 = arith.constant 0 : i32
    return %arg0, %arg1, %c0_i32, %c0_i32_0 : i32, i32, i32, i32
  }
}

</mosaic_0001>

<llo_original>
// kernel: tpu_custom_call.1
$region0: #{tpu_custom_call.1}
  #allocation0 [shape = 'u32[]', space=smem, size = 0x4, offset = 0x4, fixed_abs, tag = 'smem constant byte address 0x4 - core index']
  #allocation1 [shape = 'u32[144,128]{1,0:T(1,128)}', space=vmem, size = 0x12000, scoped, tag = 'internal scratch']
  %s0 = inlined_call_operand.vmem [shape: f32[4,8], index: 0, kind: input, shape index: {}]
  %s1 = inlined_call_operand.vmem [shape: f32[512,32], index: 1, kind: input, shape index: {}]
  %s2 = inlined_call_operand.vmem [shape: f32[32,512], index: 2, kind: input, shape index: {}]
  %s3 = inlined_call_operand.vmem [shape: f32[2,8,1024], index: 3, kind: input, shape index: {}]
  %s4 = inlined_call_operand.hbm [shape: f32[2,4,1024], index: 4, kind: output, shape index: {0}]
  %s5 = inlined_call_operand.vmem [shape: f32[2,2,4,1], index: 5, kind: output, shape index: {1}]
  %s6 = inlined_call_operand.vmem [shape: f32[2,2,4,1], index: 6, kind: output, shape index: {2}]
  %7 = xla_tuple %s4, %s5, %s6
  %s8 = sld [smem:[#allocation0]]
  $region65: #{tpu_custom_call.1} parent=0
    _
  %s10 = ssub.s32 1, %s8
  %s11 = scalar_select 0, %s10, %s8
  $region1: #{tpu_custom_call.1} parent=0
    #allocation2 [shape = 'u8[16384]{0}', space=vmem, size = 0x4000, scoped, tag = 'output window, operand 0']
    #allocation3 [shape = 's32[2]{0}', space=sflag, size = 0x8, scoped, tag = 'scoped memory for tpu_custom_call.1']
    %12 = vsyncpa [#allocation3], 0
    %s13 = scalar_lea.sflag [#allocation3], 1
    %14 = vsyncpa %s13, 0
    loop: start=0, step=1, limit=6
    $region2: #{tpu_custom_call.1} parent=1 // loop_pre_header
      _
    $region3: #{tpu_custom_call.1} parent=1 // loop_header
      %s16 = sphi 0, %s20
      %p17 = scmp.ge.s32.totalorder %s16, 6
      %s23 = sphi 0, %s35
      %s24 = sphi 0, %s31
      %s25 = sphi 0, %s23
      %s26 = sphi 0, %s24
      %s27 = sphi 0, %s25
      %s28 = sphi 0, %s26
      %s36 = sphi 0, %s36
      %s38 = sphi 0, %s36
      %s39 = sphi 0, %s38
      %s53 = sphi 0, %s39
      %s57 = sphi 0, %s57
      %s59 = sphi 0, %s57
      %s60 = sphi 0, %s59
      %s74 = sphi 0, %s60
      %s78 = sphi 0, %s78
      %s80 = sphi 0, %s78
      %s81 = sphi 0, %s80
      %s95 = sphi 0, %s81
      %s103 = sphi 0, %s105
      %s106 = sphi 0, %s103
      %s107 = sphi 0, %s106
      %s123 = sphi 0, %s107
      %s131 = sphi 0, %s133
      %s134 = sphi 0, %s131
      %s135 = sphi 0, %s134
      %s151 = sphi 0, %s135
      %s159 = sphi 0, %s161
      %s162 = sphi 0, %s159
      %s163 = sphi 0, %s162
      %s179 = sphi 0, %s163
      %s187 = sphi 0, %s189
      %s190 = sphi 0, %s187
      %s191 = sphi 0, %s190
      %s207 = sphi 0, %s191
    $region4: #{tpu_custom_call.1} parent=1 // loop_header_branch
      %19 = sbr.rel (%p17) target = $region8
    $region5: #{tpu_custom_call.1} parent=1 // loop_body
      %s21 = ssub.s32 %s16, 1
      %s22 = ssub.s32 %s16, 2
      %s29 = sadd.s32 1, %s24
      %p30 = scmp.ge.s32.totalorder %s29, 2
      %s31 = scalar_select %p30, 0, %s29
      %s32 = sadd.s32 1, %s23
      %s33 = scalar_select %p30, %s32, %s23
      %p34 = scmp.ge.s32.totalorder %s33, 2
      %s35 = scalar_select %p34, 0, %s33
      %s37 = sadd.s32 %s36, 1
      %p40 = scmp.eq.s32.totalorder %s16, 3
      %p41 = scmp.ne.s32.totalorder %s36, %s38
      %p42 = scmp.eq.s32.totalorder %s16, 0
      %p43 = por %p41, %p42
      %p44 = scmp.ne.s32.totalorder %s36, %s38
      %p45 = scmp.eq.s32.totalorder %s21, 3
      %p46 = por %p44, %p45
      %p47 = scmp.ne.s32.totalorder %s38, %s39
      %p48 = scmp.eq.s32.totalorder %s21, 0
      %p49 = por %p47, %p48
      %p50 = scmp.ne.s32.totalorder %s38, %s39
      %p51 = scmp.eq.s32.totalorder %s22, 3
      %p52 = por %p50, %p51
      %p54 = scmp.ne.s32.totalorder %s39, %s53
      %p55 = scmp.eq.s32.totalorder %s22, 0
      %p56 = por %p54, %p55
      %s58 = sadd.s32 %s57, 1
      %p61 = scmp.eq.s32.totalorder %s16, 3
      %p62 = scmp.ne.s32.totalorder %s57, %s59
      %p63 = scmp.eq.s32.totalorder %s16, 0
      %p64 = por %p62, %p63
      %p65 = scmp.ne.s32.totalorder %s57, %s59
      %p66 = scmp.eq.s32.totalorder %s21, 3
      %p67 = por %p65, %p66
      %p68 = scmp.ne.s32.totalorder %s59, %s60
      %p69 = scmp.eq.s32.totalorder %s21, 0
      %p70 = por %p68, %p69
      %p71 = scmp.ne.s32.totalorder %s59, %s60
      %p72 = scmp.eq.s32.totalorder %s22, 3
      %p73 = por %p71, %p72
      %p75 = scmp.ne.s32.totalorder %s60, %s74
      %p76 = scmp.eq.s32.totalorder %s22, 0
      %p77 = por %p75, %p76
      %s79 = sadd.s32 %s78, 1
      %p82 = scmp.eq.s32.totalorder %s16, 3
      %p83 = scmp.ne.s32.totalorder %s78, %s80
      %p84 = scmp.eq.s32.totalorder %s16, 0
      %p85 = por %p83, %p84
      %p86 = scmp.ne.s32.totalorder %s78, %s80
      %p87 = scmp.eq.s32.totalorder %s21, 3
      %p88 = por %p86, %p87
      %p89 = scmp.ne.s32.totalorder %s80, %s81
      %p90 = scmp.eq.s32.totalorder %s21, 0
      %p91 = por %p89, %p90
      %p92 = scmp.ne.s32.totalorder %s80, %s81
      %p93 = scmp.eq.s32.totalorder %s22, 3
      %p94 = por %p92, %p93
      %p96 = scmp.ne.s32.totalorder %s81, %s95
      %p97 = scmp.eq.s32.totalorder %s22, 0
      %p98 = por %p96, %p97
      %s99 = ssub.s32 %s23, %s35
      %s100 = ssub.s32 %s24, %s31
      %s101 = sor.u32 %s99, %s100
      %p102 = scmp.eq.s32.totalorder %s101, 0
      %s104 = sadd.s32 %s103, 1
      %s105 = scalar_select %p102, %s103, %s104
      %p108 = pneg %p102
      %p109 = scmp.eq.s32.totalorder %s16, 3
      %p110 = por %p108, %p109
      %p111 = scmp.ne.s32.totalorder %s103, %s106
      %p112 = scmp.eq.s32.totalorder %s16, 0
      %p113 = por %p111, %p112
      %p114 = scmp.ne.s32.totalorder %s103, %s106
      %p115 = scmp.eq.s32.totalorder %s21, 3
      %p116 = por %p114, %p115
      %p117 = scmp.ne.s32.totalorder %s106, %s107
      %p118 = scmp.eq.s32.totalorder %s21, 0
      %p119 = por %p117, %p118
      %p120 = scmp.ne.s32.totalorder %s106, %s107
      %p121 = scmp.eq.s32.totalorder %s22, 3
      %p122 = por %p120, %p121
      %p124 = scmp.ne.s32.totalorder %s107, %s123
      %p125 = scmp.eq.s32.totalorder %s22, 0
      %p126 = por %p124, %p125
      %s127 = ssub.s32 %s23, %s35
      %s128 = ssub.s32 %s24, %s31
      %s129 = sor.u32 %s127, %s128
      %p130 = scmp.eq.s32.totalorder %s129, 0
      %s132 = sadd.s32 %s131, 1
      %s133 = scalar_select %p130, %s131, %s132
      %p136 = pneg %p130
      %p137 = scmp.eq.s32.totalorder %s16, 3
      %p138 = por %p136, %p137
      %p139 = scmp.ne.s32.totalorder %s131, %s134
      %p140 = scmp.eq.s32.totalorder %s16, 0
      %p141 = por %p139, %p140
      %p142 = scmp.ne.s32.totalorder %s131, %s134
      %p143 = scmp.eq.s32.totalorder %s21, 3
      %p144 = por %p142, %p143
      %p145 = scmp.ne.s32.totalorder %s134, %s135
      %p146 = scmp.eq.s32.totalorder %s21, 0
      %p147 = por %p145, %p146
      %p148 = scmp.ne.s32.totalorder %s134, %s135
      %p149 = scmp.eq.s32.totalorder %s22, 3
      %p150 = por %p148, %p149
      %p152 = scmp.ne.s32.totalorder %s135, %s151
      %p153 = scmp.eq.s32.totalorder %s22, 0
      %p154 = por %p152, %p153
      %s155 = ssub.s32 %s23, %s35
      %s156 = ssub.s32 %s24, %s31
      %s157 = sor.u32 %s155, %s156
      %p158 = scmp.eq.s32.totalorder %s157, 0
      %s160 = sadd.s32 %s159, 1
      %s161 = scalar_select %p158, %s159, %s160
      %p164 = pneg %p158
      %p165 = scmp.eq.s32.totalorder %s16, 3
      %p166 = por %p164, %p165
      %p167 = scmp.ne.s32.totalorder %s159, %s162
      %p168 = scmp.eq.s32.totalorder %s16, 0
      %p169 = por %p167, %p168
      %p170 = scmp.ne.s32.totalorder %s159, %s162
      %p171 = scmp.eq.s32.totalorder %s21, 3
      %p172 = por %p170, %p171
      %p173 = scmp.ne.s32.totalorder %s162, %s163
      %p174 = scmp.eq.s32.totalorder %s21, 0
      %p175 = por %p173, %p174
      %p176 = scmp.ne.s32.totalorder %s162, %s163
      %p177 = scmp.eq.s32.totalorder %s22, 3
      %p178 = por %p176, %p177
      %p180 = scmp.ne.s32.totalorder %s163, %s179
      %p181 = scmp.eq.s32.totalorder %s22, 0
      %p182 = por %p180, %p181
      %s183 = ssub.s32 %s23, %s35
      %s184 = ssub.s32 %s24, %s31
      %s185 = sor.u32 %s183, %s184
      %p186 = scmp.eq.s32.totalorder %s185, 0
      %s188 = sadd.s32 %s187, 1
      %s189 = scalar_select %p186, %s187, %s188
      %p192 = pneg %p186
      %p193 = scmp.eq.s32.totalorder %s16, 3
      %p194 = por %p192, %p193
      %p195 = scmp.ne.s32.totalorder %s187, %s190
      %p196 = scmp.eq.s32.totalorder %s16, 0
      %p197 = por %p195, %p196
      %p198 = scmp.ne.s32.totalorder %s187, %s190
      %p199 = scmp.eq.s32.totalorder %s21, 3
      %p200 = por %p198, %p199
      %p201 = scmp.ne.s32.totalorder %s190, %s191
      %p202 = scmp.eq.s32.totalorder %s21, 0
      %p203 = por %p201, %p202
      %p204 = scmp.ne.s32.totalorder %s190, %s191
      %p205 = scmp.eq.s32.totalorder %s22, 3
      %p206 = por %p204, %p205
      %p208 = scmp.ne.s32.totalorder %s191, %s207
      %p209 = scmp.eq.s32.totalorder %s22, 0
      %p210 = por %p208, %p209
      %p211 = scmp.le.s32.totalorder 1, %s16
      %p212 = scmp.lt.s32.totalorder %s16, 5
      %p213 = pnand %p211, %p212
      %p214 = pneg %p213
      // Predicated region
      $region9: #{tpu_custom_call.1} parent=5 // pred_check
        _
      $region10: #{tpu_custom_call.1} parent=5 // pred_check_branch
        %216 = sbr.rel (%p213) target = $region12
      $region11: #{tpu_custom_call.1} parent=5 // pred_region
        %s217 = ssub.s32 %s16, 1
        // Predicated region
        $region13: #{tpu_custom_call.1} parent=11 // pred_check
          %p218 = pneg %p49
        $region14: #{tpu_custom_call.1} parent=11 // pred_check_branch
          %220 = sbr.rel (%p218) target = $region16
        $region15: #{tpu_custom_call.1} parent=11 // pred_region
          _
        $region16: #{tpu_custom_call.1} parent=11 // pred_fallthru
          _
        // Predicated region
        $region17: #{tpu_custom_call.1} parent=11 // pred_check
          %p221 = pneg %p70
        $region18: #{tpu_custom_call.1} parent=11 // pred_check_branch
          %223 = sbr.rel (%p221) target = $region20
        $region19: #{tpu_custom_call.1} parent=11 // pred_region
          _
        $region20: #{tpu_custom_call.1} parent=11 // pred_fallthru
          _
        // Predicated region
        $region21: #{tpu_custom_call.1} parent=11 // pred_check
          %p224 = pneg %p91
        $region22: #{tpu_custom_call.1} parent=11 // pred_check_branch
          %226 = sbr.rel (%p224) target = $region24
        $region23: #{tpu_custom_call.1} parent=11 // pred_region
          _
        $region24: #{tpu_custom_call.1} parent=11 // pred_fallthru
          _
      $region12: #{tpu_custom_call.1} parent=5 // pred_fallthru
        _
      %p227 = scmp.lt.s32.totalorder %s16, 4
      // Predicated region
      $region25: #{tpu_custom_call.1} parent=5 // pred_check
        %p228 = pneg %p227
      $region26: #{tpu_custom_call.1} parent=5 // pred_check_branch
        %230 = sbr.rel (%p228) target = $region28
      $region27: #{tpu_custom_call.1} parent=5 // pred_region
        // Predicated region
        $region29: #{tpu_custom_call.1} parent=27 // pred_check
          %p231 = pneg %p113
        $region30: #{tpu_custom_call.1} parent=27 // pred_check_branch
          %233 = sbr.rel (%p231) target = $region32
        $region31: #{tpu_custom_call.1} parent=27 // pred_region
          %s234 = smul.u32 4, %s24
          %p235 = scmp.lt.s32.totalorder %s23, 1
          %s236 = scalar_select %p235, %s23, 1
          %p237 = scmp.lt.s32.totalorder %s234, 7
          %s238 = scalar_select %p237, %s234, 7
          %s239 = smul.addr %s236, 8
          %s240 = sadd.s32 %s238, %s239
          %s241 = smul.addr %s240, 8
          %s242 = scalar_lea.vmem %s3, %s241
          %s243 = smul.u32 4, %s24
        $region32: #{tpu_custom_call.1} parent=27 // pred_fallthru
          _
      $region28: #{tpu_custom_call.1} parent=5 // pred_fallthru
        _
      %p244 = scmp.le.s32.totalorder 1, %s16
      %p245 = scmp.lt.s32.totalorder %s16, 5
      %p246 = pnand %p244, %p245
      %p247 = pneg %p246
      // Predicated region
      $region33: #{tpu_custom_call.1} parent=5 // pred_check
        _
      $region34: #{tpu_custom_call.1} parent=5 // pred_check_branch
        %249 = sbr.rel (%p246) target = $region36
      $region35: #{tpu_custom_call.1} parent=5 // pred_region
        %s250 = ssub.s32 %s16, 1
        %p251 = pneg %p49
        %p252 = pneg %p46
        %p253 = pneg %p70
        %p254 = pneg %p67
        %p255 = pneg %p91
        %p256 = pneg %p88
        %s257 = smul.u32 4, %s26
        %p258 = scmp.lt.s32.totalorder %s25, 1
        %s259 = scalar_select %p258, %s25, 1
        %p260 = scmp.lt.s32.totalorder %s257, 7
        %s261 = scalar_select %p260, %s257, 7
        %s262 = smul.addr %s259, 8
        %s263 = sadd.s32 %s261, %s262
        %s264 = smul.addr %s263, 8
        %s265 = scalar_lea.vmem %s3, %s264
        %p266 = pneg %p119
        %p267 = pneg %p116
        %p268 = pneg %p147
        %p269 = pneg %p144
        %s270 = sand.u32 %s134, 1
        %s271 = scalar_lea.sflag [#allocation3], %s270
        %s272 = sand.u32 %s134, 1
        %s273 = smul.addr %s272, 16
        %s274 = scalar_lea.vmem [#allocation2], %s273
        %p275 = pneg %p175
        %p276 = pneg %p172
        %p277 = scmp.lt.s32.totalorder %s25, 1
        %s278 = scalar_select %p277, %s25, 1
        %p279 = scmp.lt.s32.totalorder %s26, 1
        %s280 = scalar_select %p279, %s26, 1
        %s281 = smul.addr %s278, 2
        %s282 = sadd.s32 %s280, %s281
        %s283 = smul.addr %s282, 4
        %s284 = scalar_lea.vmem %s5, %s283
        %p285 = pneg %p203
        %p286 = pneg %p200
        %p287 = scmp.lt.s32.totalorder %s25, 1
        %s288 = scalar_select %p287, %s25, 1
        %p289 = scmp.lt.s32.totalorder %s26, 1
        %s290 = scalar_select %p289, %s26, 1
        %s291 = smul.addr %s288, 2
        %s292 = sadd.s32 %s290, %s291
        %s293 = smul.addr %s292, 4
        %s294 = scalar_lea.vmem %s6, %s293
        %s295 = smul.u32 4, %s26
        %p296 = scmp.lt.s32.totalorder %s25, 1
        %s297 = scalar_select %p296, %s25, 1
        %p298 = scmp.lt.s32.totalorder %s295, 7
        %s299 = scalar_select %p298, %s295, 7
        %s300 = smul.addr %s297, 8
        %s301 = sadd.s32 %s299, %s300
        %s302 = smul.addr %s301, 8
        %s303 = scalar_lea.vmem %s3, %s302
        %s304 = smul.u32 4, %s26
        %s305 = smul.u32 4, %s26
        %p306 = scmp.lt.s32.totalorder %s25, 1
        %s307 = scalar_select %p306, %s25, 1
        %p308 = scmp.lt.s32.totalorder %s26, 1
        %s309 = scalar_select %p308, %s26, 1
        %s310 = smul.addr %s307, 2
        %s311 = sadd.s32 %s309, %s310
        %s312 = smul.addr %s311, 4
        %s313 = scalar_lea.vmem %s5, %s312
        %p314 = scmp.lt.s32.totalorder %s25, 1
        %s315 = scalar_select %p314, %s25, 1
        %p316 = scmp.lt.s32.totalorder %s26, 1
        %s317 = scalar_select %p316, %s26, 1
        %s318 = smul.addr %s315, 2
        %s319 = sadd.s32 %s317, %s318
        %s320 = smul.addr %s319, 4
        %s321 = scalar_lea.vmem %s6, %s320
        %v322 = vld [vmem:[%s303] sm:$0xff]
        %v323 = vld [vmem:[%s303 + $0x8] sm:$0xff]
        %v324 = vld [vmem:[%s303 + $0x10] sm:$0xff]
        %v325 = vld [vmem:[%s303 + $0x18] sm:$0xff]
        %v326 = vld [vmem:[%s0] sm:$0xf]
        %v327 = vld [vmem:[%s1] sm:$0xff]
        %v328 = vld [vmem:[%s1 + $0x8] sm:$0xff]
        %v329 = vld [vmem:[%s1 + $0x10] sm:$0xff]
        %v330 = vld [vmem:[%s1 + $0x18] sm:$0xff]
        %v331 = vld [vmem:[%s1 + $0x20] sm:$0xff]
        %v332 = vld [vmem:[%s1 + $0x28] sm:$0xff]
        %v333 = vld [vmem:[%s1 + $0x30] sm:$0xff]
        %v334 = vld [vmem:[%s1 + $0x38] sm:$0xff]
        %v335 = vld [vmem:[%s1 + $0x40] sm:$0xff]
        %v336 = vld [vmem:[%s1 + $0x48] sm:$0xff]
        %v337 = vld [vmem:[%s1 + $0x50] sm:$0xff]
        %v338 = vld [vmem:[%s1 + $0x58] sm:$0xff]
        %v339 = vld [vmem:[%s1 + $0x60] sm:$0xff]
        %v340 = vld [vmem:[%s1 + $0x68] sm:$0xff]
        %v341 = vld [vmem:[%s1 + $0x70] sm:$0xff]
        %v342 = vld [vmem:[%s1 + $0x78] sm:$0xff]
        %v343 = vld [vmem:[%s1 + $0x80] sm:$0xff]
        %v344 = vld [vmem:[%s1 + $0x88] sm:$0xff]
        %v345 = vld [vmem:[%s1 + $0x90] sm:$0xff]
        %v346 = vld [vmem:[%s1 + $0x98] sm:$0xff]
        %v347 = vld [vmem:[%s1 + $0xa0] sm:$0xff]
        %v348 = vld [vmem:[%s1 + $0xa8] sm:$0xff]
        %v349 = vld [vmem:[%s1 + $0xb0] sm:$0xff]
        %v350 = vld [vmem:[%s1 + $0xb8] sm:$0xff]
        %v351 = vld [vmem:[%s1 + $0xc0] sm:$0xff]
        %v352 = vld [vmem:[%s1 + $0xc8] sm:$0xff]
        %v353 = vld [vmem:[%s1 + $0xd0] sm:$0xff]
        %v354 = vld [vmem:[%s1 + $0xd8] sm:$0xff]
        %v355 = vld [vmem:[%s1 + $0xe0] sm:$0xff]
        %v356 = vld [vmem:[%s1 + $0xe8] sm:$0xff]
        %v357 = vld [vmem:[%s1 + $0xf0] sm:$0xff]
        %v358 = vld [vmem:[%s1 + $0xf8] sm:$0xff]
        %v359 = vld [vmem:[%s1 + $0x100] sm:$0xff]
        %v360 = vld [vmem:[%s1 + $0x108] sm:$0xff]
        %v361 = vld [vmem:[%s1 + $0x110] sm:$0xff]
        %v362 = vld [vmem:[%s1 + $0x118] sm:$0xff]
        %v363 = vld [vmem:[%s1 + $0x120] sm:$0xff]
        %v364 = vld [vmem:[%s1 + $0x128] sm:$0xff]
        %v365 = vld [vmem:[%s1 + $0x130] sm:$0xff]
        %v366 = vld [vmem:[%s1 + $0x138] sm:$0xff]
        %v367 = vld [vmem:[%s1 + $0x140] sm:$0xff]
        %v368 = vld [vmem:[%s1 + $0x148] sm:$0xff]
        %v369 = vld [vmem:[%s1 + $0x150] sm:$0xff]
        %v370 = vld [vmem:[%s1 + $0x158] sm:$0xff]
        %v371 = vld [vmem:[%s1 + $0x160] sm:$0xff]
        %v372 = vld [vmem:[%s1 + $0x168] sm:$0xff]
        %v373 = vld [vmem:[%s1 + $0x170] sm:$0xff]
        %v374 = vld [vmem:[%s1 + $0x178] sm:$0xff]
        %v375 = vld [vmem:[%s1 + $0x180] sm:$0xff]
        %v376 = vld [vmem:[%s1 + $0x188] sm:$0xff]
        %v377 = vld [vmem:[%s1 + $0x190] sm:$0xff]
        %v378 = vld [vmem:[%s1 + $0x198] sm:$0xff]
        %v379 = vld [vmem:[%s1 + $0x1a0] sm:$0xff]
        %v380 = vld [vmem:[%s1 + $0x1a8] sm:$0xff]
        %v381 = vld [vmem:[%s1 + $0x1b0] sm:$0xff]
        %v382 = vld [vmem:[%s1 + $0x1b8] sm:$0xff]
        %v383 = vld [vmem:[%s1 + $0x1c0] sm:$0xff]
        %v384 = vld [vmem:[%s1 + $0x1c8] sm:$0xff]
        %v385 = vld [vmem:[%s1 + $0x1d0] sm:$0xff]
        %v386 = vld [vmem:[%s1 + $0x1d8] sm:$0xff]
        %v387 = vld [vmem:[%s1 + $0x1e0] sm:$0xff]
        %v388 = vld [vmem:[%s1 + $0x1e8] sm:$0xff]
        %v389 = vld [vmem:[%s1 + $0x1f0] sm:$0xff]
        %v390 = vld [vmem:[%s1 + $0x1f8] sm:$0xff]
        %v391 = vld [vmem:[%s2] sm:$0xff]
        %v392 = vld [vmem:[%s2 + $0x8] sm:$0xff]
        %v393 = vld [vmem:[%s2 + $0x10] sm:$0xff]
        %v394 = vld [vmem:[%s2 + $0x18] sm:$0xff]
        %v395 = vld [vmem:[%s2 + $0x20] sm:$0xff]
        %v396 = vld [vmem:[%s2 + $0x28] sm:$0xff]
        %v397 = vld [vmem:[%s2 + $0x30] sm:$0xff]
        %v398 = vld [vmem:[%s2 + $0x38] sm:$0xff]
        %v399 = vld [vmem:[%s2 + $0x40] sm:$0xff]
        %v400 = vld [vmem:[%s2 + $0x48] sm:$0xff]
        %v401 = vld [vmem:[%s2 + $0x50] sm:$0xff]
        %v402 = vld [vmem:[%s2 + $0x58] sm:$0xff]
        %v403 = vld [vmem:[%s2 + $0x60] sm:$0xff]
        %v404 = vld [vmem:[%s2 + $0x68] sm:$0xff]
        %v405 = vld [vmem:[%s2 + $0x70] sm:$0xff]
        %v406 = vld [vmem:[%s2 + $0x78] sm:$0xff]
        %vm407 = vcmask 64512
        %v409 = vsel %vm407, %v326, 0
        %v411 = vand.u32 %v323, 4294901760
        %412 = vmatprep.subr.mxu0 %v411
        %v413 = vand.u32 %v322, 4294901760
        %414 = vmatpush1.msra.mxu0 %v413
        %415 = vmatprep.subr.mxu0 0.0
        %416 = vmatpush1.msra.mxu0 0.0
        %417 = vmatprep.subr.mxu0 0.0
        %418 = vmatpush1.msra.mxu0 0.0
        %419 = vmatprep.subr.mxu0 0.0
        %420 = vmatpush1.msra.mxu0 0.0
        %421 = vmatprep.subr.mxu0 0.0
        %422 = vmatpush1.msra.mxu0 0.0
        %423 = vmatprep.subr.mxu0 0.0
        %424 = vmatpush1.msra.mxu0 0.0
        %425 = vmatprep.subr.mxu0 0.0
        %426 = vmatpush1.msra.mxu0 0.0
        %427 = vmatprep.subr.mxu0 0.0
        %428 = vmatpush1.msra.mxu0 0.0
        %429 = vmatprep.subr.mxu0 0.0
        %430 = vmatpush1.msra.mxu0 0.0
        %431 = vmatprep.subr.mxu0 0.0
        %432 = vmatpush1.msra.mxu0 0.0
        %433 = vmatprep.subr.mxu0 0.0
        %434 = vmatpush1.msra.mxu0 0.0
        %435 = vmatprep.subr.mxu0 0.0
        %436 = vmatpush1.msra.mxu0 0.0
        %437 = vmatprep.subr.mxu0 0.0
        %438 = vmatpush1.msra.mxu0 0.0
        %439 = vmatprep.subr.mxu0 0.0
        %440 = vmatpush1.msra.mxu0 0.0
        %441 = vmatprep.subr.mxu0 0.0
        %442 = vmatpush1.msra.mxu0 0.0
        %443 = vmatprep.subr.mxu0 0.0
        %444 = vmatpush1.msra.mxu0 0.0
        %445 = vmatprep.subr.mxu0 0.0
        %446 = vmatpush1.msra.mxu0 0.0
        %447 = vmatprep.subr.mxu0 0.0
        %448 = vmatpush1.msra.mxu0 0.0
        %449 = vmatprep.subr.mxu0 0.0
        %450 = vmatpush1.msra.mxu0 0.0
        %451 = vmatprep.subr.mxu0 0.0
        %452 = vmatpush1.msra.mxu0 0.0
        %453 = vmatprep.subr.mxu0 0.0
        %454 = vmatpush1.msra.mxu0 0.0
        %455 = vmatprep.subr.mxu0 0.0
        %456 = vmatpush1.msra.mxu0 0.0
        %457 = vmatprep.subr.mxu0 0.0
        %458 = vmatpush1.msra.mxu0 0.0
        %459 = vmatprep.subr.mxu0 0.0
        %460 = vmatpush1.msra.mxu0 0.0
        %461 = vmatprep.subr.mxu0 0.0
        %462 = vmatpush1.msra.mxu0 0.0
        %463 = vmatprep.subr.mxu0 0.0
        %464 = vmatpush1.msra.mxu0 0.0
        %465 = vmatprep.subr.mxu0 0.0
        %466 = vmatpush1.msra.mxu0 0.0
        %467 = vmatprep.subr.mxu0 0.0
        %468 = vmatpush1.msra.mxu0 0.0
        %469 = vmatprep.subr.mxu0 0.0
        %470 = vmatpush1.msra.mxu0 0.0
        %471 = vmatprep.subr.mxu0 0.0
        %472 = vmatpush1.msra.mxu0 0.0
        %473 = vmatprep.subr.mxu0 0.0
        %474 = vmatpush1.msra.mxu0 0.0
        %475 = vmatprep.subr.mxu0 0.0
        %476 = vmatpush1.msra.mxu0 0.0
        %477 = vmatprep.mubr.f32.mxu0 0.0
        %v478 = vand.u32 %v409, 4294901760
        %v479 = vsub.f32 %v409, %v478
        %v480 = vand.u32 %v479, 4294901760
        %v481 = vsub.f32 %v479, %v480
        %v482 = vand.u32 %v481, 4294901760
        %483 = vmatmul.mubr.f32.gmra.mrb[0].mxu0 %v482
        %v484 = vpop.f32.mrb[0].mxu0
        %v485 = vadd.f32 0.0, %v484
        %v486 = vpop.f32.mrb[0].mxu0
        %v487 = vadd.f32 0.0, %v486
        %488 = vdwg.mxu0
        %v489 = vand.u32 %v323, 4294901760
        %v490 = vsub.f32 %v323, %v489
        %v491 = vand.u32 %v490, 4294901760
        %v492 = vsub.f32 %v490, %v491
        %v493 = vand.u32 %v492, 4294901760
        %494 = vmatprep.subr.mxu0 %v493
        %v495 = vand.u32 %v322, 4294901760
        %v496 = vsub.f32 %v322, %v495
        %v497 = vand.u32 %v496, 4294901760
        %v498 = vsub.f32 %v496, %v497
        %v499 = vand.u32 %v498, 4294901760
        %500 = vmatpush1.msra.mxu0 %v499
        %501 = vmatprep.subr.mxu0 0.0
        %502 = vmatpush1.msra.mxu0 0.0
        %503 = vmatprep.subr.mxu0 0.0
        %504 = vmatpush1.msra.mxu0 0.0
        %505 = vmatprep.subr.mxu0 0.0
        %506 = vmatpush1.msra.mxu0 0.0
        %507 = vmatprep.subr.mxu0 0.0
        %508 = vmatpush1.msra.mxu0 0.0
        %509 = vmatprep.subr.mxu0 0.0
        %510 = vmatpush1.msra.mxu0 0.0
        %511 = vmatprep.subr.mxu0 0.0
        %512 = vmatpush1.msra.mxu0 0.0
        %513 = vmatprep.subr.mxu0 0.0
        %514 = vmatpush1.msra.mxu0 0.0
        %515 = vmatprep.subr.mxu0 0.0
        %516 = vmatpush1.msra.mxu0 0.0
        %517 = vmatprep.subr.mxu0 0.0
        %518 = vmatpush1.msra.mxu0 0.0
        %519 = vmatprep.subr.mxu0 0.0
        %520 = vmatpush1.msra.mxu0 0.0
        %521 = vmatprep.subr.mxu0 0.0
        %522 = vmatpush1.msra.mxu0 0.0
        %523 = vmatprep.subr.mxu0 0.0
        %524 = vmatpush1.msra.mxu0 0.0
        %525 = vmatprep.subr.mxu0 0.0
        %526 = vmatpush1.msra.mxu0 0.0
        %527 = vmatprep.subr.mxu0 0.0
        %528 = vmatpush1.msra.mxu0 0.0
        %529 = vmatprep.subr.mxu0 0.0
        %530 = vmatpush1.msra.mxu0 0.0
        %531 = vmatprep.subr.mxu0 0.0
        %532 = vmatpush1.msra.mxu0 0.0
        %533 = vmatprep.subr.mxu0 0.0
        %534 = vmatpush1.msra.mxu0 0.0
        %535 = vmatprep.subr.mxu0 0.0
        %536 = vmatpush1.msra.mxu0 0.0
        %537 = vmatprep.subr.mxu0 0.0
        %538 = vmatpush1.msra.mxu0 0.0
        %539 = vmatprep.subr.mxu0 0.0
        %540 = vmatpush1.msra.mxu0 0.0
        %541 = vmatprep.subr.mxu0 0.0
        %542 = vmatpush1.msra.mxu0 0.0
        %543 = vmatprep.subr.mxu0 0.0
        %544 = vmatpush1.msra.mxu0 0.0
        %545 = vmatprep.subr.mxu0 0.0
        %546 = vmatpush1.msra.mxu0 0.0
        %547 = vmatprep.subr.mxu0 0.0
        %548 = vmatpush1.msra.mxu0 0.0
        %549 = vmatprep.subr.mxu0 0.0
        %550 = vmatpush1.msra.mxu0 0.0
        %551 = vmatprep.subr.mxu0 0.0
        %552 = vmatpush1.msra.mxu0 0.0
        %553 = vmatprep.subr.mxu0 0.0
        %554 = vmatpush1.msra.mxu0 0.0
        %555 = vmatprep.subr.mxu0 0.0
        %556 = vmatpush1.msra.mxu0 0.0
        %557 = vmatprep.subr.mxu0 0.0
        %558 = vmatpush1.msra.mxu0 0.0
        %559 = vmatprep.subr.mxu0 0.0
        %560 = vmatpush1.msra.mxu0 0.0
        %561 = vmatprep.subr.mxu0 0.0
        %562 = vmatpush1.msra.mxu0 0.0
        %563 = vmatprep.mubr.f32.mxu0 0.0
        %v564 = vand.u32 %v409, 4294901760
        %565 = vmatmul.mubr.f32.gmra.mrb[0].mxu0 %v564
        %v566 = vpop.f32.mrb[0].mxu0
        %v567 = vadd.f32 %v485, %v566
        %v568 = vpop.f32.mrb[0].mxu0
        %v569 = vadd.f32 %v487, %v568
        %570 = vdwg.mxu0
        %v571 = vand.u32 %v323, 4294901760
        %v572 = vsub.f32 %v323, %v571
        %573 = vmatprep.subr.mxu0 %v572
        %v574 = vand.u32 %v322, 4294901760
        %v575 = vsub.f32 %v322, %v574
        %576 = vmatpush1.msra.mxu0 %v575
        %577 = vmatprep.subr.mxu0 0.0
        %578 = vmatpush1.msra.mxu0 0.0
        %579 = vmatprep.subr.mxu0 0.0
        %580 = vmatpush1.msra.mxu0 0.0
        %581 = vmatprep.subr.mxu0 0.0
        %582 = vmatpush1.msra.mxu0 0.0
        %583 = vmatprep.subr.mxu0 0.0
        %584 = vmatpush1.msra.mxu0 0.0
        %585 = vmatprep.subr.mxu0 0.0
        %586 = vmatpush1.msra.mxu0 0.0
        %587 = vmatprep.subr.mxu0 0.0
        %588 = vmatpush1.msra.mxu0 0.0
        %589 = vmatprep.subr.mxu0 0.0
        %590 = vmatpush1.msra.mxu0 0.0
        %591 = vmatprep.subr.mxu0 0.0
        %592 = vmatpush1.msra.mxu0 0.0
        %593 = vmatprep.subr.mxu0 0.0
        %594 = vmatpush1.msra.mxu0 0.0
        %595 = vmatprep.subr.mxu0 0.0
        %596 = vmatpush1.msra.mxu0 0.0
        %597 = vmatprep.subr.mxu0 0.0
        %598 = vmatpush1.msra.mxu0 0.0
        %599 = vmatprep.subr.mxu0 0.0
        %600 = vmatpush1.msra.mxu0 0.0
        %601 = vmatprep.subr.mxu0 0.0
        %602 = vmatpush1.msra.mxu0 0.0
        %603 = vmatprep.subr.mxu0 0.0
        %604 = vmatpush1.msra.mxu0 0.0
        %605 = vmatprep.subr.mxu0 0.0
        %606 = vmatpush1.msra.mxu0 0.0
        %607 = vmatprep.subr.mxu0 0.0
        %608 = vmatpush1.msra.mxu0 0.0
        %609 = vmatprep.subr.mxu0 0.0
        %610 = vmatpush1.msra.mxu0 0.0
        %611 = vmatprep.subr.mxu0 0.0
        %612 = vmatpush1.msra.mxu0 0.0
        %613 = vmatprep.subr.mxu0 0.0
        %614 = vmatpush1.msra.mxu0 0.0
        %615 = vmatprep.subr.mxu0 0.0
        %616 = vmatpush1.msra.mxu0 0.0
        %617 = vmatprep.subr.mxu0 0.0
        %618 = vmatpush1.msra.mxu0 0.0
        %619 = vmatprep.subr.mxu0 0.0
        %620 = vmatpush1.msra.mxu0 0.0
        %621 = vmatprep.subr.mxu0 0.0
        %622 = vmatpush1.msra.mxu0 0.0
        %623 = vmatprep.subr.mxu0 0.0
        %624 = vmatpush1.msra.mxu0 0.0
        %625 = vmatprep.subr.mxu0 0.0
        %626 = vmatpush1.msra.mxu0 0.0
        %627 = vmatprep.subr.mxu0 0.0
        %628 = vmatpush1.msra.mxu0 0.0
        %629 = vmatprep.subr.mxu0 0.0
        %630 = vmatpush1.msra.mxu0 0.0
        %631 = vmatprep.subr.mxu0 0.0
        %632 = vmatpush1.msra.mxu0 0.0
        %633 = vmatprep.subr.mxu0 0.0
        %634 = vmatpush1.msra.mxu0 0.0
        %635 = vmatprep.subr.mxu0 0.0
        %636 = vmatpush1.msra.mxu0 0.0
        %637 = vmatprep.subr.mxu0 0.0
        %638 = vmatpush1.msra.mxu0 0.0
        %639 = vmatprep.mubr.f32.mxu0 0.0
        %v640 = vand.u32 %v409, 4294901760
        %v641 = vsub.f32 %v409, %v640
        %642 = vmatmul.mubr.f32.gmra.mrb[0].mxu0 %v641
        %v643 = vpop.f32.mrb[0].mxu0
        %v644 = vadd.f32 %v567, %v643
        %v645 = vpop.f32.mrb[0].mxu0
        %v646 = vadd.f32 %v569, %v645
        %647 = vdwg.mxu0
        %v648 = vand.u32 %v323, 4294901760
        %649 = vmatprep.subr.mxu0 %v648
        %v650 = vand.u32 %v322, 4294901760
        %651 = vmatpush1.msra.mxu0 %v650
        %652 = vmatprep.subr.mxu0 0.0
        %653 = vmatpush1.msra.mxu0 0.0
        %654 = vmatprep.subr.mxu0 0.0
        %655 = vmatpush1.msra.mxu0 0.0
        %656 = vmatprep.subr.mxu0 0.0
        %657 = vmatpush1.msra.mxu0 0.0
        %658 = vmatprep.subr.mxu0 0.0
        %659 = vmatpush1.msra.mxu0 0.0
        %660 = vmatprep.subr.mxu0 0.0
        %661 = vmatpush1.msra.mxu0 0.0
        %662 = vmatprep.subr.mxu0 0.0
        %663 = vmatpush1.msra.mxu0 0.0
        %664 = vmatprep.subr.mxu0 0.0
        %665 = vmatpush1.msra.mxu0 0.0
        %666 = vmatprep.subr.mxu0 0.0
        %667 = vmatpush1.msra.mxu0 0.0
        %668 = vmatprep.subr.mxu0 0.0
        %669 = vmatpush1.msra.mxu0 0.0
        %670 = vmatprep.subr.mxu0 0.0
        %671 = vmatpush1.msra.mxu0 0.0
        %672 = vmatprep.subr.mxu0 0.0
        %673 = vmatpush1.msra.mxu0 0.0
        %674 = vmatprep.subr.mxu0 0.0
        %675 = vmatpush1.msra.mxu0 0.0
        %676 = vmatprep.subr.mxu0 0.0
        %677 = vmatpush1.msra.mxu0 0.0
        %678 = vmatprep.subr.mxu0 0.0
        %679 = vmatpush1.msra.mxu0 0.0
        %680 = vmatprep.subr.mxu0 0.0
        %681 = vmatpush1.msra.mxu0 0.0
        %682 = vmatprep.subr.mxu0 0.0
        %683 = vmatpush1.msra.mxu0 0.0
        %684 = vmatprep.subr.mxu0 0.0
        %685 = vmatpush1.msra.mxu0 0.0
        %686 = vmatprep.subr.mxu0 0.0
        %687 = vmatpush1.msra.mxu0 0.0
        %688 = vmatprep.subr.mxu0 0.0
        %689 = vmatpush1.msra.mxu0 0.0
        %690 = vmatprep.subr.mxu0 0.0
        %691 = vmatpush1.msra.mxu0 0.0
        %692 = vmatprep.subr.mxu0 0.0
        %693 = vmatpush1.msra.mxu0 0.0
        %694 = vmatprep.subr.mxu0 0.0
        %695 = vmatpush1.msra.mxu0 0.0
        %696 = vmatprep.subr.mxu0 0.0
        %697 = vmatpush1.msra.mxu0 0.0
        %698 = vmatprep.subr.mxu0 0.0
        %699 = vmatpush1.msra.mxu0 0.0
        %700 = vmatprep.subr.mxu0 0.0
        %701 = vmatpush1.msra.mxu0 0.0
        %702 = vmatprep.subr.mxu0 0.0
        %703 = vmatpush1.msra.mxu0 0.0
        %704 = vmatprep.subr.mxu0 0.0
        %705 = vmatpush1.msra.mxu0 0.0
        %706 = vmatprep.subr.mxu0 0.0
        %707 = vmatpush1.msra.mxu0 0.0
        %708 = vmatprep.subr.mxu0 0.0
        %709 = vmatpush1.msra.mxu0 0.0
        %710 = vmatprep.subr.mxu0 0.0
        %711 = vmatpush1.msra.mxu0 0.0
        %712 = vmatprep.subr.mxu0 0.0
        %713 = vmatpush1.msra.mxu0 0.0
        %714 = vmatprep.mubr.f32.mxu0 0.0
        %v715 = vand.u32 %v409, 4294901760
        %v716 = vsub.f32 %v409, %v715
        %v717 = vand.u32 %v716, 4294901760
        %718 = vmatmul.mubr.f32.gmra.mrb[0].mxu0 %v717
        %v719 = vpop.f32.mrb[0].mxu0
        %v720 = vadd.f32 %v644, %v719
        %v721 = vpop.f32.mrb[0].mxu0
        %v722 = vadd.f32 %v646, %v721
        %723 = vdwg.mxu0
        %v724 = vand.u32 %v323, 4294901760
        %v725 = vsub.f32 %v323, %v724
        %v726 = vand.u32 %v725, 4294901760
        %727 = vmatprep.subr.mxu0 %v726
        %v728 = vand.u32 %v322, 4294901760
        %v729 = vsub.f32 %v322, %v728
        %v730 = vand.u32 %v729, 4294901760
        %731 = vmatpush1.msra.mxu0 %v730
        %732 = vmatprep.subr.mxu0 0.0
        %733 = vmatpush1.msra.mxu0 0.0
        %734 = vmatprep.subr.mxu0 0.0
        %735 = vmatpush1.msra.mxu0 0.0
        %736 = vmatprep.subr.mxu0 0.0
        %737 = vmatpush1.msra.mxu0 0.0
        %738 = vmatprep.subr.mxu0 0.0
        %739 = vmatpush1.msra.mxu0 0.0
        %740 = vmatprep.subr.mxu0 0.0
        %741 = vmatpush1.msra.mxu0 0.0
        %742 = vmatprep.subr.mxu0 0.0
        %743 = vmatpush1.msra.mxu0 0.0
        %744 = vmatprep.subr.mxu0 0.0
        %745 = vmatpush1.msra.mxu0 0.0
        %746 = vmatprep.subr.mxu0 0.0
        %747 = vmatpush1.msra.mxu0 0.0
        %748 = vmatprep.subr.mxu0 0.0
        %749 = vmatpush1.msra.mxu0 0.0
        %750 = vmatprep.subr.mxu0 0.0
        %751 = vmatpush1.msra.mxu0 0.0
        %752 = vmatprep.subr.mxu0 0.0
        %753 = vmatpush1.msra.mxu0 0.0
        %754 = vmatprep.subr.mxu0 0.0
        %755 = vmatpush1.msra.mxu0 0.0
        %756 = vmatprep.subr.mxu0 0.0
        %757 = vmatpush1.msra.mxu0 0.0
        %758 = vmatprep.subr.mxu0 0.0
        %759 = vmatpush1.msra.mxu0 0.0
        %760 = vmatprep.subr.mxu0 0.0
        %761 = vmatpush1.msra.mxu0 0.0
        %762 = vmatprep.subr.mxu0 0.0
        %763 = vmatpush1.msra.mxu0 0.0
        %764 = vmatprep.subr.mxu0 0.0
        %765 = vmatpush1.msra.mxu0 0.0
        %766 = vmatprep.subr.mxu0 0.0
        %767 = vmatpush1.msra.mxu0 0.0
        %768 = vmatprep.subr.mxu0 0.0
        %769 = vmatpush1.msra.mxu0 0.0
        %770 = vmatprep.subr.mxu0 0.0
        %771 = vmatpush1.msra.mxu0 0.0
        %772 = vmatprep.subr.mxu0 0.0
        %773 = vmatpush1.msra.mxu0 0.0
        %774 = vmatprep.subr.mxu0 0.0
        %775 = vmatpush1.msra.mxu0 0.0
        %776 = vmatprep.subr.mxu0 0.0
        %777 = vmatpush1.msra.mxu0 0.0
        %778 = vmatprep.subr.mxu0 0.0
        %779 = vmatpush1.msra.mxu0 0.0
        %780 = vmatprep.subr.mxu0 0.0
        %781 = vmatpush1.msra.mxu0 0.0
        %782 = vmatprep.subr.mxu0 0.0
        %783 = vmatpush1.msra.mxu0 0.0
        %784 = vmatprep.subr.mxu0 0.0
        %785 = vmatpush1.msra.mxu0 0.0
        %786 = vmatprep.subr.mxu0 0.0
        %787 = vmatpush1.msra.mxu0 0.0
        %788 = vmatprep.subr.mxu0 0.0
        %789 = vmatpush1.msra.mxu0 0.0
        %790 = vmatprep.subr.mxu0 0.0
        %791 = vmatpush1.msra.mxu0 0.0
        %792 = vmatprep.subr.mxu0 0.0
        %793 = vmatpush1.msra.mxu0 0.0
        %794 = vmatprep.mubr.f32.mxu0 0.0
        %v795 = vand.u32 %v409, 4294901760
        %796 = vmatmul.mubr.f32.gmra.mrb[0].mxu0 %v795
        %v797 = vpop.f32.mrb[0].mxu0
        %v798 = vadd.f32 %v720, %v797
        %v799 = vpop.f32.mrb[0].mxu0
        %v800 = vadd.f32 %v722, %v799
        %801 = vdwg.mxu0
        %v802 = vand.u32 %v323, 4294901760
        %803 = vmatprep.subr.mxu0 %v802
        %v804 = vand.u32 %v322, 4294901760
        %805 = vmatpush1.msra.mxu0 %v804
        %806 = vmatprep.subr.mxu0 0.0
        %807 = vmatpush1.msra.mxu0 0.0
        %808 = vmatprep.subr.mxu0 0.0
        %809 = vmatpush1.msra.mxu0 0.0
        %810 = vmatprep.subr.mxu0 0.0
        %811 = vmatpush1.msra.mxu0 0.0
        %812 = vmatprep.subr.mxu0 0.0
        %813 = vmatpush1.msra.mxu0 0.0
        %814 = vmatprep.subr.mxu0 0.0
        %815 = vmatpush1.msra.mxu0 0.0
        %816 = vmatprep.subr.mxu0 0.0
        %817 = vmatpush1.msra.mxu0 0.0
        %818 = vmatprep.subr.mxu0 0.0
        %819 = vmatpush1.msra.mxu0 0.0
        %820 = vmatprep.subr.mxu0 0.0
        %821 = vmatpush1.msra.mxu0 0.0
        %822 = vmatprep.subr.mxu0 0.0
        %823 = vmatpush1.msra.mxu0 0.0
        %824 = vmatprep.subr.mxu0 0.0
        %825 = vmatpush1.msra.mxu0 0.0
        %826 = vmatprep.subr.mxu0 0.0
        %827 = vmatpush1.msra.mxu0 0.0
        %828 = vmatprep.subr.mxu0 0.0
        %829 = vmatpush1.msra.mxu0 0.0
        %830 = vmatprep.subr.mxu0 0.0
        %831 = vmatpush1.msra.mxu0 0.0
        %832 = vmatprep.subr.mxu0 0.0
        %833 = vmatpush1.msra.mxu0 0.0
        %834 = vmatprep.subr.mxu0 0.0
        %835 = vmatpush1.msra.mxu0 0.0
        %836 = vmatprep.subr.mxu0 0.0
        %837 = vmatpush1.msra.mxu0 0.0
        %838 = vmatprep.subr.mxu0 0.0
        %839 = vmatpush1.msra.mxu0 0.0
        %840 = vmatprep.subr.mxu0 0.0
        %841 = vmatpush1.msra.mxu0 0.0
        %842 = vmatprep.subr.mxu0 0.0
        %843 = vmatpush1.msra.mxu0 0.0
        %844 = vmatprep.subr.mxu0 0.0
        %845 = vmatpush1.msra.mxu0 0.0
        %846 = vmatprep.subr.mxu0 0.0
        %847 = vmatpush1.msra.mxu0 0.0
        %848 = vmatprep.subr.mxu0 0.0
        %849 = vmatpush1.msra.mxu0 0.0
        %850 = vmatprep.subr.mxu0 0.0
        %851 = vmatpush1.msra.mxu0 0.0
        %852 = vmatprep.subr.mxu0 0.0
        %853 = vmatpush1.msra.mxu0 0.0
        %854 = vmatprep.subr.mxu0 0.0
        %855 = vmatpush1.msra.mxu0 0.0
        %856 = vmatprep.subr.mxu0 0.0
        %857 = vmatpush1.msra.mxu0 0.0
        %858 = vmatprep.subr.mxu0 0.0
        %859 = vmatpush1.msra.mxu0 0.0
        %860 = vmatprep.subr.mxu0 0.0
        %861 = vmatpush1.msra.mxu0 0.0
        %862 = vmatprep.subr.mxu0 0.0
        %863 = vmatpush1.msra.mxu0 0.0
        %864 = vmatprep.subr.mxu0 0.0
        %865 = vmatpush1.msra.mxu0 0.0
        %866 = vmatprep.subr.mxu0 0.0
        %867 = vmatpush1.msra.mxu0 0.0
        %868 = vmatprep.mubr.f32.mxu0 0.0
        %v869 = vand.u32 %v409, 4294901760
        %870 = vmatmul.mubr.f32.gmra.mrb[0].mxu0 %v869
        %v871 = vpop.f32.mrb[0].mxu0
        %v872 = vadd.f32 %v798, %v871
        %v873 = vpop.f32.mrb[0].mxu0
        %v874 = vadd.f32 %v800, %v873
        %875 = vdwg.mxu0
        %v876 = vand.u32 %v325, 4294901760
        %877 = vmatprep.subr.mxu0 %v876
        %v878 = vand.u32 %v324, 4294901760
        %879 = vmatpush1.msra.mxu0 %v878
        %880 = vmatprep.subr.mxu0 0.0
        %881 = vmatpush1.msra.mxu0 0.0
        %882 = vmatprep.subr.mxu0 0.0
        %883 = vmatpush1.msra.mxu0 0.0
        %884 = vmatprep.subr.mxu0 0.0
        %885 = vmatpush1.msra.mxu0 0.0
        %886 = vmatprep.subr.mxu0 0.0
        %887 = vmatpush1.msra.mxu0 0.0
        %888 = vmatprep.subr.mxu0 0.0
        %889 = vmatpush1.msra.mxu0 0.0
        %890 = vmatprep.subr.mxu0 0.0
        %891 = vmatpush1.msra.mxu0 0.0
        %892 = vmatprep.subr.mxu0 0.0
        %893 = vmatpush1.msra.mxu0 0.0
        %894 = vmatprep.subr.mxu0 0.0
        %895 = vmatpush1.msra.mxu0 0.0
        %896 = vmatprep.subr.mxu0 0.0
        %897 = vmatpush1.msra.mxu0 0.0
        %898 = vmatprep.subr.mxu0 0.0
        %899 = vmatpush1.msra.mxu0 0.0
        %900 = vmatprep.subr.mxu0 0.0
        %901 = vmatpush1.msra.mxu0 0.0
        %902 = vmatprep.subr.mxu0 0.0
        %903 = vmatpush1.msra.mxu0 0.0
        %904 = vmatprep.subr.mxu0 0.0
        %905 = vmatpush1.msra.mxu0 0.0
        %906 = vmatprep.subr.mxu0 0.0
        %907 = vmatpush1.msra.mxu0 0.0
        %908 = vmatprep.subr.mxu0 0.0
        %909 = vmatpush1.msra.mxu0 0.0
        %910 = vmatprep.subr.mxu0 0.0
        %911 = vmatpush1.msra.mxu0 0.0
        %912 = vmatprep.subr.mxu0 0.0
        %913 = vmatpush1.msra.mxu0 0.0
        %914 = vmatprep.subr.mxu0 0.0
        %915 = vmatpush1.msra.mxu0 0.0
        %916 = vmatprep.subr.mxu0 0.0
        %917 = vmatpush1.msra.mxu0 0.0
        %918 = vmatprep.subr.mxu0 0.0
        %919 = vmatpush1.msra.mxu0 0.0
        %920 = vmatprep.subr.mxu0 0.0
        %921 = vmatpush1.msra.mxu0 0.0
        %922 = vmatprep.subr.mxu0 0.0
        %923 = vmatpush1.msra.mxu0 0.0
        %924 = vmatprep.subr.mxu0 0.0
        %925 = vmatpush1.msra.mxu0 0.0
        %926 = vmatprep.subr.mxu0 0.0
        %927 = vmatpush1.msra.mxu0 0.0
        %928 = vmatprep.subr.mxu0 0.0
        %929 = vmatpush1.msra.mxu0 0.0
        %930 = vmatprep.subr.mxu0 0.0
        %931 = vmatpush1.msra.mxu0 0.0
        %932 = vmatprep.subr.mxu0 0.0
        %933 = vmatpush1.msra.mxu0 0.0
        %934 = vmatprep.subr.mxu0 0.0
        %935 = vmatpush1.msra.mxu0 0.0
        %936 = vmatprep.subr.mxu0 0.0
        %937 = vmatpush1.msra.mxu0 0.0
        %938 = vmatprep.subr.mxu0 0.0
        %939 = vmatpush1.msra.mxu0 0.0
        %940 = vmatprep.subr.mxu0 0.0
        %941 = vmatpush1.msra.mxu0 0.0
        %942 = vmatprep.mubr.f32.mxu0 0.0
        %v943 = vand.u32 %v409, 4294901760
        %v944 = vsub.f32 %v409, %v943
        %v945 = vand.u32 %v944, 4294901760
        %v946 = vsub.f32 %v944, %v945
        %v947 = vand.u32 %v946, 4294901760
        %948 = vmatmul.mubr.f32.gmra.mrb[0].mxu0 %v947
        %v949 = vpop.f32.mrb[0].mxu0
        %v950 = vadd.f32 0.0, %v949
        %v951 = vpop.f32.mrb[0].mxu0
        %v952 = vadd.f32 0.0, %v951
        %953 = vdwg.mxu0
        %v954 = vand.u32 %v325, 4294901760
        %v955 = vsub.f32 %v325, %v954
        %v956 = vand.u32 %v955, 4294901760
        %v957 = vsub.f32 %v955, %v956
        %v958 = vand.u32 %v957, 4294901760
        %959 = vmatprep.subr.mxu0 %v958
        %v960 = vand.u32 %v324, 4294901760
        %v961 = vsub.f32 %v324, %v960
        %v962 = vand.u32 %v961, 4294901760
        %v963 = vsub.f32 %v961, %v962
        %v964 = vand.u32 %v963, 4294901760
        %965 = vmatpush1.msra.mxu0 %v964
        %966 = vmatprep.subr.mxu0 0.0
        %967 = vmatpush1.msra.mxu0 0.0
        %968 = vmatprep.subr.mxu0 0.0
        %969 = vmatpush1.msra.mxu0 0.0
        %970 = vmatprep.subr.mxu0 0.0
        %971 = vmatpush1.msra.mxu0 0.0
        %972 = vmatprep.subr.mxu0 0.0
        %973 = vmatpush1.msra.mxu0 0.0
        %974 = vmatprep.subr.mxu0 0.0
        %975 = vmatpush1.msra.mxu0 0.0
        %976 = vmatprep.subr.mxu0 0.0
        %977 = vmatpush1.msra.mxu0 0.0
        %978 = vmatprep.subr.mxu0 0.0
        %979 = vmatpush1.msra.mxu0 0.0
        %980 = vmatprep.subr.mxu0 0.0
        %981 = vmatpush1.msra.mxu0 0.0
        %982 = vmatprep.subr.mxu0 0.0
        %983 = vmatpush1.msra.mxu0 0.0
        %984 = vmatprep.subr.mxu0 0.0
        %985 = vmatpush1.msra.mxu0 0.0
        %986 = vmatprep.subr.mxu0 0.0
        %987 = vmatpush1.msra.mxu0 0.0
        %988 = vmatprep.subr.mxu0 0.0
        %989 = vmatpush1.msra.mxu0 0.0
        %990 = vmatprep.subr.mxu0 0.0
        %991 = vmatpush1.msra.mxu0 0.0
        %992 = vmatprep.subr.mxu0 0.0
        %993 = vmatpush1.msra.mxu0 0.0
        %994 = vmatprep.subr.mxu0 0.0
        %995 = vmatpush1.msra.mxu0 0.0
        %996 = vmatprep.subr.mxu0 0.0
        %997 = vmatpush1.msra.mxu0 0.0
        %998 = vmatprep.subr.mxu0 0.0
        %999 = vmatpush1.msra.mxu0 0.0
        %1000 = vmatprep.subr.mxu0 0.0
        %1001 = vmatpush1.msra.mxu0 0.0
        %1002 = vmatprep.subr.mxu0 0.0
        %1003 = vmatpush1.msra.mxu0 0.0
        %1004 = vmatprep.subr.mxu0 0.0
        %1005 = vmatpush1.msra.mxu0 0.0
        %1006 = vmatprep.subr.mxu0 0.0
        %1007 = vmatpush1.msra.mxu0 0.0
        %1008 = vmatprep.subr.mxu0 0.0
        %1009 = vmatpush1.msra.mxu0 0.0
        %1010 = vmatprep.subr.mxu0 0.0
        %1011 = vmatpush1.msra.mxu0 0.0
        %1012 = vmatprep.subr.mxu0 0.0
        %1013 = vmatpush1.msra.mxu0 0.0
        %1014 = vmatprep.subr.mxu0 0.0
        %1015 = vmatpush1.msra.mxu0 0.0
        %1016 = vmatprep.subr.mxu0 0.0
        %1017 = vmatpush1.msra.mxu0 0.0
        %1018 = vmatprep.subr.mxu0 0.0
        %1019 = vmatpush1.msra.mxu0 0.0
        %1020 = vmatprep.subr.mxu0 0.0
        %1021 = vmatpush1.msra.mxu0 0.0
        %1022 = vmatprep.subr.mxu0 0.0
        %1023 = vmatpush1.msra.mxu0 0.0
        %1024 = vmatprep.subr.mxu0 0.0
        %1025 = vmatpush1.msra.mxu0 0.0
        %1026 = vmatprep.subr.mxu0 0.0
        %1027 = vmatpush1.msra.mxu0 0.0
        %1028 = vmatprep.mubr.f32.mxu0 0.0
        %v1029 = vand.u32 %v409, 4294901760
        %1030 = vmatmul.mubr.f32.gmra.mrb[0].mxu0 %v1029
        %v1031 = vpop.f32.mrb[0].mxu0
        %v1032 = vadd.f32 %v950, %v1031
        %v1033 = vpop.f32.mrb[0].mxu0
        %v1034 = vadd.f32 %v952, %v1033
        %1035 = vdwg.mxu0
        %v1036 = vand.u32 %v325, 4294901760
        %v1037 = vsub.f32 %v325, %v1036
        %1038 = vmatprep.subr.mxu0 %v1037
        %v1039 = vand.u32 %v324, 4294901760
        %v1040 = vsub.f32 %v324, %v1039
        %1041 = vmatpush1.msra.mxu0 %v1040
        %1042 = vmatprep.subr.mxu0 0.0
        %1043 = vmatpush1.msra.mxu0 0.0
        %1044 = vmatprep.subr.mxu0 0.0
        %1045 = vmatpush1.msra.mxu0 0.0
        %1046 = vmatprep.subr.mxu0 0.0
        %1047 = vmatpush1.msra.mxu0 0.0
        %1048 = vmatprep.subr.mxu0 0.0
        %1049 = vmatpush1.msra.mxu0 0.0
        %1050 = vmatprep.subr.mxu0 0.0
        %1051 = vmatpush1.msra.mxu0 0.0
        %1052 = vmatprep.subr.mxu0 0.0
        %1053 = vmatpush1.msra.mxu0 0.0
        %1054 = vmatprep.subr.mxu0 0.0
        %1055 = vmatpush1.msra.mxu0 0.0
        %1056 = vmatprep.subr.mxu0 0.0
        %1057 = vmatpush1.msra.mxu0 0.0
        %1058 = vmatprep.subr.mxu0 0.0
        %1059 = vmatpush1.msra.mxu0 0.0
        %1060 = vmatprep.subr.mxu0 0.0
        %1061 = vmatpush1.msra.mxu0 0.0
        %1062 = vmatprep.subr.mxu0 0.0
        %1063 = vmatpush1.msra.mxu0 0.0
        %1064 = vmatprep.subr.mxu0 0.0
        %1065 = vmatpush1.msra.mxu0 0.0
        %1066 = vmatprep.subr.mxu0 0.0
        %1067 = vmatpush1.msra.mxu0 0.0
        %1068 = vmatprep.subr.mxu0 0.0
        %1069 = vmatpush1.msra.mxu0 0.0
        %1070 = vmatprep.subr.mxu0 0.0
        %1071 = vmatpush1.msra.mxu0 0.0
        %1072 = vmatprep.subr.mxu0 0.0
        %1073 = vmatpush1.msra.mxu0 0.0
        %1074 = vmatprep.subr.mxu0 0.0
        %1075 = vmatpush1.msra.mxu0 0.0
        %1076 = vmatprep.subr.mxu0 0.0
        %1077 = vmatpush1.msra.mxu0 0.0
        %1078 = vmatprep.subr.mxu0 0.0
        %1079 = vmatpush1.msra.mxu0 0.0
        %1080 = vmatprep.subr.mxu0 0.0
        %1081 = vmatpush1.msra.mxu0 0.0
        %1082 = vmatprep.subr.mxu0 0.0
        %1083 = vmatpush1.msra.mxu0 0.0
        %1084 = vmatprep.subr.mxu0 0.0
        %1085 = vmatpush1.msra.mxu0 0.0
        %1086 = vmatprep.subr.mxu0 0.0
        %1087 = vmatpush1.msra.mxu0 0.0
        %1088 = vmatprep.subr.mxu0 0.0
        %1089 = vmatpush1.msra.mxu0 0.0
        %1090 = vmatprep.subr.mxu0 0.0
        %1091 = vmatpush1.msra.mxu0 0.0
        %1092 = vmatprep.subr.mxu0 0.0
        %1093 = vmatpush1.msra.mxu0 0.0
        %1094 = vmatprep.subr.mxu0 0.0
        %1095 = vmatpush1.msra.mxu0 0.0
        %1096 = vmatprep.subr.mxu0 0.0
        %1097 = vmatpush1.msra.mxu0 0.0
        %1098 = vmatprep.subr.mxu0 0.0
        %1099 = vmatpush1.msra.mxu0 0.0
        %1100 = vmatprep.subr.mxu0 0.0
        %1101 = vmatpush1.msra.mxu0 0.0
        %1102 = vmatprep.subr.mxu0 0.0
        %1103 = vmatpush1.msra.mxu0 0.0
        %1104 = vmatprep.mubr.f32.mxu0 0.0
        %v1105 = vand.u32 %v409, 4294901760
        %v1106 = vsub.f32 %v409, %v1105
        %1107 = vmatmul.mubr.f32.gmra.mrb[0].mxu0 %v1106
        %v1108 = vpop.f32.mrb[0].mxu0
        %v1109 = vadd.f32 %v1032, %v1108
        %v1110 = vpop.f32.mrb[0].mxu0
        %v1111 = vadd.f32 %v1034, %v1110
        %1112 = vdwg.mxu0
        %v1113 = vand.u32 %v325, 4294901760
        %1114 = vmatprep.subr.mxu0 %v1113
        %v1115 = vand.u32 %v324, 4294901760
        %1116 = vmatpush1.msra.mxu0 %v1115
        %1117 = vmatprep.subr.mxu0 0.0
        %1118 = vmatpush1.msra.mxu0 0.0
        %1119 = vmatprep.subr.mxu0 0.0
        %1120 = vmatpush1.msra.mxu0 0.0
        %1121 = vmatprep.subr.mxu0 0.0
        %1122 = vmatpush1.msra.mxu0 0.0
        %1123 = vmatprep.subr.mxu0 0.0
        %1124 = vmatpush1.msra.mxu0 0.0
        %1125 = vmatprep.subr.mxu0 0.0
        %1126 = vmatpush1.msra.mxu0 0.0
        %1127 = vmatprep.subr.mxu0 0.0
        %1128 = vmatpush1.msra.mxu0 0.0
        %1129 = vmatprep.subr.mxu0 0.0
        %1130 = vmatpush1.msra.mxu0 0.0
        %1131 = vmatprep.subr.mxu0 0.0
        %1132 = vmatpush1.msra.mxu0 0.0
        %1133 = vmatprep.subr.mxu0 0.0
        %1134 = vmatpush1.msra.mxu0 0.0
        %1135 = vmatprep.subr.mxu0 0.0
        %1136 = vmatpush1.msra.mxu0 0.0
        %1137 = vmatprep.subr.mxu0 0.0
        %1138 = vmatpush1.msra.mxu0 0.0
        %1139 = vmatprep.subr.mxu0 0.0
        %1140 = vmatpush1.msra.mxu0 0.0
        %1141 = vmatprep.subr.mxu0 0.0
        %1142 = vmatpush1.msra.mxu0 0.0
        %1143 = vmatprep.subr.mxu0 0.0
        %1144 = vmatpush1.msra.mxu0 0.0
        %1145 = vmatprep.subr.mxu0 0.0
        %1146 = vmatpush1.msra.mxu0 0.0
        %1147 = vmatprep.subr.mxu0 0.0
        %1148 = vmatpush1.msra.mxu0 0.0
        %1149 = vmatprep.subr.mxu0 0.0
        %1150 = vmatpush1.msra.mxu0 0.0
        %1151 = vmatprep.subr.mxu0 0.0
        %1152 = vmatpush1.msra.mxu0 0.0
        %1153 = vmatprep.subr.mxu0 0.0
        %1154 = vmatpush1.msra.mxu0 0.0
        %1155 = vmatprep.subr.mxu0 0.0
        %1156 = vmatpush1.msra.mxu0 0.0
        %1157 = vmatprep.subr.mxu0 0.0
        %1158 = vmatpush1.msra.mxu0 0.0
        %1159 = vmatprep.subr.mxu0 0.0
        %1160 = vmatpush1.msra.mxu0 0.0
        %1161 = vmatprep.subr.mxu0 0.0
        %1162 = vmatpush1.msra.mxu0 0.0
        %1163 = vmatprep.subr.mxu0 0.0
        %1164 = vmatpush1.msra.mxu0 0.0
        %1165 = vmatprep.subr.mxu0 0.0
        %1166 = vmatpush1.msra.mxu0 0.0
        %1167 = vmatprep.subr.mxu0 0.0
        %1168 = vmatpush1.msra.mxu0 0.0
        %1169 = vmatprep.subr.mxu0 0.0
        %1170 = vmatpush1.msra.mxu0 0.0
        %1171 = vmatprep.subr.mxu0 0.0
        %1172 = vmatpush1.msra.mxu0 0.0
        %1173 = vmatprep.subr.mxu0 0.0
        %1174 = vmatpush1.msra.mxu0 0.0
        %1175 = vmatprep.subr.mxu0 0.0
        %1176 = vmatpush1.msra.mxu0 0.0
        %1177 = vmatprep.subr.mxu0 0.0
        %1178 = vmatpush1.msra.mxu0 0.0
        %1179 = vmatprep.mubr.f32.mxu0 0.0
        %v1180 = vand.u32 %v409, 4294901760
        %v1181 = vsub.f32 %v409, %v1180
        %v1182 = vand.u32 %v1181, 4294901760
        %1183 = vmatmul.mubr.f32.gmra.mrb[0].mxu0 %v1182
        %v1184 = vpop.f32.mrb[0].mxu0
        %v1185 = vadd.f32 %v1109, %v1184
        %v1186 = vpop.f32.mrb[0].mxu0
        %v1187 = vadd.f32 %v1111, %v1186
        %1188 = vdwg.mxu0
        %v1189 = vand.u32 %v325, 4294901760
        %v1190 = vsub.f32 %v325, %v1189
        %v1191 = vand.u32 %v1190, 4294901760
        %1192 = vmatprep.subr.mxu0 %v1191
        %v1193 = vand.u32 %v324, 4294901760
        %v1194 = vsub.f32 %v324, %v1193
        %v1195 = vand.u32 %v1194, 4294901760
        %1196 = vmatpush1.msra.mxu0 %v1195
        %1197 = vmatprep.subr.mxu0 0.0
        %1198 = vmatpush1.msra.mxu0 0.0
        %1199 = vmatprep.subr.mxu0 0.0
        %1200 = vmatpush1.msra.mxu0 0.0
        %1201 = vmatprep.subr.mxu0 0.0
        %1202 = vmatpush1.msra.mxu0 0.0
        %1203 = vmatprep.subr.mxu0 0.0
        %1204 = vmatpush1.msra.mxu0 0.0
        %1205 = vmatprep.subr.mxu0 0.0
        %1206 = vmatpush1.msra.mxu0 0.0
        %1207 = vmatprep.subr.mxu0 0.0
        %1208 = vmatpush1.msra.mxu0 0.0
        %1209 = vmatprep.subr.mxu0 0.0
        %1210 = vmatpush1.msra.mxu0 0.0
        %1211 = vmatprep.subr.mxu0 0.0
        %1212 = vmatpush1.msra.mxu0 0.0
        %1213 = vmatprep.subr.mxu0 0.0
        %1214 = vmatpush1.msra.mxu0 0.0
        %1215 = vmatprep.subr.mxu0 0.0
        %1216 = vmatpush1.msra.mxu0 0.0
        %1217 = vmatprep.subr.mxu0 0.0
        %1218 = vmatpush1.msra.mxu0 0.0
        %1219 = vmatprep.subr.mxu0 0.0
        %1220 = vmatpush1.msra.mxu0 0.0
        %1221 = vmatprep.subr.mxu0 0.0
        %1222 = vmatpush1.msra.mxu0 0.0
        %1223 = vmatprep.subr.mxu0 0.0
        %1224 = vmatpush1.msra.mxu0 0.0
        %1225 = vmatprep.subr.mxu0 0.0
        %1226 = vmatpush1.msra.mxu0 0.0
        %1227 = vmatprep.subr.mxu0 0.0
        %1228 = vmatpush1.msra.mxu0 0.0
        %1229 = vmatprep.subr.mxu0 0.0
        %1230 = vmatpush1.msra.mxu0 0.0
        %1231 = vmatprep.subr.mxu0 0.0
        %1232 = vmatpush1.msra.mxu0 0.0
        %1233 = vmatprep.subr.mxu0 0.0
        %1234 = vmatpush1.msra.mxu0 0.0
        %1235 = vmatprep.subr.mxu0 0.0
        %1236 = vmatpush1.msra.mxu0 0.0
        %1237 = vmatprep.subr.mxu0 0.0
        %1238 = vmatpush1.msra.mxu0 0.0
        %1239 = vmatprep.subr.mxu0 0.0
        %1240 = vmatpush1.msra.mxu0 0.0
        %1241 = vmatprep.subr.mxu0 0.0
        %1242 = vmatpush1.msra.mxu0 0.0
        %1243 = vmatprep.subr.mxu0 0.0
        %1244 = vmatpush1.msra.mxu0 0.0
        %1245 = vmatprep.subr.mxu0 0.0
        %1246 = vmatpush1.msra.mxu0 0.0
        %1247 = vmatprep.subr.mxu0 0.0
        %1248 = vmatpush1.msra.mxu0 0.0
        %1249 = vmatprep.subr.mxu0 0.0
        %1250 = vmatpush1.msra.mxu0 0.0
        %1251 = vmatprep.subr.mxu0 0.0
        %1252 = vmatpush1.msra.mxu0 0.0
        %1253 = vmatprep.subr.mxu0 0.0
        %1254 = vmatpush1.msra.mxu0 0.0
        %1255 = vmatprep.subr.mxu0 0.0
        %1256 = vmatpush1.msra.mxu0 0.0
        %1257 = vmatprep.subr.mxu0 0.0
        %1258 = vmatpush1.msra.mxu0 0.0
        %1259 = vmatprep.mubr.f32.mxu0 0.0
        %v1260 = vand.u32 %v409, 4294901760
        %1261 = vmatmul.mubr.f32.gmra.mrb[0].mxu0 %v1260
        %v1262 = vpop.f32.mrb[0].mxu0
        %v1263 = vadd.f32 %v1185, %v1262
        %v1264 = vpop.f32.mrb[0].mxu0
        %v1265 = vadd.f32 %v1187, %v1264
        %1266 = vdwg.mxu0
        %v1267 = vand.u32 %v325, 4294901760
        %1268 = vmatprep.subr.mxu0 %v1267
        %v1269 = vand.u32 %v324, 4294901760
        %1270 = vmatpush1.msra.mxu0 %v1269
        %1271 = vmatprep.subr.mxu0 0.0
        %1272 = vmatpush1.msra.mxu0 0.0
        %1273 = vmatprep.subr.mxu0 0.0
        %1274 = vmatpush1.msra.mxu0 0.0
        %1275 = vmatprep.subr.mxu0 0.0
        %1276 = vmatpush1.msra.mxu0 0.0
        %1277 = vmatprep.subr.mxu0 0.0
        %1278 = vmatpush1.msra.mxu0 0.0
        %1279 = vmatprep.subr.mxu0 0.0
        %1280 = vmatpush1.msra.mxu0 0.0
        %1281 = vmatprep.subr.mxu0 0.0
        %1282 = vmatpush1.msra.mxu0 0.0
        %1283 = vmatprep.subr.mxu0 0.0
        %1284 = vmatpush1.msra.mxu0 0.0
        %1285 = vmatprep.subr.mxu0 0.0
        %1286 = vmatpush1.msra.mxu0 0.0
        %1287 = vmatprep.subr.mxu0 0.0
        %1288 = vmatpush1.msra.mxu0 0.0
        %1289 = vmatprep.subr.mxu0 0.0
        %1290 = vmatpush1.msra.mxu0 0.0
        %1291 = vmatprep.subr.mxu0 0.0
        %1292 = vmatpush1.msra.mxu0 0.0
        %1293 = vmatprep.subr.mxu0 0.0
        %1294 = vmatpush1.msra.mxu0 0.0
        %1295 = vmatprep.subr.mxu0 0.0
        %1296 = vmatpush1.msra.mxu0 0.0
        %1297 = vmatprep.subr.mxu0 0.0
        %1298 = vmatpush1.msra.mxu0 0.0
        %1299 = vmatprep.subr.mxu0 0.0
        %1300 = vmatpush1.msra.mxu0 0.0
        %1301 = vmatprep.subr.mxu0 0.0
        %1302 = vmatpush1.msra.mxu0 0.0
        %1303 = vmatprep.subr.mxu0 0.0
        %1304 = vmatpush1.msra.mxu0 0.0
        %1305 = vmatprep.subr.mxu0 0.0
        %1306 = vmatpush1.msra.mxu0 0.0
        %1307 = vmatprep.subr.mxu0 0.0
        %1308 = vmatpush1.msra.mxu0 0.0
        %1309 = vmatprep.subr.mxu0 0.0
        %1310 = vmatpush1.msra.mxu0 0.0
        %1311 = vmatprep.subr.mxu0 0.0
        %1312 = vmatpush1.msra.mxu0 0.0
        %1313 = vmatprep.subr.mxu0 0.0
        %1314 = vmatpush1.msra.mxu0 0.0
        %1315 = vmatprep.subr.mxu0 0.0
        %1316 = vmatpush1.msra.mxu0 0.0
        %1317 = vmatprep.subr.mxu0 0.0
        %1318 = vmatpush1.msra.mxu0 0.0
        %1319 = vmatprep.subr.mxu0 0.0
        %1320 = vmatpush1.msra.mxu0 0.0
        %1321 = vmatprep.subr.mxu0 0.0
        %1322 = vmatpush1.msra.mxu0 0.0
        %1323 = vmatprep.subr.mxu0 0.0
        %1324 = vmatpush1.msra.mxu0 0.0
        %1325 = vmatprep.subr.mxu0 0.0
        %1326 = vmatpush1.msra.mxu0 0.0
        %1327 = vmatprep.subr.mxu0 0.0
        %1328 = vmatpush1.msra.mxu0 0.0
        %1329 = vmatprep.subr.mxu0 0.0
        %1330 = vmatpush1.msra.mxu0 0.0
        %1331 = vmatprep.subr.mxu0 0.0
        %1332 = vmatpush1.msra.mxu0 0.0
        %1333 = vmatprep.mubr.f32.mxu0 0.0
        %v1334 = vand.u32 %v409, 4294901760
        %1335 = vmatmul.mubr.f32.gmra.mrb[0].mxu0 %v1334
        %v1336 = vpop.f32.mrb[0].mxu0
        %v1337 = vadd.f32 %v1263, %v1336
        %v1338 = vpop.f32.mrb[0].mxu0
        %v1339 = vadd.f32 %v1265, %v1338
        %1340 = vdwg.mxu0
        %1341 = vmatprep.subr.mxu0 0.0
        %v1342 = vand.u32 %v327, 4294901760
        %1343 = vmatpush1.msra.mxu0 %v1342
        %1344 = vmatprep.subr.mxu0 0.0
        %v1345 = vand.u32 %v328, 4294901760
        %1346 = vmatpush1.msra.mxu0 %v1345
        %1347 = vmatprep.subr.mxu0 0.0
        %v1348 = vand.u32 %v329, 4294901760
        %1349 = vmatpush1.msra.mxu0 %v1348
        %1350 = vmatprep.subr.mxu0 0.0
        %v1351 = vand.u32 %v330, 4294901760
        %1352 = vmatpush1.msra.mxu0 %v1351
        %1353 = vmatprep.subr.mxu0 0.0
        %v1354 = vand.u32 %v331, 4294901760
        %1355 = vmatpush1.msra.mxu0 %v1354
        %1356 = vmatprep.subr.mxu0 0.0
        %v1357 = vand.u32 %v332, 4294901760
        %1358 = vmatpush1.msra.mxu0 %v1357
        %1359 = vmatprep.subr.mxu0 0.0
        %v1360 = vand.u32 %v333, 4294901760
        %1361 = vmatpush1.msra.mxu0 %v1360
        %1362 = vmatprep.subr.mxu0 0.0
        %v1363 = vand.u32 %v334, 4294901760
        %1364 = vmatpush1.msra.mxu0 %v1363
        %1365 = vmatprep.subr.mxu0 0.0
        %v1366 = vand.u32 %v335, 4294901760
        %1367 = vmatpush1.msra.mxu0 %v1366
        %1368 = vmatprep.subr.mxu0 0.0
        %v1369 = vand.u32 %v336, 4294901760
        %1370 = vmatpush1.msra.mxu0 %v1369
        %1371 = vmatprep.subr.mxu0 0.0
        %v1372 = vand.u32 %v337, 4294901760
        %1373 = vmatpush1.msra.mxu0 %v1372
        %1374 = vmatprep.subr.mxu0 0.0
        %v1375 = vand.u32 %v338, 4294901760
        %1376 = vmatpush1.msra.mxu0 %v1375
        %1377 = vmatprep.subr.mxu0 0.0
        %v1378 = vand.u32 %v339, 4294901760
        %1379 = vmatpush1.msra.mxu0 %v1378
        %1380 = vmatprep.subr.mxu0 0.0
        %v1381 = vand.u32 %v340, 4294901760
        %1382 = vmatpush1.msra.mxu0 %v1381
        %1383 = vmatprep.subr.mxu0 0.0
        %v1384 = vand.u32 %v341, 4294901760
        %1385 = vmatpush1.msra.mxu0 %v1384
        %1386 = vmatprep.subr.mxu0 0.0
        %v1387 = vand.u32 %v342, 4294901760
        %1388 = vmatpush1.msra.mxu0 %v1387
        %1389 = vmatprep.subr.mxu0 0.0
        %v1390 = vand.u32 %v343, 4294901760
        %1391 = vmatpush1.msra.mxu0 %v1390
        %1392 = vmatprep.subr.mxu0 0.0
        %v1393 = vand.u32 %v344, 4294901760
        %1394 = vmatpush1.msra.mxu0 %v1393
        %1395 = vmatprep.subr.mxu0 0.0
        %v1396 = vand.u32 %v345, 4294901760
        %1397 = vmatpush1.msra.mxu0 %v1396
        %1398 = vmatprep.subr.mxu0 0.0
        %v1399 = vand.u32 %v346, 4294901760
        %1400 = vmatpush1.msra.mxu0 %v1399
        %1401 = vmatprep.subr.mxu0 0.0
        %v1402 = vand.u32 %v347, 4294901760
        %1403 = vmatpush1.msra.mxu0 %v1402
        %1404 = vmatprep.subr.mxu0 0.0
        %v1405 = vand.u32 %v348, 4294901760
        %1406 = vmatpush1.msra.mxu0 %v1405
        %1407 = vmatprep.subr.mxu0 0.0
        %v1408 = vand.u32 %v349, 4294901760
        %1409 = vmatpush1.msra.mxu0 %v1408
        %1410 = vmatprep.subr.mxu0 0.0
        %v1411 = vand.u32 %v350, 4294901760
        %1412 = vmatpush1.msra.mxu0 %v1411
        %1413 = vmatprep.subr.mxu0 0.0
        %v1414 = vand.u32 %v351, 4294901760
        %1415 = vmatpush1.msra.mxu0 %v1414
        %1416 = vmatprep.subr.mxu0 0.0
        %v1417 = vand.u32 %v352, 4294901760
        %1418 = vmatpush1.msra.mxu0 %v1417
        %1419 = vmatprep.subr.mxu0 0.0
        %v1420 = vand.u32 %v353, 4294901760
        %1421 = vmatpush1.msra.mxu0 %v1420
        %1422 = vmatprep.subr.mxu0 0.0
        %v1423 = vand.u32 %v354, 4294901760
        %1424 = vmatpush1.msra.mxu0 %v1423
        %1425 = vmatprep.subr.mxu0 0.0
        %v1426 = vand.u32 %v355, 4294901760
        %1427 = vmatpush1.msra.mxu0 %v1426
        %1428 = vmatprep.subr.mxu0 0.0
        %v1429 = vand.u32 %v356, 4294901760
        %1430 = vmatpush1.msra.mxu0 %v1429
        %1431 = vmatprep.subr.mxu0 0.0
        %v1432 = vand.u32 %v357, 4294901760
        %1433 = vmatpush1.msra.mxu0 %v1432
        %1434 = vmatprep.subr.mxu0 0.0
        %v1435 = vand.u32 %v358, 4294901760
        %1436 = vmatpush1.msra.mxu0 %v1435
        %v1437 = vand.u32 %v874, 4294901760
        %v1438 = vsub.f32 %v874, %v1437
        %v1439 = vand.u32 %v1438, 4294901760
        %v1440 = vsub.f32 %v1438, %v1439
        %v1441 = vand.u32 %v1440, 4294901760
        %1442 = vmatprep.mubr.f32.mxu0 %v1441
        %v1443 = vand.u32 %v872, 4294901760
        %v1444 = vsub.f32 %v872, %v1443
        %v1445 = vand.u32 %v1444, 4294901760
        %v1446 = vsub.f32 %v1444, %v1445
        %v1447 = vand.u32 %v1446, 4294901760
        %1448 = vmatmul.mubr.f32.gmra.mrb[0].mxu0 %v1447
        %v1449 = vpop.f32.mrb[0].mxu0
        %v1450 = vadd.f32 0.0, %v1449
        %v1451 = vpop.f32.mrb[0].mxu0
        %1452 = vdwg.mxu0
        %1453 = vmatprep.subr.mxu0 0.0
        %v1454 = vand.u32 %v327, 4294901760
        %v1455 = vsub.f32 %v327, %v1454
        %v1456 = vand.u32 %v1455, 4294901760
        %v1457 = vsub.f32 %v1455, %v1456
        %v1458 = vand.u32 %v1457, 4294901760
        %1459 = vmatpush1.msra.mxu0 %v1458
        %1460 = vmatprep.subr.mxu0 0.0
        %v1461 = vand.u32 %v328, 4294901760
        %v1462 = vsub.f32 %v328, %v1461
        %v1463 = vand.u32 %v1462, 4294901760
        %v1464 = vsub.f32 %v1462, %v1463
        %v1465 = vand.u32 %v1464, 4294901760
        %1466 = vmatpush1.msra.mxu0 %v1465
        %1467 = vmatprep.subr.mxu0 0.0
        %v1468 = vand.u32 %v329, 4294901760
        %v1469 = vsub.f32 %v329, %v1468
        %v1470 = vand.u32 %v1469, 4294901760
        %v1471 = vsub.f32 %v1469, %v1470
        %v1472 = vand.u32 %v1471, 4294901760
        %1473 = vmatpush1.msra.mxu0 %v1472
        %1474 = vmatprep.subr.mxu0 0.0
        %v1475 = vand.u32 %v330, 4294901760
        %v1476 = vsub.f32 %v330, %v1475
        %v1477 = vand.u32 %v1476, 4294901760
        %v1478 = vsub.f32 %v1476, %v1477
        %v1479 = vand.u32 %v1478, 4294901760
        %1480 = vmatpush1.msra.mxu0 %v1479
        %1481 = vmatprep.subr.mxu0 0.0
        %v1482 = vand.u32 %v331, 4294901760
        %v1483 = vsub.f32 %v331, %v1482
        %v1484 = vand.u32 %v1483, 4294901760
        %v1485 = vsub.f32 %v1483, %v1484
        %v1486 = vand.u32 %v1485, 4294901760
        %1487 = vmatpush1.msra.mxu0 %v1486
        %1488 = vmatprep.subr.mxu0 0.0
        %v1489 = vand.u32 %v332, 4294901760
        %v1490 = vsub.f32 %v332, %v1489
        %v1491 = vand.u32 %v1490, 4294901760
        %v1492 = vsub.f32 %v1490, %v1491
        %v1493 = vand.u32 %v1492, 4294901760
        %1494 = vmatpush1.msra.mxu0 %v1493
        %1495 = vmatprep.subr.mxu0 0.0
        %v1496 = vand.u32 %v333, 4294901760
        %v1497 = vsub.f32 %v333, %v1496
        %v1498 = vand.u32 %v1497, 4294901760
        %v1499 = vsub.f32 %v1497, %v1498
        %v1500 = vand.u32 %v1499, 4294901760
        %1501 = vmatpush1.msra.mxu0 %v1500
        %1502 = vmatprep.subr.mxu0 0.0
        %v1503 = vand.u32 %v334, 4294901760
        %v1504 = vsub.f32 %v334, %v1503
        %v1505 = vand.u32 %v1504, 4294901760
        %v1506 = vsub.f32 %v1504, %v1505
        %v1507 = vand.u32 %v1506, 4294901760
        %1508 = vmatpush1.msra.mxu0 %v1507
        %1509 = vmatprep.subr.mxu0 0.0
        %v1510 = vand.u32 %v335, 4294901760
        %v1511 = vsub.f32 %v335, %v1510
        %v1512 = vand.u32 %v1511, 4294901760
        %v1513 = vsub.f32 %v1511, %v1512
        %v1514 = vand.u32 %v1513, 4294901760
        %1515 = vmatpush1.msra.mxu0 %v1514
        %1516 = vmatprep.subr.mxu0 0.0
        %v1517 = vand.u32 %v336, 4294901760
        %v1518 = vsub.f32 %v336, %v1517
        %v1519 = vand.u32 %v1518, 4294901760
        %v1520 = vsub.f32 %v1518, %v1519
        %v1521 = vand.u32 %v1520, 4294901760
        %1522 = vmatpush1.msra.mxu0 %v1521
        %1523 = vmatprep.subr.mxu0 0.0
        %v1524 = vand.u32 %v337, 4294901760
        %v1525 = vsub.f32 %v337, %v1524
        %v1526 = vand.u32 %v1525, 4294901760
        %v1527 = vsub.f32 %v1525, %v1526
        %v1528 = vand.u32 %v1527, 4294901760
        %1529 = vmatpush1.msra.mxu0 %v1528
        %1530 = vmatprep.subr.mxu0 0.0
        %v1531 = vand.u32 %v338, 4294901760
        %v1532 = vsub.f32 %v338, %v1531
        %v1533 = vand.u32 %v1532, 4294901760
        %v1534 = vsub.f32 %v1532, %v1533
        %v1535 = vand.u32 %v1534, 4294901760
        %1536 = vmatpush1.msra.mxu0 %v1535
        %1537 = vmatprep.subr.mxu0 0.0
        %v1538 = vand.u32 %v339, 4294901760
        %v1539 = vsub.f32 %v339, %v1538
        %v1540 = vand.u32 %v1539, 4294901760
        %v1541 = vsub.f32 %v1539, %v1540
        %v1542 = vand.u32 %v1541, 4294901760
        %1543 = vmatpush1.msra.mxu0 %v1542
        %1544 = vmatprep.subr.mxu0 0.0
        %v1545 = vand.u32 %v340, 4294901760
        %v1546 = vsub.f32 %v340, %v1545
        %v1547 = vand.u32 %v1546, 4294901760
        %v1548 = vsub.f32 %v1546, %v1547
        %v1549 = vand.u32 %v1548, 4294901760
        %1550 = vmatpush1.msra.mxu0 %v1549
        %1551 = vmatprep.subr.mxu0 0.0
        %v1552 = vand.u32 %v341, 4294901760
        %v1553 = vsub.f32 %v341, %v1552
        %v1554 = vand.u32 %v1553, 4294901760
        %v1555 = vsub.f32 %v1553, %v1554
        %v1556 = vand.u32 %v1555, 4294901760
        %1557 = vmatpush1.msra.mxu0 %v1556
        %1558 = vmatprep.subr.mxu0 0.0
        %v1559 = vand.u32 %v342, 4294901760
        %v1560 = vsub.f32 %v342, %v1559
        %v1561 = vand.u32 %v1560, 4294901760
        %v1562 = vsub.f32 %v1560, %v1561
        %v1563 = vand.u32 %v1562, 4294901760
        %1564 = vmatpush1.msra.mxu0 %v1563
        %1565 = vmatprep.subr.mxu0 0.0
        %v1566 = vand.u32 %v343, 4294901760
        %v1567 = vsub.f32 %v343, %v1566
        %v1568 = vand.u32 %v1567, 4294901760
        %v1569 = vsub.f32 %v1567, %v1568
        %v1570 = vand.u32 %v1569, 4294901760
        %1571 = vmatpush1.msra.mxu0 %v1570
        %1572 = vmatprep.subr.mxu0 0.0
        %v1573 = vand.u32 %v344, 4294901760
        %v1574 = vsub.f32 %v344, %v1573
        %v1575 = vand.u32 %v1574, 4294901760
        %v1576 = vsub.f32 %v1574, %v1575
        %v1577 = vand.u32 %v1576, 4294901760
        %1578 = vmatpush1.msra.mxu0 %v1577
        %1579 = vmatprep.subr.mxu0 0.0
        %v1580 = vand.u32 %v345, 4294901760
        %v1581 = vsub.f32 %v345, %v1580
        %v1582 = vand.u32 %v1581, 4294901760
        %v1583 = vsub.f32 %v1581, %v1582
        %v1584 = vand.u32 %v1583, 4294901760
        %1585 = vmatpush1.msra.mxu0 %v1584
        %1586 = vmatprep.subr.mxu0 0.0
        %v1587 = vand.u32 %v346, 4294901760
        %v1588 = vsub.f32 %v346, %v1587
        %v1589 = vand.u32 %v1588, 4294901760
        %v1590 = vsub.f32 %v1588, %v1589
        %v1591 = vand.u32 %v1590, 4294901760
        %1592 = vmatpush1.msra.mxu0 %v1591
        %1593 = vmatprep.subr.mxu0 0.0
        %v1594 = vand.u32 %v347, 4294901760
        %v1595 = vsub.f32 %v347, %v1594
        %v1596 = vand.u32 %v1595, 4294901760
        %v1597 = vsub.f32 %v1595, %v1596
        %v1598 = vand.u32 %v1597, 4294901760
        %1599 = vmatpush1.msra.mxu0 %v1598
        %1600 = vmatprep.subr.mxu0 0.0
        %v1601 = vand.u32 %v348, 4294901760
        %v1602 = vsub.f32 %v348, %v1601
        %v1603 = vand.u32 %v1602, 4294901760
        %v1604 = vsub.f32 %v1602, %v1603
        %v1605 = vand.u32 %v1604, 4294901760
        %1606 = vmatpush1.msra.mxu0 %v1605
        %1607 = vmatprep.subr.mxu0 0.0
        %v1608 = vand.u32 %v349, 4294901760
        %v1609 = vsub.f32 %v349, %v1608
        %v1610 = vand.u32 %v1609, 4294901760
        %v1611 = vsub.f32 %v1609, %v1610
        %v1612 = vand.u32 %v1611, 4294901760
        %1613 = vmatpush1.msra.mxu0 %v1612
        %1614 = vmatprep.subr.mxu0 0.0
        %v1615 = vand.u32 %v350, 4294901760
        %v1616 = vsub.f32 %v350, %v1615
        %v1617 = vand.u32 %v1616, 4294901760
        %v1618 = vsub.f32 %v1616, %v1617
        %v1619 = vand.u32 %v1618, 4294901760
        %1620 = vmatpush1.msra.mxu0 %v1619
        %1621 = vmatprep.subr.mxu0 0.0
        %v1622 = vand.u32 %v351, 4294901760
        %v1623 = vsub.f32 %v351, %v1622
        %v1624 = vand.u32 %v1623, 4294901760
        %v1625 = vsub.f32 %v1623, %v1624
        %v1626 = vand.u32 %v1625, 4294901760
        %1627 = vmatpush1.msra.mxu0 %v1626
        %1628 = vmatprep.subr.mxu0 0.0
        %v1629 = vand.u32 %v352, 4294901760
        %v1630 = vsub.f32 %v352, %v1629
        %v1631 = vand.u32 %v1630, 4294901760
        %v1632 = vsub.f32 %v1630, %v1631
        %v1633 = vand.u32 %v1632, 4294901760
        %1634 = vmatpush1.msra.mxu0 %v1633
        %1635 = vmatprep.subr.mxu0 0.0
        %v1636 = vand.u32 %v353, 4294901760
        %v1637 = vsub.f32 %v353, %v1636
        %v1638 = vand.u32 %v1637, 4294901760
        %v1639 = vsub.f32 %v1637, %v1638
        %v1640 = vand.u32 %v1639, 4294901760
        %1641 = vmatpush1.msra.mxu0 %v1640
        %1642 = vmatprep.subr.mxu0 0.0
        %v1643 = vand.u32 %v354, 4294901760
        %v1644 = vsub.f32 %v354, %v1643
        %v1645 = vand.u32 %v1644, 4294901760
        %v1646 = vsub.f32 %v1644, %v1645
        %v1647 = vand.u32 %v1646, 4294901760
        %1648 = vmatpush1.msra.mxu0 %v1647
        %1649 = vmatprep.subr.mxu0 0.0
        %v1650 = vand.u32 %v355, 4294901760
        %v1651 = vsub.f32 %v355, %v1650
        %v1652 = vand.u32 %v1651, 4294901760
        %v1653 = vsub.f32 %v1651, %v1652
        %v1654 = vand.u32 %v1653, 4294901760
        %1655 = vmatpush1.msra.mxu0 %v1654
        %1656 = vmatprep.subr.mxu0 0.0
        %v1657 = vand.u32 %v356, 4294901760
        %v1658 = vsub.f32 %v356, %v1657
        %v1659 = vand.u32 %v1658, 4294901760
        %v1660 = vsub.f32 %v1658, %v1659
        %v1661 = vand.u32 %v1660, 4294901760
        %1662 = vmatpush1.msra.mxu0 %v1661
        %1663 = vmatprep.subr.mxu0 0.0
        %v1664 = vand.u32 %v357, 4294901760
        %v1665 = vsub.f32 %v357, %v1664
        %v1666 = vand.u32 %v1665, 4294901760
        %v1667 = vsub.f32 %v1665, %v1666
        %v1668 = vand.u32 %v1667, 4294901760
        %1669 = vmatpush1.msra.mxu0 %v1668
        %1670 = vmatprep.subr.mxu0 0.0
        %v1671 = vand.u32 %v358, 4294901760
        %v1672 = vsub.f32 %v358, %v1671
        %v1673 = vand.u32 %v1672, 4294901760
        %v1674 = vsub.f32 %v1672, %v1673
        %v1675 = vand.u32 %v1674, 4294901760
        %1676 = vmatpush1.msra.mxu0 %v1675
        %v1677 = vand.u32 %v874, 4294901760
        %1678 = vmatprep.mubr.f32.mxu0 %v1677
        %v1679 = vand.u32 %v872, 4294901760
        %1680 = vmatmul.mubr.f32.gmra.mrb[0].mxu0 %v1679
        %v1681 = vpop.f32.mrb[0].mxu0
        %v1682 = vadd.f32 %v1450, %v1681
        %v1683 = vpop.f32.mrb[0].mxu0
        %1684 = vdwg.mxu0
        %1685 = vmatprep.subr.mxu0 0.0
        %v1686 = vand.u32 %v327, 4294901760
        %v1687 = vsub.f32 %v327, %v1686
        %1688 = vmatpush1.msra.mxu0 %v1687
        %1689 = vmatprep.subr.mxu0 0.0
        %v1690 = vand.u32 %v328, 4294901760
        %v1691 = vsub.f32 %v328, %v1690
        %1692 = vmatpush1.msra.mxu0 %v1691
        %1693 = vmatprep.subr.mxu0 0.0
        %v1694 = vand.u32 %v329, 4294901760
        %v1695 = vsub.f32 %v329, %v1694
        %1696 = vmatpush1.msra.mxu0 %v1695
        %1697 = vmatprep.subr.mxu0 0.0
        %v1698 = vand.u32 %v330, 4294901760
        %v1699 = vsub.f32 %v330, %v1698
        %1700 = vmatpush1.msra.mxu0 %v1699
        %1701 = vmatprep.subr.mxu0 0.0
        %v1702 = vand.u32 %v331, 4294901760
        %v1703 = vsub.f32 %v331, %v1702
        %1704 = vmatpush1.msra.mxu0 %v1703
        %1705 = vmatprep.subr.mxu0 0.0
        %v1706 = vand.u32 %v332, 4294901760
        %v1707 = vsub.f32 %v332, %v1706
        %1708 = vmatpush1.msra.mxu0 %v1707
        %1709 = vmatprep.subr.mxu0 0.0
        %v1710 = vand.u32 %v333, 4294901760
        %v1711 = vsub.f32 %v333, %v1710
        %1712 = vmatpush1.msra.mxu0 %v1711
        %1713 = vmatprep.subr.mxu0 0.0
        %v1714 = vand.u32 %v334, 4294901760
        %v1715 = vsub.f32 %v334, %v1714
        %1716 = vmatpush1.msra.mxu0 %v1715
        %1717 = vmatprep.subr.mxu0 0.0
        %v1718 = vand.u32 %v335, 4294901760
        %v1719 = vsub.f32 %v335, %v1718
        %1720 = vmatpush1.msra.mxu0 %v1719
        %1721 = vmatprep.subr.mxu0 0.0
        %v1722 = vand.u32 %v336, 4294901760
        %v1723 = vsub.f32 %v336, %v1722
        %1724 = vmatpush1.msra.mxu0 %v1723
        %1725 = vmatprep.subr.mxu0 0.0
        %v1726 = vand.u32 %v337, 4294901760
        %v1727 = vsub.f32 %v337, %v1726
        %1728 = vmatpush1.msra.mxu0 %v1727
        %1729 = vmatprep.subr.mxu0 0.0
        %v1730 = vand.u32 %v338, 4294901760
        %v1731 = vsub.f32 %v338, %v1730
        %1732 = vmatpush1.msra.mxu0 %v1731
        %1733 = vmatprep.subr.mxu0 0.0
        %v1734 = vand.u32 %v339, 4294901760
        %v1735 = vsub.f32 %v339, %v1734
        %1736 = vmatpush1.msra.mxu0 %v1735
        %1737 = vmatprep.subr.mxu0 0.0
        %v1738 = vand.u32 %v340, 4294901760
        %v1739 = vsub.f32 %v340, %v1738
        %1740 = vmatpush1.msra.mxu0 %v1739
        %1741 = vmatprep.subr.mxu0 0.0
        %v1742 = vand.u32 %v341, 4294901760
        %v1743 = vsub.f32 %v341, %v1742
        %1744 = vmatpush1.msra.mxu0 %v1743
        %1745 = vmatprep.subr.mxu0 0.0
        %v1746 = vand.u32 %v342, 4294901760
        %v1747 = vsub.f32 %v342, %v1746
        %1748 = vmatpush1.msra.mxu0 %v1747
        %1749 = vmatprep.subr.mxu0 0.0
        %v1750 = vand.u32 %v343, 4294901760
        %v1751 = vsub.f32 %v343, %v1750
        %1752 = vmatpush1.msra.mxu0 %v1751
        %1753 = vmatprep.subr.mxu0 0.0
        %v1754 = vand.u32 %v344, 4294901760
        %v1755 = vsub.f32 %v344, %v1754
        %1756 = vmatpush1.msra.mxu0 %v1755
        %1757 = vmatprep.subr.mxu0 0.0
        %v1758 = vand.u32 %v345, 4294901760
        %v1759 = vsub.f32 %v345, %v1758
        %1760 = vmatpush1.msra.mxu0 %v1759
        %1761 = vmatprep.subr.mxu0 0.0
        %v1762 = vand.u32 %v346, 4294901760
        %v1763 = vsub.f32 %v346, %v1762
        %1764 = vmatpush1.msra.mxu0 %v1763
        %1765 = vmatprep.subr.mxu0 0.0
        %v1766 = vand.u32 %v347, 4294901760
        %v1767 = vsub.f32 %v347, %v1766
        %1768 = vmatpush1.msra.mxu0 %v1767
        %1769 = vmatprep.subr.mxu0 0.0
        %v1770 = vand.u32 %v348, 4294901760
        %v1771 = vsub.f32 %v348, %v1770
        %1772 = vmatpush1.msra.mxu0 %v1771
        %1773 = vmatprep.subr.mxu0 0.0
        %v1774 = vand.u32 %v349, 4294901760
        %v1775 = vsub.f32 %v349, %v1774
        %1776 = vmatpush1.msra.mxu0 %v1775
        %1777 = vmatprep.subr.mxu0 0.0
        %v1778 = vand.u32 %v350, 4294901760
        %v1779 = vsub.f32 %v350, %v1778
        %1780 = vmatpush1.msra.mxu0 %v1779
        %1781 = vmatprep.subr.mxu0 0.0
        %v1782 = vand.u32 %v351, 4294901760
        %v1783 = vsub.f32 %v351, %v1782
        %1784 = vmatpush1.msra.mxu0 %v1783
        %1785 = vmatprep.subr.mxu0 0.0
        %v1786 = vand.u32 %v352, 4294901760
        %v1787 = vsub.f32 %v352, %v1786
        %1788 = vmatpush1.msra.mxu0 %v1787
        %1789 = vmatprep.subr.mxu0 0.0
        %v1790 = vand.u32 %v353, 4294901760
        %v1791 = vsub.f32 %v353, %v1790
        %1792 = vmatpush1.msra.mxu0 %v1791
        %1793 = vmatprep.subr.mxu0 0.0
        %v1794 = vand.u32 %v354, 4294901760
        %v1795 = vsub.f32 %v354, %v1794
        %1796 = vmatpush1.msra.mxu0 %v1795
        %1797 = vmatprep.subr.mxu0 0.0
        %v1798 = vand.u32 %v355, 4294901760
        %v1799 = vsub.f32 %v355, %v1798
        %1800 = vmatpush1.msra.mxu0 %v1799
        %1801 = vmatprep.subr.mxu0 0.0
        %v1802 = vand.u32 %v356, 4294901760
        %v1803 = vsub.f32 %v356, %v1802
        %1804 = vmatpush1.msra.mxu0 %v1803
        %1805 = vmatprep.subr.mxu0 0.0
        %v1806 = vand.u32 %v357, 4294901760
        %v1807 = vsub.f32 %v357, %v1806
        %1808 = vmatpush1.msra.mxu0 %v1807
        %1809 = vmatprep.subr.mxu0 0.0
        %v1810 = vand.u32 %v358, 4294901760
        %v1811 = vsub.f32 %v358, %v1810
        %1812 = vmatpush1.msra.mxu0 %v1811
        %v1813 = vand.u32 %v874, 4294901760
        %v1814 = vsub.f32 %v874, %v1813
        %1815 = vmatprep.mubr.f32.mxu0 %v1814
        %v1816 = vand.u32 %v872, 4294901760
        %v1817 = vsub.f32 %v872, %v1816
        %1818 = vmatmul.mubr.f32.gmra.mrb[0].mxu0 %v1817
        %v1819 = vpop.f32.mrb[0].mxu0
        %v1820 = vadd.f32 %v1682, %v1819
        %v1821 = vpop.f32.mrb[0].mxu0
        %1822 = vdwg.mxu0
        %1823 = vmatprep.subr.mxu0 0.0
        %v1824 = vand.u32 %v327, 4294901760
        %1825 = vmatpush1.msra.mxu0 %v1824
        %1826 = vmatprep.subr.mxu0 0.0
        %v1827 = vand.u32 %v328, 4294901760
        %1828 = vmatpush1.msra.mxu0 %v1827
        %1829 = vmatprep.subr.mxu0 0.0
        %v1830 = vand.u32 %v329, 4294901760
        %1831 = vmatpush1.msra.mxu0 %v1830
        %1832 = vmatprep.subr.mxu0 0.0
        %v1833 = vand.u32 %v330, 4294901760
        %1834 = vmatpush1.msra.mxu0 %v1833
        %1835 = vmatprep.subr.mxu0 0.0
        %v1836 = vand.u32 %v331, 4294901760
        %1837 = vmatpush1.msra.mxu0 %v1836
        %1838 = vmatprep.subr.mxu0 0.0
        %v1839 = vand.u32 %v332, 4294901760
        %1840 = vmatpush1.msra.mxu0 %v1839
        %1841 = vmatprep.subr.mxu0 0.0
        %v1842 = vand.u32 %v333, 4294901760
        %1843 = vmatpush1.msra.mxu0 %v1842
        %1844 = vmatprep.subr.mxu0 0.0
        %v1845 = vand.u32 %v334, 4294901760
        %1846 = vmatpush1.msra.mxu0 %v1845
        %1847 = vmatprep.subr.mxu0 0.0
        %v1848 = vand.u32 %v335, 4294901760
        %1849 = vmatpush1.msra.mxu0 %v1848
        %1850 = vmatprep.subr.mxu0 0.0
        %v1851 = vand.u32 %v336, 4294901760
        %1852 = vmatpush1.msra.mxu0 %v1851
        %1853 = vmatprep.subr.mxu0 0.0
        %v1854 = vand.u32 %v337, 4294901760
        %1855 = vmatpush1.msra.mxu0 %v1854
        %1856 = vmatprep.subr.mxu0 0.0
        %v1857 = vand.u32 %v338, 4294901760
        %1858 = vmatpush1.msra.mxu0 %v1857
        %1859 = vmatprep.subr.mxu0 0.0
        %v1860 = vand.u32 %v339, 4294901760
        %1861 = vmatpush1.msra.mxu0 %v1860
        %1862 = vmatprep.subr.mxu0 0.0
        %v1863 = vand.u32 %v340, 4294901760
        %1864 = vmatpush1.msra.mxu0 %v1863
        %1865 = vmatprep.subr.mxu0 0.0
        %v1866 = vand.u32 %v341, 4294901760
        %1867 = vmatpush1.msra.mxu0 %v1866
        %1868 = vmatprep.subr.mxu0 0.0
        %v1869 = vand.u32 %v342, 4294901760
        %1870 = vmatpush1.msra.mxu0 %v1869
        %1871 = vmatprep.subr.mxu0 0.0
        %v1872 = vand.u32 %v343, 4294901760
        %1873 = vmatpush1.msra.mxu0 %v1872
        %1874 = vmatprep.subr.mxu0 0.0
        %v1875 = vand.u32 %v344, 4294901760
        %1876 = vmatpush1.msra.mxu0 %v1875
        %1877 = vmatprep.subr.mxu0 0.0
        %v1878 = vand.u32 %v345, 4294901760
        %1879 = vmatpush1.msra.mxu0 %v1878
        %1880 = vmatprep.subr.mxu0 0.0
        %v1881 = vand.u32 %v346, 4294901760
        %1882 = vmatpush1.msra.mxu0 %v1881
        %1883 = vmatprep.subr.mxu0 0.0
        %v1884 = vand.u32 %v347, 4294901760
        %1885 = vmatpush1.msra.mxu0 %v1884
        %1886 = vmatprep.subr.mxu0 0.0
        %v1887 = vand.u32 %v348, 4294901760
        %1888 = vmatpush1.msra.mxu0 %v1887
        %1889 = vmatprep.subr.mxu0 0.0
        %v1890 = vand.u32 %v349, 4294901760
        %1891 = vmatpush1.msra.mxu0 %v1890
        %1892 = vmatprep.subr.mxu0 0.0
        %v1893 = vand.u32 %v350, 4294901760
        %1894 = vmatpush1.msra.mxu0 %v1893
        %1895 = vmatprep.subr.mxu0 0.0
        %v1896 = vand.u32 %v351, 4294901760
        %1897 = vmatpush1.msra.mxu0 %v1896
        %1898 = vmatprep.subr.mxu0 0.0
        %v1899 = vand.u32 %v352, 4294901760
        %1900 = vmatpush1.msra.mxu0 %v1899
        %1901 = vmatprep.subr.mxu0 0.0
        %v1902 = vand.u32 %v353, 4294901760
        %1903 = vmatpush1.msra.mxu0 %v1902
        %1904 = vmatprep.subr.mxu0 0.0
        %v1905 = vand.u32 %v354, 4294901760
        %1906 = vmatpush1.msra.mxu0 %v1905
        %1907 = vmatprep.subr.mxu0 0.0
        %v1908 = vand.u32 %v355, 4294901760
        %1909 = vmatpush1.msra.mxu0 %v1908
        %1910 = vmatprep.subr.mxu0 0.0
        %v1911 = vand.u32 %v356, 4294901760
        %1912 = vmatpush1.msra.mxu0 %v1911
        %1913 = vmatprep.subr.mxu0 0.0
        %v1914 = vand.u32 %v357, 4294901760
        %1915 = vmatpush1.msra.mxu0 %v1914
        %1916 = vmatprep.subr.mxu0 0.0
        %v1917 = vand.u32 %v358, 4294901760
        %1918 = vmatpush1.msra.mxu0 %v1917
        %v1919 = vand.u32 %v874, 4294901760
        %v1920 = vsub.f32 %v874, %v1919
        %v1921 = vand.u32 %v1920, 4294901760
        %1922 = vmatprep.mubr.f32.mxu0 %v1921
        %v1923 = vand.u32 %v872, 4294901760
        %v1924 = vsub.f32 %v872, %v1923
        %v1925 = vand.u32 %v1924, 4294901760
        %1926 = vmatmul.mubr.f32.gmra.mrb[0].mxu0 %v1925
        %v1927 = vpop.f32.mrb[0].mxu0
        %v1928 = vadd.f32 %v1820, %v1927
        %v1929 = vpop.f32.mrb[0].mxu0
        %1930 = vdwg.mxu0
        %1931 = vmatprep.subr.mxu0 0.0
        %v1932 = vand.u32 %v327, 4294901760
        %v1933 = vsub.f32 %v327, %v1932
        %v1934 = vand.u32 %v1933, 4294901760
        %1935 = vmatpush1.msra.mxu0 %v1934
        %1936 = vmatprep.subr.mxu0 0.0
        %v1937 = vand.u32 %v328, 4294901760
        %v1938 = vsub.f32 %v328, %v1937
        %v1939 = vand.u32 %v1938, 4294901760
        %1940 = vmatpush1.msra.mxu0 %v1939
        %1941 = vmatprep.subr.mxu0 0.0
        %v1942 = vand.u32 %v329, 4294901760
        %v1943 = vsub.f32 %v329, %v1942
        %v1944 = vand.u32 %v1943, 4294901760
        %1945 = vmatpush1.msra.mxu0 %v1944
        %1946 = vmatprep.subr.mxu0 0.0
        %v1947 = vand.u32 %v330, 4294901760
        %v1948 = vsub.f32 %v330, %v1947
        %v1949 = vand.u32 %v1948, 4294901760
        %1950 = vmatpush1.msra.mxu0 %v1949
        %1951 = vmatprep.subr.mxu0 0.0
        %v1952 = vand.u32 %v331, 4294901760
        %v1953 = vsub.f32 %v331, %v1952
        %v1954 = vand.u32 %v1953, 4294901760
        %1955 = vmatpush1.msra.mxu0 %v1954
        %1956 = vmatprep.subr.mxu0 0.0
        %v1957 = vand.u32 %v332, 4294901760
        %v1958 = vsub.f32 %v332, %v1957
        %v1959 = vand.u32 %v1958, 4294901760
        %1960 = vmatpush1.msra.mxu0 %v1959
        %1961 = vmatprep.subr.mxu0 0.0
        %v1962 = vand.u32 %v333, 4294901760
        %v1963 = vsub.f32 %v333, %v1962
        %v1964 = vand.u32 %v1963, 4294901760
        %1965 = vmatpush1.msra.mxu0 %v1964
        %1966 = vmatprep.subr.mxu0 0.0
        %v1967 = vand.u32 %v334, 4294901760
        %v1968 = vsub.f32 %v334, %v1967
        %v1969 = vand.u32 %v1968, 4294901760
        %1970 = vmatpush1.msra.mxu0 %v1969
        %1971 = vmatprep.subr.mxu0 0.0
        %v1972 = vand.u32 %v335, 4294901760
        %v1973 = vsub.f32 %v335, %v1972
        %v1974 = vand.u32 %v1973, 4294901760
        %1975 = vmatpush1.msra.mxu0 %v1974
        %1976 = vmatprep.subr.mxu0 0.0
        %v1977 = vand.u32 %v336, 4294901760
        %v1978 = vsub.f32 %v336, %v1977
        %v1979 = vand.u32 %v1978, 4294901760
        %1980 = vmatpush1.msra.mxu0 %v1979
        %1981 = vmatprep.subr.mxu0 0.0
        %v1982 = vand.u32 %v337, 4294901760
        %v1983 = vsub.f32 %v337, %v1982
        %v1984 = vand.u32 %v1983, 4294901760
        %1985 = vmatpush1.msra.mxu0 %v1984
        %1986 = vmatprep.subr.mxu0 0.0
        %v1987 = vand.u32 %v338, 4294901760
        %v1988 = vsub.f32 %v338, %v1987
        %v1989 = vand.u32 %v1988, 4294901760
        %1990 = vmatpush1.msra.mxu0 %v1989
        %1991 = vmatprep.subr.mxu0 0.0
        %v1992 = vand.u32 %v339, 4294901760
        %v1993 = vsub.f32 %v339, %v1992
        %v1994 = vand.u32 %v1993, 4294901760
        %1995 = vmatpush1.msra.mxu0 %v1994
        %1996 = vmatprep.subr.mxu0 0.0
        %v1997 = vand.u32 %v340, 4294901760
        %v1998 = vsub.f32 %v340, %v1997
        %v1999 = vand.u32 %v1998, 4294901760
        %2000 = vmatpush1.msra.mxu0 %v1999
        %2001 = vmatprep.subr.mxu0 0.0
        %v2002 = vand.u32 %v341, 4294901760
        %v2003 = vsub.f32 %v341, %v2002
        %v2004 = vand.u32 %v2003, 4294901760
        %2005 = vmatpush1.msra.mxu0 %v2004
        %2006 = vmatprep.subr.mxu0 0.0
        %v2007 = vand.u32 %v342, 4294901760
        %v2008 = vsub.f32 %v342, %v2007
        %v2009 = vand.u32 %v2008, 4294901760
        %2010 = vmatpush1.msra.mxu0 %v2009
        %2011 = vmatprep.subr.mxu0 0.0
        %v2012 = vand.u32 %v343, 4294901760
        %v2013 = vsub.f32 %v343, %v2012
        %v2014 = vand.u32 %v2013, 4294901760
        %2015 = vmatpush1.msra.mxu0 %v2014
        %2016 = vmatprep.subr.mxu0 0.0
        %v2017 = vand.u32 %v344, 4294901760
        %v2018 = vsub.f32 %v344, %v2017
        %v2019 = vand.u32 %v2018, 4294901760
        %2020 = vmatpush1.msra.mxu0 %v2019
        %2021 = vmatprep.subr.mxu0 0.0
        %v2022 = vand.u32 %v345, 4294901760
        %v2023 = vsub.f32 %v345, %v2022
        %v2024 = vand.u32 %v2023, 4294901760
        %2025 = vmatpush1.msra.mxu0 %v2024
        %2026 = vmatprep.subr.mxu0 0.0
        %v2027 = vand.u32 %v346, 4294901760
        %v2028 = vsub.f32 %v346, %v2027
        %v2029 = vand.u32 %v2028, 4294901760
        %2030 = vmatpush1.msra.mxu0 %v2029
        %2031 = vmatprep.subr.mxu0 0.0
        %v2032 = vand.u32 %v347, 4294901760
        %v2033 = vsub.f32 %v347, %v2032
        %v2034 = vand.u32 %v2033, 4294901760
        %2035 = vmatpush1.msra.mxu0 %v2034
        %2036 = vmatprep.subr.mxu0 0.0
        %v2037 = vand.u32 %v348, 4294901760
        %v2038 = vsub.f32 %v348, %v2037
        %v2039 = vand.u32 %v2038, 4294901760
        %2040 = vmatpush1.msra.mxu0 %v2039
        %2041 = vmatprep.subr.mxu0 0.0
        %v2042 = vand.u32 %v349, 4294901760
        %v2043 = vsub.f32 %v349, %v2042
        %v2044 = vand.u32 %v2043, 4294901760
        %2045 = vmatpush1.msra.mxu0 %v2044
        %2046 = vmatprep.subr.mxu0 0.0
        %v2047 = vand.u32 %v350, 4294901760
        %v2048 = vsub.f32 %v350, %v2047
        %v2049 = vand.u32 %v2048, 4294901760
        %2050 = vmatpush1.msra.mxu0 %v2049
        %2051 = vmatprep.subr.mxu0 0.0
        %v2052 = vand.u32 %v351, 4294901760
        %v2053 = vsub.f32 %v351, %v2052
        %v2054 = vand.u32 %v2053, 4294901760
        %2055 = vmatpush1.msra.mxu0 %v2054
        %2056 = vmatprep.subr.mxu0 0.0
        %v2057 = vand.u32 %v352, 4294901760
        %v2058 = vsub.f32 %v352, %v2057
        %v2059 = vand.u32 %v2058, 4294901760
        %2060 = vmatpush1.msra.mxu0 %v2059
        %2061 = vmatprep.subr.mxu0 0.0
        %v2062 = vand.u32 %v353, 4294901760
        %v2063 = vsub.f32 %v353, %v2062
        %v2064 = vand.u32 %v2063, 4294901760
        %2065 = vmatpush1.msra.mxu0 %v2064
        %2066 = vmatprep.subr.mxu0 0.0
        %v2067 = vand.u32 %v354, 4294901760
        %v2068 = vsub.f32 %v354, %v2067
        %v2069 = vand.u32 %v2068, 4294901760
        %2070 = vmatpush1.msra.mxu0 %v2069
        %2071 = vmatprep.subr.mxu0 0.0
        %v2072 = vand.u32 %v355, 4294901760
        %v2073 = vsub.f32 %v355, %v2072
        %v2074 = vand.u32 %v2073, 4294901760
        %2075 = vmatpush1.msra.mxu0 %v2074
        %2076 = vmatprep.subr.mxu0 0.0
        %v2077 = vand.u32 %v356, 4294901760
        %v2078 = vsub.f32 %v356, %v2077
        %v2079 = vand.u32 %v2078, 4294901760
        %2080 = vmatpush1.msra.mxu0 %v2079
        %2081 = vmatprep.subr.mxu0 0.0
        %v2082 = vand.u32 %v357, 4294901760
        %v2083 = vsub.f32 %v357, %v2082
        %v2084 = vand.u32 %v2083, 4294901760
        %2085 = vmatpush1.msra.mxu0 %v2084
        %2086 = vmatprep.subr.mxu0 0.0
        %v2087 = vand.u32 %v358, 4294901760
        %v2088 = vsub.f32 %v358, %v2087
        %v2089 = vand.u32 %v2088, 4294901760
        %2090 = vmatpush1.msra.mxu0 %v2089
        %v2091 = vand.u32 %v874, 4294901760
        %2092 = vmatprep.mubr.f32.mxu0 %v2091
        %v2093 = vand.u32 %v872, 4294901760
        %2094 = vmatmul.mubr.f32.gmra.mrb[0].mxu0 %v2093
        %v2095 = vpop.f32.mrb[0].mxu0
        %v2096 = vadd.f32 %v1928, %v2095
        %v2097 = vpop.f32.mrb[0].mxu0
        %2098 = vdwg.mxu0
        %2099 = vmatprep.subr.mxu0 0.0
        %v2100 = vand.u32 %v327, 4294901760
        %2101 = vmatpush1.msra.mxu0 %v2100
        %2102 = vmatprep.subr.mxu0 0.0
        %v2103 = vand.u32 %v328, 4294901760
        %2104 = vmatpush1.msra.mxu0 %v2103
        %2105 = vmatprep.subr.mxu0 0.0
        %v2106 = vand.u32 %v329, 4294901760
        %2107 = vmatpush1.msra.mxu0 %v2106
        %2108 = vmatprep.subr.mxu0 0.0
        %v2109 = vand.u32 %v330, 4294901760
        %2110 = vmatpush1.msra.mxu0 %v2109
        %2111 = vmatprep.subr.mxu0 0.0
        %v2112 = vand.u32 %v331, 4294901760
        %2113 = vmatpush1.msra.mxu0 %v2112
        %2114 = vmatprep.subr.mxu0 0.0
        %v2115 = vand.u32 %v332, 4294901760
        %2116 = vmatpush1.msra.mxu0 %v2115
        %2117 = vmatprep.subr.mxu0 0.0
        %v2118 = vand.u32 %v333, 4294901760
        %2119 = vmatpush1.msra.mxu0 %v2118
        %2120 = vmatprep.subr.mxu0 0.0
        %v2121 = vand.u32 %v334, 4294901760
        %2122 = vmatpush1.msra.mxu0 %v2121
        %2123 = vmatprep.subr.mxu0 0.0
        %v2124 = vand.u32 %v335, 4294901760
        %2125 = vmatpush1.msra.mxu0 %v2124
        %2126 = vmatprep.subr.mxu0 0.0
        %v2127 = vand.u32 %v336, 4294901760
        %2128 = vmatpush1.msra.mxu0 %v2127
        %2129 = vmatprep.subr.mxu0 0.0
        %v2130 = vand.u32 %v337, 4294901760
        %2131 = vmatpush1.msra.mxu0 %v2130
        %2132 = vmatprep.subr.mxu0 0.0
        %v2133 = vand.u32 %v338, 4294901760
        %2134 = vmatpush1.msra.mxu0 %v2133
        %2135 = vmatprep.subr.mxu0 0.0
        %v2136 = vand.u32 %v339, 4294901760
        %2137 = vmatpush1.msra.mxu0 %v2136
        %2138 = vmatprep.subr.mxu0 0.0
        %v2139 = vand.u32 %v340, 4294901760
        %2140 = vmatpush1.msra.mxu0 %v2139
        %2141 = vmatprep.subr.mxu0 0.0
        %v2142 = vand.u32 %v341, 4294901760
        %2143 = vmatpush1.msra.mxu0 %v2142
        %2144 = vmatprep.subr.mxu0 0.0
        %v2145 = vand.u32 %v342, 4294901760
        %2146 = vmatpush1.msra.mxu0 %v2145
        %2147 = vmatprep.subr.mxu0 0.0
        %v2148 = vand.u32 %v343, 4294901760
        %2149 = vmatpush1.msra.mxu0 %v2148
        %2150 = vmatprep.subr.mxu0 0.0
        %v2151 = vand.u32 %v344, 4294901760
        %2152 = vmatpush1.msra.mxu0 %v2151
        %2153 = vmatprep.subr.mxu0 0.0
        %v2154 = vand.u32 %v345, 4294901760
        %2155 = vmatpush1.msra.mxu0 %v2154
        %2156 = vmatprep.subr.mxu0 0.0
        %v2157 = vand.u32 %v346, 4294901760
        %2158 = vmatpush1.msra.mxu0 %v2157
        %2159 = vmatprep.subr.mxu0 0.0
        %v2160 = vand.u32 %v347, 4294901760
        %2161 = vmatpush1.msra.mxu0 %v2160
        %2162 = vmatprep.subr.mxu0 0.0
        %v2163 = vand.u32 %v348, 4294901760
        %2164 = vmatpush1.msra.mxu0 %v2163
        %2165 = vmatprep.subr.mxu0 0.0
        %v2166 = vand.u32 %v349, 4294901760
        %2167 = vmatpush1.msra.mxu0 %v2166
        %2168 = vmatprep.subr.mxu0 0.0
        %v2169 = vand.u32 %v350, 4294901760
        %2170 = vmatpush1.msra.mxu0 %v2169
        %2171 = vmatprep.subr.mxu0 0.0
        %v2172 = vand.u32 %v351, 4294901760
        %2173 = vmatpush1.msra.mxu0 %v2172
        %2174 = vmatprep.subr.mxu0 0.0
        %v2175 = vand.u32 %v352, 4294901760
        %2176 = vmatpush1.msra.mxu0 %v2175
        %2177 = vmatprep.subr.mxu0 0.0
        %v2178 = vand.u32 %v353, 4294901760
        %2179 = vmatpush1.msra.mxu0 %v2178
        %2180 = vmatprep.subr.mxu0 0.0
        %v2181 = vand.u32 %v354, 4294901760
        %2182 = vmatpush1.msra.mxu0 %v2181
        %2183 = vmatprep.subr.mxu0 0.0
        %v2184 = vand.u32 %v355, 4294901760
        %2185 = vmatpush1.msra.mxu0 %v2184
        %2186 = vmatprep.subr.mxu0 0.0
        %v2187 = vand.u32 %v356, 4294901760
        %2188 = vmatpush1.msra.mxu0 %v2187
        %2189 = vmatprep.subr.mxu0 0.0
        %v2190 = vand.u32 %v357, 4294901760
        %2191 = vmatpush1.msra.mxu0 %v2190
        %2192 = vmatprep.subr.mxu0 0.0
        %v2193 = vand.u32 %v358, 4294901760
        %2194 = vmatpush1.msra.mxu0 %v2193
        %v2195 = vand.u32 %v874, 4294901760
        %2196 = vmatprep.mubr.f32.mxu0 %v2195
        %v2197 = vand.u32 %v872, 4294901760
        %2198 = vmatmul.mubr.f32.gmra.mrb[0].mxu0 %v2197
        %v2199 = vpop.f32.mrb[0].mxu0
        %v2200 = vadd.f32 %v2096, %v2199
        %v2201 = vpop.f32.mrb[0].mxu0
        %2202 = vdwg.mxu0
        %2203 = vmatprep.subr.mxu0 0.0
        %v2204 = vand.u32 %v359, 4294901760
        %2205 = vmatpush1.msra.mxu0 %v2204
        %2206 = vmatprep.subr.mxu0 0.0
        %v2207 = vand.u32 %v360, 4294901760
        %2208 = vmatpush1.msra.mxu0 %v2207
        %2209 = vmatprep.subr.mxu0 0.0
        %v2210 = vand.u32 %v361, 4294901760
        %2211 = vmatpush1.msra.mxu0 %v2210
        %2212 = vmatprep.subr.mxu0 0.0
        %v2213 = vand.u32 %v362, 4294901760
        %2214 = vmatpush1.msra.mxu0 %v2213
        %2215 = vmatprep.subr.mxu0 0.0
        %v2216 = vand.u32 %v363, 4294901760
        %2217 = vmatpush1.msra.mxu0 %v2216
        %2218 = vmatprep.subr.mxu0 0.0
        %v2219 = vand.u32 %v364, 4294901760
        %2220 = vmatpush1.msra.mxu0 %v2219
        %2221 = vmatprep.subr.mxu0 0.0
        %v2222 = vand.u32 %v365, 4294901760
        %2223 = vmatpush1.msra.mxu0 %v2222
        %2224 = vmatprep.subr.mxu0 0.0
        %v2225 = vand.u32 %v366, 4294901760
        %2226 = vmatpush1.msra.mxu0 %v2225
        %2227 = vmatprep.subr.mxu0 0.0
        %v2228 = vand.u32 %v367, 4294901760
        %2229 = vmatpush1.msra.mxu0 %v2228
        %2230 = vmatprep.subr.mxu0 0.0
        %v2231 = vand.u32 %v368, 4294901760
        %2232 = vmatpush1.msra.mxu0 %v2231
        %2233 = vmatprep.subr.mxu0 0.0
        %v2234 = vand.u32 %v369, 4294901760
        %2235 = vmatpush1.msra.mxu0 %v2234
        %2236 = vmatprep.subr.mxu0 0.0
        %v2237 = vand.u32 %v370, 4294901760
        %2238 = vmatpush1.msra.mxu0 %v2237
        %2239 = vmatprep.subr.mxu0 0.0
        %v2240 = vand.u32 %v371, 4294901760
        %2241 = vmatpush1.msra.mxu0 %v2240
        %2242 = vmatprep.subr.mxu0 0.0
        %v2243 = vand.u32 %v372, 4294901760
        %2244 = vmatpush1.msra.mxu0 %v2243
        %2245 = vmatprep.subr.mxu0 0.0
        %v2246 = vand.u32 %v373, 4294901760
        %2247 = vmatpush1.msra.mxu0 %v2246
        %2248 = vmatprep.subr.mxu0 0.0
        %v2249 = vand.u32 %v374, 4294901760
        %2250 = vmatpush1.msra.mxu0 %v2249
        %2251 = vmatprep.subr.mxu0 0.0
        %v2252 = vand.u32 %v375, 4294901760
        %2253 = vmatpush1.msra.mxu0 %v2252
        %2254 = vmatprep.subr.mxu0 0.0
        %v2255 = vand.u32 %v376, 4294901760
        %2256 = vmatpush1.msra.mxu0 %v2255
        %2257 = vmatprep.subr.mxu0 0.0
        %v2258 = vand.u32 %v377, 4294901760
        %2259 = vmatpush1.msra.mxu0 %v2258
        %2260 = vmatprep.subr.mxu0 0.0
        %v2261 = vand.u32 %v378, 4294901760
        %2262 = vmatpush1.msra.mxu0 %v2261
        %2263 = vmatprep.subr.mxu0 0.0
        %v2264 = vand.u32 %v379, 4294901760
        %2265 = vmatpush1.msra.mxu0 %v2264
        %2266 = vmatprep.subr.mxu0 0.0
        %v2267 = vand.u32 %v380, 4294901760
        %2268 = vmatpush1.msra.mxu0 %v2267
        %2269 = vmatprep.subr.mxu0 0.0
        %v2270 = vand.u32 %v381, 4294901760
        %2271 = vmatpush1.msra.mxu0 %v2270
        %2272 = vmatprep.subr.mxu0 0.0
        %v2273 = vand.u32 %v382, 4294901760
        %2274 = vmatpush1.msra.mxu0 %v2273
        %2275 = vmatprep.subr.mxu0 0.0
        %v2276 = vand.u32 %v383, 4294901760
        %2277 = vmatpush1.msra.mxu0 %v2276
        %2278 = vmatprep.subr.mxu0 0.0
        %v2279 = vand.u32 %v384, 4294901760
        %2280 = vmatpush1.msra.mxu0 %v2279
        %2281 = vmatprep.subr.mxu0 0.0
        %v2282 = vand.u32 %v385, 4294901760
        %2283 = vmatpush1.msra.mxu0 %v2282
        %2284 = vmatprep.subr.mxu0 0.0
        %v2285 = vand.u32 %v386, 4294901760
        %2286 = vmatpush1.msra.mxu0 %v2285
        %2287 = vmatprep.subr.mxu0 0.0
        %v2288 = vand.u32 %v387, 4294901760
        %2289 = vmatpush1.msra.mxu0 %v2288
        %2290 = vmatprep.subr.mxu0 0.0
        %v2291 = vand.u32 %v388, 4294901760
        %2292 = vmatpush1.msra.mxu0 %v2291
        %2293 = vmatprep.subr.mxu0 0.0
        %v2294 = vand.u32 %v389, 4294901760
        %2295 = vmatpush1.msra.mxu0 %v2294
        %2296 = vmatprep.subr.mxu0 0.0
        %v2297 = vand.u32 %v390, 4294901760
        %2298 = vmatpush1.msra.mxu0 %v2297
        %v2299 = vand.u32 %v1339, 4294901760
        %v2300 = vsub.f32 %v1339, %v2299
        %v2301 = vand.u32 %v2300, 4294901760
        %v2302 = vsub.f32 %v2300, %v2301
        %v2303 = vand.u32 %v2302, 4294901760
        %2304 = vmatprep.mubr.f32.mxu0 %v2303
        %v2305 = vand.u32 %v1337, 4294901760
        %v2306 = vsub.f32 %v1337, %v2305
        %v2307 = vand.u32 %v2306, 4294901760
        %v2308 = vsub.f32 %v2306, %v2307
        %v2309 = vand.u32 %v2308, 4294901760
        %2310 = vmatmul.mubr.f32.gmra.mrb[0].mxu0 %v2309
        %v2311 = vpop.f32.mrb[0].mxu0
        %v2312 = vadd.f32 %v2200, %v2311
        %v2313 = vpop.f32.mrb[0].mxu0
        %2314 = vdwg.mxu0
        %2315 = vmatprep.subr.mxu0 0.0
        %v2316 = vand.u32 %v359, 4294901760
        %v2317 = vsub.f32 %v359, %v2316
        %v2318 = vand.u32 %v2317, 4294901760
        %v2319 = vsub.f32 %v2317, %v2318
        %v2320 = vand.u32 %v2319, 4294901760
        %2321 = vmatpush1.msra.mxu0 %v2320
        %2322 = vmatprep.subr.mxu0 0.0
        %v2323 = vand.u32 %v360, 4294901760
        %v2324 = vsub.f32 %v360, %v2323
        %v2325 = vand.u32 %v2324, 4294901760
        %v2326 = vsub.f32 %v2324, %v2325
        %v2327 = vand.u32 %v2326, 4294901760
        %2328 = vmatpush1.msra.mxu0 %v2327
        %2329 = vmatprep.subr.mxu0 0.0
        %v2330 = vand.u32 %v361, 4294901760
        %v2331 = vsub.f32 %v361, %v2330
        %v2332 = vand.u32 %v2331, 4294901760
        %v2333 = vsub.f32 %v2331, %v2332
        %v2334 = vand.u32 %v2333, 4294901760
        %2335 = vmatpush1.msra.mxu0 %v2334
        %2336 = vmatprep.subr.mxu0 0.0
        %v2337 = vand.u32 %v362, 4294901760
        %v2338 = vsub.f32 %v362, %v2337
        %v2339 = vand.u32 %v2338, 4294901760
        %v2340 = vsub.f32 %v2338, %v2339
        %v2341 = vand.u32 %v2340, 4294901760
        %2342 = vmatpush1.msra.mxu0 %v2341
        %2343 = vmatprep.subr.mxu0 0.0
        %v2344 = vand.u32 %v363, 4294901760
        %v2345 = vsub.f32 %v363, %v2344
        %v2346 = vand.u32 %v2345, 4294901760
        %v2347 = vsub.f32 %v2345, %v2346
        %v2348 = vand.u32 %v2347, 4294901760
        %2349 = vmatpush1.msra.mxu0 %v2348
        %2350 = vmatprep.subr.mxu0 0.0
        %v2351 = vand.u32 %v364, 4294901760
        %v2352 = vsub.f32 %v364, %v2351
        %v2353 = vand.u32 %v2352, 4294901760
        %v2354 = vsub.f32 %v2352, %v2353
        %v2355 = vand.u32 %v2354, 4294901760
        %2356 = vmatpush1.msra.mxu0 %v2355
        %2357 = vmatprep.subr.mxu0 0.0
        %v2358 = vand.u32 %v365, 4294901760
        %v2359 = vsub.f32 %v365, %v2358
        %v2360 = vand.u32 %v2359, 4294901760
        %v2361 = vsub.f32 %v2359, %v2360
        %v2362 = vand.u32 %v2361, 4294901760
        %2363 = vmatpush1.msra.mxu0 %v2362
        %2364 = vmatprep.subr.mxu0 0.0
        %v2365 = vand.u32 %v366, 4294901760
        %v2366 = vsub.f32 %v366, %v2365
        %v2367 = vand.u32 %v2366, 4294901760
        %v2368 = vsub.f32 %v2366, %v2367
        %v2369 = vand.u32 %v2368, 4294901760
        %2370 = vmatpush1.msra.mxu0 %v2369
        %2371 = vmatprep.subr.mxu0 0.0
        %v2372 = vand.u32 %v367, 4294901760
        %v2373 = vsub.f32 %v367, %v2372
        %v2374 = vand.u32 %v2373, 4294901760
        %v2375 = vsub.f32 %v2373, %v2374
        %v2376 = vand.u32 %v2375, 4294901760
        %2377 = vmatpush1.msra.mxu0 %v2376
        %2378 = vmatprep.subr.mxu0 0.0
        %v2379 = vand.u32 %v368, 4294901760
        %v2380 = vsub.f32 %v368, %v2379
        %v2381 = vand.u32 %v2380, 4294901760
        %v2382 = vsub.f32 %v2380, %v2381
        %v2383 = vand.u32 %v2382, 4294901760
        %2384 = vmatpush1.msra.mxu0 %v2383
        %2385 = vmatprep.subr.mxu0 0.0
        %v2386 = vand.u32 %v369, 4294901760
        %v2387 = vsub.f32 %v369, %v2386
        %v2388 = vand.u32 %v2387, 4294901760
        %v2389 = vsub.f32 %v2387, %v2388
        %v2390 = vand.u32 %v2389, 4294901760
        %2391 = vmatpush1.msra.mxu0 %v2390
        %2392 = vmatprep.subr.mxu0 0.0
        %v2393 = vand.u32 %v370, 4294901760
        %v2394 = vsub.f32 %v370, %v2393
        %v2395 = vand.u32 %v2394, 4294901760
        %v2396 = vsub.f32 %v2394, %v2395
        %v2397 = vand.u32 %v2396, 4294901760
        %2398 = vmatpush1.msra.mxu0 %v2397
        %2399 = vmatprep.subr.mxu0 0.0
        %v2400 = vand.u32 %v371, 4294901760
        %v2401 = vsub.f32 %v371, %v2400
        %v2402 = vand.u32 %v2401, 4294901760
        %v2403 = vsub.f32 %v2401, %v2402
        %v2404 = vand.u32 %v2403, 4294901760
        %2405 = vmatpush1.msra.mxu0 %v2404
        %2406 = vmatprep.subr.mxu0 0.0
        %v2407 = vand.u32 %v372, 4294901760
        %v2408 = vsub.f32 %v372, %v2407
        %v2409 = vand.u32 %v2408, 4294901760
        %v2410 = vsub.f32 %v2408, %v2409
        %v2411 = vand.u32 %v2410, 4294901760
        %2412 = vmatpush1.msra.mxu0 %v2411
        %2413 = vmatprep.subr.mxu0 0.0
        %v2414 = vand.u32 %v373, 4294901760
        %v2415 = vsub.f32 %v373, %v2414
        %v2416 = vand.u32 %v2415, 4294901760
        %v2417 = vsub.f32 %v2415, %v2416
        %v2418 = vand.u32 %v2417, 4294901760
        %2419 = vmatpush1.msra.mxu0 %v2418
        %2420 = vmatprep.subr.mxu0 0.0
        %v2421 = vand.u32 %v374, 4294901760
        %v2422 = vsub.f32 %v374, %v2421
        %v2423 = vand.u32 %v2422, 4294901760
        %v2424 = vsub.f32 %v2422, %v2423
        %v2425 = vand.u32 %v2424, 4294901760
        %2426 = vmatpush1.msra.mxu0 %v2425
        %2427 = vmatprep.subr.mxu0 0.0
        %v2428 = vand.u32 %v375, 4294901760
        %v2429 = vsub.f32 %v375, %v2428
        %v2430 = vand.u32 %v2429, 4294901760
        %v2431 = vsub.f32 %v2429, %v2430
        %v2432 = vand.u32 %v2431, 4294901760
        %2433 = vmatpush1.msra.mxu0 %v2432
        %2434 = vmatprep.subr.mxu0 0.0
        %v2435 = vand.u32 %v376, 4294901760
        %v2436 = vsub.f32 %v376, %v2435
        %v2437 = vand.u32 %v2436, 4294901760
        %v2438 = vsub.f32 %v2436, %v2437
        %v2439 = vand.u32 %v2438, 4294901760
        %2440 = vmatpush1.msra.mxu0 %v2439
        %2441 = vmatprep.subr.mxu0 0.0
        %v2442 = vand.u32 %v377, 4294901760
        %v2443 = vsub.f32 %v377, %v2442
        %v2444 = vand.u32 %v2443, 4294901760
        %v2445 = vsub.f32 %v2443, %v2444
        %v2446 = vand.u32 %v2445, 4294901760
        %2447 = vmatpush1.msra.mxu0 %v2446
        %2448 = vmatprep.subr.mxu0 0.0
        %v2449 = vand.u32 %v378, 4294901760
        %v2450 = vsub.f32 %v378, %v2449
        %v2451 = vand.u32 %v2450, 4294901760
        %v2452 = vsub.f32 %v2450, %v2451
        %v2453 = vand.u32 %v2452, 4294901760
        %2454 = vmatpush1.msra.mxu0 %v2453
        %2455 = vmatprep.subr.mxu0 0.0
        %v2456 = vand.u32 %v379, 4294901760
        %v2457 = vsub.f32 %v379, %v2456
        %v2458 = vand.u32 %v2457, 4294901760
        %v2459 = vsub.f32 %v2457, %v2458
        %v2460 = vand.u32 %v2459, 4294901760
        %2461 = vmatpush1.msra.mxu0 %v2460
        %2462 = vmatprep.subr.mxu0 0.0
        %v2463 = vand.u32 %v380, 4294901760
        %v2464 = vsub.f32 %v380, %v2463
        %v2465 = vand.u32 %v2464, 4294901760
        %v2466 = vsub.f32 %v2464, %v2465
        %v2467 = vand.u32 %v2466, 4294901760
        %2468 = vmatpush1.msra.mxu0 %v2467
        %2469 = vmatprep.subr.mxu0 0.0
        %v2470 = vand.u32 %v381, 4294901760
        %v2471 = vsub.f32 %v381, %v2470
        %v2472 = vand.u32 %v2471, 4294901760
        %v2473 = vsub.f32 %v2471, %v2472
        %v2474 = vand.u32 %v2473, 4294901760
        %2475 = vmatpush1.msra.mxu0 %v2474
        %2476 = vmatprep.subr.mxu0 0.0
        %v2477 = vand.u32 %v382, 4294901760
        %v2478 = vsub.f32 %v382, %v2477
        %v2479 = vand.u32 %v2478, 4294901760
        %v2480 = vsub.f32 %v2478, %v2479
        %v2481 = vand.u32 %v2480, 4294901760
        %2482 = vmatpush1.msra.mxu0 %v2481
        %2483 = vmatprep.subr.mxu0 0.0
        %v2484 = vand.u32 %v383, 4294901760
        %v2485 = vsub.f32 %v383, %v2484
        %v2486 = vand.u32 %v2485, 4294901760
        %v2487 = vsub.f32 %v2485, %v2486
        %v2488 = vand.u32 %v2487, 4294901760
        %2489 = vmatpush1.msra.mxu0 %v2488
        %2490 = vmatprep.subr.mxu0 0.0
        %v2491 = vand.u32 %v384, 4294901760
        %v2492 = vsub.f32 %v384, %v2491
        %v2493 = vand.u32 %v2492, 4294901760
        %v2494 = vsub.f32 %v2492, %v2493
        %v2495 = vand.u32 %v2494, 4294901760
        %2496 = vmatpush1.msra.mxu0 %v2495
        %2497 = vmatprep.subr.mxu0 0.0
        %v2498 = vand.u32 %v385, 4294901760
        %v2499 = vsub.f32 %v385, %v2498
        %v2500 = vand.u32 %v2499, 4294901760
        %v2501 = vsub.f32 %v2499, %v2500
        %v2502 = vand.u32 %v2501, 4294901760
        %2503 = vmatpush1.msra.mxu0 %v2502
        %2504 = vmatprep.subr.mxu0 0.0
        %v2505 = vand.u32 %v386, 4294901760
        %v2506 = vsub.f32 %v386, %v2505
        %v2507 = vand.u32 %v2506, 4294901760
        %v2508 = vsub.f32 %v2506, %v2507
        %v2509 = vand.u32 %v2508, 4294901760
        %2510 = vmatpush1.msra.mxu0 %v2509
        %2511 = vmatprep.subr.mxu0 0.0
        %v2512 = vand.u32 %v387, 4294901760
        %v2513 = vsub.f32 %v387, %v2512
        %v2514 = vand.u32 %v2513, 4294901760
        %v2515 = vsub.f32 %v2513, %v2514
        %v2516 = vand.u32 %v2515, 4294901760
        %2517 = vmatpush1.msra.mxu0 %v2516
        %2518 = vmatprep.subr.mxu0 0.0
        %v2519 = vand.u32 %v388, 4294901760
        %v2520 = vsub.f32 %v388, %v2519
        %v2521 = vand.u32 %v2520, 4294901760
        %v2522 = vsub.f32 %v2520, %v2521
        %v2523 = vand.u32 %v2522, 4294901760
        %2524 = vmatpush1.msra.mxu0 %v2523
        %2525 = vmatprep.subr.mxu0 0.0
        %v2526 = vand.u32 %v389, 4294901760
        %v2527 = vsub.f32 %v389, %v2526
        %v2528 = vand.u32 %v2527, 4294901760
        %v2529 = vsub.f32 %v2527, %v2528
        %v2530 = vand.u32 %v2529, 4294901760
        %2531 = vmatpush1.msra.mxu0 %v2530
        %2532 = vmatprep.subr.mxu0 0.0
        %v2533 = vand.u32 %v390, 4294901760
        %v2534 = vsub.f32 %v390, %v2533
        %v2535 = vand.u32 %v2534, 4294901760
        %v2536 = vsub.f32 %v2534, %v2535
        %v2537 = vand.u32 %v2536, 4294901760
        %2538 = vmatpush1.msra.mxu0 %v2537
        %v2539 = vand.u32 %v1339, 4294901760
        %2540 = vmatprep.mubr.f32.mxu0 %v2539
        %v2541 = vand.u32 %v1337, 4294901760
        %2542 = vmatmul.mubr.f32.gmra.mrb[0].mxu0 %v2541
        %v2543 = vpop.f32.mrb[0].mxu0
        %v2544 = vadd.f32 %v2312, %v2543
        %v2545 = vpop.f32.mrb[0].mxu0
        %2546 = vdwg.mxu0
        %2547 = vmatprep.subr.mxu0 0.0
        %v2548 = vand.u32 %v359, 4294901760
        %v2549 = vsub.f32 %v359, %v2548
        %2550 = vmatpush1.msra.mxu0 %v2549
        %2551 = vmatprep.subr.mxu0 0.0
        %v2552 = vand.u32 %v360, 4294901760
        %v2553 = vsub.f32 %v360, %v2552
        %2554 = vmatpush1.msra.mxu0 %v2553
        %2555 = vmatprep.subr.mxu0 0.0
        %v2556 = vand.u32 %v361, 4294901760
        %v2557 = vsub.f32 %v361, %v2556
        %2558 = vmatpush1.msra.mxu0 %v2557
        %2559 = vmatprep.subr.mxu0 0.0
        %v2560 = vand.u32 %v362, 4294901760
        %v2561 = vsub.f32 %v362, %v2560
        %2562 = vmatpush1.msra.mxu0 %v2561
        %2563 = vmatprep.subr.mxu0 0.0
        %v2564 = vand.u32 %v363, 4294901760
        %v2565 = vsub.f32 %v363, %v2564
        %2566 = vmatpush1.msra.mxu0 %v2565
        %2567 = vmatprep.subr.mxu0 0.0
        %v2568 = vand.u32 %v364, 4294901760
        %v2569 = vsub.f32 %v364, %v2568
        %2570 = vmatpush1.msra.mxu0 %v2569
        %2571 = vmatprep.subr.mxu0 0.0
        %v2572 = vand.u32 %v365, 4294901760
        %v2573 = vsub.f32 %v365, %v2572
        %2574 = vmatpush1.msra.mxu0 %v2573
        %2575 = vmatprep.subr.mxu0 0.0
        %v2576 = vand.u32 %v366, 4294901760
        %v2577 = vsub.f32 %v366, %v2576
        %2578 = vmatpush1.msra.mxu0 %v2577
        %2579 = vmatprep.subr.mxu0 0.0
        %v2580 = vand.u32 %v367, 4294901760
        %v2581 = vsub.f32 %v367, %v2580
        %2582 = vmatpush1.msra.mxu0 %v2581
        %2583 = vmatprep.subr.mxu0 0.0
        %v2584 = vand.u32 %v368, 4294901760
        %v2585 = vsub.f32 %v368, %v2584
        %2586 = vmatpush1.msra.mxu0 %v2585
        %2587 = vmatprep.subr.mxu0 0.0
        %v2588 = vand.u32 %v369, 4294901760
        %v2589 = vsub.f32 %v369, %v2588
        %2590 = vmatpush1.msra.mxu0 %v2589
        %2591 = vmatprep.subr.mxu0 0.0
        %v2592 = vand.u32 %v370, 4294901760
        %v2593 = vsub.f32 %v370, %v2592
        %2594 = vmatpush1.msra.mxu0 %v2593
        %2595 = vmatprep.subr.mxu0 0.0
        %v2596 = vand.u32 %v371, 4294901760
        %v2597 = vsub.f32 %v371, %v2596
        %2598 = vmatpush1.msra.mxu0 %v2597
        %2599 = vmatprep.subr.mxu0 0.0
        %v2600 = vand.u32 %v372, 4294901760
        %v2601 = vsub.f32 %v372, %v2600
        %2602 = vmatpush1.msra.mxu0 %v2601
        %2603 = vmatprep.subr.mxu0 0.0
        %v2604 = vand.u32 %v373, 4294901760
        %v2605 = vsub.f32 %v373, %v2604
        %2606 = vmatpush1.msra.mxu0 %v2605
        %2607 = vmatprep.subr.mxu0 0.0
        %v2608 = vand.u32 %v374, 4294901760
        %v2609 = vsub.f32 %v374, %v2608
        %2610 = vmatpush1.msra.mxu0 %v2609
        %2611 = vmatprep.subr.mxu0 0.0
        %v2612 = vand.u32 %v375, 4294901760
        %v2613 = vsub.f32 %v375, %v2612
        %2614 = vmatpush1.msra.mxu0 %v2613
        %2615 = vmatprep.subr.mxu0 0.0
        %v2616 = vand.u32 %v376, 4294901760
        %v2617 = vsub.f32 %v376, %v2616
        %2618 = vmatpush1.msra.mxu0 %v2617
        %2619 = vmatprep.subr.mxu0 0.0
        %v2620 = vand.u32 %v377, 4294901760
        %v2621 = vsub.f32 %v377, %v2620
        %2622 = vmatpush1.msra.mxu0 %v2621
        %2623 = vmatprep.subr.mxu0 0.0
        %v2624 = vand.u32 %v378, 4294901760
        %v2625 = vsub.f32 %v378, %v2624
        %2626 = vmatpush1.msra.mxu0 %v2625
        %2627 = vmatprep.subr.mxu0 0.0
        %v2628 = vand.u32 %v379, 4294901760
        %v2629 = vsub.f32 %v379, %v2628
        %2630 = vmatpush1.msra.mxu0 %v2629
        %2631 = vmatprep.subr.mxu0 0.0
        %v2632 = vand.u32 %v380, 4294901760
        %v2633 = vsub.f32 %v380, %v2632
        %2634 = vmatpush1.msra.mxu0 %v2633
        %2635 = vmatprep.subr.mxu0 0.0
        %v2636 = vand.u32 %v381, 4294901760
        %v2637 = vsub.f32 %v381, %v2636
        %2638 = vmatpush1.msra.mxu0 %v2637
        %2639 = vmatprep.subr.mxu0 0.0
        %v2640 = vand.u32 %v382, 4294901760
        %v2641 = vsub.f32 %v382, %v2640
        %2642 = vmatpush1.msra.mxu0 %v2641
        %2643 = vmatprep.subr.mxu0 0.0
        %v2644 = vand.u32 %v383, 4294901760
        %v2645 = vsub.f32 %v383, %v2644
        %2646 = vmatpush1.msra.mxu0 %v2645
        %2647 = vmatprep.subr.mxu0 0.0
        %v2648 = vand.u32 %v384, 4294901760
        %v2649 = vsub.f32 %v384, %v2648
        %2650 = vmatpush1.msra.mxu0 %v2649
        %2651 = vmatprep.subr.mxu0 0.0
        %v2652 = vand.u32 %v385, 4294901760
        %v2653 = vsub.f32 %v385, %v2652
        %2654 = vmatpush1.msra.mxu0 %v2653
        %2655 = vmatprep.subr.mxu0 0.0
        %v2656 = vand.u32 %v386, 4294901760
        %v2657 = vsub.f32 %v386, %v2656
        %2658 = vmatpush1.msra.mxu0 %v2657
        %2659 = vmatprep.subr.mxu0 0.0
        %v2660 = vand.u32 %v387, 4294901760
        %v2661 = vsub.f32 %v387, %v2660
        %2662 = vmatpush1.msra.mxu0 %v2661
        %2663 = vmatprep.subr.mxu0 0.0
        %v2664 = vand.u32 %v388, 4294901760
        %v2665 = vsub.f32 %v388, %v2664
        %2666 = vmatpush1.msra.mxu0 %v2665
        %2667 = vmatprep.subr.mxu0 0.0
        %v2668 = vand.u32 %v389, 4294901760
        %v2669 = vsub.f32 %v389, %v2668
        %2670 = vmatpush1.msra.mxu0 %v2669
        %2671 = vmatprep.subr.mxu0 0.0
        %v2672 = vand.u32 %v390, 4294901760
        %v2673 = vsub.f32 %v390, %v2672
        %2674 = vmatpush1.msra.mxu0 %v2673
        %v2675 = vand.u32 %v1339, 4294901760
        %v2676 = vsub.f32 %v1339, %v2675
        %2677 = vmatprep.mubr.f32.mxu0 %v2676
        %v2678 = vand.u32 %v1337, 4294901760
        %v2679 = vsub.f32 %v1337, %v2678
        %2680 = vmatmul.mubr.f32.gmra.mrb[0].mxu0 %v2679
        %v2681 = vpop.f32.mrb[0].mxu0
        %v2682 = vadd.f32 %v2544, %v2681
        %v2683 = vpop.f32.mrb[0].mxu0
        %2684 = vdwg.mxu0
        %2685 = vmatprep.subr.mxu0 0.0
        %v2686 = vand.u32 %v359, 4294901760
        %2687 = vmatpush1.msra.mxu0 %v2686
        %2688 = vmatprep.subr.mxu0 0.0
        %v2689 = vand.u32 %v360, 4294901760
        %2690 = vmatpush1.msra.mxu0 %v2689
        %2691 = vmatprep.subr.mxu0 0.0
        %v2692 = vand.u32 %v361, 4294901760
        %2693 = vmatpush1.msra.mxu0 %v2692
        %2694 = vmatprep.subr.mxu0 0.0
        %v2695 = vand.u32 %v362, 4294901760
        %2696 = vmatpush1.msra.mxu0 %v2695
        %2697 = vmatprep.subr.mxu0 0.0
        %v2698 = vand.u32 %v363, 4294901760
        %2699 = vmatpush1.msra.mxu0 %v2698
        %2700 = vmatprep.subr.mxu0 0.0
        %v2701 = vand.u32 %v364, 4294901760
        %2702 = vmatpush1.msra.mxu0 %v2701
        %2703 = vmatprep.subr.mxu0 0.0
        %v2704 = vand.u32 %v365, 4294901760
        %2705 = vmatpush1.msra.mxu0 %v2704
        %2706 = vmatprep.subr.mxu0 0.0
        %v2707 = vand.u32 %v366, 4294901760
        %2708 = vmatpush1.msra.mxu0 %v2707
        %2709 = vmatprep.subr.mxu0 0.0
        %v2710 = vand.u32 %v367, 4294901760
        %2711 = vmatpush1.msra.mxu0 %v2710
        %2712 = vmatprep.subr.mxu0 0.0
        %v2713 = vand.u32 %v368, 4294901760
        %2714 = vmatpush1.msra.mxu0 %v2713
        %2715 = vmatprep.subr.mxu0 0.0
        %v2716 = vand.u32 %v369, 4294901760
        %2717 = vmatpush1.msra.mxu0 %v2716
        %2718 = vmatprep.subr.mxu0 0.0
        %v2719 = vand.u32 %v370, 4294901760
        %2720 = vmatpush1.msra.mxu0 %v2719
        %2721 = vmatprep.subr.mxu0 0.0
        %v2722 = vand.u32 %v371, 4294901760
        %2723 = vmatpush1.msra.mxu0 %v2722
        %2724 = vmatprep.subr.mxu0 0.0
        %v2725 = vand.u32 %v372, 4294901760
        %2726 = vmatpush1.msra.mxu0 %v2725
        %2727 = vmatprep.subr.mxu0 0.0
        %v2728 = vand.u32 %v373, 4294901760
        %2729 = vmatpush1.msra.mxu0 %v2728
        %2730 = vmatprep.subr.mxu0 0.0
        %v2731 = vand.u32 %v374, 4294901760
        %2732 = vmatpush1.msra.mxu0 %v2731
        %2733 = vmatprep.subr.mxu0 0.0
        %v2734 = vand.u32 %v375, 4294901760
        %2735 = vmatpush1.msra.mxu0 %v2734
        %2736 = vmatprep.subr.mxu0 0.0
        %v2737 = vand.u32 %v376, 4294901760
        %2738 = vmatpush1.msra.mxu0 %v2737
        %2739 = vmatprep.subr.mxu0 0.0
        %v2740 = vand.u32 %v377, 4294901760
        %2741 = vmatpush1.msra.mxu0 %v2740
        %2742 = vmatprep.subr.mxu0 0.0
        %v2743 = vand.u32 %v378, 4294901760
        %2744 = vmatpush1.msra.mxu0 %v2743
        %2745 = vmatprep.subr.mxu0 0.0
        %v2746 = vand.u32 %v379, 4294901760
        %2747 = vmatpush1.msra.mxu0 %v2746
        %2748 = vmatprep.subr.mxu0 0.0
        %v2749 = vand.u32 %v380, 4294901760
        %2750 = vmatpush1.msra.mxu0 %v2749
        %2751 = vmatprep.subr.mxu0 0.0
        %v2752 = vand.u32 %v381, 4294901760
        %2753 = vmatpush1.msra.mxu0 %v2752
        %2754 = vmatprep.subr.mxu0 0.0
        %v2755 = vand.u32 %v382, 4294901760
        %2756 = vmatpush1.msra.mxu0 %v2755
        %2757 = vmatprep.subr.mxu0 0.0
        %v2758 = vand.u32 %v383, 4294901760
        %2759 = vmatpush1.msra.mxu0 %v2758
        %2760 = vmatprep.subr.mxu0 0.0
        %v2761 = vand.u32 %v384, 4294901760
        %2762 = vmatpush1.msra.mxu0 %v2761
        %2763 = vmatprep.subr.mxu0 0.0
        %v2764 = vand.u32 %v385, 4294901760
        %2765 = vmatpush1.msra.mxu0 %v2764
        %2766 = vmatprep.subr.mxu0 0.0
        %v2767 = vand.u32 %v386, 4294901760
        %2768 = vmatpush1.msra.mxu0 %v2767
        %2769 = vmatprep.subr.mxu0 0.0
        %v2770 = vand.u32 %v387, 4294901760
        %2771 = vmatpush1.msra.mxu0 %v2770
        %2772 = vmatprep.subr.mxu0 0.0
        %v2773 = vand.u32 %v388, 4294901760
        %2774 = vmatpush1.msra.mxu0 %v2773
        %2775 = vmatprep.subr.mxu0 0.0
        %v2776 = vand.u32 %v389, 4294901760
        %2777 = vmatpush1.msra.mxu0 %v2776
        %2778 = vmatprep.subr.mxu0 0.0
        %v2779 = vand.u32 %v390, 4294901760
        %2780 = vmatpush1.msra.mxu0 %v2779
        %v2781 = vand.u32 %v1339, 4294901760
        %v2782 = vsub.f32 %v1339, %v2781
        %v2783 = vand.u32 %v2782, 4294901760
        %2784 = vmatprep.mubr.f32.mxu0 %v2783
        %v2785 = vand.u32 %v1337, 4294901760
        %v2786 = vsub.f32 %v1337, %v2785
        %v2787 = vand.u32 %v2786, 4294901760
        %2788 = vmatmul.mubr.f32.gmra.mrb[0].mxu0 %v2787
        %v2789 = vpop.f32.mrb[0].mxu0
        %v2790 = vadd.f32 %v2682, %v2789
        %v2791 = vpop.f32.mrb[0].mxu0
        %2792 = vdwg.mxu0
        %2793 = vmatprep.subr.mxu0 0.0
        %v2794 = vand.u32 %v359, 4294901760
        %v2795 = vsub.f32 %v359, %v2794
        %v2796 = vand.u32 %v2795, 4294901760
        %2797 = vmatpush1.msra.mxu0 %v2796
        %2798 = vmatprep.subr.mxu0 0.0
        %v2799 = vand.u32 %v360, 4294901760
        %v2800 = vsub.f32 %v360, %v2799
        %v2801 = vand.u32 %v2800, 4294901760
        %2802 = vmatpush1.msra.mxu0 %v2801
        %2803 = vmatprep.subr.mxu0 0.0
        %v2804 = vand.u32 %v361, 4294901760
        %v2805 = vsub.f32 %v361, %v2804
        %v2806 = vand.u32 %v2805, 4294901760
        %2807 = vmatpush1.msra.mxu0 %v2806
        %2808 = vmatprep.subr.mxu0 0.0
        %v2809 = vand.u32 %v362, 4294901760
        %v2810 = vsub.f32 %v362, %v2809
        %v2811 = vand.u32 %v2810, 4294901760
        %2812 = vmatpush1.msra.mxu0 %v2811
        %2813 = vmatprep.subr.mxu0 0.0
        %v2814 = vand.u32 %v363, 4294901760
        %v2815 = vsub.f32 %v363, %v2814
        %v2816 = vand.u32 %v2815, 4294901760
        %2817 = vmatpush1.msra.mxu0 %v2816
        %2818 = vmatprep.subr.mxu0 0.0
        %v2819 = vand.u32 %v364, 4294901760
        %v2820 = vsub.f32 %v364, %v2819
        %v2821 = vand.u32 %v2820, 4294901760
        %2822 = vmatpush1.msra.mxu0 %v2821
        %2823 = vmatprep.subr.mxu0 0.0
        %v2824 = vand.u32 %v365, 4294901760
        %v2825 = vsub.f32 %v365, %v2824
        %v2826 = vand.u32 %v2825, 4294901760
        %2827 = vmatpush1.msra.mxu0 %v2826
        %2828 = vmatprep.subr.mxu0 0.0
        %v2829 = vand.u32 %v366, 4294901760
        %v2830 = vsub.f32 %v366, %v2829
        %v2831 = vand.u32 %v2830, 4294901760
        %2832 = vmatpush1.msra.mxu0 %v2831
        %2833 = vmatprep.subr.mxu0 0.0
        %v2834 = vand.u32 %v367, 4294901760
        %v2835 = vsub.f32 %v367, %v2834
        %v2836 = vand.u32 %v2835, 4294901760
        %2837 = vmatpush1.msra.mxu0 %v2836
        %2838 = vmatprep.subr.mxu0 0.0
        %v2839 = vand.u32 %v368, 4294901760
        %v2840 = vsub.f32 %v368, %v2839
        %v2841 = vand.u32 %v2840, 4294901760
        %2842 = vmatpush1.msra.mxu0 %v2841
        %2843 = vmatprep.subr.mxu0 0.0
        %v2844 = vand.u32 %v369, 4294901760
        %v2845 = vsub.f32 %v369, %v2844
        %v2846 = vand.u32 %v2845, 4294901760
        %2847 = vmatpush1.msra.mxu0 %v2846
        %2848 = vmatprep.subr.mxu0 0.0
        %v2849 = vand.u32 %v370, 4294901760
        %v2850 = vsub.f32 %v370, %v2849
        %v2851 = vand.u32 %v2850, 4294901760
        %2852 = vmatpush1.msra.mxu0 %v2851
        %2853 = vmatprep.subr.mxu0 0.0
        %v2854 = vand.u32 %v371, 4294901760
        %v2855 = vsub.f32 %v371, %v2854
        %v2856 = vand.u32 %v2855, 4294901760
        %2857 = vmatpush1.msra.mxu0 %v2856
        %2858 = vmatprep.subr.mxu0 0.0
        %v2859 = vand.u32 %v372, 4294901760
        %v2860 = vsub.f32 %v372, %v2859
        %v2861 = vand.u32 %v2860, 4294901760
        %2862 = vmatpush1.msra.mxu0 %v2861
        %2863 = vmatprep.subr.mxu0 0.0
        %v2864 = vand.u32 %v373, 4294901760
        %v2865 = vsub.f32 %v373, %v2864
        %v2866 = vand.u32 %v2865, 4294901760
        %2867 = vmatpush1.msra.mxu0 %v2866
        %2868 = vmatprep.subr.mxu0 0.0
        %v2869 = vand.u32 %v374, 4294901760
        %v2870 = vsub.f32 %v374, %v2869
        %v2871 = vand.u32 %v2870, 4294901760
        %2872 = vmatpush1.msra.mxu0 %v2871
        %2873 = vmatprep.subr.mxu0 0.0
        %v2874 = vand.u32 %v375, 4294901760
        %v2875 = vsub.f32 %v375, %v2874
        %v2876 = vand.u32 %v2875, 4294901760
        %2877 = vmatpush1.msra.mxu0 %v2876
        %2878 = vmatprep.subr.mxu0 0.0
        %v2879 = vand.u32 %v376, 4294901760
        %v2880 = vsub.f32 %v376, %v2879
        %v2881 = vand.u32 %v2880, 4294901760
        %2882 = vmatpush1.msra.mxu0 %v2881
        %2883 = vmatprep.subr.mxu0 0.0
        %v2884 = vand.u32 %v377, 4294901760
        %v2885 = vsub.f32 %v377, %v2884
        %v2886 = vand.u32 %v2885, 4294901760
        %2887 = vmatpush1.msra.mxu0 %v2886
        %2888 = vmatprep.subr.mxu0 0.0
        %v2889 = vand.u32 %v378, 4294901760
        %v2890 = vsub.f32 %v378, %v2889
        %v2891 = vand.u32 %v2890, 4294901760
        %2892 = vmatpush1.msra.mxu0 %v2891
        %2893 = vmatprep.subr.mxu0 0.0
        %v2894 = vand.u32 %v379, 4294901760
        %v2895 = vsub.f32 %v379, %v2894
        %v2896 = vand.u32 %v2895, 4294901760
        %2897 = vmatpush1.msra.mxu0 %v2896
        %2898 = vmatprep.subr.mxu0 0.0
        %v2899 = vand.u32 %v380, 4294901760
        %v2900 = vsub.f32 %v380, %v2899
        %v2901 = vand.u32 %v2900, 4294901760
        %2902 = vmatpush1.msra.mxu0 %v2901
        %2903 = vmatprep.subr.mxu0 0.0
        %v2904 = vand.u32 %v381, 4294901760
        %v2905 = vsub.f32 %v381, %v2904
        %v2906 = vand.u32 %v2905, 4294901760
        %2907 = vmatpush1.msra.mxu0 %v2906
        %2908 = vmatprep.subr.mxu0 0.0
        %v2909 = vand.u32 %v382, 4294901760
        %v2910 = vsub.f32 %v382, %v2909
        %v2911 = vand.u32 %v2910, 4294901760
        %2912 = vmatpush1.msra.mxu0 %v2911
        %2913 = vmatprep.subr.mxu0 0.0
        %v2914 = vand.u32 %v383, 4294901760
        %v2915 = vsub.f32 %v383, %v2914
        %v2916 = vand.u32 %v2915, 4294901760
        %2917 = vmatpush1.msra.mxu0 %v2916
        %2918 = vmatprep.subr.mxu0 0.0
        %v2919 = vand.u32 %v384, 4294901760
        %v2920 = vsub.f32 %v384, %v2919
        %v2921 = vand.u32 %v2920, 4294901760
        %2922 = vmatpush1.msra.mxu0 %v2921
        %2923 = vmatprep.subr.mxu0 0.0
        %v2924 = vand.u32 %v385, 4294901760
        %v2925 = vsub.f32 %v385, %v2924
        %v2926 = vand.u32 %v2925, 4294901760
        %2927 = vmatpush1.msra.mxu0 %v2926
        %2928 = vmatprep.subr.mxu0 0.0
        %v2929 = vand.u32 %v386, 4294901760
        %v2930 = vsub.f32 %v386, %v2929
        %v2931 = vand.u32 %v2930, 4294901760
        %2932 = vmatpush1.msra.mxu0 %v2931
        %2933 = vmatprep.subr.mxu0 0.0
        %v2934 = vand.u32 %v387, 4294901760
        %v2935 = vsub.f32 %v387, %v2934
        %v2936 = vand.u32 %v2935, 4294901760
        %2937 = vmatpush1.msra.mxu0 %v2936
        %2938 = vmatprep.subr.mxu0 0.0
        %v2939 = vand.u32 %v388, 4294901760
        %v2940 = vsub.f32 %v388, %v2939
        %v2941 = vand.u32 %v2940, 4294901760
        %2942 = vmatpush1.msra.mxu0 %v2941
        %2943 = vmatprep.subr.mxu0 0.0
        %v2944 = vand.u32 %v389, 4294901760
        %v2945 = vsub.f32 %v389, %v2944
        %v2946 = vand.u32 %v2945, 4294901760
        %2947 = vmatpush1.msra.mxu0 %v2946
        %2948 = vmatprep.subr.mxu0 0.0
        %v2949 = vand.u32 %v390, 4294901760
        %v2950 = vsub.f32 %v390, %v2949
        %v2951 = vand.u32 %v2950, 4294901760
        %2952 = vmatpush1.msra.mxu0 %v2951
        %v2953 = vand.u32 %v1339, 4294901760
        %2954 = vmatprep.mubr.f32.mxu0 %v2953
        %v2955 = vand.u32 %v1337, 4294901760
        %2956 = vmatmul.mubr.f32.gmra.mrb[0].mxu0 %v2955
        %v2957 = vpop.f32.mrb[0].mxu0
        %v2958 = vadd.f32 %v2790, %v2957
        %v2959 = vpop.f32.mrb[0].mxu0
        %2960 = vdwg.mxu0
        %2961 = vmatprep.subr.mxu0 0.0
        %v2962 = vand.u32 %v359, 4294901760
        %2963 = vmatpush1.msra.mxu0 %v2962
        %2964 = vmatprep.subr.mxu0 0.0
        %v2965 = vand.u32 %v360, 4294901760
        %2966 = vmatpush1.msra.mxu0 %v2965
        %2967 = vmatprep.subr.mxu0 0.0
        %v2968 = vand.u32 %v361, 4294901760
        %2969 = vmatpush1.msra.mxu0 %v2968
        %2970 = vmatprep.subr.mxu0 0.0
        %v2971 = vand.u32 %v362, 4294901760
        %2972 = vmatpush1.msra.mxu0 %v2971
        %2973 = vmatprep.subr.mxu0 0.0
        %v2974 = vand.u32 %v363, 4294901760
        %2975 = vmatpush1.msra.mxu0 %v2974
        %2976 = vmatprep.subr.mxu0 0.0
        %v2977 = vand.u32 %v364, 4294901760
        %2978 = vmatpush1.msra.mxu0 %v2977
        %2979 = vmatprep.subr.mxu0 0.0
        %v2980 = vand.u32 %v365, 4294901760
        %2981 = vmatpush1.msra.mxu0 %v2980
        %2982 = vmatprep.subr.mxu0 0.0
        %v2983 = vand.u32 %v366, 4294901760
        %2984 = vmatpush1.msra.mxu0 %v2983
        %2985 = vmatprep.subr.mxu0 0.0
        %v2986 = vand.u32 %v367, 4294901760
        %2987 = vmatpush1.msra.mxu0 %v2986
        %2988 = vmatprep.subr.mxu0 0.0
        %v2989 = vand.u32 %v368, 4294901760
        %2990 = vmatpush1.msra.mxu0 %v2989
        %2991 = vmatprep.subr.mxu0 0.0
        %v2992 = vand.u32 %v369, 4294901760
        %2993 = vmatpush1.msra.mxu0 %v2992
        %2994 = vmatprep.subr.mxu0 0.0
        %v2995 = vand.u32 %v370, 4294901760
        %2996 = vmatpush1.msra.mxu0 %v2995
        %2997 = vmatprep.subr.mxu0 0.0
        %v2998 = vand.u32 %v371, 4294901760
        %2999 = vmatpush1.msra.mxu0 %v2998
        %3000 = vmatprep.subr.mxu0 0.0
        %v3001 = vand.u32 %v372, 4294901760
        %3002 = vmatpush1.msra.mxu0 %v3001
        %3003 = vmatprep.subr.mxu0 0.0
        %v3004 = vand.u32 %v373, 4294901760
        %3005 = vmatpush1.msra.mxu0 %v3004
        %3006 = vmatprep.subr.mxu0 0.0
        %v3007 = vand.u32 %v374, 4294901760
        %3008 = vmatpush1.msra.mxu0 %v3007
        %3009 = vmatprep.subr.mxu0 0.0
        %v3010 = vand.u32 %v375, 4294901760
        %3011 = vmatpush1.msra.mxu0 %v3010
        %3012 = vmatprep.subr.mxu0 0.0
        %v3013 = vand.u32 %v376, 4294901760
        %3014 = vmatpush1.msra.mxu0 %v3013
        %3015 = vmatprep.subr.mxu0 0.0
        %v3016 = vand.u32 %v377, 4294901760
        %3017 = vmatpush1.msra.mxu0 %v3016
        %3018 = vmatprep.subr.mxu0 0.0
        %v3019 = vand.u32 %v378, 4294901760
        %3020 = vmatpush1.msra.mxu0 %v3019
        %3021 = vmatprep.subr.mxu0 0.0
        %v3022 = vand.u32 %v379, 4294901760
        %3023 = vmatpush1.msra.mxu0 %v3022
        %3024 = vmatprep.subr.mxu0 0.0
        %v3025 = vand.u32 %v380, 4294901760
        %3026 = vmatpush1.msra.mxu0 %v3025
        %3027 = vmatprep.subr.mxu0 0.0
        %v3028 = vand.u32 %v381, 4294901760
        %3029 = vmatpush1.msra.mxu0 %v3028
        %3030 = vmatprep.subr.mxu0 0.0
        %v3031 = vand.u32 %v382, 4294901760
        %3032 = vmatpush1.msra.mxu0 %v3031
        %3033 = vmatprep.subr.mxu0 0.0
        %v3034 = vand.u32 %v383, 4294901760
        %3035 = vmatpush1.msra.mxu0 %v3034
        %3036 = vmatprep.subr.mxu0 0.0
        %v3037 = vand.u32 %v384, 4294901760
        %3038 = vmatpush1.msra.mxu0 %v3037
        %3039 = vmatprep.subr.mxu0 0.0
        %v3040 = vand.u32 %v385, 4294901760
        %3041 = vmatpush1.msra.mxu0 %v3040
        %3042 = vmatprep.subr.mxu0 0.0
        %v3043 = vand.u32 %v386, 4294901760
        %3044 = vmatpush1.msra.mxu0 %v3043
        %3045 = vmatprep.subr.mxu0 0.0
        %v3046 = vand.u32 %v387, 4294901760
        %3047 = vmatpush1.msra.mxu0 %v3046
        %3048 = vmatprep.subr.mxu0 0.0
        %v3049 = vand.u32 %v388, 4294901760
        %3050 = vmatpush1.msra.mxu0 %v3049
        %3051 = vmatprep.subr.mxu0 0.0
        %v3052 = vand.u32 %v389, 4294901760
        %3053 = vmatpush1.msra.mxu0 %v3052
        %3054 = vmatprep.subr.mxu0 0.0
        %v3055 = vand.u32 %v390, 4294901760
        %3056 = vmatpush1.msra.mxu0 %v3055
        %v3057 = vand.u32 %v1339, 4294901760
        %3058 = vmatprep.mubr.f32.mxu0 %v3057
        %v3059 = vand.u32 %v1337, 4294901760
        %3060 = vmatmul.mubr.f32.gmra.mrb[0].mxu0 %v3059
        %v3061 = vpop.f32.mrb[0].mxu0
        %v3062 = vadd.f32 %v2958, %v3061
        %v3063 = vpop.f32.mrb[0].mxu0
        %3064 = vdwg.mxu0
        %v3065 = vmul.f32 %v872, %v872
        %v3066 = vmul.f32 %v874, %v874
        %v3067 = vmul.f32 %v1337, %v1337
        %v3068 = vmul.f32 %v1339, %v1339
        %3069 = vmatprep.subr.mxu0 0.0
        %v3070 = vand.u32 %v327, 4294901760
        %3071 = vmatpush1.msra.mxu0 %v3070
        %3072 = vmatprep.subr.mxu0 0.0
        %v3073 = vand.u32 %v328, 4294901760
        %3074 = vmatpush1.msra.mxu0 %v3073
        %3075 = vmatprep.subr.mxu0 0.0
        %v3076 = vand.u32 %v329, 4294901760
        %3077 = vmatpush1.msra.mxu0 %v3076
        %3078 = vmatprep.subr.mxu0 0.0
        %v3079 = vand.u32 %v330, 4294901760
        %3080 = vmatpush1.msra.mxu0 %v3079
        %3081 = vmatprep.subr.mxu0 0.0
        %v3082 = vand.u32 %v331, 4294901760
        %3083 = vmatpush1.msra.mxu0 %v3082
        %3084 = vmatprep.subr.mxu0 0.0
        %v3085 = vand.u32 %v332, 4294901760
        %3086 = vmatpush1.msra.mxu0 %v3085
        %3087 = vmatprep.subr.mxu0 0.0
        %v3088 = vand.u32 %v333, 4294901760
        %3089 = vmatpush1.msra.mxu0 %v3088
        %3090 = vmatprep.subr.mxu0 0.0
        %v3091 = vand.u32 %v334, 4294901760
        %3092 = vmatpush1.msra.mxu0 %v3091
        %3093 = vmatprep.subr.mxu0 0.0
        %v3094 = vand.u32 %v335, 4294901760
        %3095 = vmatpush1.msra.mxu0 %v3094
        %3096 = vmatprep.subr.mxu0 0.0
        %v3097 = vand.u32 %v336, 4294901760
        %3098 = vmatpush1.msra.mxu0 %v3097
        %3099 = vmatprep.subr.mxu0 0.0
        %v3100 = vand.u32 %v337, 4294901760
        %3101 = vmatpush1.msra.mxu0 %v3100
        %3102 = vmatprep.subr.mxu0 0.0
        %v3103 = vand.u32 %v338, 4294901760
        %3104 = vmatpush1.msra.mxu0 %v3103
        %3105 = vmatprep.subr.mxu0 0.0
        %v3106 = vand.u32 %v339, 4294901760
        %3107 = vmatpush1.msra.mxu0 %v3106
        %3108 = vmatprep.subr.mxu0 0.0
        %v3109 = vand.u32 %v340, 4294901760
        %3110 = vmatpush1.msra.mxu0 %v3109
        %3111 = vmatprep.subr.mxu0 0.0
        %v3112 = vand.u32 %v341, 4294901760
        %3113 = vmatpush1.msra.mxu0 %v3112
        %3114 = vmatprep.subr.mxu0 0.0
        %v3115 = vand.u32 %v342, 4294901760
        %3116 = vmatpush1.msra.mxu0 %v3115
        %3117 = vmatprep.subr.mxu0 0.0
        %v3118 = vand.u32 %v343, 4294901760
        %3119 = vmatpush1.msra.mxu0 %v3118
        %3120 = vmatprep.subr.mxu0 0.0
        %v3121 = vand.u32 %v344, 4294901760
        %3122 = vmatpush1.msra.mxu0 %v3121
        %3123 = vmatprep.subr.mxu0 0.0
        %v3124 = vand.u32 %v345, 4294901760
        %3125 = vmatpush1.msra.mxu0 %v3124
        %3126 = vmatprep.subr.mxu0 0.0
        %v3127 = vand.u32 %v346, 4294901760
        %3128 = vmatpush1.msra.mxu0 %v3127
        %3129 = vmatprep.subr.mxu0 0.0
        %v3130 = vand.u32 %v347, 4294901760
        %3131 = vmatpush1.msra.mxu0 %v3130
        %3132 = vmatprep.subr.mxu0 0.0
        %v3133 = vand.u32 %v348, 4294901760
        %3134 = vmatpush1.msra.mxu0 %v3133
        %3135 = vmatprep.subr.mxu0 0.0
        %v3136 = vand.u32 %v349, 4294901760
        %3137 = vmatpush1.msra.mxu0 %v3136
        %3138 = vmatprep.subr.mxu0 0.0
        %v3139 = vand.u32 %v350, 4294901760
        %3140 = vmatpush1.msra.mxu0 %v3139
        %3141 = vmatprep.subr.mxu0 0.0
        %v3142 = vand.u32 %v351, 4294901760
        %3143 = vmatpush1.msra.mxu0 %v3142
        %3144 = vmatprep.subr.mxu0 0.0
        %v3145 = vand.u32 %v352, 4294901760
        %3146 = vmatpush1.msra.mxu0 %v3145
        %3147 = vmatprep.subr.mxu0 0.0
        %v3148 = vand.u32 %v353, 4294901760
        %3149 = vmatpush1.msra.mxu0 %v3148
        %3150 = vmatprep.subr.mxu0 0.0
        %v3151 = vand.u32 %v354, 4294901760
        %3152 = vmatpush1.msra.mxu0 %v3151
        %3153 = vmatprep.subr.mxu0 0.0
        %v3154 = vand.u32 %v355, 4294901760
        %3155 = vmatpush1.msra.mxu0 %v3154
        %3156 = vmatprep.subr.mxu0 0.0
        %v3157 = vand.u32 %v356, 4294901760
        %3158 = vmatpush1.msra.mxu0 %v3157
        %3159 = vmatprep.subr.mxu0 0.0
        %v3160 = vand.u32 %v357, 4294901760
        %3161 = vmatpush1.msra.mxu0 %v3160
        %3162 = vmatprep.subr.mxu0 0.0
        %v3163 = vand.u32 %v358, 4294901760
        %3164 = vmatpush1.msra.mxu0 %v3163
        %v3165 = vand.u32 %v3066, 4294901760
        %v3166 = vsub.f32 %v3066, %v3165
        %v3167 = vand.u32 %v3166, 4294901760
        %v3168 = vsub.f32 %v3166, %v3167
        %v3169 = vand.u32 %v3168, 4294901760
        %3170 = vmatprep.mubr.f32.mxu0 %v3169
        %v3171 = vand.u32 %v3065, 4294901760
        %v3172 = vsub.f32 %v3065, %v3171
        %v3173 = vand.u32 %v3172, 4294901760
        %v3174 = vsub.f32 %v3172, %v3173
        %v3175 = vand.u32 %v3174, 4294901760
        %3176 = vmatmul.mubr.f32.gmra.mrb[0].mxu0 %v3175
        %v3177 = vpop.f32.mrb[0].mxu0
        %v3178 = vadd.f32 0.0, %v3177
        %v3179 = vpop.f32.mrb[0].mxu0
        %3180 = vdwg.mxu0
        %3181 = vmatprep.subr.mxu0 0.0
        %v3182 = vand.u32 %v327, 4294901760
        %v3183 = vsub.f32 %v327, %v3182
        %v3184 = vand.u32 %v3183, 4294901760
        %v3185 = vsub.f32 %v3183, %v3184
        %v3186 = vand.u32 %v3185, 4294901760
        %3187 = vmatpush1.msra.mxu0 %v3186
        %3188 = vmatprep.subr.mxu0 0.0
        %v3189 = vand.u32 %v328, 4294901760
        %v3190 = vsub.f32 %v328, %v3189
        %v3191 = vand.u32 %v3190, 4294901760
        %v3192 = vsub.f32 %v3190, %v3191
        %v3193 = vand.u32 %v3192, 4294901760
        %3194 = vmatpush1.msra.mxu0 %v3193
        %3195 = vmatprep.subr.mxu0 0.0
        %v3196 = vand.u32 %v329, 4294901760
        %v3197 = vsub.f32 %v329, %v3196
        %v3198 = vand.u32 %v3197, 4294901760
        %v3199 = vsub.f32 %v3197, %v3198
        %v3200 = vand.u32 %v3199, 4294901760
        %3201 = vmatpush1.msra.mxu0 %v3200
        %3202 = vmatprep.subr.mxu0 0.0
        %v3203 = vand.u32 %v330, 4294901760
        %v3204 = vsub.f32 %v330, %v3203
        %v3205 = vand.u32 %v3204, 4294901760
        %v3206 = vsub.f32 %v3204, %v3205
        %v3207 = vand.u32 %v3206, 4294901760
        %3208 = vmatpush1.msra.mxu0 %v3207
        %3209 = vmatprep.subr.mxu0 0.0
        %v3210 = vand.u32 %v331, 4294901760
        %v3211 = vsub.f32 %v331, %v3210
        %v3212 = vand.u32 %v3211, 4294901760
        %v3213 = vsub.f32 %v3211, %v3212
        %v3214 = vand.u32 %v3213, 4294901760
        %3215 = vmatpush1.msra.mxu0 %v3214
        %3216 = vmatprep.subr.mxu0 0.0
        %v3217 = vand.u32 %v332, 4294901760
        %v3218 = vsub.f32 %v332, %v3217
        %v3219 = vand.u32 %v3218, 4294901760
        %v3220 = vsub.f32 %v3218, %v3219
        %v3221 = vand.u32 %v3220, 4294901760
        %3222 = vmatpush1.msra.mxu0 %v3221
        %3223 = vmatprep.subr.mxu0 0.0
        %v3224 = vand.u32 %v333, 4294901760
        %v3225 = vsub.f32 %v333, %v3224
        %v3226 = vand.u32 %v3225, 4294901760
        %v3227 = vsub.f32 %v3225, %v3226
        %v3228 = vand.u32 %v3227, 4294901760
        %3229 = vmatpush1.msra.mxu0 %v3228
        %3230 = vmatprep.subr.mxu0 0.0
        %v3231 = vand.u32 %v334, 4294901760
        %v3232 = vsub.f32 %v334, %v3231
        %v3233 = vand.u32 %v3232, 4294901760
        %v3234 = vsub.f32 %v3232, %v3233
        %v3235 = vand.u32 %v3234, 4294901760
        %3236 = vmatpush1.msra.mxu0 %v3235
        %3237 = vmatprep.subr.mxu0 0.0
        %v3238 = vand.u32 %v335, 4294901760
        %v3239 = vsub.f32 %v335, %v3238
        %v3240 = vand.u32 %v3239, 4294901760
        %v3241 = vsub.f32 %v3239, %v3240
        %v3242 = vand.u32 %v3241, 4294901760
        %3243 = vmatpush1.msra.mxu0 %v3242
        %3244 = vmatprep.subr.mxu0 0.0
        %v3245 = vand.u32 %v336, 4294901760
        %v3246 = vsub.f32 %v336, %v3245
        %v3247 = vand.u32 %v3246, 4294901760
        %v3248 = vsub.f32 %v3246, %v3247
        %v3249 = vand.u32 %v3248, 4294901760
        %3250 = vmatpush1.msra.mxu0 %v3249
        %3251 = vmatprep.subr.mxu0 0.0
        %v3252 = vand.u32 %v337, 4294901760
        %v3253 = vsub.f32 %v337, %v3252
        %v3254 = vand.u32 %v3253, 4294901760
        %v3255 = vsub.f32 %v3253, %v3254
        %v3256 = vand.u32 %v3255, 4294901760
        %3257 = vmatpush1.msra.mxu0 %v3256
        %3258 = vmatprep.subr.mxu0 0.0
        %v3259 = vand.u32 %v338, 4294901760
        %v3260 = vsub.f32 %v338, %v3259
        %v3261 = vand.u32 %v3260, 4294901760
        %v3262 = vsub.f32 %v3260, %v3261
        %v3263 = vand.u32 %v3262, 4294901760
        %3264 = vmatpush1.msra.mxu0 %v3263
        %3265 = vmatprep.subr.mxu0 0.0
        %v3266 = vand.u32 %v339, 4294901760
        %v3267 = vsub.f32 %v339, %v3266
        %v3268 = vand.u32 %v3267, 4294901760
        %v3269 = vsub.f32 %v3267, %v3268
        %v3270 = vand.u32 %v3269, 4294901760
        %3271 = vmatpush1.msra.mxu0 %v3270
        %3272 = vmatprep.subr.mxu0 0.0
        %v3273 = vand.u32 %v340, 4294901760
        %v3274 = vsub.f32 %v340, %v3273
        %v3275 = vand.u32 %v3274, 4294901760
        %v3276 = vsub.f32 %v3274, %v3275
        %v3277 = vand.u32 %v3276, 4294901760
        %3278 = vmatpush1.msra.mxu0 %v3277
        %3279 = vmatprep.subr.mxu0 0.0
        %v3280 = vand.u32 %v341, 4294901760
        %v3281 = vsub.f32 %v341, %v3280
        %v3282 = vand.u32 %v3281, 4294901760
        %v3283 = vsub.f32 %v3281, %v3282
        %v3284 = vand.u32 %v3283, 4294901760
        %3285 = vmatpush1.msra.mxu0 %v3284
        %3286 = vmatprep.subr.mxu0 0.0
        %v3287 = vand.u32 %v342, 4294901760
        %v3288 = vsub.f32 %v342, %v3287
        %v3289 = vand.u32 %v3288, 4294901760
        %v3290 = vsub.f32 %v3288, %v3289
        %v3291 = vand.u32 %v3290, 4294901760
        %3292 = vmatpush1.msra.mxu0 %v3291
        %3293 = vmatprep.subr.mxu0 0.0
        %v3294 = vand.u32 %v343, 4294901760
        %v3295 = vsub.f32 %v343, %v3294
        %v3296 = vand.u32 %v3295, 4294901760
        %v3297 = vsub.f32 %v3295, %v3296
        %v3298 = vand.u32 %v3297, 4294901760
        %3299 = vmatpush1.msra.mxu0 %v3298
        %3300 = vmatprep.subr.mxu0 0.0
        %v3301 = vand.u32 %v344, 4294901760
        %v3302 = vsub.f32 %v344, %v3301
        %v3303 = vand.u32 %v3302, 4294901760
        %v3304 = vsub.f32 %v3302, %v3303
        %v3305 = vand.u32 %v3304, 4294901760
        %3306 = vmatpush1.msra.mxu0 %v3305
        %3307 = vmatprep.subr.mxu0 0.0
        %v3308 = vand.u32 %v345, 4294901760
        %v3309 = vsub.f32 %v345, %v3308
        %v3310 = vand.u32 %v3309, 4294901760
        %v3311 = vsub.f32 %v3309, %v3310
        %v3312 = vand.u32 %v3311, 4294901760
        %3313 = vmatpush1.msra.mxu0 %v3312
        %3314 = vmatprep.subr.mxu0 0.0
        %v3315 = vand.u32 %v346, 4294901760
        %v3316 = vsub.f32 %v346, %v3315
        %v3317 = vand.u32 %v3316, 4294901760
        %v3318 = vsub.f32 %v3316, %v3317
        %v3319 = vand.u32 %v3318, 4294901760
        %3320 = vmatpush1.msra.mxu0 %v3319
        %3321 = vmatprep.subr.mxu0 0.0
        %v3322 = vand.u32 %v347, 4294901760
        %v3323 = vsub.f32 %v347, %v3322
        %v3324 = vand.u32 %v3323, 4294901760
        %v3325 = vsub.f32 %v3323, %v3324
        %v3326 = vand.u32 %v3325, 4294901760
        %3327 = vmatpush1.msra.mxu0 %v3326
        %3328 = vmatprep.subr.mxu0 0.0
        %v3329 = vand.u32 %v348, 4294901760
        %v3330 = vsub.f32 %v348, %v3329
        %v3331 = vand.u32 %v3330, 4294901760
        %v3332 = vsub.f32 %v3330, %v3331
        %v3333 = vand.u32 %v3332, 4294901760
        %3334 = vmatpush1.msra.mxu0 %v3333
        %3335 = vmatprep.subr.mxu0 0.0
        %v3336 = vand.u32 %v349, 4294901760
        %v3337 = vsub.f32 %v349, %v3336
        %v3338 = vand.u32 %v3337, 4294901760
        %v3339 = vsub.f32 %v3337, %v3338
        %v3340 = vand.u32 %v3339, 4294901760
        %3341 = vmatpush1.msra.mxu0 %v3340
        %3342 = vmatprep.subr.mxu0 0.0
        %v3343 = vand.u32 %v350, 4294901760
        %v3344 = vsub.f32 %v350, %v3343
        %v3345 = vand.u32 %v3344, 4294901760
        %v3346 = vsub.f32 %v3344, %v3345
        %v3347 = vand.u32 %v3346, 4294901760
        %3348 = vmatpush1.msra.mxu0 %v3347
        %3349 = vmatprep.subr.mxu0 0.0
        %v3350 = vand.u32 %v351, 4294901760
        %v3351 = vsub.f32 %v351, %v3350
        %v3352 = vand.u32 %v3351, 4294901760
        %v3353 = vsub.f32 %v3351, %v3352
        %v3354 = vand.u32 %v3353, 4294901760
        %3355 = vmatpush1.msra.mxu0 %v3354
        %3356 = vmatprep.subr.mxu0 0.0
        %v3357 = vand.u32 %v352, 4294901760
        %v3358 = vsub.f32 %v352, %v3357
        %v3359 = vand.u32 %v3358, 4294901760
        %v3360 = vsub.f32 %v3358, %v3359
        %v3361 = vand.u32 %v3360, 4294901760
        %3362 = vmatpush1.msra.mxu0 %v3361
        %3363 = vmatprep.subr.mxu0 0.0
        %v3364 = vand.u32 %v353, 4294901760
        %v3365 = vsub.f32 %v353, %v3364
        %v3366 = vand.u32 %v3365, 4294901760
        %v3367 = vsub.f32 %v3365, %v3366
        %v3368 = vand.u32 %v3367, 4294901760
        %3369 = vmatpush1.msra.mxu0 %v3368
        %3370 = vmatprep.subr.mxu0 0.0
        %v3371 = vand.u32 %v354, 4294901760
        %v3372 = vsub.f32 %v354, %v3371
        %v3373 = vand.u32 %v3372, 4294901760
        %v3374 = vsub.f32 %v3372, %v3373
        %v3375 = vand.u32 %v3374, 4294901760
        %3376 = vmatpush1.msra.mxu0 %v3375
        %3377 = vmatprep.subr.mxu0 0.0
        %v3378 = vand.u32 %v355, 4294901760
        %v3379 = vsub.f32 %v355, %v3378
        %v3380 = vand.u32 %v3379, 4294901760
        %v3381 = vsub.f32 %v3379, %v3380
        %v3382 = vand.u32 %v3381, 4294901760
        %3383 = vmatpush1.msra.mxu0 %v3382
        %3384 = vmatprep.subr.mxu0 0.0
        %v3385 = vand.u32 %v356, 4294901760
        %v3386 = vsub.f32 %v356, %v3385
        %v3387 = vand.u32 %v3386, 4294901760
        %v3388 = vsub.f32 %v3386, %v3387
        %v3389 = vand.u32 %v3388, 4294901760
        %3390 = vmatpush1.msra.mxu0 %v3389
        %3391 = vmatprep.subr.mxu0 0.0
        %v3392 = vand.u32 %v357, 4294901760
        %v3393 = vsub.f32 %v357, %v3392
        %v3394 = vand.u32 %v3393, 4294901760
        %v3395 = vsub.f32 %v3393, %v3394
        %v3396 = vand.u32 %v3395, 4294901760
        %3397 = vmatpush1.msra.mxu0 %v3396
        %3398 = vmatprep.subr.mxu0 0.0
        %v3399 = vand.u32 %v358, 4294901760
        %v3400 = vsub.f32 %v358, %v3399
        %v3401 = vand.u32 %v3400, 4294901760
        %v3402 = vsub.f32 %v3400, %v3401
        %v3403 = vand.u32 %v3402, 4294901760
        %3404 = vmatpush1.msra.mxu0 %v3403
        %v3405 = vand.u32 %v3066, 4294901760
        %3406 = vmatprep.mubr.f32.mxu0 %v3405
        %v3407 = vand.u32 %v3065, 4294901760
        %3408 = vmatmul.mubr.f32.gmra.mrb[0].mxu0 %v3407
        %v3409 = vpop.f32.mrb[0].mxu0
        %v3410 = vadd.f32 %v3178, %v3409
        %v3411 = vpop.f32.mrb[0].mxu0
        %3412 = vdwg.mxu0
        %3413 = vmatprep.subr.mxu0 0.0
        %v3414 = vand.u32 %v327, 4294901760
        %v3415 = vsub.f32 %v327, %v3414
        %3416 = vmatpush1.msra.mxu0 %v3415
        %3417 = vmatprep.subr.mxu0 0.0
        %v3418 = vand.u32 %v328, 4294901760
        %v3419 = vsub.f32 %v328, %v3418
        %3420 = vmatpush1.msra.mxu0 %v3419
        %3421 = vmatprep.subr.mxu0 0.0
        %v3422 = vand.u32 %v329, 4294901760
        %v3423 = vsub.f32 %v329, %v3422
        %3424 = vmatpush1.msra.mxu0 %v3423
        %3425 = vmatprep.subr.mxu0 0.0
        %v3426 = vand.u32 %v330, 4294901760
        %v3427 = vsub.f32 %v330, %v3426
        %3428 = vmatpush1.msra.mxu0 %v3427
        %3429 = vmatprep.subr.mxu0 0.0
        %v3430 = vand.u32 %v331, 4294901760
        %v3431 = vsub.f32 %v331, %v3430
        %3432 = vmatpush1.msra.mxu0 %v3431
        %3433 = vmatprep.subr.mxu0 0.0
        %v3434 = vand.u32 %v332, 4294901760
        %v3435 = vsub.f32 %v332, %v3434
        %3436 = vmatpush1.msra.mxu0 %v3435
        %3437 = vmatprep.subr.mxu0 0.0
        %v3438 = vand.u32 %v333, 4294901760
        %v3439 = vsub.f32 %v333, %v3438
        %3440 = vmatpush1.msra.mxu0 %v3439
        %3441 = vmatprep.subr.mxu0 0.0
        %v3442 = vand.u32 %v334, 4294901760
        %v3443 = vsub.f32 %v334, %v3442
        %3444 = vmatpush1.msra.mxu0 %v3443
        %3445 = vmatprep.subr.mxu0 0.0
        %v3446 = vand.u32 %v335, 4294901760
        %v3447 = vsub.f32 %v335, %v3446
        %3448 = vmatpush1.msra.mxu0 %v3447
        %3449 = vmatprep.subr.mxu0 0.0
        %v3450 = vand.u32 %v336, 4294901760
        %v3451 = vsub.f32 %v336, %v3450
        %3452 = vmatpush1.msra.mxu0 %v3451
        %3453 = vmatprep.subr.mxu0 0.0
        %v3454 = vand.u32 %v337, 4294901760
        %v3455 = vsub.f32 %v337, %v3454
        %3456 = vmatpush1.msra.mxu0 %v3455
        %3457 = vmatprep.subr.mxu0 0.0
        %v3458 = vand.u32 %v338, 4294901760
        %v3459 = vsub.f32 %v338, %v3458
        %3460 = vmatpush1.msra.mxu0 %v3459
        %3461 = vmatprep.subr.mxu0 0.0
        %v3462 = vand.u32 %v339, 4294901760
        %v3463 = vsub.f32 %v339, %v3462
        %3464 = vmatpush1.msra.mxu0 %v3463
        %3465 = vmatprep.subr.mxu0 0.0
        %v3466 = vand.u32 %v340, 4294901760
        %v3467 = vsub.f32 %v340, %v3466
        %3468 = vmatpush1.msra.mxu0 %v3467
        %3469 = vmatprep.subr.mxu0 0.0
        %v3470 = vand.u32 %v341, 4294901760
        %v3471 = vsub.f32 %v341, %v3470
        %3472 = vmatpush1.msra.mxu0 %v3471
        %3473 = vmatprep.subr.mxu0 0.0
        %v3474 = vand.u32 %v342, 4294901760
        %v3475 = vsub.f32 %v342, %v3474
        %3476 = vmatpush1.msra.mxu0 %v3475
        %3477 = vmatprep.subr.mxu0 0.0
        %v3478 = vand.u32 %v343, 4294901760
        %v3479 = vsub.f32 %v343, %v3478
        %3480 = vmatpush1.msra.mxu0 %v3479
        %3481 = vmatprep.subr.mxu0 0.0
        %v3482 = vand.u32 %v344, 4294901760
        %v3483 = vsub.f32 %v344, %v3482
        %3484 = vmatpush1.msra.mxu0 %v3483
        %3485 = vmatprep.subr.mxu0 0.0
        %v3486 = vand.u32 %v345, 4294901760
        %v3487 = vsub.f32 %v345, %v3486
        %3488 = vmatpush1.msra.mxu0 %v3487
        %3489 = vmatprep.subr.mxu0 0.0
        %v3490 = vand.u32 %v346, 4294901760
        %v3491 = vsub.f32 %v346, %v3490
        %3492 = vmatpush1.msra.mxu0 %v3491
        %3493 = vmatprep.subr.mxu0 0.0
        %v3494 = vand.u32 %v347, 4294901760
        %v3495 = vsub.f32 %v347, %v3494
        %3496 = vmatpush1.msra.mxu0 %v3495
        %3497 = vmatprep.subr.mxu0 0.0
        %v3498 = vand.u32 %v348, 4294901760
        %v3499 = vsub.f32 %v348, %v3498
        %3500 = vmatpush1.msra.mxu0 %v3499
        %3501 = vmatprep.subr.mxu0 0.0
        %v3502 = vand.u32 %v349, 4294901760
        %v3503 = vsub.f32 %v349, %v3502
        %3504 = vmatpush1.msra.mxu0 %v3503
        %3505 = vmatprep.subr.mxu0 0.0
        %v3506 = vand.u32 %v350, 4294901760
        %v3507 = vsub.f32 %v350, %v3506
        %3508 = vmatpush1.msra.mxu0 %v3507
        %3509 = vmatprep.subr.mxu0 0.0
        %v3510 = vand.u32 %v351, 4294901760
        %v3511 = vsub.f32 %v351, %v3510
        %3512 = vmatpush1.msra.mxu0 %v3511
        %3513 = vmatprep.subr.mxu0 0.0
        %v3514 = vand.u32 %v352, 4294901760
        %v3515 = vsub.f32 %v352, %v3514
        %3516 = vmatpush1.msra.mxu0 %v3515
        %3517 = vmatprep.subr.mxu0 0.0
        %v3518 = vand.u32 %v353, 4294901760
        %v3519 = vsub.f32 %v353, %v3518
        %3520 = vmatpush1.msra.mxu0 %v3519
        %3521 = vmatprep.subr.mxu0 0.0
        %v3522 = vand.u32 %v354, 4294901760
        %v3523 = vsub.f32 %v354, %v3522
        %3524 = vmatpush1.msra.mxu0 %v3523
        %3525 = vmatprep.subr.mxu0 0.0
        %v3526 = vand.u32 %v355, 4294901760
        %v3527 = vsub.f32 %v355, %v3526
        %3528 = vmatpush1.msra.mxu0 %v3527
        %3529 = vmatprep.subr.mxu0 0.0
        %v3530 = vand.u32 %v356, 4294901760
        %v3531 = vsub.f32 %v356, %v3530
        %3532 = vmatpush1.msra.mxu0 %v3531
        %3533 = vmatprep.subr.mxu0 0.0
        %v3534 = vand.u32 %v357, 4294901760
        %v3535 = vsub.f32 %v357, %v3534
        %3536 = vmatpush1.msra.mxu0 %v3535
        %3537 = vmatprep.subr.mxu0 0.0
        %v3538 = vand.u32 %v358, 4294901760
        %v3539 = vsub.f32 %v358, %v3538
        %3540 = vmatpush1.msra.mxu0 %v3539
        %v3541 = vand.u32 %v3066, 4294901760
        %v3542 = vsub.f32 %v3066, %v3541
        %3543 = vmatprep.mubr.f32.mxu0 %v3542
        %v3544 = vand.u32 %v3065, 4294901760
        %v3545 = vsub.f32 %v3065, %v3544
        %3546 = vmatmul.mubr.f32.gmra.mrb[0].mxu0 %v3545
        %v3547 = vpop.f32.mrb[0].mxu0
        %v3548 = vadd.f32 %v3410, %v3547
        %v3549 = vpop.f32.mrb[0].mxu0
        %3550 = vdwg.mxu0
        %3551 = vmatprep.subr.mxu0 0.0
        %v3552 = vand.u32 %v327, 4294901760
        %3553 = vmatpush1.msra.mxu0 %v3552
        %3554 = vmatprep.subr.mxu0 0.0
        %v3555 = vand.u32 %v328, 4294901760
        %3556 = vmatpush1.msra.mxu0 %v3555
        %3557 = vmatprep.subr.mxu0 0.0
        %v3558 = vand.u32 %v329, 4294901760
        %3559 = vmatpush1.msra.mxu0 %v3558
        %3560 = vmatprep.subr.mxu0 0.0
        %v3561 = vand.u32 %v330, 4294901760
        %3562 = vmatpush1.msra.mxu0 %v3561
        %3563 = vmatprep.subr.mxu0 0.0
        %v3564 = vand.u32 %v331, 4294901760
        %3565 = vmatpush1.msra.mxu0 %v3564
        %3566 = vmatprep.subr.mxu0 0.0
        %v3567 = vand.u32 %v332, 4294901760
        %3568 = vmatpush1.msra.mxu0 %v3567
        %3569 = vmatprep.subr.mxu0 0.0
        %v3570 = vand.u32 %v333, 4294901760
        %3571 = vmatpush1.msra.mxu0 %v3570
        %3572 = vmatprep.subr.mxu0 0.0
        %v3573 = vand.u32 %v334, 4294901760
        %3574 = vmatpush1.msra.mxu0 %v3573
        %3575 = vmatprep.subr.mxu0 0.0
        %v3576 = vand.u32 %v335, 4294901760
        %3577 = vmatpush1.msra.mxu0 %v3576
        %3578 = vmatprep.subr.mxu0 0.0
        %v3579 = vand.u32 %v336, 4294901760
        %3580 = vmatpush1.msra.mxu0 %v3579
        %3581 = vmatprep.subr.mxu0 0.0
        %v3582 = vand.u32 %v337, 4294901760
        %3583 = vmatpush1.msra.mxu0 %v3582
        %3584 = vmatprep.subr.mxu0 0.0
        %v3585 = vand.u32 %v338, 4294901760
        %3586 = vmatpush1.msra.mxu0 %v3585
        %3587 = vmatprep.subr.mxu0 0.0
        %v3588 = vand.u32 %v339, 4294901760
        %3589 = vmatpush1.msra.mxu0 %v3588
        %3590 = vmatprep.subr.mxu0 0.0
        %v3591 = vand.u32 %v340, 4294901760
        %3592 = vmatpush1.msra.mxu0 %v3591
        %3593 = vmatprep.subr.mxu0 0.0
        %v3594 = vand.u32 %v341, 4294901760
        %3595 = vmatpush1.msra.mxu0 %v3594
        %3596 = vmatprep.subr.mxu0 0.0
        %v3597 = vand.u32 %v342, 4294901760
        %3598 = vmatpush1.msra.mxu0 %v3597
        %3599 = vmatprep.subr.mxu0 0.0
        %v3600 = vand.u32 %v343, 4294901760
        %3601 = vmatpush1.msra.mxu0 %v3600
        %3602 = vmatprep.subr.mxu0 0.0
        %v3603 = vand.u32 %v344, 4294901760
        %3604 = vmatpush1.msra.mxu0 %v3603
        %3605 = vmatprep.subr.mxu0 0.0
        %v3606 = vand.u32 %v345, 4294901760
        %3607 = vmatpush1.msra.mxu0 %v3606
        %3608 = vmatprep.subr.mxu0 0.0
        %v3609 = vand.u32 %v346, 4294901760
        %3610 = vmatpush1.msra.mxu0 %v3609
        %3611 = vmatprep.subr.mxu0 0.0
        %v3612 = vand.u32 %v347, 4294901760
        %3613 = vmatpush1.msra.mxu0 %v3612
        %3614 = vmatprep.subr.mxu0 0.0
        %v3615 = vand.u32 %v348, 4294901760
        %3616 = vmatpush1.msra.mxu0 %v3615
        %3617 = vmatprep.subr.mxu0 0.0
        %v3618 = vand.u32 %v349, 4294901760
        %3619 = vmatpush1.msra.mxu0 %v3618
        %3620 = vmatprep.subr.mxu0 0.0
        %v3621 = vand.u32 %v350, 4294901760
        %3622 = vmatpush1.msra.mxu0 %v3621
        %3623 = vmatprep.subr.mxu0 0.0
        %v3624 = vand.u32 %v351, 4294901760
        %3625 = vmatpush1.msra.mxu0 %v3624
        %3626 = vmatprep.subr.mxu0 0.0
        %v3627 = vand.u32 %v352, 4294901760
        %3628 = vmatpush1.msra.mxu0 %v3627
        %3629 = vmatprep.subr.mxu0 0.0
        %v3630 = vand.u32 %v353, 4294901760
        %3631 = vmatpush1.msra.mxu0 %v3630
        %3632 = vmatprep.subr.mxu0 0.0
        %v3633 = vand.u32 %v354, 4294901760
        %3634 = vmatpush1.msra.mxu0 %v3633
        %3635 = vmatprep.subr.mxu0 0.0
        %v3636 = vand.u32 %v355, 4294901760
        %3637 = vmatpush1.msra.mxu0 %v3636
        %3638 = vmatprep.subr.mxu0 0.0
        %v3639 = vand.u32 %v356, 4294901760
        %3640 = vmatpush1.msra.mxu0 %v3639
        %3641 = vmatprep.subr.mxu0 0.0
        %v3642 = vand.u32 %v357, 4294901760
        %3643 = vmatpush1.msra.mxu0 %v3642
        %3644 = vmatprep.subr.mxu0 0.0
        %v3645 = vand.u32 %v358, 4294901760
        %3646 = vmatpush1.msra.mxu0 %v3645
        %v3647 = vand.u32 %v3066, 4294901760
        %v3648 = vsub.f32 %v3066, %v3647
        %v3649 = vand.u32 %v3648, 4294901760
        %3650 = vmatprep.mubr.f32.mxu0 %v3649
        %v3651 = vand.u32 %v3065, 4294901760
        %v3652 = vsub.f32 %v3065, %v3651
        %v3653 = vand.u32 %v3652, 4294901760
        %3654 = vmatmul.mubr.f32.gmra.mrb[0].mxu0 %v3653
        %v3655 = vpop.f32.mrb[0].mxu0
        %v3656 = vadd.f32 %v3548, %v3655
        %v3657 = vpop.f32.mrb[0].mxu0
        %3658 = vdwg.mxu0
        %3659 = vmatprep.subr.mxu0 0.0
        %v3660 = vand.u32 %v327, 4294901760
        %v3661 = vsub.f32 %v327, %v3660
        %v3662 = vand.u32 %v3661, 4294901760
        %3663 = vmatpush1.msra.mxu0 %v3662
        %3664 = vmatprep.subr.mxu0 0.0
        %v3665 = vand.u32 %v328, 4294901760
        %v3666 = vsub.f32 %v328, %v3665
        %v3667 = vand.u32 %v3666, 4294901760
        %3668 = vmatpush1.msra.mxu0 %v3667
        %3669 = vmatprep.subr.mxu0 0.0
        %v3670 = vand.u32 %v329, 4294901760
        %v3671 = vsub.f32 %v329, %v3670
        %v3672 = vand.u32 %v3671, 4294901760
        %3673 = vmatpush1.msra.mxu0 %v3672
        %3674 = vmatprep.subr.mxu0 0.0
        %v3675 = vand.u32 %v330, 4294901760
        %v3676 = vsub.f32 %v330, %v3675
        %v3677 = vand.u32 %v3676, 4294901760
        %3678 = vmatpush1.msra.mxu0 %v3677
        %3679 = vmatprep.subr.mxu0 0.0
        %v3680 = vand.u32 %v331, 4294901760
        %v3681 = vsub.f32 %v331, %v3680
        %v3682 = vand.u32 %v3681, 4294901760
        %3683 = vmatpush1.msra.mxu0 %v3682
        %3684 = vmatprep.subr.mxu0 0.0
        %v3685 = vand.u32 %v332, 4294901760
        %v3686 = vsub.f32 %v332, %v3685
        %v3687 = vand.u32 %v3686, 4294901760
        %3688 = vmatpush1.msra.mxu0 %v3687
        %3689 = vmatprep.subr.mxu0 0.0
        %v3690 = vand.u32 %v333, 4294901760
        %v3691 = vsub.f32 %v333, %v3690
        %v3692 = vand.u32 %v3691, 4294901760
        %3693 = vmatpush1.msra.mxu0 %v3692
        %3694 = vmatprep.subr.mxu0 0.0
        %v3695 = vand.u32 %v334, 4294901760
        %v3696 = vsub.f32 %v334, %v3695
        %v3697 = vand.u32 %v3696, 4294901760
        %3698 = vmatpush1.msra.mxu0 %v3697
        %3699 = vmatprep.subr.mxu0 0.0
        %v3700 = vand.u32 %v335, 4294901760
        %v3701 = vsub.f32 %v335, %v3700
        %v3702 = vand.u32 %v3701, 4294901760
        %3703 = vmatpush1.msra.mxu0 %v3702
        %3704 = vmatprep.subr.mxu0 0.0
        %v3705 = vand.u32 %v336, 4294901760
        %v3706 = vsub.f32 %v336, %v3705
        %v3707 = vand.u32 %v3706, 4294901760
        %3708 = vmatpush1.msra.mxu0 %v3707
        %3709 = vmatprep.subr.mxu0 0.0
        %v3710 = vand.u32 %v337, 4294901760
        %v3711 = vsub.f32 %v337, %v3710
        %v3712 = vand.u32 %v3711, 4294901760
        %3713 = vmatpush1.msra.mxu0 %v3712
        %3714 = vmatprep.subr.mxu0 0.0
        %v3715 = vand.u32 %v338, 4294901760
        %v3716 = vsub.f32 %v338, %v3715
        %v3717 = vand.u32 %v3716, 4294901760
        %3718 = vmatpush1.msra.mxu0 %v3717
        %3719 = vmatprep.subr.mxu0 0.0
        %v3720 = vand.u32 %v339, 4294901760
        %v3721 = vsub.f32 %v339, %v3720
        %v3722 = vand.u32 %v3721, 4294901760
        %3723 = vmatpush1.msra.mxu0 %v3722
        %3724 = vmatprep.subr.mxu0 0.0
        %v3725 = vand.u32 %v340, 4294901760
        %v3726 = vsub.f32 %v340, %v3725
        %v3727 = vand.u32 %v3726, 4294901760
        %3728 = vmatpush1.msra.mxu0 %v3727
        %3729 = vmatprep.subr.mxu0 0.0
        %v3730 = vand.u32 %v341, 4294901760
        %v3731 = vsub.f32 %v341, %v3730
        %v3732 = vand.u32 %v3731, 4294901760
        %3733 = vmatpush1.msra.mxu0 %v3732
        %3734 = vmatprep.subr.mxu0 0.0
        %v3735 = vand.u32 %v342, 4294901760
        %v3736 = vsub.f32 %v342, %v3735
        %v3737 = vand.u32 %v3736, 4294901760
        %3738 = vmatpush1.msra.mxu0 %v3737
        %3739 = vmatprep.subr.mxu0 0.0
        %v3740 = vand.u32 %v343, 4294901760
        %v3741 = vsub.f32 %v343, %v3740
        %v3742 = vand.u32 %v3741, 4294901760
        %3743 = vmatpush1.msra.mxu0 %v3742
        %3744 = vmatprep.subr.mxu0 0.0
        %v3745 = vand.u32 %v344, 4294901760
        %v3746 = vsub.f32 %v344, %v3745
        %v3747 = vand.u32 %v3746, 4294901760
        %3748 = vmatpush1.msra.mxu0 %v3747
        %3749 = vmatprep.subr.mxu0 0.0
        %v3750 = vand.u32 %v345, 4294901760
        %v3751 = vsub.f32 %v345, %v3750
        %v3752 = vand.u32 %v3751, 4294901760
        %3753 = vmatpush1.msra.mxu0 %v3752
        %3754 = vmatprep.subr.mxu0 0.0
        %v3755 = vand.u32 %v346, 4294901760
        %v3756 = vsub.f32 %v346, %v3755
        %v3757 = vand.u32 %v3756, 4294901760
        %3758 = vmatpush1.msra.mxu0 %v3757
        %3759 = vmatprep.subr.mxu0 0.0
        %v3760 = vand.u32 %v347, 4294901760
        %v3761 = vsub.f32 %v347, %v3760
        %v3762 = vand.u32 %v3761, 4294901760
        %3763 = vmatpush1.msra.mxu0 %v3762
        %3764 = vmatprep.subr.mxu0 0.0
        %v3765 = vand.u32 %v348, 4294901760
        %v3766 = vsub.f32 %v348, %v3765
        %v3767 = vand.u32 %v3766, 4294901760
        %3768 = vmatpush1.msra.mxu0 %v3767
        %3769 = vmatprep.subr.mxu0 0.0
        %v3770 = vand.u32 %v349, 4294901760
        %v3771 = vsub.f32 %v349, %v3770
        %v3772 = vand.u32 %v3771, 4294901760
        %3773 = vmatpush1.msra.mxu0 %v3772
        %3774 = vmatprep.subr.mxu0 0.0
        %v3775 = vand.u32 %v350, 4294901760
        %v3776 = vsub.f32 %v350, %v3775
        %v3777 = vand.u32 %v3776, 4294901760
        %3778 = vmatpush1.msra.mxu0 %v3777
        %3779 = vmatprep.subr.mxu0 0.0
        %v3780 = vand.u32 %v351, 4294901760
        %v3781 = vsub.f32 %v351, %v3780
        %v3782 = vand.u32 %v3781, 4294901760
        %3783 = vmatpush1.msra.mxu0 %v3782
        %3784 = vmatprep.subr.mxu0 0.0
        %v3785 = vand.u32 %v352, 4294901760
        %v3786 = vsub.f32 %v352, %v3785
        %v3787 = vand.u32 %v3786, 4294901760
        %3788 = vmatpush1.msra.mxu0 %v3787
        %3789 = vmatprep.subr.mxu0 0.0
        %v3790 = vand.u32 %v353, 4294901760
        %v3791 = vsub.f32 %v353, %v3790
        %v3792 = vand.u32 %v3791, 4294901760
        %3793 = vmatpush1.msra.mxu0 %v3792
        %3794 = vmatprep.subr.mxu0 0.0
        %v3795 = vand.u32 %v354, 4294901760
        %v3796 = vsub.f32 %v354, %v3795
        %v3797 = vand.u32 %v3796, 4294901760
        %3798 = vmatpush1.msra.mxu0 %v3797
        %3799 = vmatprep.subr.mxu0 0.0
        %v3800 = vand.u32 %v355, 4294901760
        %v3801 = vsub.f32 %v355, %v3800
        %v3802 = vand.u32 %v3801, 4294901760
        %3803 = vmatpush1.msra.mxu0 %v3802
        %3804 = vmatprep.subr.mxu0 0.0
        %v3805 = vand.u32 %v356, 4294901760
        %v3806 = vsub.f32 %v356, %v3805
        %v3807 = vand.u32 %v3806, 4294901760
        %3808 = vmatpush1.msra.mxu0 %v3807
        %3809 = vmatprep.subr.mxu0 0.0
        %v3810 = vand.u32 %v357, 4294901760
        %v3811 = vsub.f32 %v357, %v3810
        %v3812 = vand.u32 %v3811, 4294901760
        %3813 = vmatpush1.msra.mxu0 %v3812
        %3814 = vmatprep.subr.mxu0 0.0
        %v3815 = vand.u32 %v358, 4294901760
        %v3816 = vsub.f32 %v358, %v3815
        %v3817 = vand.u32 %v3816, 4294901760
        %3818 = vmatpush1.msra.mxu0 %v3817
        %v3819 = vand.u32 %v3066, 4294901760
        %3820 = vmatprep.mubr.f32.mxu0 %v3819
        %v3821 = vand.u32 %v3065, 4294901760
        %3822 = vmatmul.mubr.f32.gmra.mrb[0].mxu0 %v3821
        %v3823 = vpop.f32.mrb[0].mxu0
        %v3824 = vadd.f32 %v3656, %v3823
        %v3825 = vpop.f32.mrb[0].mxu0
        %3826 = vdwg.mxu0
        %3827 = vmatprep.subr.mxu0 0.0
        %v3828 = vand.u32 %v327, 4294901760
        %3829 = vmatpush1.msra.mxu0 %v3828
        %3830 = vmatprep.subr.mxu0 0.0
        %v3831 = vand.u32 %v328, 4294901760
        %3832 = vmatpush1.msra.mxu0 %v3831
        %3833 = vmatprep.subr.mxu0 0.0
        %v3834 = vand.u32 %v329, 4294901760
        %3835 = vmatpush1.msra.mxu0 %v3834
        %3836 = vmatprep.subr.mxu0 0.0
        %v3837 = vand.u32 %v330, 4294901760
        %3838 = vmatpush1.msra.mxu0 %v3837
        %3839 = vmatprep.subr.mxu0 0.0
        %v3840 = vand.u32 %v331, 4294901760
        %3841 = vmatpush1.msra.mxu0 %v3840
        %3842 = vmatprep.subr.mxu0 0.0
        %v3843 = vand.u32 %v332, 4294901760
        %3844 = vmatpush1.msra.mxu0 %v3843
        %3845 = vmatprep.subr.mxu0 0.0
        %v3846 = vand.u32 %v333, 4294901760
        %3847 = vmatpush1.msra.mxu0 %v3846
        %3848 = vmatprep.subr.mxu0 0.0
        %v3849 = vand.u32 %v334, 4294901760
        %3850 = vmatpush1.msra.mxu0 %v3849
        %3851 = vmatprep.subr.mxu0 0.0
        %v3852 = vand.u32 %v335, 4294901760
        %3853 = vmatpush1.msra.mxu0 %v3852
        %3854 = vmatprep.subr.mxu0 0.0
        %v3855 = vand.u32 %v336, 4294901760
        %3856 = vmatpush1.msra.mxu0 %v3855
        %3857 = vmatprep.subr.mxu0 0.0
        %v3858 = vand.u32 %v337, 4294901760
        %3859 = vmatpush1.msra.mxu0 %v3858
        %3860 = vmatprep.subr.mxu0 0.0
        %v3861 = vand.u32 %v338, 4294901760
        %3862 = vmatpush1.msra.mxu0 %v3861
        %3863 = vmatprep.subr.mxu0 0.0
        %v3864 = vand.u32 %v339, 4294901760
        %3865 = vmatpush1.msra.mxu0 %v3864
        %3866 = vmatprep.subr.mxu0 0.0
        %v3867 = vand.u32 %v340, 4294901760
        %3868 = vmatpush1.msra.mxu0 %v3867
        %3869 = vmatprep.subr.mxu0 0.0
        %v3870 = vand.u32 %v341, 4294901760
        %3871 = vmatpush1.msra.mxu0 %v3870
        %3872 = vmatprep.subr.mxu0 0.0
        %v3873 = vand.u32 %v342, 4294901760
        %3874 = vmatpush1.msra.mxu0 %v3873
        %3875 = vmatprep.subr.mxu0 0.0
        %v3876 = vand.u32 %v343, 4294901760
        %3877 = vmatpush1.msra.mxu0 %v3876
        %3878 = vmatprep.subr.mxu0 0.0
        %v3879 = vand.u32 %v344, 4294901760
        %3880 = vmatpush1.msra.mxu0 %v3879
        %3881 = vmatprep.subr.mxu0 0.0
        %v3882 = vand.u32 %v345, 4294901760
        %3883 = vmatpush1.msra.mxu0 %v3882
        %3884 = vmatprep.subr.mxu0 0.0
        %v3885 = vand.u32 %v346, 4294901760
        %3886 = vmatpush1.msra.mxu0 %v3885
        %3887 = vmatprep.subr.mxu0 0.0
        %v3888 = vand.u32 %v347, 4294901760
        %3889 = vmatpush1.msra.mxu0 %v3888
        %3890 = vmatprep.subr.mxu0 0.0
        %v3891 = vand.u32 %v348, 4294901760
        %3892 = vmatpush1.msra.mxu0 %v3891
        %3893 = vmatprep.subr.mxu0 0.0
        %v3894 = vand.u32 %v349, 4294901760
        %3895 = vmatpush1.msra.mxu0 %v3894
        %3896 = vmatprep.subr.mxu0 0.0
        %v3897 = vand.u32 %v350, 4294901760
        %3898 = vmatpush1.msra.mxu0 %v3897
        %3899 = vmatprep.subr.mxu0 0.0
        %v3900 = vand.u32 %v351, 4294901760
        %3901 = vmatpush1.msra.mxu0 %v3900
        %3902 = vmatprep.subr.mxu0 0.0
        %v3903 = vand.u32 %v352, 4294901760
        %3904 = vmatpush1.msra.mxu0 %v3903
        %3905 = vmatprep.subr.mxu0 0.0
        %v3906 = vand.u32 %v353, 4294901760
        %3907 = vmatpush1.msra.mxu0 %v3906
        %3908 = vmatprep.subr.mxu0 0.0
        %v3909 = vand.u32 %v354, 4294901760
        %3910 = vmatpush1.msra.mxu0 %v3909
        %3911 = vmatprep.subr.mxu0 0.0
        %v3912 = vand.u32 %v355, 4294901760
        %3913 = vmatpush1.msra.mxu0 %v3912
        %3914 = vmatprep.subr.mxu0 0.0
        %v3915 = vand.u32 %v356, 4294901760
        %3916 = vmatpush1.msra.mxu0 %v3915
        %3917 = vmatprep.subr.mxu0 0.0
        %v3918 = vand.u32 %v357, 4294901760
        %3919 = vmatpush1.msra.mxu0 %v3918
        %3920 = vmatprep.subr.mxu0 0.0
        %v3921 = vand.u32 %v358, 4294901760
        %3922 = vmatpush1.msra.mxu0 %v3921
        %v3923 = vand.u32 %v3066, 4294901760
        %3924 = vmatprep.mubr.f32.mxu0 %v3923
        %v3925 = vand.u32 %v3065, 4294901760
        %3926 = vmatmul.mubr.f32.gmra.mrb[0].mxu0 %v3925
        %v3927 = vpop.f32.mrb[0].mxu0
        %v3928 = vadd.f32 %v3824, %v3927
        %v3929 = vpop.f32.mrb[0].mxu0
        %3930 = vdwg.mxu0
        %3931 = vmatprep.subr.mxu0 0.0
        %v3932 = vand.u32 %v359, 4294901760
        %3933 = vmatpush1.msra.mxu0 %v3932
        %3934 = vmatprep.subr.mxu0 0.0
        %v3935 = vand.u32 %v360, 4294901760
        %3936 = vmatpush1.msra.mxu0 %v3935
        %3937 = vmatprep.subr.mxu0 0.0
        %v3938 = vand.u32 %v361, 4294901760
        %3939 = vmatpush1.msra.mxu0 %v3938
        %3940 = vmatprep.subr.mxu0 0.0
        %v3941 = vand.u32 %v362, 4294901760
        %3942 = vmatpush1.msra.mxu0 %v3941
        %3943 = vmatprep.subr.mxu0 0.0
        %v3944 = vand.u32 %v363, 4294901760
        %3945 = vmatpush1.msra.mxu0 %v3944
        %3946 = vmatprep.subr.mxu0 0.0
        %v3947 = vand.u32 %v364, 4294901760
        %3948 = vmatpush1.msra.mxu0 %v3947
        %3949 = vmatprep.subr.mxu0 0.0
        %v3950 = vand.u32 %v365, 4294901760
        %3951 = vmatpush1.msra.mxu0 %v3950
        %3952 = vmatprep.subr.mxu0 0.0
        %v3953 = vand.u32 %v366, 4294901760
        %3954 = vmatpush1.msra.mxu0 %v3953
        %3955 = vmatprep.subr.mxu0 0.0
        %v3956 = vand.u32 %v367, 4294901760
        %3957 = vmatpush1.msra.mxu0 %v3956
        %3958 = vmatprep.subr.mxu0 0.0
        %v3959 = vand.u32 %v368, 4294901760
        %3960 = vmatpush1.msra.mxu0 %v3959
        %3961 = vmatprep.subr.mxu0 0.0
        %v3962 = vand.u32 %v369, 4294901760
        %3963 = vmatpush1.msra.mxu0 %v3962
        %3964 = vmatprep.subr.mxu0 0.0
        %v3965 = vand.u32 %v370, 4294901760
        %3966 = vmatpush1.msra.mxu0 %v3965
        %3967 = vmatprep.subr.mxu0 0.0
        %v3968 = vand.u32 %v371, 4294901760
        %3969 = vmatpush1.msra.mxu0 %v3968
        %3970 = vmatprep.subr.mxu0 0.0
        %v3971 = vand.u32 %v372, 4294901760
        %3972 = vmatpush1.msra.mxu0 %v3971
        %3973 = vmatprep.subr.mxu0 0.0
        %v3974 = vand.u32 %v373, 4294901760
        %3975 = vmatpush1.msra.mxu0 %v3974
        %3976 = vmatprep.subr.mxu0 0.0
        %v3977 = vand.u32 %v374, 4294901760
        %3978 = vmatpush1.msra.mxu0 %v3977
        %3979 = vmatprep.subr.mxu0 0.0
        %v3980 = vand.u32 %v375, 4294901760
        %3981 = vmatpush1.msra.mxu0 %v3980
        %3982 = vmatprep.subr.mxu0 0.0
        %v3983 = vand.u32 %v376, 4294901760
        %3984 = vmatpush1.msra.mxu0 %v3983
        %3985 = vmatprep.subr.mxu0 0.0
        %v3986 = vand.u32 %v377, 4294901760
        %3987 = vmatpush1.msra.mxu0 %v3986
        %3988 = vmatprep.subr.mxu0 0.0
        %v3989 = vand.u32 %v378, 4294901760
        %3990 = vmatpush1.msra.mxu0 %v3989
        %3991 = vmatprep.subr.mxu0 0.0
        %v3992 = vand.u32 %v379, 4294901760
        %3993 = vmatpush1.msra.mxu0 %v3992
        %3994 = vmatprep.subr.mxu0 0.0
        %v3995 = vand.u32 %v380, 4294901760
        %3996 = vmatpush1.msra.mxu0 %v3995
        %3997 = vmatprep.subr.mxu0 0.0
        %v3998 = vand.u32 %v381, 4294901760
        %3999 = vmatpush1.msra.mxu0 %v3998
        %4000 = vmatprep.subr.mxu0 0.0
        %v4001 = vand.u32 %v382, 4294901760
        %4002 = vmatpush1.msra.mxu0 %v4001
        %4003 = vmatprep.subr.mxu0 0.0
        %v4004 = vand.u32 %v383, 4294901760
        %4005 = vmatpush1.msra.mxu0 %v4004
        %4006 = vmatprep.subr.mxu0 0.0
        %v4007 = vand.u32 %v384, 4294901760
        %4008 = vmatpush1.msra.mxu0 %v4007
        %4009 = vmatprep.subr.mxu0 0.0
        %v4010 = vand.u32 %v385, 4294901760
        %4011 = vmatpush1.msra.mxu0 %v4010
        %4012 = vmatprep.subr.mxu0 0.0
        %v4013 = vand.u32 %v386, 4294901760
        %4014 = vmatpush1.msra.mxu0 %v4013
        %4015 = vmatprep.subr.mxu0 0.0
        %v4016 = vand.u32 %v387, 4294901760
        %4017 = vmatpush1.msra.mxu0 %v4016
        %4018 = vmatprep.subr.mxu0 0.0
        %v4019 = vand.u32 %v388, 4294901760
        %4020 = vmatpush1.msra.mxu0 %v4019
        %4021 = vmatprep.subr.mxu0 0.0
        %v4022 = vand.u32 %v389, 4294901760
        %4023 = vmatpush1.msra.mxu0 %v4022
        %4024 = vmatprep.subr.mxu0 0.0
        %v4025 = vand.u32 %v390, 4294901760
        %4026 = vmatpush1.msra.mxu0 %v4025
        %v4027 = vand.u32 %v3068, 4294901760
        %v4028 = vsub.f32 %v3068, %v4027
        %v4029 = vand.u32 %v4028, 4294901760
        %v4030 = vsub.f32 %v4028, %v4029
        %v4031 = vand.u32 %v4030, 4294901760
        %4032 = vmatprep.mubr.f32.mxu0 %v4031
        %v4033 = vand.u32 %v3067, 4294901760
        %v4034 = vsub.f32 %v3067, %v4033
        %v4035 = vand.u32 %v4034, 4294901760
        %v4036 = vsub.f32 %v4034, %v4035
        %v4037 = vand.u32 %v4036, 4294901760
        %4038 = vmatmul.mubr.f32.gmra.mrb[0].mxu0 %v4037
        %v4039 = vpop.f32.mrb[0].mxu0
        %v4040 = vadd.f32 %v3928, %v4039
        %v4041 = vpop.f32.mrb[0].mxu0
        %4042 = vdwg.mxu0
        %4043 = vmatprep.subr.mxu0 0.0
        %v4044 = vand.u32 %v359, 4294901760
        %v4045 = vsub.f32 %v359, %v4044
        %v4046 = vand.u32 %v4045, 4294901760
        %v4047 = vsub.f32 %v4045, %v4046
        %v4048 = vand.u32 %v4047, 4294901760
        %4049 = vmatpush1.msra.mxu0 %v4048
        %4050 = vmatprep.subr.mxu0 0.0
        %v4051 = vand.u32 %v360, 4294901760
        %v4052 = vsub.f32 %v360, %v4051
        %v4053 = vand.u32 %v4052, 4294901760
        %v4054 = vsub.f32 %v4052, %v4053
        %v4055 = vand.u32 %v4054, 4294901760
        %4056 = vmatpush1.msra.mxu0 %v4055
        %4057 = vmatprep.subr.mxu0 0.0
        %v4058 = vand.u32 %v361, 4294901760
        %v4059 = vsub.f32 %v361, %v4058
        %v4060 = vand.u32 %v4059, 4294901760
        %v4061 = vsub.f32 %v4059, %v4060
        %v4062 = vand.u32 %v4061, 4294901760
        %4063 = vmatpush1.msra.mxu0 %v4062
        %4064 = vmatprep.subr.mxu0 0.0
        %v4065 = vand.u32 %v362, 4294901760
        %v4066 = vsub.f32 %v362, %v4065
        %v4067 = vand.u32 %v4066, 4294901760
        %v4068 = vsub.f32 %v4066, %v4067
        %v4069 = vand.u32 %v4068, 4294901760
        %4070 = vmatpush1.msra.mxu0 %v4069
        %4071 = vmatprep.subr.mxu0 0.0
        %v4072 = vand.u32 %v363, 4294901760
        %v4073 = vsub.f32 %v363, %v4072
        %v4074 = vand.u32 %v4073, 4294901760
        %v4075 = vsub.f32 %v4073, %v4074
        %v4076 = vand.u32 %v4075, 4294901760
        %4077 = vmatpush1.msra.mxu0 %v4076
        %4078 = vmatprep.subr.mxu0 0.0
        %v4079 = vand.u32 %v364, 4294901760
        %v4080 = vsub.f32 %v364, %v4079
        %v4081 = vand.u32 %v4080, 4294901760
        %v4082 = vsub.f32 %v4080, %v4081
        %v4083 = vand.u32 %v4082, 4294901760
        %4084 = vmatpush1.msra.mxu0 %v4083
        %4085 = vmatprep.subr.mxu0 0.0
        %v4086 = vand.u32 %v365, 4294901760
        %v4087 = vsub.f32 %v365, %v4086
        %v4088 = vand.u32 %v4087, 4294901760
        %v4089 = vsub.f32 %v4087, %v4088
        %v4090 = vand.u32 %v4089, 4294901760
        %4091 = vmatpush1.msra.mxu0 %v4090
        %4092 = vmatprep.subr.mxu0 0.0
        %v4093 = vand.u32 %v366, 4294901760
        %v4094 = vsub.f32 %v366, %v4093
        %v4095 = vand.u32 %v4094, 4294901760
        %v4096 = vsub.f32 %v4094, %v4095
        %v4097 = vand.u32 %v4096, 4294901760
        %4098 = vmatpush1.msra.mxu0 %v4097
        %4099 = vmatprep.subr.mxu0 0.0
        %v4100 = vand.u32 %v367, 4294901760
        %v4101 = vsub.f32 %v367, %v4100
        %v4102 = vand.u32 %v4101, 4294901760
        %v4103 = vsub.f32 %v4101, %v4102
        %v4104 = vand.u32 %v4103, 4294901760
        %4105 = vmatpush1.msra.mxu0 %v4104
        %4106 = vmatprep.subr.mxu0 0.0
        %v4107 = vand.u32 %v368, 4294901760
        %v4108 = vsub.f32 %v368, %v4107
        %v4109 = vand.u32 %v4108, 4294901760
        %v4110 = vsub.f32 %v4108, %v4109
        %v4111 = vand.u32 %v4110, 4294901760
        %4112 = vmatpush1.msra.mxu0 %v4111
        %4113 = vmatprep.subr.mxu0 0.0
        %v4114 = vand.u32 %v369, 4294901760
        %v4115 = vsub.f32 %v369, %v4114
        %v4116 = vand.u32 %v4115, 4294901760
        %v4117 = vsub.f32 %v4115, %v4116
        %v4118 = vand.u32 %v4117, 4294901760
        %4119 = vmatpush1.msra.mxu0 %v4118
        %4120 = vmatprep.subr.mxu0 0.0
        %v4121 = vand.u32 %v370, 4294901760
        %v4122 = vsub.f32 %v370, %v4121
        %v4123 = vand.u32 %v4122, 4294901760
        %v4124 = vsub.f32 %v4122, %v4123
        %v4125 = vand.u32 %v4124, 4294901760
        %4126 = vmatpush1.msra.mxu0 %v4125
        %4127 = vmatprep.subr.mxu0 0.0
        %v4128 = vand.u32 %v371, 4294901760
        %v4129 = vsub.f32 %v371, %v4128
        %v4130 = vand.u32 %v4129, 4294901760
        %v4131 = vsub.f32 %v4129, %v4130
        %v4132 = vand.u32 %v4131, 4294901760
        %4133 = vmatpush1.msra.mxu0 %v4132
        %4134 = vmatprep.subr.mxu0 0.0
        %v4135 = vand.u32 %v372, 4294901760
        %v4136 = vsub.f32 %v372, %v4135
        %v4137 = vand.u32 %v4136, 4294901760
        %v4138 = vsub.f32 %v4136, %v4137
        %v4139 = vand.u32 %v4138, 4294901760
        %4140 = vmatpush1.msra.mxu0 %v4139
        %4141 = vmatprep.subr.mxu0 0.0
        %v4142 = vand.u32 %v373, 4294901760
        %v4143 = vsub.f32 %v373, %v4142
        %v4144 = vand.u32 %v4143, 4294901760
        %v4145 = vsub.f32 %v4143, %v4144
        %v4146 = vand.u32 %v4145, 4294901760
        %4147 = vmatpush1.msra.mxu0 %v4146
        %4148 = vmatprep.subr.mxu0 0.0
        %v4149 = vand.u32 %v374, 4294901760
        %v4150 = vsub.f32 %v374, %v4149
        %v4151 = vand.u32 %v4150, 4294901760
        %v4152 = vsub.f32 %v4150, %v4151
        %v4153 = vand.u32 %v4152, 4294901760
        %4154 = vmatpush1.msra.mxu0 %v4153
        %4155 = vmatprep.subr.mxu0 0.0
        %v4156 = vand.u32 %v375, 4294901760
        %v4157 = vsub.f32 %v375, %v4156
        %v4158 = vand.u32 %v4157, 4294901760
        %v4159 = vsub.f32 %v4157, %v4158
        %v4160 = vand.u32 %v4159, 4294901760
        %4161 = vmatpush1.msra.mxu0 %v4160
        %4162 = vmatprep.subr.mxu0 0.0
        %v4163 = vand.u32 %v376, 4294901760
        %v4164 = vsub.f32 %v376, %v4163
        %v4165 = vand.u32 %v4164, 4294901760
        %v4166 = vsub.f32 %v4164, %v4165
        %v4167 = vand.u32 %v4166, 4294901760
        %4168 = vmatpush1.msra.mxu0 %v4167
        %4169 = vmatprep.subr.mxu0 0.0
        %v4170 = vand.u32 %v377, 4294901760
        %v4171 = vsub.f32 %v377, %v4170
        %v4172 = vand.u32 %v4171, 4294901760
        %v4173 = vsub.f32 %v4171, %v4172
        %v4174 = vand.u32 %v4173, 4294901760
        %4175 = vmatpush1.msra.mxu0 %v4174
        %4176 = vmatprep.subr.mxu0 0.0
        %v4177 = vand.u32 %v378, 4294901760
        %v4178 = vsub.f32 %v378, %v4177
        %v4179 = vand.u32 %v4178, 4294901760
        %v4180 = vsub.f32 %v4178, %v4179
        %v4181 = vand.u32 %v4180, 4294901760
        %4182 = vmatpush1.msra.mxu0 %v4181
        %4183 = vmatprep.subr.mxu0 0.0
        %v4184 = vand.u32 %v379, 4294901760
        %v4185 = vsub.f32 %v379, %v4184
        %v4186 = vand.u32 %v4185, 4294901760
        %v4187 = vsub.f32 %v4185, %v4186
        %v4188 = vand.u32 %v4187, 4294901760
        %4189 = vmatpush1.msra.mxu0 %v4188
        %4190 = vmatprep.subr.mxu0 0.0
        %v4191 = vand.u32 %v380, 4294901760
        %v4192 = vsub.f32 %v380, %v4191
        %v4193 = vand.u32 %v4192, 4294901760
        %v4194 = vsub.f32 %v4192, %v4193
        %v4195 = vand.u32 %v4194, 4294901760
        %4196 = vmatpush1.msra.mxu0 %v4195
        %4197 = vmatprep.subr.mxu0 0.0
        %v4198 = vand.u32 %v381, 4294901760
        %v4199 = vsub.f32 %v381, %v4198
        %v4200 = vand.u32 %v4199, 4294901760
        %v4201 = vsub.f32 %v4199, %v4200
        %v4202 = vand.u32 %v4201, 4294901760
        %4203 = vmatpush1.msra.mxu0 %v4202
        %4204 = vmatprep.subr.mxu0 0.0
        %v4205 = vand.u32 %v382, 4294901760
        %v4206 = vsub.f32 %v382, %v4205
        %v4207 = vand.u32 %v4206, 4294901760
        %v4208 = vsub.f32 %v4206, %v4207
        %v4209 = vand.u32 %v4208, 4294901760
        %4210 = vmatpush1.msra.mxu0 %v4209
        %4211 = vmatprep.subr.mxu0 0.0
        %v4212 = vand.u32 %v383, 4294901760
        %v4213 = vsub.f32 %v383, %v4212
        %v4214 = vand.u32 %v4213, 4294901760
        %v4215 = vsub.f32 %v4213, %v4214
        %v4216 = vand.u32 %v4215, 4294901760
        %4217 = vmatpush1.msra.mxu0 %v4216
        %4218 = vmatprep.subr.mxu0 0.0
        %v4219 = vand.u32 %v384, 4294901760
        %v4220 = vsub.f32 %v384, %v4219
        %v4221 = vand.u32 %v4220, 4294901760
        %v4222 = vsub.f32 %v4220, %v4221
        %v4223 = vand.u32 %v4222, 4294901760
        %4224 = vmatpush1.msra.mxu0 %v4223
        %4225 = vmatprep.subr.mxu0 0.0
        %v4226 = vand.u32 %v385, 4294901760
        %v4227 = vsub.f32 %v385, %v4226
        %v4228 = vand.u32 %v4227, 4294901760
        %v4229 = vsub.f32 %v4227, %v4228
        %v4230 = vand.u32 %v4229, 4294901760
        %4231 = vmatpush1.msra.mxu0 %v4230
        %4232 = vmatprep.subr.mxu0 0.0
        %v4233 = vand.u32 %v386, 4294901760
        %v4234 = vsub.f32 %v386, %v4233
        %v4235 = vand.u32 %v4234, 4294901760
        %v4236 = vsub.f32 %v4234, %v4235
        %v4237 = vand.u32 %v4236, 4294901760
        %4238 = vmatpush1.msra.mxu0 %v4237
        %4239 = vmatprep.subr.mxu0 0.0
        %v4240 = vand.u32 %v387, 4294901760
        %v4241 = vsub.f32 %v387, %v4240
        %v4242 = vand.u32 %v4241, 4294901760
        %v4243 = vsub.f32 %v4241, %v4242
        %v4244 = vand.u32 %v4243, 4294901760
        %4245 = vmatpush1.msra.mxu0 %v4244
        %4246 = vmatprep.subr.mxu0 0.0
        %v4247 = vand.u32 %v388, 4294901760
        %v4248 = vsub.f32 %v388, %v4247
        %v4249 = vand.u32 %v4248, 4294901760
        %v4250 = vsub.f32 %v4248, %v4249
        %v4251 = vand.u32 %v4250, 4294901760
        %4252 = vmatpush1.msra.mxu0 %v4251
        %4253 = vmatprep.subr.mxu0 0.0
        %v4254 = vand.u32 %v389, 4294901760
        %v4255 = vsub.f32 %v389, %v4254
        %v4256 = vand.u32 %v4255, 4294901760
        %v4257 = vsub.f32 %v4255, %v4256
        %v4258 = vand.u32 %v4257, 4294901760
        %4259 = vmatpush1.msra.mxu0 %v4258
        %4260 = vmatprep.subr.mxu0 0.0
        %v4261 = vand.u32 %v390, 4294901760
        %v4262 = vsub.f32 %v390, %v4261
        %v4263 = vand.u32 %v4262, 4294901760
        %v4264 = vsub.f32 %v4262, %v4263
        %v4265 = vand.u32 %v4264, 4294901760
        %4266 = vmatpush1.msra.mxu0 %v4265
        %v4267 = vand.u32 %v3068, 4294901760
        %4268 = vmatprep.mubr.f32.mxu0 %v4267
        %v4269 = vand.u32 %v3067, 4294901760
        %4270 = vmatmul.mubr.f32.gmra.mrb[0].mxu0 %v4269
        %v4271 = vpop.f32.mrb[0].mxu0
        %v4272 = vadd.f32 %v4040, %v4271
        %v4273 = vpop.f32.mrb[0].mxu0
        %4274 = vdwg.mxu0
        %4275 = vmatprep.subr.mxu0 0.0
        %v4276 = vand.u32 %v359, 4294901760
        %v4277 = vsub.f32 %v359, %v4276
        %4278 = vmatpush1.msra.mxu0 %v4277
        %4279 = vmatprep.subr.mxu0 0.0
        %v4280 = vand.u32 %v360, 4294901760
        %v4281 = vsub.f32 %v360, %v4280
        %4282 = vmatpush1.msra.mxu0 %v4281
        %4283 = vmatprep.subr.mxu0 0.0
        %v4284 = vand.u32 %v361, 4294901760
        %v4285 = vsub.f32 %v361, %v4284
        %4286 = vmatpush1.msra.mxu0 %v4285
        %4287 = vmatprep.subr.mxu0 0.0
        %v4288 = vand.u32 %v362, 4294901760
        %v4289 = vsub.f32 %v362, %v4288
        %4290 = vmatpush1.msra.mxu0 %v4289
        %4291 = vmatprep.subr.mxu0 0.0
        %v4292 = vand.u32 %v363, 4294901760
        %v4293 = vsub.f32 %v363, %v4292
        %4294 = vmatpush1.msra.mxu0 %v4293
        %4295 = vmatprep.subr.mxu0 0.0
        %v4296 = vand.u32 %v364, 4294901760
        %v4297 = vsub.f32 %v364, %v4296
        %4298 = vmatpush1.msra.mxu0 %v4297
        %4299 = vmatprep.subr.mxu0 0.0
        %v4300 = vand.u32 %v365, 4294901760
        %v4301 = vsub.f32 %v365, %v4300
        %4302 = vmatpush1.msra.mxu0 %v4301
        %4303 = vmatprep.subr.mxu0 0.0
        %v4304 = vand.u32 %v366, 4294901760
        %v4305 = vsub.f32 %v366, %v4304
        %4306 = vmatpush1.msra.mxu0 %v4305
        %4307 = vmatprep.subr.mxu0 0.0
        %v4308 = vand.u32 %v367, 4294901760
        %v4309 = vsub.f32 %v367, %v4308
        %4310 = vmatpush1.msra.mxu0 %v4309
        %4311 = vmatprep.subr.mxu0 0.0
        %v4312 = vand.u32 %v368, 4294901760
        %v4313 = vsub.f32 %v368, %v4312
        %4314 = vmatpush1.msra.mxu0 %v4313
        %4315 = vmatprep.subr.mxu0 0.0
        %v4316 = vand.u32 %v369, 4294901760
        %v4317 = vsub.f32 %v369, %v4316
        %4318 = vmatpush1.msra.mxu0 %v4317
        %4319 = vmatprep.subr.mxu0 0.0
        %v4320 = vand.u32 %v370, 4294901760
        %v4321 = vsub.f32 %v370, %v4320
        %4322 = vmatpush1.msra.mxu0 %v4321
        %4323 = vmatprep.subr.mxu0 0.0
        %v4324 = vand.u32 %v371, 4294901760
        %v4325 = vsub.f32 %v371, %v4324
        %4326 = vmatpush1.msra.mxu0 %v4325
        %4327 = vmatprep.subr.mxu0 0.0
        %v4328 = vand.u32 %v372, 4294901760
        %v4329 = vsub.f32 %v372, %v4328
        %4330 = vmatpush1.msra.mxu0 %v4329
        %4331 = vmatprep.subr.mxu0 0.0
        %v4332 = vand.u32 %v373, 4294901760
        %v4333 = vsub.f32 %v373, %v4332
        %4334 = vmatpush1.msra.mxu0 %v4333
        %4335 = vmatprep.subr.mxu0 0.0
        %v4336 = vand.u32 %v374, 4294901760
        %v4337 = vsub.f32 %v374, %v4336
        %4338 = vmatpush1.msra.mxu0 %v4337
        %4339 = vmatprep.subr.mxu0 0.0
        %v4340 = vand.u32 %v375, 4294901760
        %v4341 = vsub.f32 %v375, %v4340
        %4342 = vmatpush1.msra.mxu0 %v4341
        %4343 = vmatprep.subr.mxu0 0.0
        %v4344 = vand.u32 %v376, 4294901760
        %v4345 = vsub.f32 %v376, %v4344
        %4346 = vmatpush1.msra.mxu0 %v4345
        %4347 = vmatprep.subr.mxu0 0.0
        %v4348 = vand.u32 %v377, 4294901760
        %v4349 = vsub.f32 %v377, %v4348
        %4350 = vmatpush1.msra.mxu0 %v4349
        %4351 = vmatprep.subr.mxu0 0.0
        %v4352 = vand.u32 %v378, 4294901760
        %v4353 = vsub.f32 %v378, %v4352
        %4354 = vmatpush1.msra.mxu0 %v4353
        %4355 = vmatprep.subr.mxu0 0.0
        %v4356 = vand.u32 %v379, 4294901760
        %v4357 = vsub.f32 %v379, %v4356
        %4358 = vmatpush1.msra.mxu0 %v4357
        %4359 = vmatprep.subr.mxu0 0.0
        %v4360 = vand.u32 %v380, 4294901760
        %v4361 = vsub.f32 %v380, %v4360
        %4362 = vmatpush1.msra.mxu0 %v4361
        %4363 = vmatprep.subr.mxu0 0.0
        %v4364 = vand.u32 %v381, 4294901760
        %v4365 = vsub.f32 %v381, %v4364
        %4366 = vmatpush1.msra.mxu0 %v4365
        %4367 = vmatprep.subr.mxu0 0.0
        %v4368 = vand.u32 %v382, 4294901760
        %v4369 = vsub.f32 %v382, %v4368
        %4370 = vmatpush1.msra.mxu0 %v4369
        %4371 = vmatprep.subr.mxu0 0.0
        %v4372 = vand.u32 %v383, 4294901760
        %v4373 = vsub.f32 %v383, %v4372
        %4374 = vmatpush1.msra.mxu0 %v4373
        %4375 = vmatprep.subr.mxu0 0.0
        %v4376 = vand.u32 %v384, 4294901760
        %v4377 = vsub.f32 %v384, %v4376
        %4378 = vmatpush1.msra.mxu0 %v4377
        %4379 = vmatprep.subr.mxu0 0.0
        %v4380 = vand.u32 %v385, 4294901760
        %v4381 = vsub.f32 %v385, %v4380
        %4382 = vmatpush1.msra.mxu0 %v4381
        %4383 = vmatprep.subr.mxu0 0.0
        %v4384 = vand.u32 %v386, 4294901760
        %v4385 = vsub.f32 %v386, %v4384
        %4386 = vmatpush1.msra.mxu0 %v4385
        %4387 = vmatprep.subr.mxu0 0.0
        %v4388 = vand.u32 %v387, 4294901760
        %v4389 = vsub.f32 %v387, %v4388
        %4390 = vmatpush1.msra.mxu0 %v4389
        %4391 = vmatprep.subr.mxu0 0.0
        %v4392 = vand.u32 %v388, 4294901760
        %v4393 = vsub.f32 %v388, %v4392
        %4394 = vmatpush1.msra.mxu0 %v4393
        %4395 = vmatprep.subr.mxu0 0.0
        %v4396 = vand.u32 %v389, 4294901760
        %v4397 = vsub.f32 %v389, %v4396
        %4398 = vmatpush1.msra.mxu0 %v4397
        %4399 = vmatprep.subr.mxu0 0.0
        %v4400 = vand.u32 %v390, 4294901760
        %v4401 = vsub.f32 %v390, %v4400
        %4402 = vmatpush1.msra.mxu0 %v4401
        %v4403 = vand.u32 %v3068, 4294901760
        %v4404 = vsub.f32 %v3068, %v4403
        %4405 = vmatprep.mubr.f32.mxu0 %v4404
        %v4406 = vand.u32 %v3067, 4294901760
        %v4407 = vsub.f32 %v3067, %v4406
        %4408 = vmatmul.mubr.f32.gmra.mrb[0].mxu0 %v4407
        %v4409 = vpop.f32.mrb[0].mxu0
        %v4410 = vadd.f32 %v4272, %v4409
        %v4411 = vpop.f32.mrb[0].mxu0
        %4412 = vdwg.mxu0
        %4413 = vmatprep.subr.mxu0 0.0
        %v4414 = vand.u32 %v359, 4294901760
        %4415 = vmatpush1.msra.mxu0 %v4414
        %4416 = vmatprep.subr.mxu0 0.0
        %v4417 = vand.u32 %v360, 4294901760
        %4418 = vmatpush1.msra.mxu0 %v4417
        %4419 = vmatprep.subr.mxu0 0.0
        %v4420 = vand.u32 %v361, 4294901760
        %4421 = vmatpush1.msra.mxu0 %v4420
        %4422 = vmatprep.subr.mxu0 0.0
        %v4423 = vand.u32 %v362, 4294901760
        %4424 = vmatpush1.msra.mxu0 %v4423
        %4425 = vmatprep.subr.mxu0 0.0
        %v4426 = vand.u32 %v363, 4294901760
        %4427 = vmatpush1.msra.mxu0 %v4426
        %4428 = vmatprep.subr.mxu0 0.0
        %v4429 = vand.u32 %v364, 4294901760
        %4430 = vmatpush1.msra.mxu0 %v4429
        %4431 = vmatprep.subr.mxu0 0.0
        %v4432 = vand.u32 %v365, 4294901760
        %4433 = vmatpush1.msra.mxu0 %v4432
        %4434 = vmatprep.subr.mxu0 0.0
        %v4435 = vand.u32 %v366, 4294901760
        %4436 = vmatpush1.msra.mxu0 %v4435
        %4437 = vmatprep.subr.mxu0 0.0
        %v4438 = vand.u32 %v367, 4294901760
        %4439 = vmatpush1.msra.mxu0 %v4438
        %4440 = vmatprep.subr.mxu0 0.0
        %v4441 = vand.u32 %v368, 4294901760
        %4442 = vmatpush1.msra.mxu0 %v4441
        %4443 = vmatprep.subr.mxu0 0.0
        %v4444 = vand.u32 %v369, 4294901760
        %4445 = vmatpush1.msra.mxu0 %v4444
        %4446 = vmatprep.subr.mxu0 0.0
        %v4447 = vand.u32 %v370, 4294901760
        %4448 = vmatpush1.msra.mxu0 %v4447
        %4449 = vmatprep.subr.mxu0 0.0
        %v4450 = vand.u32 %v371, 4294901760
        %4451 = vmatpush1.msra.mxu0 %v4450
        %4452 = vmatprep.subr.mxu0 0.0
        %v4453 = vand.u32 %v372, 4294901760
        %4454 = vmatpush1.msra.mxu0 %v4453
        %4455 = vmatprep.subr.mxu0 0.0
        %v4456 = vand.u32 %v373, 4294901760
        %4457 = vmatpush1.msra.mxu0 %v4456
        %4458 = vmatprep.subr.mxu0 0.0
        %v4459 = vand.u32 %v374, 4294901760
        %4460 = vmatpush1.msra.mxu0 %v4459
        %4461 = vmatprep.subr.mxu0 0.0
        %v4462 = vand.u32 %v375, 4294901760
        %4463 = vmatpush1.msra.mxu0 %v4462
        %4464 = vmatprep.subr.mxu0 0.0
        %v4465 = vand.u32 %v376, 4294901760
        %4466 = vmatpush1.msra.mxu0 %v4465
        %4467 = vmatprep.subr.mxu0 0.0
        %v4468 = vand.u32 %v377, 4294901760
        %4469 = vmatpush1.msra.mxu0 %v4468
        %4470 = vmatprep.subr.mxu0 0.0
        %v4471 = vand.u32 %v378, 4294901760
        %4472 = vmatpush1.msra.mxu0 %v4471
        %4473 = vmatprep.subr.mxu0 0.0
        %v4474 = vand.u32 %v379, 4294901760
        %4475 = vmatpush1.msra.mxu0 %v4474
        %4476 = vmatprep.subr.mxu0 0.0
        %v4477 = vand.u32 %v380, 4294901760
        %4478 = vmatpush1.msra.mxu0 %v4477
        %4479 = vmatprep.subr.mxu0 0.0
        %v4480 = vand.u32 %v381, 4294901760
        %4481 = vmatpush1.msra.mxu0 %v4480
        %4482 = vmatprep.subr.mxu0 0.0
        %v4483 = vand.u32 %v382, 4294901760
        %4484 = vmatpush1.msra.mxu0 %v4483
        %4485 = vmatprep.subr.mxu0 0.0
        %v4486 = vand.u32 %v383, 4294901760
        %4487 = vmatpush1.msra.mxu0 %v4486
        %4488 = vmatprep.subr.mxu0 0.0
        %v4489 = vand.u32 %v384, 4294901760
        %4490 = vmatpush1.msra.mxu0 %v4489
        %4491 = vmatprep.subr.mxu0 0.0
        %v4492 = vand.u32 %v385, 4294901760
        %4493 = vmatpush1.msra.mxu0 %v4492
        %4494 = vmatprep.subr.mxu0 0.0
        %v4495 = vand.u32 %v386, 4294901760
        %4496 = vmatpush1.msra.mxu0 %v4495
        %4497 = vmatprep.subr.mxu0 0.0
        %v4498 = vand.u32 %v387, 4294901760
        %4499 = vmatpush1.msra.mxu0 %v4498
        %4500 = vmatprep.subr.mxu0 0.0
        %v4501 = vand.u32 %v388, 4294901760
        %4502 = vmatpush1.msra.mxu0 %v4501
        %4503 = vmatprep.subr.mxu0 0.0
        %v4504 = vand.u32 %v389, 4294901760
        %4505 = vmatpush1.msra.mxu0 %v4504
        %4506 = vmatprep.subr.mxu0 0.0
        %v4507 = vand.u32 %v390, 4294901760
        %4508 = vmatpush1.msra.mxu0 %v4507
        %v4509 = vand.u32 %v3068, 4294901760
        %v4510 = vsub.f32 %v3068, %v4509
        %v4511 = vand.u32 %v4510, 4294901760
        %4512 = vmatprep.mubr.f32.mxu0 %v4511
        %v4513 = vand.u32 %v3067, 4294901760
        %v4514 = vsub.f32 %v3067, %v4513
        %v4515 = vand.u32 %v4514, 4294901760
        %4516 = vmatmul.mubr.f32.gmra.mrb[0].mxu0 %v4515
        %v4517 = vpop.f32.mrb[0].mxu0
        %v4518 = vadd.f32 %v4410, %v4517
        %v4519 = vpop.f32.mrb[0].mxu0
        %4520 = vdwg.mxu0
        %4521 = vmatprep.subr.mxu0 0.0
        %v4522 = vand.u32 %v359, 4294901760
        %v4523 = vsub.f32 %v359, %v4522
        %v4524 = vand.u32 %v4523, 4294901760
        %4525 = vmatpush1.msra.mxu0 %v4524
        %4526 = vmatprep.subr.mxu0 0.0
        %v4527 = vand.u32 %v360, 4294901760
        %v4528 = vsub.f32 %v360, %v4527
        %v4529 = vand.u32 %v4528, 4294901760
        %4530 = vmatpush1.msra.mxu0 %v4529
        %4531 = vmatprep.subr.mxu0 0.0
        %v4532 = vand.u32 %v361, 4294901760
        %v4533 = vsub.f32 %v361, %v4532
        %v4534 = vand.u32 %v4533, 4294901760
        %4535 = vmatpush1.msra.mxu0 %v4534
        %4536 = vmatprep.subr.mxu0 0.0
        %v4537 = vand.u32 %v362, 4294901760
        %v4538 = vsub.f32 %v362, %v4537
        %v4539 = vand.u32 %v4538, 4294901760
        %4540 = vmatpush1.msra.mxu0 %v4539
        %4541 = vmatprep.subr.mxu0 0.0
        %v4542 = vand.u32 %v363, 4294901760
        %v4543 = vsub.f32 %v363, %v4542
        %v4544 = vand.u32 %v4543, 4294901760
        %4545 = vmatpush1.msra.mxu0 %v4544
        %4546 = vmatprep.subr.mxu0 0.0
        %v4547 = vand.u32 %v364, 4294901760
        %v4548 = vsub.f32 %v364, %v4547
        %v4549 = vand.u32 %v4548, 4294901760
        %4550 = vmatpush1.msra.mxu0 %v4549
        %4551 = vmatprep.subr.mxu0 0.0
        %v4552 = vand.u32 %v365, 4294901760
        %v4553 = vsub.f32 %v365, %v4552
        %v4554 = vand.u32 %v4553, 4294901760
        %4555 = vmatpush1.msra.mxu0 %v4554
        %4556 = vmatprep.subr.mxu0 0.0
        %v4557 = vand.u32 %v366, 4294901760
        %v4558 = vsub.f32 %v366, %v4557
        %v4559 = vand.u32 %v4558, 4294901760
        %4560 = vmatpush1.msra.mxu0 %v4559
        %4561 = vmatprep.subr.mxu0 0.0
        %v4562 = vand.u32 %v367, 4294901760
        %v4563 = vsub.f32 %v367, %v4562
        %v4564 = vand.u32 %v4563, 4294901760
        %4565 = vmatpush1.msra.mxu0 %v4564
        %4566 = vmatprep.subr.mxu0 0.0
        %v4567 = vand.u32 %v368, 4294901760
        %v4568 = vsub.f32 %v368, %v4567
        %v4569 = vand.u32 %v4568, 4294901760
        %4570 = vmatpush1.msra.mxu0 %v4569
        %4571 = vmatprep.subr.mxu0 0.0
        %v4572 = vand.u32 %v369, 4294901760
        %v4573 = vsub.f32 %v369, %v4572
        %v4574 = vand.u32 %v4573, 4294901760
        %4575 = vmatpush1.msra.mxu0 %v4574
        %4576 = vmatprep.subr.mxu0 0.0
        %v4577 = vand.u32 %v370, 4294901760
        %v4578 = vsub.f32 %v370, %v4577
        %v4579 = vand.u32 %v4578, 4294901760
        %4580 = vmatpush1.msra.mxu0 %v4579
        %4581 = vmatprep.subr.mxu0 0.0
        %v4582 = vand.u32 %v371, 4294901760
        %v4583 = vsub.f32 %v371, %v4582
        %v4584 = vand.u32 %v4583, 4294901760
        %4585 = vmatpush1.msra.mxu0 %v4584
        %4586 = vmatprep.subr.mxu0 0.0
        %v4587 = vand.u32 %v372, 4294901760
        %v4588 = vsub.f32 %v372, %v4587
        %v4589 = vand.u32 %v4588, 4294901760
        %4590 = vmatpush1.msra.mxu0 %v4589
        %4591 = vmatprep.subr.mxu0 0.0
        %v4592 = vand.u32 %v373, 4294901760
        %v4593 = vsub.f32 %v373, %v4592
        %v4594 = vand.u32 %v4593, 4294901760
        %4595 = vmatpush1.msra.mxu0 %v4594
        %4596 = vmatprep.subr.mxu0 0.0
        %v4597 = vand.u32 %v374, 4294901760
        %v4598 = vsub.f32 %v374, %v4597
        %v4599 = vand.u32 %v4598, 4294901760
        %4600 = vmatpush1.msra.mxu0 %v4599
        %4601 = vmatprep.subr.mxu0 0.0
        %v4602 = vand.u32 %v375, 4294901760
        %v4603 = vsub.f32 %v375, %v4602
        %v4604 = vand.u32 %v4603, 4294901760
        %4605 = vmatpush1.msra.mxu0 %v4604
        %4606 = vmatprep.subr.mxu0 0.0
        %v4607 = vand.u32 %v376, 4294901760
        %v4608 = vsub.f32 %v376, %v4607
        %v4609 = vand.u32 %v4608, 4294901760
        %4610 = vmatpush1.msra.mxu0 %v4609
        %4611 = vmatprep.subr.mxu0 0.0
        %v4612 = vand.u32 %v377, 4294901760
        %v4613 = vsub.f32 %v377, %v4612
        %v4614 = vand.u32 %v4613, 4294901760
        %4615 = vmatpush1.msra.mxu0 %v4614
        %4616 = vmatprep.subr.mxu0 0.0
        %v4617 = vand.u32 %v378, 4294901760
        %v4618 = vsub.f32 %v378, %v4617
        %v4619 = vand.u32 %v4618, 4294901760
        %4620 = vmatpush1.msra.mxu0 %v4619
        %4621 = vmatprep.subr.mxu0 0.0
        %v4622 = vand.u32 %v379, 4294901760
        %v4623 = vsub.f32 %v379, %v4622
        %v4624 = vand.u32 %v4623, 4294901760
        %4625 = vmatpush1.msra.mxu0 %v4624
        %4626 = vmatprep.subr.mxu0 0.0
        %v4627 = vand.u32 %v380, 4294901760
        %v4628 = vsub.f32 %v380, %v4627
        %v4629 = vand.u32 %v4628, 4294901760
        %4630 = vmatpush1.msra.mxu0 %v4629
        %4631 = vmatprep.subr.mxu0 0.0
        %v4632 = vand.u32 %v381, 4294901760
        %v4633 = vsub.f32 %v381, %v4632
        %v4634 = vand.u32 %v4633, 4294901760
        %4635 = vmatpush1.msra.mxu0 %v4634
        %4636 = vmatprep.subr.mxu0 0.0
        %v4637 = vand.u32 %v382, 4294901760
        %v4638 = vsub.f32 %v382, %v4637
        %v4639 = vand.u32 %v4638, 4294901760
        %4640 = vmatpush1.msra.mxu0 %v4639
        %4641 = vmatprep.subr.mxu0 0.0
        %v4642 = vand.u32 %v383, 4294901760
        %v4643 = vsub.f32 %v383, %v4642
        %v4644 = vand.u32 %v4643, 4294901760
        %4645 = vmatpush1.msra.mxu0 %v4644
        %4646 = vmatprep.subr.mxu0 0.0
        %v4647 = vand.u32 %v384, 4294901760
        %v4648 = vsub.f32 %v384, %v4647
        %v4649 = vand.u32 %v4648, 4294901760
        %4650 = vmatpush1.msra.mxu0 %v4649
        %4651 = vmatprep.subr.mxu0 0.0
        %v4652 = vand.u32 %v385, 4294901760
        %v4653 = vsub.f32 %v385, %v4652
        %v4654 = vand.u32 %v4653, 4294901760
        %4655 = vmatpush1.msra.mxu0 %v4654
        %4656 = vmatprep.subr.mxu0 0.0
        %v4657 = vand.u32 %v386, 4294901760
        %v4658 = vsub.f32 %v386, %v4657
        %v4659 = vand.u32 %v4658, 4294901760
        %4660 = vmatpush1.msra.mxu0 %v4659
        %4661 = vmatprep.subr.mxu0 0.0
        %v4662 = vand.u32 %v387, 4294901760
        %v4663 = vsub.f32 %v387, %v4662
        %v4664 = vand.u32 %v4663, 4294901760
        %4665 = vmatpush1.msra.mxu0 %v4664
        %4666 = vmatprep.subr.mxu0 0.0
        %v4667 = vand.u32 %v388, 4294901760
        %v4668 = vsub.f32 %v388, %v4667
        %v4669 = vand.u32 %v4668, 4294901760
        %4670 = vmatpush1.msra.mxu0 %v4669
        %4671 = vmatprep.subr.mxu0 0.0
        %v4672 = vand.u32 %v389, 4294901760
        %v4673 = vsub.f32 %v389, %v4672
        %v4674 = vand.u32 %v4673, 4294901760
        %4675 = vmatpush1.msra.mxu0 %v4674
        %4676 = vmatprep.subr.mxu0 0.0
        %v4677 = vand.u32 %v390, 4294901760
        %v4678 = vsub.f32 %v390, %v4677
        %v4679 = vand.u32 %v4678, 4294901760
        %4680 = vmatpush1.msra.mxu0 %v4679
        %v4681 = vand.u32 %v3068, 4294901760
        %4682 = vmatprep.mubr.f32.mxu0 %v4681
        %v4683 = vand.u32 %v3067, 4294901760
        %4684 = vmatmul.mubr.f32.gmra.mrb[0].mxu0 %v4683
        %v4685 = vpop.f32.mrb[0].mxu0
        %v4686 = vadd.f32 %v4518, %v4685
        %v4687 = vpop.f32.mrb[0].mxu0
        %4688 = vdwg.mxu0
        %4689 = vmatprep.subr.mxu0 0.0
        %v4690 = vand.u32 %v359, 4294901760
        %4691 = vmatpush1.msra.mxu0 %v4690
        %4692 = vmatprep.subr.mxu0 0.0
        %v4693 = vand.u32 %v360, 4294901760
        %4694 = vmatpush1.msra.mxu0 %v4693
        %4695 = vmatprep.subr.mxu0 0.0
        %v4696 = vand.u32 %v361, 4294901760
        %4697 = vmatpush1.msra.mxu0 %v4696
        %4698 = vmatprep.subr.mxu0 0.0
        %v4699 = vand.u32 %v362, 4294901760
        %4700 = vmatpush1.msra.mxu0 %v4699
        %4701 = vmatprep.subr.mxu0 0.0
        %v4702 = vand.u32 %v363, 4294901760
        %4703 = vmatpush1.msra.mxu0 %v4702
        %4704 = vmatprep.subr.mxu0 0.0
        %v4705 = vand.u32 %v364, 4294901760
        %4706 = vmatpush1.msra.mxu0 %v4705
        %4707 = vmatprep.subr.mxu0 0.0
        %v4708 = vand.u32 %v365, 4294901760
        %4709 = vmatpush1.msra.mxu0 %v4708
        %4710 = vmatprep.subr.mxu0 0.0
        %v4711 = vand.u32 %v366, 4294901760
        %4712 = vmatpush1.msra.mxu0 %v4711
        %4713 = vmatprep.subr.mxu0 0.0
        %v4714 = vand.u32 %v367, 4294901760
        %4715 = vmatpush1.msra.mxu0 %v4714
        %4716 = vmatprep.subr.mxu0 0.0
        %v4717 = vand.u32 %v368, 4294901760
        %4718 = vmatpush1.msra.mxu0 %v4717
        %4719 = vmatprep.subr.mxu0 0.0
        %v4720 = vand.u32 %v369, 4294901760
        %4721 = vmatpush1.msra.mxu0 %v4720
        %4722 = vmatprep.subr.mxu0 0.0
        %v4723 = vand.u32 %v370, 4294901760
        %4724 = vmatpush1.msra.mxu0 %v4723
        %4725 = vmatprep.subr.mxu0 0.0
        %v4726 = vand.u32 %v371, 4294901760
        %4727 = vmatpush1.msra.mxu0 %v4726
        %4728 = vmatprep.subr.mxu0 0.0
        %v4729 = vand.u32 %v372, 4294901760
        %4730 = vmatpush1.msra.mxu0 %v4729
        %4731 = vmatprep.subr.mxu0 0.0
        %v4732 = vand.u32 %v373, 4294901760
        %4733 = vmatpush1.msra.mxu0 %v4732
        %4734 = vmatprep.subr.mxu0 0.0
        %v4735 = vand.u32 %v374, 4294901760
        %4736 = vmatpush1.msra.mxu0 %v4735
        %4737 = vmatprep.subr.mxu0 0.0
        %v4738 = vand.u32 %v375, 4294901760
        %4739 = vmatpush1.msra.mxu0 %v4738
        %4740 = vmatprep.subr.mxu0 0.0
        %v4741 = vand.u32 %v376, 4294901760
        %4742 = vmatpush1.msra.mxu0 %v4741
        %4743 = vmatprep.subr.mxu0 0.0
        %v4744 = vand.u32 %v377, 4294901760
        %4745 = vmatpush1.msra.mxu0 %v4744
        %4746 = vmatprep.subr.mxu0 0.0
        %v4747 = vand.u32 %v378, 4294901760
        %4748 = vmatpush1.msra.mxu0 %v4747
        %4749 = vmatprep.subr.mxu0 0.0
        %v4750 = vand.u32 %v379, 4294901760
        %4751 = vmatpush1.msra.mxu0 %v4750
        %4752 = vmatprep.subr.mxu0 0.0
        %v4753 = vand.u32 %v380, 4294901760
        %4754 = vmatpush1.msra.mxu0 %v4753
        %4755 = vmatprep.subr.mxu0 0.0
        %v4756 = vand.u32 %v381, 4294901760
        %4757 = vmatpush1.msra.mxu0 %v4756
        %4758 = vmatprep.subr.mxu0 0.0
        %v4759 = vand.u32 %v382, 4294901760
        %4760 = vmatpush1.msra.mxu0 %v4759
        %4761 = vmatprep.subr.mxu0 0.0
        %v4762 = vand.u32 %v383, 4294901760
        %4763 = vmatpush1.msra.mxu0 %v4762
        %4764 = vmatprep.subr.mxu0 0.0
        %v4765 = vand.u32 %v384, 4294901760
        %4766 = vmatpush1.msra.mxu0 %v4765
        %4767 = vmatprep.subr.mxu0 0.0
        %v4768 = vand.u32 %v385, 4294901760
        %4769 = vmatpush1.msra.mxu0 %v4768
        %4770 = vmatprep.subr.mxu0 0.0
        %v4771 = vand.u32 %v386, 4294901760
        %4772 = vmatpush1.msra.mxu0 %v4771
        %4773 = vmatprep.subr.mxu0 0.0
        %v4774 = vand.u32 %v387, 4294901760
        %4775 = vmatpush1.msra.mxu0 %v4774
        %4776 = vmatprep.subr.mxu0 0.0
        %v4777 = vand.u32 %v388, 4294901760
        %4778 = vmatpush1.msra.mxu0 %v4777
        %4779 = vmatprep.subr.mxu0 0.0
        %v4780 = vand.u32 %v389, 4294901760
        %4781 = vmatpush1.msra.mxu0 %v4780
        %4782 = vmatprep.subr.mxu0 0.0
        %v4783 = vand.u32 %v390, 4294901760
        %4784 = vmatpush1.msra.mxu0 %v4783
        %v4785 = vand.u32 %v3068, 4294901760
        %4786 = vmatprep.mubr.f32.mxu0 %v4785
        %v4787 = vand.u32 %v3067, 4294901760
        %4788 = vmatmul.mubr.f32.gmra.mrb[0].mxu0 %v4787
        %v4789 = vpop.f32.mrb[0].mxu0
        %v4790 = vadd.f32 %v4686, %v4789
        %v4791 = vpop.f32.mrb[0].mxu0
        %4792 = vdwg.mxu0
        %v4793 = vmul.f32 %v3062, 0.0625
        %v4794 = vmul.f32 %v4790, 0.0625
        %v4795 = vmul.f32 %v4793, %v4793
        %v4796 = vsub.f32 %v4794, %v4795
        %v4797 = vmax.f32 %v4796, 0.0
        %v4798 = vadd.f32 %v4797, 1e-05
        %v4799 = vrsqrt.pop %v4798
        %v4800 = vsub.f32 0.0, %v4793
        %v4801 = vmul.f32 %v4800, %v4799
        %vm4802 = vcmask 261120
        %v4804 = vsel %vm4802, %v4799, 0
        %v4806 = vand.u32 %v392, 4294901760
        %4807 = vmatprep.subr.mxu0 %v4806
        %v4808 = vand.u32 %v391, 4294901760
        %4809 = vmatpush1.msra.mxu0 %v4808
        %v4810 = vand.u32 %v396, 4294901760
        %4811 = vmatprep.subr.mxu0 %v4810
        %v4812 = vand.u32 %v395, 4294901760
        %4813 = vmatpush1.msra.mxu0 %v4812
        %v4814 = vand.u32 %v400, 4294901760
        %4815 = vmatprep.subr.mxu0 %v4814
        %v4816 = vand.u32 %v399, 4294901760
        %4817 = vmatpush1.msra.mxu0 %v4816
        %v4818 = vand.u32 %v404, 4294901760
        %4819 = vmatprep.subr.mxu0 %v4818
        %v4820 = vand.u32 %v403, 4294901760
        %4821 = vmatpush1.msra.mxu0 %v4820
        %4822 = vmatprep.subr.mxu0 0.0
        %4823 = vmatpush1.msra.mxu0 0.0
        %4824 = vmatprep.subr.mxu0 0.0
        %4825 = vmatpush1.msra.mxu0 0.0
        %4826 = vmatprep.subr.mxu0 0.0
        %4827 = vmatpush1.msra.mxu0 0.0
        %4828 = vmatprep.subr.mxu0 0.0
        %4829 = vmatpush1.msra.mxu0 0.0
        %4830 = vmatprep.subr.mxu0 0.0
        %4831 = vmatpush1.msra.mxu0 0.0
        %4832 = vmatprep.subr.mxu0 0.0
        %4833 = vmatpush1.msra.mxu0 0.0
        %4834 = vmatprep.subr.mxu0 0.0
        %4835 = vmatpush1.msra.mxu0 0.0
        %4836 = vmatprep.subr.mxu0 0.0
        %4837 = vmatpush1.msra.mxu0 0.0
        %4838 = vmatprep.subr.mxu0 0.0
        %4839 = vmatpush1.msra.mxu0 0.0
        %4840 = vmatprep.subr.mxu0 0.0
        %4841 = vmatpush1.msra.mxu0 0.0
        %4842 = vmatprep.subr.mxu0 0.0
        %4843 = vmatpush1.msra.mxu0 0.0
        %4844 = vmatprep.subr.mxu0 0.0
        %4845 = vmatpush1.msra.mxu0 0.0
        %4846 = vmatprep.subr.mxu0 0.0
        %4847 = vmatpush1.msra.mxu0 0.0
        %4848 = vmatprep.subr.mxu0 0.0
        %4849 = vmatpush1.msra.mxu0 0.0
        %4850 = vmatprep.subr.mxu0 0.0
        %4851 = vmatpush1.msra.mxu0 0.0
        %4852 = vmatprep.subr.mxu0 0.0
        %4853 = vmatpush1.msra.mxu0 0.0
        %4854 = vmatprep.subr.mxu0 0.0
        %4855 = vmatpush1.msra.mxu0 0.0
        %4856 = vmatprep.subr.mxu0 0.0
        %4857 = vmatpush1.msra.mxu0 0.0
        %4858 = vmatprep.subr.mxu0 0.0
        %4859 = vmatpush1.msra.mxu0 0.0
        %4860 = vmatprep.subr.mxu0 0.0
        %4861 = vmatpush1.msra.mxu0 0.0
        %4862 = vmatprep.subr.mxu0 0.0
        %4863 = vmatpush1.msra.mxu0 0.0
        %4864 = vmatprep.subr.mxu0 0.0
        %4865 = vmatpush1.msra.mxu0 0.0
        %4866 = vmatprep.subr.mxu0 0.0
        %4867 = vmatpush1.msra.mxu0 0.0
        %4868 = vmatprep.subr.mxu0 0.0
        %4869 = vmatpush1.msra.mxu0 0.0
        %4870 = vmatprep.subr.mxu0 0.0
        %4871 = vmatpush1.msra.mxu0 0.0
        %4872 = vmatprep.subr.mxu0 0.0
        %4873 = vmatpush1.msra.mxu0 0.0
        %4874 = vmatprep.subr.mxu0 0.0
        %4875 = vmatpush1.msra.mxu0 0.0
        %4876 = vmatprep.subr.mxu0 0.0
        %4877 = vmatpush1.msra.mxu0 0.0
        %4878 = vmatprep.mubr.f32.mxu0 0.0
        %v4879 = vand.u32 %v4804, 4294901760
        %v4880 = vsub.f32 %v4804, %v4879
        %v4881 = vand.u32 %v4880, 4294901760
        %v4882 = vsub.f32 %v4880, %v4881
        %v4883 = vand.u32 %v4882, 4294901760
        %4884 = vmatmul.mubr.f32.gmra.mrb[0].mxu0 %v4883
        %v4885 = vpop.f32.mrb[0].mxu0
        %v4886 = vadd.f32 0.0, %v4885
        %v4887 = vpop.f32.mrb[0].mxu0
        %v4888 = vadd.f32 0.0, %v4887
        %4889 = vdwg.mxu0
        %v4890 = vand.u32 %v392, 4294901760
        %v4891 = vsub.f32 %v392, %v4890
        %v4892 = vand.u32 %v4891, 4294901760
        %v4893 = vsub.f32 %v4891, %v4892
        %v4894 = vand.u32 %v4893, 4294901760
        %4895 = vmatprep.subr.mxu0 %v4894
        %v4896 = vand.u32 %v391, 4294901760
        %v4897 = vsub.f32 %v391, %v4896
        %v4898 = vand.u32 %v4897, 4294901760
        %v4899 = vsub.f32 %v4897, %v4898
        %v4900 = vand.u32 %v4899, 4294901760
        %4901 = vmatpush1.msra.mxu0 %v4900
        %v4902 = vand.u32 %v396, 4294901760
        %v4903 = vsub.f32 %v396, %v4902
        %v4904 = vand.u32 %v4903, 4294901760
        %v4905 = vsub.f32 %v4903, %v4904
        %v4906 = vand.u32 %v4905, 4294901760
        %4907 = vmatprep.subr.mxu0 %v4906
        %v4908 = vand.u32 %v395, 4294901760
        %v4909 = vsub.f32 %v395, %v4908
        %v4910 = vand.u32 %v4909, 4294901760
        %v4911 = vsub.f32 %v4909, %v4910
        %v4912 = vand.u32 %v4911, 4294901760
        %4913 = vmatpush1.msra.mxu0 %v4912
        %v4914 = vand.u32 %v400, 4294901760
        %v4915 = vsub.f32 %v400, %v4914
        %v4916 = vand.u32 %v4915, 4294901760
        %v4917 = vsub.f32 %v4915, %v4916
        %v4918 = vand.u32 %v4917, 4294901760
        %4919 = vmatprep.subr.mxu0 %v4918
        %v4920 = vand.u32 %v399, 4294901760
        %v4921 = vsub.f32 %v399, %v4920
        %v4922 = vand.u32 %v4921, 4294901760
        %v4923 = vsub.f32 %v4921, %v4922
        %v4924 = vand.u32 %v4923, 4294901760
        %4925 = vmatpush1.msra.mxu0 %v4924
        %v4926 = vand.u32 %v404, 4294901760
        %v4927 = vsub.f32 %v404, %v4926
        %v4928 = vand.u32 %v4927, 4294901760
        %v4929 = vsub.f32 %v4927, %v4928
        %v4930 = vand.u32 %v4929, 4294901760
        %4931 = vmatprep.subr.mxu0 %v4930
        %v4932 = vand.u32 %v403, 4294901760
        %v4933 = vsub.f32 %v403, %v4932
        %v4934 = vand.u32 %v4933, 4294901760
        %v4935 = vsub.f32 %v4933, %v4934
        %v4936 = vand.u32 %v4935, 4294901760
        %4937 = vmatpush1.msra.mxu0 %v4936
        %4938 = vmatprep.subr.mxu0 0.0
        %4939 = vmatpush1.msra.mxu0 0.0
        %4940 = vmatprep.subr.mxu0 0.0
        %4941 = vmatpush1.msra.mxu0 0.0
        %4942 = vmatprep.subr.mxu0 0.0
        %4943 = vmatpush1.msra.mxu0 0.0
        %4944 = vmatprep.subr.mxu0 0.0
        %4945 = vmatpush1.msra.mxu0 0.0
        %4946 = vmatprep.subr.mxu0 0.0
        %4947 = vmatpush1.msra.mxu0 0.0
        %4948 = vmatprep.subr.mxu0 0.0
        %4949 = vmatpush1.msra.mxu0 0.0
        %4950 = vmatprep.subr.mxu0 0.0
        %4951 = vmatpush1.msra.mxu0 0.0
        %4952 = vmatprep.subr.mxu0 0.0
        %4953 = vmatpush1.msra.mxu0 0.0
        %4954 = vmatprep.subr.mxu0 0.0
        %4955 = vmatpush1.msra.mxu0 0.0
        %4956 = vmatprep.subr.mxu0 0.0
        %4957 = vmatpush1.msra.mxu0 0.0
        %4958 = vmatprep.subr.mxu0 0.0
        %4959 = vmatpush1.msra.mxu0 0.0
        %4960 = vmatprep.subr.mxu0 0.0
        %4961 = vmatpush1.msra.mxu0 0.0
        %4962 = vmatprep.subr.mxu0 0.0
        %4963 = vmatpush1.msra.mxu0 0.0
        %4964 = vmatprep.subr.mxu0 0.0
        %4965 = vmatpush1.msra.mxu0 0.0
        %4966 = vmatprep.subr.mxu0 0.0
        %4967 = vmatpush1.msra.mxu0 0.0
        %4968 = vmatprep.subr.mxu0 0.0
        %4969 = vmatpush1.msra.mxu0 0.0
        %4970 = vmatprep.subr.mxu0 0.0
        %4971 = vmatpush1.msra.mxu0 0.0
        %4972 = vmatprep.subr.mxu0 0.0
        %4973 = vmatpush1.msra.mxu0 0.0
        %4974 = vmatprep.subr.mxu0 0.0
        %4975 = vmatpush1.msra.mxu0 0.0
        %4976 = vmatprep.subr.mxu0 0.0
        %4977 = vmatpush1.msra.mxu0 0.0
        %4978 = vmatprep.subr.mxu0 0.0
        %4979 = vmatpush1.msra.mxu0 0.0
        %4980 = vmatprep.subr.mxu0 0.0
        %4981 = vmatpush1.msra.mxu0 0.0
        %4982 = vmatprep.subr.mxu0 0.0
        %4983 = vmatpush1.msra.mxu0 0.0
        %4984 = vmatprep.subr.mxu0 0.0
        %4985 = vmatpush1.msra.mxu0 0.0
        %4986 = vmatprep.subr.mxu0 0.0
        %4987 = vmatpush1.msra.mxu0 0.0
        %4988 = vmatprep.subr.mxu0 0.0
        %4989 = vmatpush1.msra.mxu0 0.0
        %4990 = vmatprep.subr.mxu0 0.0
        %4991 = vmatpush1.msra.mxu0 0.0
        %4992 = vmatprep.subr.mxu0 0.0
        %4993 = vmatpush1.msra.mxu0 0.0
        %4994 = vmatprep.mubr.f32.mxu0 0.0
        %v4995 = vand.u32 %v4804, 4294901760
        %4996 = vmatmul.mubr.f32.gmra.mrb[0].mxu0 %v4995
        %v4997 = vpop.f32.mrb[0].mxu0
        %v4998 = vadd.f32 %v4886, %v4997
        %v4999 = vpop.f32.mrb[0].mxu0
        %v5000 = vadd.f32 %v4888, %v4999
        %5001 = vdwg.mxu0
        %v5002 = vand.u32 %v392, 4294901760
        %v5003 = vsub.f32 %v392, %v5002
        %5004 = vmatprep.subr.mxu0 %v5003
        %v5005 = vand.u32 %v391, 4294901760
        %v5006 = vsub.f32 %v391, %v5005
        %5007 = vmatpush1.msra.mxu0 %v5006
        %v5008 = vand.u32 %v396, 4294901760
        %v5009 = vsub.f32 %v396, %v5008
        %5010 = vmatprep.subr.mxu0 %v5009
        %v5011 = vand.u32 %v395, 4294901760
        %v5012 = vsub.f32 %v395, %v5011
        %5013 = vmatpush1.msra.mxu0 %v5012
        %v5014 = vand.u32 %v400, 4294901760
        %v5015 = vsub.f32 %v400, %v5014
        %5016 = vmatprep.subr.mxu0 %v5015
        %v5017 = vand.u32 %v399, 4294901760
        %v5018 = vsub.f32 %v399, %v5017
        %5019 = vmatpush1.msra.mxu0 %v5018
        %v5020 = vand.u32 %v404, 4294901760
        %v5021 = vsub.f32 %v404, %v5020
        %5022 = vmatprep.subr.mxu0 %v5021
        %v5023 = vand.u32 %v403, 4294901760
        %v5024 = vsub.f32 %v403, %v5023
        %5025 = vmatpush1.msra.mxu0 %v5024
        %5026 = vmatprep.subr.mxu0 0.0
        %5027 = vmatpush1.msra.mxu0 0.0
        %5028 = vmatprep.subr.mxu0 0.0
        %5029 = vmatpush1.msra.mxu0 0.0
        %5030 = vmatprep.subr.mxu0 0.0
        %5031 = vmatpush1.msra.mxu0 0.0
        %5032 = vmatprep.subr.mxu0 0.0
        %5033 = vmatpush1.msra.mxu0 0.0
        %5034 = vmatprep.subr.mxu0 0.0
        %5035 = vmatpush1.msra.mxu0 0.0
        %5036 = vmatprep.subr.mxu0 0.0
        %5037 = vmatpush1.msra.mxu0 0.0
        %5038 = vmatprep.subr.mxu0 0.0
        %5039 = vmatpush1.msra.mxu0 0.0
        %5040 = vmatprep.subr.mxu0 0.0
        %5041 = vmatpush1.msra.mxu0 0.0
        %5042 = vmatprep.subr.mxu0 0.0
        %5043 = vmatpush1.msra.mxu0 0.0
        %5044 = vmatprep.subr.mxu0 0.0
        %5045 = vmatpush1.msra.mxu0 0.0
        %5046 = vmatprep.subr.mxu0 0.0
        %5047 = vmatpush1.msra.mxu0 0.0
        %5048 = vmatprep.subr.mxu0 0.0
        %5049 = vmatpush1.msra.mxu0 0.0
        %5050 = vmatprep.subr.mxu0 0.0
        %5051 = vmatpush1.msra.mxu0 0.0
        %5052 = vmatprep.subr.mxu0 0.0
        %5053 = vmatpush1.msra.mxu0 0.0
        %5054 = vmatprep.subr.mxu0 0.0
        %5055 = vmatpush1.msra.mxu0 0.0
        %5056 = vmatprep.subr.mxu0 0.0
        %5057 = vmatpush1.msra.mxu0 0.0
        %5058 = vmatprep.subr.mxu0 0.0
        %5059 = vmatpush1.msra.mxu0 0.0
        %5060 = vmatprep.subr.mxu0 0.0
        %5061 = vmatpush1.msra.mxu0 0.0
        %5062 = vmatprep.subr.mxu0 0.0
        %5063 = vmatpush1.msra.mxu0 0.0
        %5064 = vmatprep.subr.mxu0 0.0
        %5065 = vmatpush1.msra.mxu0 0.0
        %5066 = vmatprep.subr.mxu0 0.0
        %5067 = vmatpush1.msra.mxu0 0.0
        %5068 = vmatprep.subr.mxu0 0.0
        %5069 = vmatpush1.msra.mxu0 0.0
        %5070 = vmatprep.subr.mxu0 0.0
        %5071 = vmatpush1.msra.mxu0 0.0
        %5072 = vmatprep.subr.mxu0 0.0
        %5073 = vmatpush1.msra.mxu0 0.0
        %5074 = vmatprep.subr.mxu0 0.0
        %5075 = vmatpush1.msra.mxu0 0.0
        %5076 = vmatprep.subr.mxu0 0.0
        %5077 = vmatpush1.msra.mxu0 0.0
        %5078 = vmatprep.subr.mxu0 0.0
        %5079 = vmatpush1.msra.mxu0 0.0
        %5080 = vmatprep.subr.mxu0 0.0
        %5081 = vmatpush1.msra.mxu0 0.0
        %5082 = vmatprep.mubr.f32.mxu0 0.0
        %v5083 = vand.u32 %v4804, 4294901760
        %v5084 = vsub.f32 %v4804, %v5083
        %5085 = vmatmul.mubr.f32.gmra.mrb[0].mxu0 %v5084
        %v5086 = vpop.f32.mrb[0].mxu0
        %v5087 = vadd.f32 %v4998, %v5086
        %v5088 = vpop.f32.mrb[0].mxu0
        %v5089 = vadd.f32 %v5000, %v5088
        %5090 = vdwg.mxu0
        %v5091 = vand.u32 %v392, 4294901760
        %5092 = vmatprep.subr.mxu0 %v5091
        %v5093 = vand.u32 %v391, 4294901760
        %5094 = vmatpush1.msra.mxu0 %v5093
        %v5095 = vand.u32 %v396, 4294901760
        %5096 = vmatprep.subr.mxu0 %v5095
        %v5097 = vand.u32 %v395, 4294901760
        %5098 = vmatpush1.msra.mxu0 %v5097
        %v5099 = vand.u32 %v400, 4294901760
        %5100 = vmatprep.subr.mxu0 %v5099
        %v5101 = vand.u32 %v399, 4294901760
        %5102 = vmatpush1.msra.mxu0 %v5101
        %v5103 = vand.u32 %v404, 4294901760
        %5104 = vmatprep.subr.mxu0 %v5103
        %v5105 = vand.u32 %v403, 4294901760
        %5106 = vmatpush1.msra.mxu0 %v5105
        %5107 = vmatprep.subr.mxu0 0.0
        %5108 = vmatpush1.msra.mxu0 0.0
        %5109 = vmatprep.subr.mxu0 0.0
        %5110 = vmatpush1.msra.mxu0 0.0
        %5111 = vmatprep.subr.mxu0 0.0
        %5112 = vmatpush1.msra.mxu0 0.0
        %5113 = vmatprep.subr.mxu0 0.0
        %5114 = vmatpush1.msra.mxu0 0.0
        %5115 = vmatprep.subr.mxu0 0.0
        %5116 = vmatpush1.msra.mxu0 0.0
        %5117 = vmatprep.subr.mxu0 0.0
        %5118 = vmatpush1.msra.mxu0 0.0
        %5119 = vmatprep.subr.mxu0 0.0
        %5120 = vmatpush1.msra.mxu0 0.0
        %5121 = vmatprep.subr.mxu0 0.0
        %5122 = vmatpush1.msra.mxu0 0.0
        %5123 = vmatprep.subr.mxu0 0.0
        %5124 = vmatpush1.msra.mxu0 0.0
        %5125 = vmatprep.subr.mxu0 0.0
        %5126 = vmatpush1.msra.mxu0 0.0
        %5127 = vmatprep.subr.mxu0 0.0
        %5128 = vmatpush1.msra.mxu0 0.0
        %5129 = vmatprep.subr.mxu0 0.0
        %5130 = vmatpush1.msra.mxu0 0.0
        %5131 = vmatprep.subr.mxu0 0.0
        %5132 = vmatpush1.msra.mxu0 0.0
        %5133 = vmatprep.subr.mxu0 0.0
        %5134 = vmatpush1.msra.mxu0 0.0
        %5135 = vmatprep.subr.mxu0 0.0
        %5136 = vmatpush1.msra.mxu0 0.0
        %5137 = vmatprep.subr.mxu0 0.0
        %5138 = vmatpush1.msra.mxu0 0.0
        %5139 = vmatprep.subr.mxu0 0.0
        %5140 = vmatpush1.msra.mxu0 0.0
        %5141 = vmatprep.subr.mxu0 0.0
        %5142 = vmatpush1.msra.mxu0 0.0
        %5143 = vmatprep.subr.mxu0 0.0
        %5144 = vmatpush1.msra.mxu0 0.0
        %5145 = vmatprep.subr.mxu0 0.0
        %5146 = vmatpush1.msra.mxu0 0.0
        %5147 = vmatprep.subr.mxu0 0.0
        %5148 = vmatpush1.msra.mxu0 0.0
        %5149 = vmatprep.subr.mxu0 0.0
        %5150 = vmatpush1.msra.mxu0 0.0
        %5151 = vmatprep.subr.mxu0 0.0
        %5152 = vmatpush1.msra.mxu0 0.0
        %5153 = vmatprep.subr.mxu0 0.0
        %5154 = vmatpush1.msra.mxu0 0.0
        %5155 = vmatprep.subr.mxu0 0.0
        %5156 = vmatpush1.msra.mxu0 0.0
        %5157 = vmatprep.subr.mxu0 0.0
        %5158 = vmatpush1.msra.mxu0 0.0
        %5159 = vmatprep.subr.mxu0 0.0
        %5160 = vmatpush1.msra.mxu0 0.0
        %5161 = vmatprep.subr.mxu0 0.0
        %5162 = vmatpush1.msra.mxu0 0.0
        %5163 = vmatprep.mubr.f32.mxu0 0.0
        %v5164 = vand.u32 %v4804, 4294901760
        %v5165 = vsub.f32 %v4804, %v5164
        %v5166 = vand.u32 %v5165, 4294901760
        %5167 = vmatmul.mubr.f32.gmra.mrb[0].mxu0 %v5166
        %v5168 = vpop.f32.mrb[0].mxu0
        %v5169 = vadd.f32 %v5087, %v5168
        %v5170 = vpop.f32.mrb[0].mxu0
        %v5171 = vadd.f32 %v5089, %v5170
        %5172 = vdwg.mxu0
        %v5173 = vand.u32 %v392, 4294901760
        %v5174 = vsub.f32 %v392, %v5173
        %v5175 = vand.u32 %v5174, 4294901760
        %5176 = vmatprep.subr.mxu0 %v5175
        %v5177 = vand.u32 %v391, 4294901760
        %v5178 = vsub.f32 %v391, %v5177
        %v5179 = vand.u32 %v5178, 4294901760
        %5180 = vmatpush1.msra.mxu0 %v5179
        %v5181 = vand.u32 %v396, 4294901760
        %v5182 = vsub.f32 %v396, %v5181
        %v5183 = vand.u32 %v5182, 4294901760
        %5184 = vmatprep.subr.mxu0 %v5183
        %v5185 = vand.u32 %v395, 4294901760
        %v5186 = vsub.f32 %v395, %v5185
        %v5187 = vand.u32 %v5186, 4294901760
        %5188 = vmatpush1.msra.mxu0 %v5187
        %v5189 = vand.u32 %v400, 4294901760
        %v5190 = vsub.f32 %v400, %v5189
        %v5191 = vand.u32 %v5190, 4294901760
        %5192 = vmatprep.subr.mxu0 %v5191
        %v5193 = vand.u32 %v399, 4294901760
        %v5194 = vsub.f32 %v399, %v5193
        %v5195 = vand.u32 %v5194, 4294901760
        %5196 = vmatpush1.msra.mxu0 %v5195
        %v5197 = vand.u32 %v404, 4294901760
        %v5198 = vsub.f32 %v404, %v5197
        %v5199 = vand.u32 %v5198, 4294901760
        %5200 = vmatprep.subr.mxu0 %v5199
        %v5201 = vand.u32 %v403, 4294901760
        %v5202 = vsub.f32 %v403, %v5201
        %v5203 = vand.u32 %v5202, 4294901760
        %5204 = vmatpush1.msra.mxu0 %v5203
        %5205 = vmatprep.subr.mxu0 0.0
        %5206 = vmatpush1.msra.mxu0 0.0
        %5207 = vmatprep.subr.mxu0 0.0
        %5208 = vmatpush1.msra.mxu0 0.0
        %5209 = vmatprep.subr.mxu0 0.0
        %5210 = vmatpush1.msra.mxu0 0.0
        %5211 = vmatprep.subr.mxu0 0.0
        %5212 = vmatpush1.msra.mxu0 0.0
        %5213 = vmatprep.subr.mxu0 0.0
        %5214 = vmatpush1.msra.mxu0 0.0
        %5215 = vmatprep.subr.mxu0 0.0
        %5216 = vmatpush1.msra.mxu0 0.0
        %5217 = vmatprep.subr.mxu0 0.0
        %5218 = vmatpush1.msra.mxu0 0.0
        %5219 = vmatprep.subr.mxu0 0.0
        %5220 = vmatpush1.msra.mxu0 0.0
        %5221 = vmatprep.subr.mxu0 0.0
        %5222 = vmatpush1.msra.mxu0 0.0
        %5223 = vmatprep.subr.mxu0 0.0
        %5224 = vmatpush1.msra.mxu0 0.0
        %5225 = vmatprep.subr.mxu0 0.0
        %5226 = vmatpush1.msra.mxu0 0.0
        %5227 = vmatprep.subr.mxu0 0.0
        %5228 = vmatpush1.msra.mxu0 0.0
        %5229 = vmatprep.subr.mxu0 0.0
        %5230 = vmatpush1.msra.mxu0 0.0
        %5231 = vmatprep.subr.mxu0 0.0
        %5232 = vmatpush1.msra.mxu0 0.0
        %5233 = vmatprep.subr.mxu0 0.0
        %5234 = vmatpush1.msra.mxu0 0.0
        %5235 = vmatprep.subr.mxu0 0.0
        %5236 = vmatpush1.msra.mxu0 0.0
        %5237 = vmatprep.subr.mxu0 0.0
        %5238 = vmatpush1.msra.mxu0 0.0
        %5239 = vmatprep.subr.mxu0 0.0
        %5240 = vmatpush1.msra.mxu0 0.0
        %5241 = vmatprep.subr.mxu0 0.0
        %5242 = vmatpush1.msra.mxu0 0.0
        %5243 = vmatprep.subr.mxu0 0.0
        %5244 = vmatpush1.msra.mxu0 0.0
        %5245 = vmatprep.subr.mxu0 0.0
        %5246 = vmatpush1.msra.mxu0 0.0
        %5247 = vmatprep.subr.mxu0 0.0
        %5248 = vmatpush1.msra.mxu0 0.0
        %5249 = vmatprep.subr.mxu0 0.0
        %5250 = vmatpush1.msra.mxu0 0.0
        %5251 = vmatprep.subr.mxu0 0.0
        %5252 = vmatpush1.msra.mxu0 0.0
        %5253 = vmatprep.subr.mxu0 0.0
        %5254 = vmatpush1.msra.mxu0 0.0
        %5255 = vmatprep.subr.mxu0 0.0
        %5256 = vmatpush1.msra.mxu0 0.0
        %5257 = vmatprep.subr.mxu0 0.0
        %5258 = vmatpush1.msra.mxu0 0.0
        %5259 = vmatprep.subr.mxu0 0.0
        %5260 = vmatpush1.msra.mxu0 0.0
        %5261 = vmatprep.mubr.f32.mxu0 0.0
        %v5262 = vand.u32 %v4804, 4294901760
        %5263 = vmatmul.mubr.f32.gmra.mrb[0].mxu0 %v5262
        %v5264 = vpop.f32.mrb[0].mxu0
        %v5265 = vadd.f32 %v5169, %v5264
        %v5266 = vpop.f32.mrb[0].mxu0
        %v5267 = vadd.f32 %v5171, %v5266
        %5268 = vdwg.mxu0
        %v5269 = vand.u32 %v392, 4294901760
        %5270 = vmatprep.subr.mxu0 %v5269
        %v5271 = vand.u32 %v391, 4294901760
        %5272 = vmatpush1.msra.mxu0 %v5271
        %v5273 = vand.u32 %v396, 4294901760
        %5274 = vmatprep.subr.mxu0 %v5273
        %v5275 = vand.u32 %v395, 4294901760
        %5276 = vmatpush1.msra.mxu0 %v5275
        %v5277 = vand.u32 %v400, 4294901760
        %5278 = vmatprep.subr.mxu0 %v5277
        %v5279 = vand.u32 %v399, 4294901760
        %5280 = vmatpush1.msra.mxu0 %v5279
        %v5281 = vand.u32 %v404, 4294901760
        %5282 = vmatprep.subr.mxu0 %v5281
        %v5283 = vand.u32 %v403, 4294901760
        %5284 = vmatpush1.msra.mxu0 %v5283
        %5285 = vmatprep.subr.mxu0 0.0
        %5286 = vmatpush1.msra.mxu0 0.0
        %5287 = vmatprep.subr.mxu0 0.0
        %5288 = vmatpush1.msra.mxu0 0.0
        %5289 = vmatprep.subr.mxu0 0.0
        %5290 = vmatpush1.msra.mxu0 0.0
        %5291 = vmatprep.subr.mxu0 0.0
        %5292 = vmatpush1.msra.mxu0 0.0
        %5293 = vmatprep.subr.mxu0 0.0
        %5294 = vmatpush1.msra.mxu0 0.0
        %5295 = vmatprep.subr.mxu0 0.0
        %5296 = vmatpush1.msra.mxu0 0.0
        %5297 = vmatprep.subr.mxu0 0.0
        %5298 = vmatpush1.msra.mxu0 0.0
        %5299 = vmatprep.subr.mxu0 0.0
        %5300 = vmatpush1.msra.mxu0 0.0
        %5301 = vmatprep.subr.mxu0 0.0
        %5302 = vmatpush1.msra.mxu0 0.0
        %5303 = vmatprep.subr.mxu0 0.0
        %5304 = vmatpush1.msra.mxu0 0.0
        %5305 = vmatprep.subr.mxu0 0.0
        %5306 = vmatpush1.msra.mxu0 0.0
        %5307 = vmatprep.subr.mxu0 0.0
        %5308 = vmatpush1.msra.mxu0 0.0
        %5309 = vmatprep.subr.mxu0 0.0
        %5310 = vmatpush1.msra.mxu0 0.0
        %5311 = vmatprep.subr.mxu0 0.0
        %5312 = vmatpush1.msra.mxu0 0.0
        %5313 = vmatprep.subr.mxu0 0.0
        %5314 = vmatpush1.msra.mxu0 0.0
        %5315 = vmatprep.subr.mxu0 0.0
        %5316 = vmatpush1.msra.mxu0 0.0
        %5317 = vmatprep.subr.mxu0 0.0
        %5318 = vmatpush1.msra.mxu0 0.0
        %5319 = vmatprep.subr.mxu0 0.0
        %5320 = vmatpush1.msra.mxu0 0.0
        %5321 = vmatprep.subr.mxu0 0.0
        %5322 = vmatpush1.msra.mxu0 0.0
        %5323 = vmatprep.subr.mxu0 0.0
        %5324 = vmatpush1.msra.mxu0 0.0
        %5325 = vmatprep.subr.mxu0 0.0
        %5326 = vmatpush1.msra.mxu0 0.0
        %5327 = vmatprep.subr.mxu0 0.0
        %5328 = vmatpush1.msra.mxu0 0.0
        %5329 = vmatprep.subr.mxu0 0.0
        %5330 = vmatpush1.msra.mxu0 0.0
        %5331 = vmatprep.subr.mxu0 0.0
        %5332 = vmatpush1.msra.mxu0 0.0
        %5333 = vmatprep.subr.mxu0 0.0
        %5334 = vmatpush1.msra.mxu0 0.0
        %5335 = vmatprep.subr.mxu0 0.0
        %5336 = vmatpush1.msra.mxu0 0.0
        %5337 = vmatprep.subr.mxu0 0.0
        %5338 = vmatpush1.msra.mxu0 0.0
        %5339 = vmatprep.subr.mxu0 0.0
        %5340 = vmatpush1.msra.mxu0 0.0
        %5341 = vmatprep.mubr.f32.mxu0 0.0
        %v5342 = vand.u32 %v4804, 4294901760
        %5343 = vmatmul.mubr.f32.gmra.mrb[0].mxu0 %v5342
        %v5344 = vpop.f32.mrb[0].mxu0
        %v5345 = vadd.f32 %v5265, %v5344
        %v5346 = vpop.f32.mrb[0].mxu0
        %v5347 = vadd.f32 %v5267, %v5346
        %5348 = vdwg.mxu0
        %v5349 = vand.u32 %v394, 4294901760
        %5350 = vmatprep.subr.mxu0 %v5349
        %v5351 = vand.u32 %v393, 4294901760
        %5352 = vmatpush1.msra.mxu0 %v5351
        %v5353 = vand.u32 %v398, 4294901760
        %5354 = vmatprep.subr.mxu0 %v5353
        %v5355 = vand.u32 %v397, 4294901760
        %5356 = vmatpush1.msra.mxu0 %v5355
        %v5357 = vand.u32 %v402, 4294901760
        %5358 = vmatprep.subr.mxu0 %v5357
        %v5359 = vand.u32 %v401, 4294901760
        %5360 = vmatpush1.msra.mxu0 %v5359
        %v5361 = vand.u32 %v406, 4294901760
        %5362 = vmatprep.subr.mxu0 %v5361
        %v5363 = vand.u32 %v405, 4294901760
        %5364 = vmatpush1.msra.mxu0 %v5363
        %5365 = vmatprep.subr.mxu0 0.0
        %5366 = vmatpush1.msra.mxu0 0.0
        %5367 = vmatprep.subr.mxu0 0.0
        %5368 = vmatpush1.msra.mxu0 0.0
        %5369 = vmatprep.subr.mxu0 0.0
        %5370 = vmatpush1.msra.mxu0 0.0
        %5371 = vmatprep.subr.mxu0 0.0
        %5372 = vmatpush1.msra.mxu0 0.0
        %5373 = vmatprep.subr.mxu0 0.0
        %5374 = vmatpush1.msra.mxu0 0.0
        %5375 = vmatprep.subr.mxu0 0.0
        %5376 = vmatpush1.msra.mxu0 0.0
        %5377 = vmatprep.subr.mxu0 0.0
        %5378 = vmatpush1.msra.mxu0 0.0
        %5379 = vmatprep.subr.mxu0 0.0
        %5380 = vmatpush1.msra.mxu0 0.0
        %5381 = vmatprep.subr.mxu0 0.0
        %5382 = vmatpush1.msra.mxu0 0.0
        %5383 = vmatprep.subr.mxu0 0.0
        %5384 = vmatpush1.msra.mxu0 0.0
        %5385 = vmatprep.subr.mxu0 0.0
        %5386 = vmatpush1.msra.mxu0 0.0
        %5387 = vmatprep.subr.mxu0 0.0
        %5388 = vmatpush1.msra.mxu0 0.0
        %5389 = vmatprep.subr.mxu0 0.0
        %5390 = vmatpush1.msra.mxu0 0.0
        %5391 = vmatprep.subr.mxu0 0.0
        %5392 = vmatpush1.msra.mxu0 0.0
        %5393 = vmatprep.subr.mxu0 0.0
        %5394 = vmatpush1.msra.mxu0 0.0
        %5395 = vmatprep.subr.mxu0 0.0
        %5396 = vmatpush1.msra.mxu0 0.0
        %5397 = vmatprep.subr.mxu0 0.0
        %5398 = vmatpush1.msra.mxu0 0.0
        %5399 = vmatprep.subr.mxu0 0.0
        %5400 = vmatpush1.msra.mxu0 0.0
        %5401 = vmatprep.subr.mxu0 0.0
        %5402 = vmatpush1.msra.mxu0 0.0
        %5403 = vmatprep.subr.mxu0 0.0
        %5404 = vmatpush1.msra.mxu0 0.0
        %5405 = vmatprep.subr.mxu0 0.0
        %5406 = vmatpush1.msra.mxu0 0.0
        %5407 = vmatprep.subr.mxu0 0.0
        %5408 = vmatpush1.msra.mxu0 0.0
        %5409 = vmatprep.subr.mxu0 0.0
        %5410 = vmatpush1.msra.mxu0 0.0
        %5411 = vmatprep.subr.mxu0 0.0
        %5412 = vmatpush1.msra.mxu0 0.0
        %5413 = vmatprep.subr.mxu0 0.0
        %5414 = vmatpush1.msra.mxu0 0.0
        %5415 = vmatprep.subr.mxu0 0.0
        %5416 = vmatpush1.msra.mxu0 0.0
        %5417 = vmatprep.subr.mxu0 0.0
        %5418 = vmatpush1.msra.mxu0 0.0
        %5419 = vmatprep.subr.mxu0 0.0
        %5420 = vmatpush1.msra.mxu0 0.0
        %5421 = vmatprep.mubr.f32.mxu0 0.0
        %v5422 = vand.u32 %v4804, 4294901760
        %v5423 = vsub.f32 %v4804, %v5422
        %v5424 = vand.u32 %v5423, 4294901760
        %v5425 = vsub.f32 %v5423, %v5424
        %v5426 = vand.u32 %v5425, 4294901760
        %5427 = vmatmul.mubr.f32.gmra.mrb[0].mxu0 %v5426
        %v5428 = vpop.f32.mrb[0].mxu0
        %v5429 = vadd.f32 0.0, %v5428
        %v5430 = vpop.f32.mrb[0].mxu0
        %v5431 = vadd.f32 0.0, %v5430
        %5432 = vdwg.mxu0
        %v5433 = vand.u32 %v394, 4294901760
        %v5434 = vsub.f32 %v394, %v5433
        %v5435 = vand.u32 %v5434, 4294901760
        %v5436 = vsub.f32 %v5434, %v5435
        %v5437 = vand.u32 %v5436, 4294901760
        %5438 = vmatprep.subr.mxu0 %v5437
        %v5439 = vand.u32 %v393, 4294901760
        %v5440 = vsub.f32 %v393, %v5439
        %v5441 = vand.u32 %v5440, 4294901760
        %v5442 = vsub.f32 %v5440, %v5441
        %v5443 = vand.u32 %v5442, 4294901760
        %5444 = vmatpush1.msra.mxu0 %v5443
        %v5445 = vand.u32 %v398, 4294901760
        %v5446 = vsub.f32 %v398, %v5445
        %v5447 = vand.u32 %v5446, 4294901760
        %v5448 = vsub.f32 %v5446, %v5447
        %v5449 = vand.u32 %v5448, 4294901760
        %5450 = vmatprep.subr.mxu0 %v5449
        %v5451 = vand.u32 %v397, 4294901760
        %v5452 = vsub.f32 %v397, %v5451
        %v5453 = vand.u32 %v5452, 4294901760
        %v5454 = vsub.f32 %v5452, %v5453
        %v5455 = vand.u32 %v5454, 4294901760
        %5456 = vmatpush1.msra.mxu0 %v5455
        %v5457 = vand.u32 %v402, 4294901760
        %v5458 = vsub.f32 %v402, %v5457
        %v5459 = vand.u32 %v5458, 4294901760
        %v5460 = vsub.f32 %v5458, %v5459
        %v5461 = vand.u32 %v5460, 4294901760
        %5462 = vmatprep.subr.mxu0 %v5461
        %v5463 = vand.u32 %v401, 4294901760
        %v5464 = vsub.f32 %v401, %v5463
        %v5465 = vand.u32 %v5464, 4294901760
        %v5466 = vsub.f32 %v5464, %v5465
        %v5467 = vand.u32 %v5466, 4294901760
        %5468 = vmatpush1.msra.mxu0 %v5467
        %v5469 = vand.u32 %v406, 4294901760
        %v5470 = vsub.f32 %v406, %v5469
        %v5471 = vand.u32 %v5470, 4294901760
        %v5472 = vsub.f32 %v5470, %v5471
        %v5473 = vand.u32 %v5472, 4294901760
        %5474 = vmatprep.subr.mxu0 %v5473
        %v5475 = vand.u32 %v405, 4294901760
        %v5476 = vsub.f32 %v405, %v5475
        %v5477 = vand.u32 %v5476, 4294901760
        %v5478 = vsub.f32 %v5476, %v5477
        %v5479 = vand.u32 %v5478, 4294901760
        %5480 = vmatpush1.msra.mxu0 %v5479
        %5481 = vmatprep.subr.mxu0 0.0
        %5482 = vmatpush1.msra.mxu0 0.0
        %5483 = vmatprep.subr.mxu0 0.0
        %5484 = vmatpush1.msra.mxu0 0.0
        %5485 = vmatprep.subr.mxu0 0.0
        %5486 = vmatpush1.msra.mxu0 0.0
        %5487 = vmatprep.subr.mxu0 0.0
        %5488 = vmatpush1.msra.mxu0 0.0
        %5489 = vmatprep.subr.mxu0 0.0
        %5490 = vmatpush1.msra.mxu0 0.0
        %5491 = vmatprep.subr.mxu0 0.0
        %5492 = vmatpush1.msra.mxu0 0.0
        %5493 = vmatprep.subr.mxu0 0.0
        %5494 = vmatpush1.msra.mxu0 0.0
        %5495 = vmatprep.subr.mxu0 0.0
        %5496 = vmatpush1.msra.mxu0 0.0
        %5497 = vmatprep.subr.mxu0 0.0
        %5498 = vmatpush1.msra.mxu0 0.0
        %5499 = vmatprep.subr.mxu0 0.0
        %5500 = vmatpush1.msra.mxu0 0.0
        %5501 = vmatprep.subr.mxu0 0.0
        %5502 = vmatpush1.msra.mxu0 0.0
        %5503 = vmatprep.subr.mxu0 0.0
        %5504 = vmatpush1.msra.mxu0 0.0
        %5505 = vmatprep.subr.mxu0 0.0
        %5506 = vmatpush1.msra.mxu0 0.0
        %5507 = vmatprep.subr.mxu0 0.0
        %5508 = vmatpush1.msra.mxu0 0.0
        %5509 = vmatprep.subr.mxu0 0.0
        %5510 = vmatpush1.msra.mxu0 0.0
        %5511 = vmatprep.subr.mxu0 0.0
        %5512 = vmatpush1.msra.mxu0 0.0
        %5513 = vmatprep.subr.mxu0 0.0
        %5514 = vmatpush1.msra.mxu0 0.0
        %5515 = vmatprep.subr.mxu0 0.0
        %5516 = vmatpush1.msra.mxu0 0.0
        %5517 = vmatprep.subr.mxu0 0.0
        %5518 = vmatpush1.msra.mxu0 0.0
        %5519 = vmatprep.subr.mxu0 0.0
        %5520 = vmatpush1.msra.mxu0 0.0
        %5521 = vmatprep.subr.mxu0 0.0
        %5522 = vmatpush1.msra.mxu0 0.0
        %5523 = vmatprep.subr.mxu0 0.0
        %5524 = vmatpush1.msra.mxu0 0.0
        %5525 = vmatprep.subr.mxu0 0.0
        %5526 = vmatpush1.msra.mxu0 0.0
        %5527 = vmatprep.subr.mxu0 0.0
        %5528 = vmatpush1.msra.mxu0 0.0
        %5529 = vmatprep.subr.mxu0 0.0
        %5530 = vmatpush1.msra.mxu0 0.0
        %5531 = vmatprep.subr.mxu0 0.0
        %5532 = vmatpush1.msra.mxu0 0.0
        %5533 = vmatprep.subr.mxu0 0.0
        %5534 = vmatpush1.msra.mxu0 0.0
        %5535 = vmatprep.subr.mxu0 0.0
        %5536 = vmatpush1.msra.mxu0 0.0
        %5537 = vmatprep.mubr.f32.mxu0 0.0
        %v5538 = vand.u32 %v4804, 4294901760
        %5539 = vmatmul.mubr.f32.gmra.mrb[0].mxu0 %v5538
        %v5540 = vpop.f32.mrb[0].mxu0
        %v5541 = vadd.f32 %v5429, %v5540
        %v5542 = vpop.f32.mrb[0].mxu0
        %v5543 = vadd.f32 %v5431, %v5542
        %5544 = vdwg.mxu0
        %v5545 = vand.u32 %v394, 4294901760
        %v5546 = vsub.f32 %v394, %v5545
        %5547 = vmatprep.subr.mxu0 %v5546
        %v5548 = vand.u32 %v393, 4294901760
        %v5549 = vsub.f32 %v393, %v5548
        %5550 = vmatpush1.msra.mxu0 %v5549
        %v5551 = vand.u32 %v398, 4294901760
        %v5552 = vsub.f32 %v398, %v5551
        %5553 = vmatprep.subr.mxu0 %v5552
        %v5554 = vand.u32 %v397, 4294901760
        %v5555 = vsub.f32 %v397, %v5554
        %5556 = vmatpush1.msra.mxu0 %v5555
        %v5557 = vand.u32 %v402, 4294901760
        %v5558 = vsub.f32 %v402, %v5557
        %5559 = vmatprep.subr.mxu0 %v5558
        %v5560 = vand.u32 %v401, 4294901760
        %v5561 = vsub.f32 %v401, %v5560
        %5562 = vmatpush1.msra.mxu0 %v5561
        %v5563 = vand.u32 %v406, 4294901760
        %v5564 = vsub.f32 %v406, %v5563
        %5565 = vmatprep.subr.mxu0 %v5564
        %v5566 = vand.u32 %v405, 4294901760
        %v5567 = vsub.f32 %v405, %v5566
        %5568 = vmatpush1.msra.mxu0 %v5567
        %5569 = vmatprep.subr.mxu0 0.0
        %5570 = vmatpush1.msra.mxu0 0.0
        %5571 = vmatprep.subr.mxu0 0.0
        %5572 = vmatpush1.msra.mxu0 0.0
        %5573 = vmatprep.subr.mxu0 0.0
        %5574 = vmatpush1.msra.mxu0 0.0
        %5575 = vmatprep.subr.mxu0 0.0
        %5576 = vmatpush1.msra.mxu0 0.0
        %5577 = vmatprep.subr.mxu0 0.0
        %5578 = vmatpush1.msra.mxu0 0.0
        %5579 = vmatprep.subr.mxu0 0.0
        %5580 = vmatpush1.msra.mxu0 0.0
        %5581 = vmatprep.subr.mxu0 0.0
        %5582 = vmatpush1.msra.mxu0 0.0
        %5583 = vmatprep.subr.mxu0 0.0
        %5584 = vmatpush1.msra.mxu0 0.0
        %5585 = vmatprep.subr.mxu0 0.0
        %5586 = vmatpush1.msra.mxu0 0.0
        %5587 = vmatprep.subr.mxu0 0.0
        %5588 = vmatpush1.msra.mxu0 0.0
        %5589 = vmatprep.subr.mxu0 0.0
        %5590 = vmatpush1.msra.mxu0 0.0
        %5591 = vmatprep.subr.mxu0 0.0
        %5592 = vmatpush1.msra.mxu0 0.0
        %5593 = vmatprep.subr.mxu0 0.0
        %5594 = vmatpush1.msra.mxu0 0.0
        %5595 = vmatprep.subr.mxu0 0.0
        %5596 = vmatpush1.msra.mxu0 0.0
        %5597 = vmatprep.subr.mxu0 0.0
        %5598 = vmatpush1.msra.mxu0 0.0
        %5599 = vmatprep.subr.mxu0 0.0
        %5600 = vmatpush1.msra.mxu0 0.0
        %5601 = vmatprep.subr.mxu0 0.0
        %5602 = vmatpush1.msra.mxu0 0.0
        %5603 = vmatprep.subr.mxu0 0.0
        %5604 = vmatpush1.msra.mxu0 0.0
        %5605 = vmatprep.subr.mxu0 0.0
        %5606 = vmatpush1.msra.mxu0 0.0
        %5607 = vmatprep.subr.mxu0 0.0
        %5608 = vmatpush1.msra.mxu0 0.0
        %5609 = vmatprep.subr.mxu0 0.0
        %5610 = vmatpush1.msra.mxu0 0.0
        %5611 = vmatprep.subr.mxu0 0.0
        %5612 = vmatpush1.msra.mxu0 0.0
        %5613 = vmatprep.subr.mxu0 0.0
        %5614 = vmatpush1.msra.mxu0 0.0
        %5615 = vmatprep.subr.mxu0 0.0
        %5616 = vmatpush1.msra.mxu0 0.0
        %5617 = vmatprep.subr.mxu0 0.0
        %5618 = vmatpush1.msra.mxu0 0.0
        %5619 = vmatprep.subr.mxu0 0.0
        %5620 = vmatpush1.msra.mxu0 0.0
        %5621 = vmatprep.subr.mxu0 0.0
        %5622 = vmatpush1.msra.mxu0 0.0
        %5623 = vmatprep.subr.mxu0 0.0
        %5624 = vmatpush1.msra.mxu0 0.0
        %5625 = vmatprep.mubr.f32.mxu0 0.0
        %v5626 = vand.u32 %v4804, 4294901760
        %v5627 = vsub.f32 %v4804, %v5626
        %5628 = vmatmul.mubr.f32.gmra.mrb[0].mxu0 %v5627
        %v5629 = vpop.f32.mrb[0].mxu0
        %v5630 = vadd.f32 %v5541, %v5629
        %v5631 = vpop.f32.mrb[0].mxu0
        %v5632 = vadd.f32 %v5543, %v5631
        %5633 = vdwg.mxu0
        %v5634 = vand.u32 %v394, 4294901760
        %5635 = vmatprep.subr.mxu0 %v5634
        %v5636 = vand.u32 %v393, 4294901760
        %5637 = vmatpush1.msra.mxu0 %v5636
        %v5638 = vand.u32 %v398, 4294901760
        %5639 = vmatprep.subr.mxu0 %v5638
        %v5640 = vand.u32 %v397, 4294901760
        %5641 = vmatpush1.msra.mxu0 %v5640
        %v5642 = vand.u32 %v402, 4294901760
        %5643 = vmatprep.subr.mxu0 %v5642
        %v5644 = vand.u32 %v401, 4294901760
        %5645 = vmatpush1.msra.mxu0 %v5644
        %v5646 = vand.u32 %v406, 4294901760
        %5647 = vmatprep.subr.mxu0 %v5646
        %v5648 = vand.u32 %v405, 4294901760
        %5649 = vmatpush1.msra.mxu0 %v5648
        %5650 = vmatprep.subr.mxu0 0.0
        %5651 = vmatpush1.msra.mxu0 0.0
        %5652 = vmatprep.subr.mxu0 0.0
        %5653 = vmatpush1.msra.mxu0 0.0
        %5654 = vmatprep.subr.mxu0 0.0
        %5655 = vmatpush1.msra.mxu0 0.0
        %5656 = vmatprep.subr.mxu0 0.0
        %5657 = vmatpush1.msra.mxu0 0.0
        %5658 = vmatprep.subr.mxu0 0.0
        %5659 = vmatpush1.msra.mxu0 0.0
        %5660 = vmatprep.subr.mxu0 0.0
        %5661 = vmatpush1.msra.mxu0 0.0
        %5662 = vmatprep.subr.mxu0 0.0
        %5663 = vmatpush1.msra.mxu0 0.0
        %5664 = vmatprep.subr.mxu0 0.0
        %5665 = vmatpush1.msra.mxu0 0.0
        %5666 = vmatprep.subr.mxu0 0.0
        %5667 = vmatpush1.msra.mxu0 0.0
        %5668 = vmatprep.subr.mxu0 0.0
        %5669 = vmatpush1.msra.mxu0 0.0
        %5670 = vmatprep.subr.mxu0 0.0
        %5671 = vmatpush1.msra.mxu0 0.0
        %5672 = vmatprep.subr.mxu0 0.0
        %5673 = vmatpush1.msra.mxu0 0.0
        %5674 = vmatprep.subr.mxu0 0.0
        %5675 = vmatpush1.msra.mxu0 0.0
        %5676 = vmatprep.subr.mxu0 0.0
        %5677 = vmatpush1.msra.mxu0 0.0
        %5678 = vmatprep.subr.mxu0 0.0
        %5679 = vmatpush1.msra.mxu0 0.0
        %5680 = vmatprep.subr.mxu0 0.0
        %5681 = vmatpush1.msra.mxu0 0.0
        %5682 = vmatprep.subr.mxu0 0.0
        %5683 = vmatpush1.msra.mxu0 0.0
        %5684 = vmatprep.subr.mxu0 0.0
        %5685 = vmatpush1.msra.mxu0 0.0
        %5686 = vmatprep.subr.mxu0 0.0
        %5687 = vmatpush1.msra.mxu0 0.0
        %5688 = vmatprep.subr.mxu0 0.0
        %5689 = vmatpush1.msra.mxu0 0.0
        %5690 = vmatprep.subr.mxu0 0.0
        %5691 = vmatpush1.msra.mxu0 0.0
        %5692 = vmatprep.subr.mxu0 0.0
        %5693 = vmatpush1.msra.mxu0 0.0
        %5694 = vmatprep.subr.mxu0 0.0
        %5695 = vmatpush1.msra.mxu0 0.0
        %5696 = vmatprep.subr.mxu0 0.0
        %5697 = vmatpush1.msra.mxu0 0.0
        %5698 = vmatprep.subr.mxu0 0.0
        %5699 = vmatpush1.msra.mxu0 0.0
        %5700 = vmatprep.subr.mxu0 0.0
        %5701 = vmatpush1.msra.mxu0 0.0
        %5702 = vmatprep.subr.mxu0 0.0
        %5703 = vmatpush1.msra.mxu0 0.0
        %5704 = vmatprep.subr.mxu0 0.0
        %5705 = vmatpush1.msra.mxu0 0.0
        %5706 = vmatprep.mubr.f32.mxu0 0.0
        %v5707 = vand.u32 %v4804, 4294901760
        %v5708 = vsub.f32 %v4804, %v5707
        %v5709 = vand.u32 %v5708, 4294901760
        %5710 = vmatmul.mubr.f32.gmra.mrb[0].mxu0 %v5709
        %v5711 = vpop.f32.mrb[0].mxu0
        %v5712 = vadd.f32 %v5630, %v5711
        %v5713 = vpop.f32.mrb[0].mxu0
        %v5714 = vadd.f32 %v5632, %v5713
        %5715 = vdwg.mxu0
        %v5716 = vand.u32 %v394, 4294901760
        %v5717 = vsub.f32 %v394, %v5716
        %v5718 = vand.u32 %v5717, 4294901760
        %5719 = vmatprep.subr.mxu0 %v5718
        %v5720 = vand.u32 %v393, 4294901760
        %v5721 = vsub.f32 %v393, %v5720
        %v5722 = vand.u32 %v5721, 4294901760
        %5723 = vmatpush1.msra.mxu0 %v5722
        %v5724 = vand.u32 %v398, 4294901760
        %v5725 = vsub.f32 %v398, %v5724
        %v5726 = vand.u32 %v5725, 4294901760
        %5727 = vmatprep.subr.mxu0 %v5726
        %v5728 = vand.u32 %v397, 4294901760
        %v5729 = vsub.f32 %v397, %v5728
        %v5730 = vand.u32 %v5729, 4294901760
        %5731 = vmatpush1.msra.mxu0 %v5730
        %v5732 = vand.u32 %v402, 4294901760
        %v5733 = vsub.f32 %v402, %v5732
        %v5734 = vand.u32 %v5733, 4294901760
        %5735 = vmatprep.subr.mxu0 %v5734
        %v5736 = vand.u32 %v401, 4294901760
        %v5737 = vsub.f32 %v401, %v5736
        %v5738 = vand.u32 %v5737, 4294901760
        %5739 = vmatpush1.msra.mxu0 %v5738
        %v5740 = vand.u32 %v406, 4294901760
        %v5741 = vsub.f32 %v406, %v5740
        %v5742 = vand.u32 %v5741, 4294901760
        %5743 = vmatprep.subr.mxu0 %v5742
        %v5744 = vand.u32 %v405, 4294901760
        %v5745 = vsub.f32 %v405, %v5744
        %v5746 = vand.u32 %v5745, 4294901760
        %5747 = vmatpush1.msra.mxu0 %v5746
        %5748 = vmatprep.subr.mxu0 0.0
        %5749 = vmatpush1.msra.mxu0 0.0
        %5750 = vmatprep.subr.mxu0 0.0
        %5751 = vmatpush1.msra.mxu0 0.0
        %5752 = vmatprep.subr.mxu0 0.0
        %5753 = vmatpush1.msra.mxu0 0.0
        %5754 = vmatprep.subr.mxu0 0.0
        %5755 = vmatpush1.msra.mxu0 0.0
        %5756 = vmatprep.subr.mxu0 0.0
        %5757 = vmatpush1.msra.mxu0 0.0
        %5758 = vmatprep.subr.mxu0 0.0
        %5759 = vmatpush1.msra.mxu0 0.0
        %5760 = vmatprep.subr.mxu0 0.0
        %5761 = vmatpush1.msra.mxu0 0.0
        %5762 = vmatprep.subr.mxu0 0.0
        %5763 = vmatpush1.msra.mxu0 0.0
        %5764 = vmatprep.subr.mxu0 0.0
        %5765 = vmatpush1.msra.mxu0 0.0
        %5766 = vmatprep.subr.mxu0 0.0
        %5767 = vmatpush1.msra.mxu0 0.0
        %5768 = vmatprep.subr.mxu0 0.0
        %5769 = vmatpush1.msra.mxu0 0.0
        %5770 = vmatprep.subr.mxu0 0.0
        %5771 = vmatpush1.msra.mxu0 0.0
        %5772 = vmatprep.subr.mxu0 0.0
        %5773 = vmatpush1.msra.mxu0 0.0
        %5774 = vmatprep.subr.mxu0 0.0
        %5775 = vmatpush1.msra.mxu0 0.0
        %5776 = vmatprep.subr.mxu0 0.0
        %5777 = vmatpush1.msra.mxu0 0.0
        %5778 = vmatprep.subr.mxu0 0.0
        %5779 = vmatpush1.msra.mxu0 0.0
        %5780 = vmatprep.subr.mxu0 0.0
        %5781 = vmatpush1.msra.mxu0 0.0
        %5782 = vmatprep.subr.mxu0 0.0
        %5783 = vmatpush1.msra.mxu0 0.0
        %5784 = vmatprep.subr.mxu0 0.0
        %5785 = vmatpush1.msra.mxu0 0.0
        %5786 = vmatprep.subr.mxu0 0.0
        %5787 = vmatpush1.msra.mxu0 0.0
        %5788 = vmatprep.subr.mxu0 0.0
        %5789 = vmatpush1.msra.mxu0 0.0
        %5790 = vmatprep.subr.mxu0 0.0
        %5791 = vmatpush1.msra.mxu0 0.0
        %5792 = vmatprep.subr.mxu0 0.0
        %5793 = vmatpush1.msra.mxu0 0.0
        %5794 = vmatprep.subr.mxu0 0.0
        %5795 = vmatpush1.msra.mxu0 0.0
        %5796 = vmatprep.subr.mxu0 0.0
        %5797 = vmatpush1.msra.mxu0 0.0
        %5798 = vmatprep.subr.mxu0 0.0
        %5799 = vmatpush1.msra.mxu0 0.0
        %5800 = vmatprep.subr.mxu0 0.0
        %5801 = vmatpush1.msra.mxu0 0.0
        %5802 = vmatprep.subr.mxu0 0.0
        %5803 = vmatpush1.msra.mxu0 0.0
        %5804 = vmatprep.mubr.f32.mxu0 0.0
        %v5805 = vand.u32 %v4804, 4294901760
        %5806 = vmatmul.mubr.f32.gmra.mrb[0].mxu0 %v5805
        %v5807 = vpop.f32.mrb[0].mxu0
        %v5808 = vadd.f32 %v5712, %v5807
        %v5809 = vpop.f32.mrb[0].mxu0
        %v5810 = vadd.f32 %v5714, %v5809
        %5811 = vdwg.mxu0
        %v5812 = vand.u32 %v394, 4294901760
        %5813 = vmatprep.subr.mxu0 %v5812
        %v5814 = vand.u32 %v393, 4294901760
        %5815 = vmatpush1.msra.mxu0 %v5814
        %v5816 = vand.u32 %v398, 4294901760
        %5817 = vmatprep.subr.mxu0 %v5816
        %v5818 = vand.u32 %v397, 4294901760
        %5819 = vmatpush1.msra.mxu0 %v5818
        %v5820 = vand.u32 %v402, 4294901760
        %5821 = vmatprep.subr.mxu0 %v5820
        %v5822 = vand.u32 %v401, 4294901760
        %5823 = vmatpush1.msra.mxu0 %v5822
        %v5824 = vand.u32 %v406, 4294901760
        %5825 = vmatprep.subr.mxu0 %v5824
        %v5826 = vand.u32 %v405, 4294901760
        %5827 = vmatpush1.msra.mxu0 %v5826
        %5828 = vmatprep.subr.mxu0 0.0
        %5829 = vmatpush1.msra.mxu0 0.0
        %5830 = vmatprep.subr.mxu0 0.0
        %5831 = vmatpush1.msra.mxu0 0.0
        %5832 = vmatprep.subr.mxu0 0.0
        %5833 = vmatpush1.msra.mxu0 0.0
        %5834 = vmatprep.subr.mxu0 0.0
        %5835 = vmatpush1.msra.mxu0 0.0
        %5836 = vmatprep.subr.mxu0 0.0
        %5837 = vmatpush1.msra.mxu0 0.0
        %5838 = vmatprep.subr.mxu0 0.0
        %5839 = vmatpush1.msra.mxu0 0.0
        %5840 = vmatprep.subr.mxu0 0.0
        %5841 = vmatpush1.msra.mxu0 0.0
        %5842 = vmatprep.subr.mxu0 0.0
        %5843 = vmatpush1.msra.mxu0 0.0
        %5844 = vmatprep.subr.mxu0 0.0
        %5845 = vmatpush1.msra.mxu0 0.0
        %5846 = vmatprep.subr.mxu0 0.0
        %5847 = vmatpush1.msra.mxu0 0.0
        %5848 = vmatprep.subr.mxu0 0.0
        %5849 = vmatpush1.msra.mxu0 0.0
        %5850 = vmatprep.subr.mxu0 0.0
        %5851 = vmatpush1.msra.mxu0 0.0
        %5852 = vmatprep.subr.mxu0 0.0
        %5853 = vmatpush1.msra.mxu0 0.0
        %5854 = vmatprep.subr.mxu0 0.0
        %5855 = vmatpush1.msra.mxu0 0.0
        %5856 = vmatprep.subr.mxu0 0.0
        %5857 = vmatpush1.msra.mxu0 0.0
        %5858 = vmatprep.subr.mxu0 0.0
        %5859 = vmatpush1.msra.mxu0 0.0
        %5860 = vmatprep.subr.mxu0 0.0
        %5861 = vmatpush1.msra.mxu0 0.0
        %5862 = vmatprep.subr.mxu0 0.0
        %5863 = vmatpush1.msra.mxu0 0.0
        %5864 = vmatprep.subr.mxu0 0.0
        %5865 = vmatpush1.msra.mxu0 0.0
        %5866 = vmatprep.subr.mxu0 0.0
        %5867 = vmatpush1.msra.mxu0 0.0
        %5868 = vmatprep.subr.mxu0 0.0
        %5869 = vmatpush1.msra.mxu0 0.0
        %5870 = vmatprep.subr.mxu0 0.0
        %5871 = vmatpush1.msra.mxu0 0.0
        %5872 = vmatprep.subr.mxu0 0.0
        %5873 = vmatpush1.msra.mxu0 0.0
        %5874 = vmatprep.subr.mxu0 0.0
        %5875 = vmatpush1.msra.mxu0 0.0
        %5876 = vmatprep.subr.mxu0 0.0
        %5877 = vmatpush1.msra.mxu0 0.0
        %5878 = vmatprep.subr.mxu0 0.0
        %5879 = vmatpush1.msra.mxu0 0.0
        %5880 = vmatprep.subr.mxu0 0.0
        %5881 = vmatpush1.msra.mxu0 0.0
        %5882 = vmatprep.subr.mxu0 0.0
        %5883 = vmatpush1.msra.mxu0 0.0
        %5884 = vmatprep.mubr.f32.mxu0 0.0
        %v5885 = vand.u32 %v4804, 4294901760
        %5886 = vmatmul.mubr.f32.gmra.mrb[0].mxu0 %v5885
        %v5887 = vpop.f32.mrb[0].mxu0
        %v5888 = vadd.f32 %v5808, %v5887
        %v5889 = vpop.f32.mrb[0].mxu0
        %v5890 = vadd.f32 %v5810, %v5889
        %5891 = vdwg.mxu0
        %v5893 = vsel %vm4802, %v4801, 0
        %v5895 = vand.u32 %v392, 4294901760
        %5896 = vmatprep.subr.mxu0 %v5895
        %v5897 = vand.u32 %v391, 4294901760
        %5898 = vmatpush1.msra.mxu0 %v5897
        %v5899 = vand.u32 %v396, 4294901760
        %5900 = vmatprep.subr.mxu0 %v5899
        %v5901 = vand.u32 %v395, 4294901760
        %5902 = vmatpush1.msra.mxu0 %v5901
        %v5903 = vand.u32 %v400, 4294901760
        %5904 = vmatprep.subr.mxu0 %v5903
        %v5905 = vand.u32 %v399, 4294901760
        %5906 = vmatpush1.msra.mxu0 %v5905
        %v5907 = vand.u32 %v404, 4294901760
        %5908 = vmatprep.subr.mxu0 %v5907
        %v5909 = vand.u32 %v403, 4294901760
        %5910 = vmatpush1.msra.mxu0 %v5909
        %5911 = vmatprep.subr.mxu0 0.0
        %5912 = vmatpush1.msra.mxu0 0.0
        %5913 = vmatprep.subr.mxu0 0.0
        %5914 = vmatpush1.msra.mxu0 0.0
        %5915 = vmatprep.subr.mxu0 0.0
        %5916 = vmatpush1.msra.mxu0 0.0
        %5917 = vmatprep.subr.mxu0 0.0
        %5918 = vmatpush1.msra.mxu0 0.0
        %5919 = vmatprep.subr.mxu0 0.0
        %5920 = vmatpush1.msra.mxu0 0.0
        %5921 = vmatprep.subr.mxu0 0.0
        %5922 = vmatpush1.msra.mxu0 0.0
        %5923 = vmatprep.subr.mxu0 0.0
        %5924 = vmatpush1.msra.mxu0 0.0
        %5925 = vmatprep.subr.mxu0 0.0
        %5926 = vmatpush1.msra.mxu0 0.0
        %5927 = vmatprep.subr.mxu0 0.0
        %5928 = vmatpush1.msra.mxu0 0.0
        %5929 = vmatprep.subr.mxu0 0.0
        %5930 = vmatpush1.msra.mxu0 0.0
        %5931 = vmatprep.subr.mxu0 0.0
        %5932 = vmatpush1.msra.mxu0 0.0
        %5933 = vmatprep.subr.mxu0 0.0
        %5934 = vmatpush1.msra.mxu0 0.0
        %5935 = vmatprep.subr.mxu0 0.0
        %5936 = vmatpush1.msra.mxu0 0.0
        %5937 = vmatprep.subr.mxu0 0.0
        %5938 = vmatpush1.msra.mxu0 0.0
        %5939 = vmatprep.subr.mxu0 0.0
        %5940 = vmatpush1.msra.mxu0 0.0
        %5941 = vmatprep.subr.mxu0 0.0
        %5942 = vmatpush1.msra.mxu0 0.0
        %5943 = vmatprep.subr.mxu0 0.0
        %5944 = vmatpush1.msra.mxu0 0.0
        %5945 = vmatprep.subr.mxu0 0.0
        %5946 = vmatpush1.msra.mxu0 0.0
        %5947 = vmatprep.subr.mxu0 0.0
        %5948 = vmatpush1.msra.mxu0 0.0
        %5949 = vmatprep.subr.mxu0 0.0
        %5950 = vmatpush1.msra.mxu0 0.0
        %5951 = vmatprep.subr.mxu0 0.0
        %5952 = vmatpush1.msra.mxu0 0.0
        %5953 = vmatprep.subr.mxu0 0.0
        %5954 = vmatpush1.msra.mxu0 0.0
        %5955 = vmatprep.subr.mxu0 0.0
        %5956 = vmatpush1.msra.mxu0 0.0
        %5957 = vmatprep.subr.mxu0 0.0
        %5958 = vmatpush1.msra.mxu0 0.0
        %5959 = vmatprep.subr.mxu0 0.0
        %5960 = vmatpush1.msra.mxu0 0.0
        %5961 = vmatprep.subr.mxu0 0.0
        %5962 = vmatpush1.msra.mxu0 0.0
        %5963 = vmatprep.subr.mxu0 0.0
        %5964 = vmatpush1.msra.mxu0 0.0
        %5965 = vmatprep.subr.mxu0 0.0
        %5966 = vmatpush1.msra.mxu0 0.0
        %5967 = vmatprep.mubr.f32.mxu0 0.0
        %v5968 = vand.u32 %v5893, 4294901760
        %v5969 = vsub.f32 %v5893, %v5968
        %v5970 = vand.u32 %v5969, 4294901760
        %v5971 = vsub.f32 %v5969, %v5970
        %v5972 = vand.u32 %v5971, 4294901760
        %5973 = vmatmul.mubr.f32.gmra.mrb[0].mxu0 %v5972
        %v5974 = vpop.f32.mrb[0].mxu0
        %v5975 = vadd.f32 0.0, %v5974
        %v5976 = vpop.f32.mrb[0].mxu0
        %v5977 = vadd.f32 0.0, %v5976
        %5978 = vdwg.mxu0
        %v5979 = vand.u32 %v392, 4294901760
        %v5980 = vsub.f32 %v392, %v5979
        %v5981 = vand.u32 %v5980, 4294901760
        %v5982 = vsub.f32 %v5980, %v5981
        %v5983 = vand.u32 %v5982, 4294901760
        %5984 = vmatprep.subr.mxu0 %v5983
        %v5985 = vand.u32 %v391, 4294901760
        %v5986 = vsub.f32 %v391, %v5985
        %v5987 = vand.u32 %v5986, 4294901760
        %v5988 = vsub.f32 %v5986, %v5987
        %v5989 = vand.u32 %v5988, 4294901760
        %5990 = vmatpush1.msra.mxu0 %v5989
        %v5991 = vand.u32 %v396, 4294901760
        %v5992 = vsub.f32 %v396, %v5991
        %v5993 = vand.u32 %v5992, 4294901760
        %v5994 = vsub.f32 %v5992, %v5993
        %v5995 = vand.u32 %v5994, 4294901760
        %5996 = vmatprep.subr.mxu0 %v5995
        %v5997 = vand.u32 %v395, 4294901760
        %v5998 = vsub.f32 %v395, %v5997
        %v5999 = vand.u32 %v5998, 4294901760
        %v6000 = vsub.f32 %v5998, %v5999
        %v6001 = vand.u32 %v6000, 4294901760
        %6002 = vmatpush1.msra.mxu0 %v6001
        %v6003 = vand.u32 %v400, 4294901760
        %v6004 = vsub.f32 %v400, %v6003
        %v6005 = vand.u32 %v6004, 4294901760
        %v6006 = vsub.f32 %v6004, %v6005
        %v6007 = vand.u32 %v6006, 4294901760
        %6008 = vmatprep.subr.mxu0 %v6007
        %v6009 = vand.u32 %v399, 4294901760
        %v6010 = vsub.f32 %v399, %v6009
        %v6011 = vand.u32 %v6010, 4294901760
        %v6012 = vsub.f32 %v6010, %v6011
        %v6013 = vand.u32 %v6012, 4294901760
        %6014 = vmatpush1.msra.mxu0 %v6013
        %v6015 = vand.u32 %v404, 4294901760
        %v6016 = vsub.f32 %v404, %v6015
        %v6017 = vand.u32 %v6016, 4294901760
        %v6018 = vsub.f32 %v6016, %v6017
        %v6019 = vand.u32 %v6018, 4294901760
        %6020 = vmatprep.subr.mxu0 %v6019
        %v6021 = vand.u32 %v403, 4294901760
        %v6022 = vsub.f32 %v403, %v6021
        %v6023 = vand.u32 %v6022, 4294901760
        %v6024 = vsub.f32 %v6022, %v6023
        %v6025 = vand.u32 %v6024, 4294901760
        %6026 = vmatpush1.msra.mxu0 %v6025
        %6027 = vmatprep.subr.mxu0 0.0
        %6028 = vmatpush1.msra.mxu0 0.0
        %6029 = vmatprep.subr.mxu0 0.0
        %6030 = vmatpush1.msra.mxu0 0.0
        %6031 = vmatprep.subr.mxu0 0.0
        %6032 = vmatpush1.msra.mxu0 0.0
        %6033 = vmatprep.subr.mxu0 0.0
        %6034 = vmatpush1.msra.mxu0 0.0
        %6035 = vmatprep.subr.mxu0 0.0
        %6036 = vmatpush1.msra.mxu0 0.0
        %6037 = vmatprep.subr.mxu0 0.0
        %6038 = vmatpush1.msra.mxu0 0.0
        %6039 = vmatprep.subr.mxu0 0.0
        %6040 = vmatpush1.msra.mxu0 0.0
        %6041 = vmatprep.subr.mxu0 0.0
        %6042 = vmatpush1.msra.mxu0 0.0
        %6043 = vmatprep.subr.mxu0 0.0
        %6044 = vmatpush1.msra.mxu0 0.0
        %6045 = vmatprep.subr.mxu0 0.0
        %6046 = vmatpush1.msra.mxu0 0.0
        %6047 = vmatprep.subr.mxu0 0.0
        %6048 = vmatpush1.msra.mxu0 0.0
        %6049 = vmatprep.subr.mxu0 0.0
        %6050 = vmatpush1.msra.mxu0 0.0
        %6051 = vmatprep.subr.mxu0 0.0
        %6052 = vmatpush1.msra.mxu0 0.0
        %6053 = vmatprep.subr.mxu0 0.0
        %6054 = vmatpush1.msra.mxu0 0.0
        %6055 = vmatprep.subr.mxu0 0.0
        %6056 = vmatpush1.msra.mxu0 0.0
        %6057 = vmatprep.subr.mxu0 0.0
        %6058 = vmatpush1.msra.mxu0 0.0
        %6059 = vmatprep.subr.mxu0 0.0
        %6060 = vmatpush1.msra.mxu0 0.0
        %6061 = vmatprep.subr.mxu0 0.0
        %6062 = vmatpush1.msra.mxu0 0.0
        %6063 = vmatprep.subr.mxu0 0.0
        %6064 = vmatpush1.msra.mxu0 0.0
        %6065 = vmatprep.subr.mxu0 0.0
        %6066 = vmatpush1.msra.mxu0 0.0
        %6067 = vmatprep.subr.mxu0 0.0
        %6068 = vmatpush1.msra.mxu0 0.0
        %6069 = vmatprep.subr.mxu0 0.0
        %6070 = vmatpush1.msra.mxu0 0.0
        %6071 = vmatprep.subr.mxu0 0.0
        %6072 = vmatpush1.msra.mxu0 0.0
        %6073 = vmatprep.subr.mxu0 0.0
        %6074 = vmatpush1.msra.mxu0 0.0
        %6075 = vmatprep.subr.mxu0 0.0
        %6076 = vmatpush1.msra.mxu0 0.0
        %6077 = vmatprep.subr.mxu0 0.0
        %6078 = vmatpush1.msra.mxu0 0.0
        %6079 = vmatprep.subr.mxu0 0.0
        %6080 = vmatpush1.msra.mxu0 0.0
        %6081 = vmatprep.subr.mxu0 0.0
        %6082 = vmatpush1.msra.mxu0 0.0
        %6083 = vmatprep.mubr.f32.mxu0 0.0
        %v6084 = vand.u32 %v5893, 4294901760
        %6085 = vmatmul.mubr.f32.gmra.mrb[0].mxu0 %v6084
        %v6086 = vpop.f32.mrb[0].mxu0
        %v6087 = vadd.f32 %v5975, %v6086
        %v6088 = vpop.f32.mrb[0].mxu0
        %v6089 = vadd.f32 %v5977, %v6088
        %6090 = vdwg.mxu0
        %v6091 = vand.u32 %v392, 4294901760
        %v6092 = vsub.f32 %v392, %v6091
        %6093 = vmatprep.subr.mxu0 %v6092
        %v6094 = vand.u32 %v391, 4294901760
        %v6095 = vsub.f32 %v391, %v6094
        %6096 = vmatpush1.msra.mxu0 %v6095
        %v6097 = vand.u32 %v396, 4294901760
        %v6098 = vsub.f32 %v396, %v6097
        %6099 = vmatprep.subr.mxu0 %v6098
        %v6100 = vand.u32 %v395, 4294901760
        %v6101 = vsub.f32 %v395, %v6100
        %6102 = vmatpush1.msra.mxu0 %v6101
        %v6103 = vand.u32 %v400, 4294901760
        %v6104 = vsub.f32 %v400, %v6103
        %6105 = vmatprep.subr.mxu0 %v6104
        %v6106 = vand.u32 %v399, 4294901760
        %v6107 = vsub.f32 %v399, %v6106
        %6108 = vmatpush1.msra.mxu0 %v6107
        %v6109 = vand.u32 %v404, 4294901760
        %v6110 = vsub.f32 %v404, %v6109
        %6111 = vmatprep.subr.mxu0 %v6110
        %v6112 = vand.u32 %v403, 4294901760
        %v6113 = vsub.f32 %v403, %v6112
        %6114 = vmatpush1.msra.mxu0 %v6113
        %6115 = vmatprep.subr.mxu0 0.0
        %6116 = vmatpush1.msra.mxu0 0.0
        %6117 = vmatprep.subr.mxu0 0.0
        %6118 = vmatpush1.msra.mxu0 0.0
        %6119 = vmatprep.subr.mxu0 0.0
        %6120 = vmatpush1.msra.mxu0 0.0
        %6121 = vmatprep.subr.mxu0 0.0
        %6122 = vmatpush1.msra.mxu0 0.0
        %6123 = vmatprep.subr.mxu0 0.0
        %6124 = vmatpush1.msra.mxu0 0.0
        %6125 = vmatprep.subr.mxu0 0.0
        %6126 = vmatpush1.msra.mxu0 0.0
        %6127 = vmatprep.subr.mxu0 0.0
        %6128 = vmatpush1.msra.mxu0 0.0
        %6129 = vmatprep.subr.mxu0 0.0
        %6130 = vmatpush1.msra.mxu0 0.0
        %6131 = vmatprep.subr.mxu0 0.0
        %6132 = vmatpush1.msra.mxu0 0.0
        %6133 = vmatprep.subr.mxu0 0.0
        %6134 = vmatpush1.msra.mxu0 0.0
        %6135 = vmatprep.subr.mxu0 0.0
        %6136 = vmatpush1.msra.mxu0 0.0
        %6137 = vmatprep.subr.mxu0 0.0
        %6138 = vmatpush1.msra.mxu0 0.0
        %6139 = vmatprep.subr.mxu0 0.0
        %6140 = vmatpush1.msra.mxu0 0.0
        %6141 = vmatprep.subr.mxu0 0.0
        %6142 = vmatpush1.msra.mxu0 0.0
        %6143 = vmatprep.subr.mxu0 0.0
        %6144 = vmatpush1.msra.mxu0 0.0
        %6145 = vmatprep.subr.mxu0 0.0
        %6146 = vmatpush1.msra.mxu0 0.0
        %6147 = vmatprep.subr.mxu0 0.0
        %6148 = vmatpush1.msra.mxu0 0.0
        %6149 = vmatprep.subr.mxu0 0.0
        %6150 = vmatpush1.msra.mxu0 0.0
        %6151 = vmatprep.subr.mxu0 0.0
        %6152 = vmatpush1.msra.mxu0 0.0
        %6153 = vmatprep.subr.mxu0 0.0
        %6154 = vmatpush1.msra.mxu0 0.0
        %6155 = vmatprep.subr.mxu0 0.0
        %6156 = vmatpush1.msra.mxu0 0.0
        %6157 = vmatprep.subr.mxu0 0.0
        %6158 = vmatpush1.msra.mxu0 0.0
        %6159 = vmatprep.subr.mxu0 0.0
        %6160 = vmatpush1.msra.mxu0 0.0
        %6161 = vmatprep.subr.mxu0 0.0
        %6162 = vmatpush1.msra.mxu0 0.0
        %6163 = vmatprep.subr.mxu0 0.0
        %6164 = vmatpush1.msra.mxu0 0.0
        %6165 = vmatprep.subr.mxu0 0.0
        %6166 = vmatpush1.msra.mxu0 0.0
        %6167 = vmatprep.subr.mxu0 0.0
        %6168 = vmatpush1.msra.mxu0 0.0
        %6169 = vmatprep.subr.mxu0 0.0
        %6170 = vmatpush1.msra.mxu0 0.0
        %6171 = vmatprep.mubr.f32.mxu0 0.0
        %v6172 = vand.u32 %v5893, 4294901760
        %v6173 = vsub.f32 %v5893, %v6172
        %6174 = vmatmul.mubr.f32.gmra.mrb[0].mxu0 %v6173
        %v6175 = vpop.f32.mrb[0].mxu0
        %v6176 = vadd.f32 %v6087, %v6175
        %v6177 = vpop.f32.mrb[0].mxu0
        %v6178 = vadd.f32 %v6089, %v6177
        %6179 = vdwg.mxu0
        %v6180 = vand.u32 %v392, 4294901760
        %6181 = vmatprep.subr.mxu0 %v6180
        %v6182 = vand.u32 %v391, 4294901760
        %6183 = vmatpush1.msra.mxu0 %v6182
        %v6184 = vand.u32 %v396, 4294901760
        %6185 = vmatprep.subr.mxu0 %v6184
        %v6186 = vand.u32 %v395, 4294901760
        %6187 = vmatpush1.msra.mxu0 %v6186
        %v6188 = vand.u32 %v400, 4294901760
        %6189 = vmatprep.subr.mxu0 %v6188
        %v6190 = vand.u32 %v399, 4294901760
        %6191 = vmatpush1.msra.mxu0 %v6190
        %v6192 = vand.u32 %v404, 4294901760
        %6193 = vmatprep.subr.mxu0 %v6192
        %v6194 = vand.u32 %v403, 4294901760
        %6195 = vmatpush1.msra.mxu0 %v6194
        %6196 = vmatprep.subr.mxu0 0.0
        %6197 = vmatpush1.msra.mxu0 0.0
        %6198 = vmatprep.subr.mxu0 0.0
        %6199 = vmatpush1.msra.mxu0 0.0
        %6200 = vmatprep.subr.mxu0 0.0
        %6201 = vmatpush1.msra.mxu0 0.0
        %6202 = vmatprep.subr.mxu0 0.0
        %6203 = vmatpush1.msra.mxu0 0.0
        %6204 = vmatprep.subr.mxu0 0.0
        %6205 = vmatpush1.msra.mxu0 0.0
        %6206 = vmatprep.subr.mxu0 0.0
        %6207 = vmatpush1.msra.mxu0 0.0
        %6208 = vmatprep.subr.mxu0 0.0
        %6209 = vmatpush1.msra.mxu0 0.0
        %6210 = vmatprep.subr.mxu0 0.0
        %6211 = vmatpush1.msra.mxu0 0.0
        %6212 = vmatprep.subr.mxu0 0.0
        %6213 = vmatpush1.msra.mxu0 0.0
        %6214 = vmatprep.subr.mxu0 0.0
        %6215 = vmatpush1.msra.mxu0 0.0
        %6216 = vmatprep.subr.mxu0 0.0
        %6217 = vmatpush1.msra.mxu0 0.0
        %6218 = vmatprep.subr.mxu0 0.0
        %6219 = vmatpush1.msra.mxu0 0.0
        %6220 = vmatprep.subr.mxu0 0.0
        %6221 = vmatpush1.msra.mxu0 0.0
        %6222 = vmatprep.subr.mxu0 0.0
        %6223 = vmatpush1.msra.mxu0 0.0
        %6224 = vmatprep.subr.mxu0 0.0
        %6225 = vmatpush1.msra.mxu0 0.0
        %6226 = vmatprep.subr.mxu0 0.0
        %6227 = vmatpush1.msra.mxu0 0.0
        %6228 = vmatprep.subr.mxu0 0.0
        %6229 = vmatpush1.msra.mxu0 0.0
        %6230 = vmatprep.subr.mxu0 0.0
        %6231 = vmatpush1.msra.mxu0 0.0
        %6232 = vmatprep.subr.mxu0 0.0
        %6233 = vmatpush1.msra.mxu0 0.0
        %6234 = vmatprep.subr.mxu0 0.0
        %6235 = vmatpush1.msra.mxu0 0.0
        %6236 = vmatprep.subr.mxu0 0.0
        %6237 = vmatpush1.msra.mxu0 0.0
        %6238 = vmatprep.subr.mxu0 0.0
        %6239 = vmatpush1.msra.mxu0 0.0
        %6240 = vmatprep.subr.mxu0 0.0
        %6241 = vmatpush1.msra.mxu0 0.0
        %6242 = vmatprep.subr.mxu0 0.0
        %6243 = vmatpush1.msra.mxu0 0.0
        %6244 = vmatprep.subr.mxu0 0.0
        %6245 = vmatpush1.msra.mxu0 0.0
        %6246 = vmatprep.subr.mxu0 0.0
        %6247 = vmatpush1.msra.mxu0 0.0
        %6248 = vmatprep.subr.mxu0 0.0
        %6249 = vmatpush1.msra.mxu0 0.0
        %6250 = vmatprep.subr.mxu0 0.0
        %6251 = vmatpush1.msra.mxu0 0.0
        %6252 = vmatprep.mubr.f32.mxu0 0.0
        %v6253 = vand.u32 %v5893, 4294901760
        %v6254 = vsub.f32 %v5893, %v6253
        %v6255 = vand.u32 %v6254, 4294901760
        %6256 = vmatmul.mubr.f32.gmra.mrb[0].mxu0 %v6255
        %v6257 = vpop.f32.mrb[0].mxu0
        %v6258 = vadd.f32 %v6176, %v6257
        %v6259 = vpop.f32.mrb[0].mxu0
        %v6260 = vadd.f32 %v6178, %v6259
        %6261 = vdwg.mxu0
        %v6262 = vand.u32 %v392, 4294901760
        %v6263 = vsub.f32 %v392, %v6262
        %v6264 = vand.u32 %v6263, 4294901760
        %6265 = vmatprep.subr.mxu0 %v6264
        %v6266 = vand.u32 %v391, 4294901760
        %v6267 = vsub.f32 %v391, %v6266
        %v6268 = vand.u32 %v6267, 4294901760
        %6269 = vmatpush1.msra.mxu0 %v6268
        %v6270 = vand.u32 %v396, 4294901760
        %v6271 = vsub.f32 %v396, %v6270
        %v6272 = vand.u32 %v6271, 4294901760
        %6273 = vmatprep.subr.mxu0 %v6272
        %v6274 = vand.u32 %v395, 4294901760
        %v6275 = vsub.f32 %v395, %v6274
        %v6276 = vand.u32 %v6275, 4294901760
        %6277 = vmatpush1.msra.mxu0 %v6276
        %v6278 = vand.u32 %v400, 4294901760
        %v6279 = vsub.f32 %v400, %v6278
        %v6280 = vand.u32 %v6279, 4294901760
        %6281 = vmatprep.subr.mxu0 %v6280
        %v6282 = vand.u32 %v399, 4294901760
        %v6283 = vsub.f32 %v399, %v6282
        %v6284 = vand.u32 %v6283, 4294901760
        %6285 = vmatpush1.msra.mxu0 %v6284
        %v6286 = vand.u32 %v404, 4294901760
        %v6287 = vsub.f32 %v404, %v6286
        %v6288 = vand.u32 %v6287, 4294901760
        %6289 = vmatprep.subr.mxu0 %v6288
        %v6290 = vand.u32 %v403, 4294901760
        %v6291 = vsub.f32 %v403, %v6290
        %v6292 = vand.u32 %v6291, 4294901760
        %6293 = vmatpush1.msra.mxu0 %v6292
        %6294 = vmatprep.subr.mxu0 0.0
        %6295 = vmatpush1.msra.mxu0 0.0
        %6296 = vmatprep.subr.mxu0 0.0
        %6297 = vmatpush1.msra.mxu0 0.0
        %6298 = vmatprep.subr.mxu0 0.0
        %6299 = vmatpush1.msra.mxu0 0.0
        %6300 = vmatprep.subr.mxu0 0.0
        %6301 = vmatpush1.msra.mxu0 0.0
        %6302 = vmatprep.subr.mxu0 0.0
        %6303 = vmatpush1.msra.mxu0 0.0
        %6304 = vmatprep.subr.mxu0 0.0
        %6305 = vmatpush1.msra.mxu0 0.0
        %6306 = vmatprep.subr.mxu0 0.0
        %6307 = vmatpush1.msra.mxu0 0.0
        %6308 = vmatprep.subr.mxu0 0.0
        %6309 = vmatpush1.msra.mxu0 0.0
        %6310 = vmatprep.subr.mxu0 0.0
        %6311 = vmatpush1.msra.mxu0 0.0
        %6312 = vmatprep.subr.mxu0 0.0
        %6313 = vmatpush1.msra.mxu0 0.0
        %6314 = vmatprep.subr.mxu0 0.0
        %6315 = vmatpush1.msra.mxu0 0.0
        %6316 = vmatprep.subr.mxu0 0.0
        %6317 = vmatpush1.msra.mxu0 0.0
        %6318 = vmatprep.subr.mxu0 0.0
        %6319 = vmatpush1.msra.mxu0 0.0
        %6320 = vmatprep.subr.mxu0 0.0
        %6321 = vmatpush1.msra.mxu0 0.0
        %6322 = vmatprep.subr.mxu0 0.0
        %6323 = vmatpush1.msra.mxu0 0.0
        %6324 = vmatprep.subr.mxu0 0.0
        %6325 = vmatpush1.msra.mxu0 0.0
        %6326 = vmatprep.subr.mxu0 0.0
        %6327 = vmatpush1.msra.mxu0 0.0
        %6328 = vmatprep.subr.mxu0 0.0
        %6329 = vmatpush1.msra.mxu0 0.0
        %6330 = vmatprep.subr.mxu0 0.0
        %6331 = vmatpush1.msra.mxu0 0.0
        %6332 = vmatprep.subr.mxu0 0.0
        %6333 = vmatpush1.msra.mxu0 0.0
        %6334 = vmatprep.subr.mxu0 0.0
        %6335 = vmatpush1.msra.mxu0 0.0
        %6336 = vmatprep.subr.mxu0 0.0
        %6337 = vmatpush1.msra.mxu0 0.0
        %6338 = vmatprep.subr.mxu0 0.0
        %6339 = vmatpush1.msra.mxu0 0.0
        %6340 = vmatprep.subr.mxu0 0.0
        %6341 = vmatpush1.msra.mxu0 0.0
        %6342 = vmatprep.subr.mxu0 0.0
        %6343 = vmatpush1.msra.mxu0 0.0
        %6344 = vmatprep.subr.mxu0 0.0
        %6345 = vmatpush1.msra.mxu0 0.0
        %6346 = vmatprep.subr.mxu0 0.0
        %6347 = vmatpush1.msra.mxu0 0.0
        %6348 = vmatprep.subr.mxu0 0.0
        %6349 = vmatpush1.msra.mxu0 0.0
        %6350 = vmatprep.mubr.f32.mxu0 0.0
        %v6351 = vand.u32 %v5893, 4294901760
        %6352 = vmatmul.mubr.f32.gmra.mrb[0].mxu0 %v6351
        %v6353 = vpop.f32.mrb[0].mxu0
        %v6354 = vadd.f32 %v6258, %v6353
        %v6355 = vpop.f32.mrb[0].mxu0
        %v6356 = vadd.f32 %v6260, %v6355
        %6357 = vdwg.mxu0
        %v6358 = vand.u32 %v392, 4294901760
        %6359 = vmatprep.subr.mxu0 %v6358
        %v6360 = vand.u32 %v391, 4294901760
        %6361 = vmatpush1.msra.mxu0 %v6360
        %v6362 = vand.u32 %v396, 4294901760
        %6363 = vmatprep.subr.mxu0 %v6362
        %v6364 = vand.u32 %v395, 4294901760
        %6365 = vmatpush1.msra.mxu0 %v6364
        %v6366 = vand.u32 %v400, 4294901760
        %6367 = vmatprep.subr.mxu0 %v6366
        %v6368 = vand.u32 %v399, 4294901760
        %6369 = vmatpush1.msra.mxu0 %v6368
        %v6370 = vand.u32 %v404, 4294901760
        %6371 = vmatprep.subr.mxu0 %v6370
        %v6372 = vand.u32 %v403, 4294901760
        %6373 = vmatpush1.msra.mxu0 %v6372
        %6374 = vmatprep.subr.mxu0 0.0
        %6375 = vmatpush1.msra.mxu0 0.0
        %6376 = vmatprep.subr.mxu0 0.0
        %6377 = vmatpush1.msra.mxu0 0.0
        %6378 = vmatprep.subr.mxu0 0.0
        %6379 = vmatpush1.msra.mxu0 0.0
        %6380 = vmatprep.subr.mxu0 0.0
        %6381 = vmatpush1.msra.mxu0 0.0
        %6382 = vmatprep.subr.mxu0 0.0
        %6383 = vmatpush1.msra.mxu0 0.0
        %6384 = vmatprep.subr.mxu0 0.0
        %6385 = vmatpush1.msra.mxu0 0.0
        %6386 = vmatprep.subr.mxu0 0.0
        %6387 = vmatpush1.msra.mxu0 0.0
        %6388 = vmatprep.subr.mxu0 0.0
        %6389 = vmatpush1.msra.mxu0 0.0
        %6390 = vmatprep.subr.mxu0 0.0
        %6391 = vmatpush1.msra.mxu0 0.0
        %6392 = vmatprep.subr.mxu0 0.0
        %6393 = vmatpush1.msra.mxu0 0.0
        %6394 = vmatprep.subr.mxu0 0.0
        %6395 = vmatpush1.msra.mxu0 0.0
        %6396 = vmatprep.subr.mxu0 0.0
        %6397 = vmatpush1.msra.mxu0 0.0
        %6398 = vmatprep.subr.mxu0 0.0
        %6399 = vmatpush1.msra.mxu0 0.0
        %6400 = vmatprep.subr.mxu0 0.0
        %6401 = vmatpush1.msra.mxu0 0.0
        %6402 = vmatprep.subr.mxu0 0.0
        %6403 = vmatpush1.msra.mxu0 0.0
        %6404 = vmatprep.subr.mxu0 0.0
        %6405 = vmatpush1.msra.mxu0 0.0
        %6406 = vmatprep.subr.mxu0 0.0
        %6407 = vmatpush1.msra.mxu0 0.0
        %6408 = vmatprep.subr.mxu0 0.0
        %6409 = vmatpush1.msra.mxu0 0.0
        %6410 = vmatprep.subr.mxu0 0.0
        %6411 = vmatpush1.msra.mxu0 0.0
        %6412 = vmatprep.subr.mxu0 0.0
        %6413 = vmatpush1.msra.mxu0 0.0
        %6414 = vmatprep.subr.mxu0 0.0
        %6415 = vmatpush1.msra.mxu0 0.0
        %6416 = vmatprep.subr.mxu0 0.0
        %6417 = vmatpush1.msra.mxu0 0.0
        %6418 = vmatprep.subr.mxu0 0.0
        %6419 = vmatpush1.msra.mxu0 0.0
        %6420 = vmatprep.subr.mxu0 0.0
        %6421 = vmatpush1.msra.mxu0 0.0
        %6422 = vmatprep.subr.mxu0 0.0
        %6423 = vmatpush1.msra.mxu0 0.0
        %6424 = vmatprep.subr.mxu0 0.0
        %6425 = vmatpush1.msra.mxu0 0.0
        %6426 = vmatprep.subr.mxu0 0.0
        %6427 = vmatpush1.msra.mxu0 0.0
        %6428 = vmatprep.subr.mxu0 0.0
        %6429 = vmatpush1.msra.mxu0 0.0
        %6430 = vmatprep.mubr.f32.mxu0 0.0
        %v6431 = vand.u32 %v5893, 4294901760
        %6432 = vmatmul.mubr.f32.gmra.mrb[0].mxu0 %v6431
        %v6433 = vpop.f32.mrb[0].mxu0
        %v6434 = vadd.f32 %v6354, %v6433
        %v6435 = vpop.f32.mrb[0].mxu0
        %v6436 = vadd.f32 %v6356, %v6435
        %6437 = vdwg.mxu0
        %v6438 = vand.u32 %v394, 4294901760
        %6439 = vmatprep.subr.mxu0 %v6438
        %v6440 = vand.u32 %v393, 4294901760
        %6441 = vmatpush1.msra.mxu0 %v6440
        %v6442 = vand.u32 %v398, 4294901760
        %6443 = vmatprep.subr.mxu0 %v6442
        %v6444 = vand.u32 %v397, 4294901760
        %6445 = vmatpush1.msra.mxu0 %v6444
        %v6446 = vand.u32 %v402, 4294901760
        %6447 = vmatprep.subr.mxu0 %v6446
        %v6448 = vand.u32 %v401, 4294901760
        %6449 = vmatpush1.msra.mxu0 %v6448
        %v6450 = vand.u32 %v406, 4294901760
        %6451 = vmatprep.subr.mxu0 %v6450
        %v6452 = vand.u32 %v405, 4294901760
        %6453 = vmatpush1.msra.mxu0 %v6452
        %6454 = vmatprep.subr.mxu0 0.0
        %6455 = vmatpush1.msra.mxu0 0.0
        %6456 = vmatprep.subr.mxu0 0.0
        %6457 = vmatpush1.msra.mxu0 0.0
        %6458 = vmatprep.subr.mxu0 0.0
        %6459 = vmatpush1.msra.mxu0 0.0
        %6460 = vmatprep.subr.mxu0 0.0
        %6461 = vmatpush1.msra.mxu0 0.0
        %6462 = vmatprep.subr.mxu0 0.0
        %6463 = vmatpush1.msra.mxu0 0.0
        %6464 = vmatprep.subr.mxu0 0.0
        %6465 = vmatpush1.msra.mxu0 0.0
        %6466 = vmatprep.subr.mxu0 0.0
        %6467 = vmatpush1.msra.mxu0 0.0
        %6468 = vmatprep.subr.mxu0 0.0
        %6469 = vmatpush1.msra.mxu0 0.0
        %6470 = vmatprep.subr.mxu0 0.0
        %6471 = vmatpush1.msra.mxu0 0.0
        %6472 = vmatprep.subr.mxu0 0.0
        %6473 = vmatpush1.msra.mxu0 0.0
        %6474 = vmatprep.subr.mxu0 0.0
        %6475 = vmatpush1.msra.mxu0 0.0
        %6476 = vmatprep.subr.mxu0 0.0
        %6477 = vmatpush1.msra.mxu0 0.0
        %6478 = vmatprep.subr.mxu0 0.0
        %6479 = vmatpush1.msra.mxu0 0.0
        %6480 = vmatprep.subr.mxu0 0.0
        %6481 = vmatpush1.msra.mxu0 0.0
        %6482 = vmatprep.subr.mxu0 0.0
        %6483 = vmatpush1.msra.mxu0 0.0
        %6484 = vmatprep.subr.mxu0 0.0
        %6485 = vmatpush1.msra.mxu0 0.0
        %6486 = vmatprep.subr.mxu0 0.0
        %6487 = vmatpush1.msra.mxu0 0.0
        %6488 = vmatprep.subr.mxu0 0.0
        %6489 = vmatpush1.msra.mxu0 0.0
        %6490 = vmatprep.subr.mxu0 0.0
        %6491 = vmatpush1.msra.mxu0 0.0
        %6492 = vmatprep.subr.mxu0 0.0
        %6493 = vmatpush1.msra.mxu0 0.0
        %6494 = vmatprep.subr.mxu0 0.0
        %6495 = vmatpush1.msra.mxu0 0.0
        %6496 = vmatprep.subr.mxu0 0.0
        %6497 = vmatpush1.msra.mxu0 0.0
        %6498 = vmatprep.subr.mxu0 0.0
        %6499 = vmatpush1.msra.mxu0 0.0
        %6500 = vmatprep.subr.mxu0 0.0
        %6501 = vmatpush1.msra.mxu0 0.0
        %6502 = vmatprep.subr.mxu0 0.0
        %6503 = vmatpush1.msra.mxu0 0.0
        %6504 = vmatprep.subr.mxu0 0.0
        %6505 = vmatpush1.msra.mxu0 0.0
        %6506 = vmatprep.subr.mxu0 0.0
        %6507 = vmatpush1.msra.mxu0 0.0
        %6508 = vmatprep.subr.mxu0 0.0
        %6509 = vmatpush1.msra.mxu0 0.0
        %6510 = vmatprep.mubr.f32.mxu0 0.0
        %v6511 = vand.u32 %v5893, 4294901760
        %v6512 = vsub.f32 %v5893, %v6511
        %v6513 = vand.u32 %v6512, 4294901760
        %v6514 = vsub.f32 %v6512, %v6513
        %v6515 = vand.u32 %v6514, 4294901760
        %6516 = vmatmul.mubr.f32.gmra.mrb[0].mxu0 %v6515
        %v6517 = vpop.f32.mrb[0].mxu0
        %v6518 = vadd.f32 0.0, %v6517
        %v6519 = vpop.f32.mrb[0].mxu0
        %v6520 = vadd.f32 0.0, %v6519
        %6521 = vdwg.mxu0
        %v6522 = vand.u32 %v394, 4294901760
        %v6523 = vsub.f32 %v394, %v6522
        %v6524 = vand.u32 %v6523, 4294901760
        %v6525 = vsub.f32 %v6523, %v6524
        %v6526 = vand.u32 %v6525, 4294901760
        %6527 = vmatprep.subr.mxu0 %v6526
        %v6528 = vand.u32 %v393, 4294901760
        %v6529 = vsub.f32 %v393, %v6528
        %v6530 = vand.u32 %v6529, 4294901760
        %v6531 = vsub.f32 %v6529, %v6530
        %v6532 = vand.u32 %v6531, 4294901760
        %6533 = vmatpush1.msra.mxu0 %v6532
        %v6534 = vand.u32 %v398, 4294901760
        %v6535 = vsub.f32 %v398, %v6534
        %v6536 = vand.u32 %v6535, 4294901760
        %v6537 = vsub.f32 %v6535, %v6536
        %v6538 = vand.u32 %v6537, 4294901760
        %6539 = vmatprep.subr.mxu0 %v6538
        %v6540 = vand.u32 %v397, 4294901760
        %v6541 = vsub.f32 %v397, %v6540
        %v6542 = vand.u32 %v6541, 4294901760
        %v6543 = vsub.f32 %v6541, %v6542
        %v6544 = vand.u32 %v6543, 4294901760
        %6545 = vmatpush1.msra.mxu0 %v6544
        %v6546 = vand.u32 %v402, 4294901760
        %v6547 = vsub.f32 %v402, %v6546
        %v6548 = vand.u32 %v6547, 4294901760
        %v6549 = vsub.f32 %v6547, %v6548
        %v6550 = vand.u32 %v6549, 4294901760
        %6551 = vmatprep.subr.mxu0 %v6550
        %v6552 = vand.u32 %v401, 4294901760
        %v6553 = vsub.f32 %v401, %v6552
        %v6554 = vand.u32 %v6553, 4294901760
        %v6555 = vsub.f32 %v6553, %v6554
        %v6556 = vand.u32 %v6555, 4294901760
        %6557 = vmatpush1.msra.mxu0 %v6556
        %v6558 = vand.u32 %v406, 4294901760
        %v6559 = vsub.f32 %v406, %v6558
        %v6560 = vand.u32 %v6559, 4294901760
        %v6561 = vsub.f32 %v6559, %v6560
        %v6562 = vand.u32 %v6561, 4294901760
        %6563 = vmatprep.subr.mxu0 %v6562
        %v6564 = vand.u32 %v405, 4294901760
        %v6565 = vsub.f32 %v405, %v6564
        %v6566 = vand.u32 %v6565, 4294901760
        %v6567 = vsub.f32 %v6565, %v6566
        %v6568 = vand.u32 %v6567, 4294901760
        %6569 = vmatpush1.msra.mxu0 %v6568
        %6570 = vmatprep.subr.mxu0 0.0
        %6571 = vmatpush1.msra.mxu0 0.0
        %6572 = vmatprep.subr.mxu0 0.0
        %6573 = vmatpush1.msra.mxu0 0.0
        %6574 = vmatprep.subr.mxu0 0.0
        %6575 = vmatpush1.msra.mxu0 0.0
        %6576 = vmatprep.subr.mxu0 0.0
        %6577 = vmatpush1.msra.mxu0 0.0
        %6578 = vmatprep.subr.mxu0 0.0
        %6579 = vmatpush1.msra.mxu0 0.0
        %6580 = vmatprep.subr.mxu0 0.0
        %6581 = vmatpush1.msra.mxu0 0.0
        %6582 = vmatprep.subr.mxu0 0.0
        %6583 = vmatpush1.msra.mxu0 0.0
        %6584 = vmatprep.subr.mxu0 0.0
        %6585 = vmatpush1.msra.mxu0 0.0
        %6586 = vmatprep.subr.mxu0 0.0
        %6587 = vmatpush1.msra.mxu0 0.0
        %6588 = vmatprep.subr.mxu0 0.0
        %6589 = vmatpush1.msra.mxu0 0.0
        %6590 = vmatprep.subr.mxu0 0.0
        %6591 = vmatpush1.msra.mxu0 0.0
        %6592 = vmatprep.subr.mxu0 0.0
        %6593 = vmatpush1.msra.mxu0 0.0
        %6594 = vmatprep.subr.mxu0 0.0
        %6595 = vmatpush1.msra.mxu0 0.0
        %6596 = vmatprep.subr.mxu0 0.0
        %6597 = vmatpush1.msra.mxu0 0.0
        %6598 = vmatprep.subr.mxu0 0.0
        %6599 = vmatpush1.msra.mxu0 0.0
        %6600 = vmatprep.subr.mxu0 0.0
        %6601 = vmatpush1.msra.mxu0 0.0
        %6602 = vmatprep.subr.mxu0 0.0
        %6603 = vmatpush1.msra.mxu0 0.0
        %6604 = vmatprep.subr.mxu0 0.0
        %6605 = vmatpush1.msra.mxu0 0.0
        %6606 = vmatprep.subr.mxu0 0.0
        %6607 = vmatpush1.msra.mxu0 0.0
        %6608 = vmatprep.subr.mxu0 0.0
        %6609 = vmatpush1.msra.mxu0 0.0
        %6610 = vmatprep.subr.mxu0 0.0
        %6611 = vmatpush1.msra.mxu0 0.0
        %6612 = vmatprep.subr.mxu0 0.0
        %6613 = vmatpush1.msra.mxu0 0.0
        %6614 = vmatprep.subr.mxu0 0.0
        %6615 = vmatpush1.msra.mxu0 0.0
        %6616 = vmatprep.subr.mxu0 0.0
        %6617 = vmatpush1.msra.mxu0 0.0
        %6618 = vmatprep.subr.mxu0 0.0
        %6619 = vmatpush1.msra.mxu0 0.0
        %6620 = vmatprep.subr.mxu0 0.0
        %6621 = vmatpush1.msra.mxu0 0.0
        %6622 = vmatprep.subr.mxu0 0.0
        %6623 = vmatpush1.msra.mxu0 0.0
        %6624 = vmatprep.subr.mxu0 0.0
        %6625 = vmatpush1.msra.mxu0 0.0
        %6626 = vmatprep.mubr.f32.mxu0 0.0
        %v6627 = vand.u32 %v5893, 4294901760
        %6628 = vmatmul.mubr.f32.gmra.mrb[0].mxu0 %v6627
        %v6629 = vpop.f32.mrb[0].mxu0
        %v6630 = vadd.f32 %v6518, %v6629
        %v6631 = vpop.f32.mrb[0].mxu0
        %v6632 = vadd.f32 %v6520, %v6631
        %6633 = vdwg.mxu0
        %v6634 = vand.u32 %v394, 4294901760
        %v6635 = vsub.f32 %v394, %v6634
        %6636 = vmatprep.subr.mxu0 %v6635
        %v6637 = vand.u32 %v393, 4294901760
        %v6638 = vsub.f32 %v393, %v6637
        %6639 = vmatpush1.msra.mxu0 %v6638
        %v6640 = vand.u32 %v398, 4294901760
        %v6641 = vsub.f32 %v398, %v6640
        %6642 = vmatprep.subr.mxu0 %v6641
        %v6643 = vand.u32 %v397, 4294901760
        %v6644 = vsub.f32 %v397, %v6643
        %6645 = vmatpush1.msra.mxu0 %v6644
        %v6646 = vand.u32 %v402, 4294901760
        %v6647 = vsub.f32 %v402, %v6646
        %6648 = vmatprep.subr.mxu0 %v6647
        %v6649 = vand.u32 %v401, 4294901760
        %v6650 = vsub.f32 %v401, %v6649
        %6651 = vmatpush1.msra.mxu0 %v6650
        %v6652 = vand.u32 %v406, 4294901760
        %v6653 = vsub.f32 %v406, %v6652
        %6654 = vmatprep.subr.mxu0 %v6653
        %v6655 = vand.u32 %v405, 4294901760
        %v6656 = vsub.f32 %v405, %v6655
        %6657 = vmatpush1.msra.mxu0 %v6656
        %6658 = vmatprep.subr.mxu0 0.0
        %6659 = vmatpush1.msra.mxu0 0.0
        %6660 = vmatprep.subr.mxu0 0.0
        %6661 = vmatpush1.msra.mxu0 0.0
        %6662 = vmatprep.subr.mxu0 0.0
        %6663 = vmatpush1.msra.mxu0 0.0
        %6664 = vmatprep.subr.mxu0 0.0
        %6665 = vmatpush1.msra.mxu0 0.0
        %6666 = vmatprep.subr.mxu0 0.0
        %6667 = vmatpush1.msra.mxu0 0.0
        %6668 = vmatprep.subr.mxu0 0.0
        %6669 = vmatpush1.msra.mxu0 0.0
        %6670 = vmatprep.subr.mxu0 0.0
        %6671 = vmatpush1.msra.mxu0 0.0
        %6672 = vmatprep.subr.mxu0 0.0
        %6673 = vmatpush1.msra.mxu0 0.0
        %6674 = vmatprep.subr.mxu0 0.0
        %6675 = vmatpush1.msra.mxu0 0.0
        %6676 = vmatprep.subr.mxu0 0.0
        %6677 = vmatpush1.msra.mxu0 0.0
        %6678 = vmatprep.subr.mxu0 0.0
        %6679 = vmatpush1.msra.mxu0 0.0
        %6680 = vmatprep.subr.mxu0 0.0
        %6681 = vmatpush1.msra.mxu0 0.0
        %6682 = vmatprep.subr.mxu0 0.0
        %6683 = vmatpush1.msra.mxu0 0.0
        %6684 = vmatprep.subr.mxu0 0.0
        %6685 = vmatpush1.msra.mxu0 0.0
        %6686 = vmatprep.subr.mxu0 0.0
        %6687 = vmatpush1.msra.mxu0 0.0
        %6688 = vmatprep.subr.mxu0 0.0
        %6689 = vmatpush1.msra.mxu0 0.0
        %6690 = vmatprep.subr.mxu0 0.0
        %6691 = vmatpush1.msra.mxu0 0.0
        %6692 = vmatprep.subr.mxu0 0.0
        %6693 = vmatpush1.msra.mxu0 0.0
        %6694 = vmatprep.subr.mxu0 0.0
        %6695 = vmatpush1.msra.mxu0 0.0
        %6696 = vmatprep.subr.mxu0 0.0
        %6697 = vmatpush1.msra.mxu0 0.0
        %6698 = vmatprep.subr.mxu0 0.0
        %6699 = vmatpush1.msra.mxu0 0.0
        %6700 = vmatprep.subr.mxu0 0.0
        %6701 = vmatpush1.msra.mxu0 0.0
        %6702 = vmatprep.subr.mxu0 0.0
        %6703 = vmatpush1.msra.mxu0 0.0
        %6704 = vmatprep.subr.mxu0 0.0
        %6705 = vmatpush1.msra.mxu0 0.0
        %6706 = vmatprep.subr.mxu0 0.0
        %6707 = vmatpush1.msra.mxu0 0.0
        %6708 = vmatprep.subr.mxu0 0.0
        %6709 = vmatpush1.msra.mxu0 0.0
        %6710 = vmatprep.subr.mxu0 0.0
        %6711 = vmatpush1.msra.mxu0 0.0
        %6712 = vmatprep.subr.mxu0 0.0
        %6713 = vmatpush1.msra.mxu0 0.0
        %6714 = vmatprep.mubr.f32.mxu0 0.0
        %v6715 = vand.u32 %v5893, 4294901760
        %v6716 = vsub.f32 %v5893, %v6715
        %6717 = vmatmul.mubr.f32.gmra.mrb[0].mxu0 %v6716
        %v6718 = vpop.f32.mrb[0].mxu0
        %v6719 = vadd.f32 %v6630, %v6718
        %v6720 = vpop.f32.mrb[0].mxu0
        %v6721 = vadd.f32 %v6632, %v6720
        %6722 = vdwg.mxu0
        %v6723 = vand.u32 %v394, 4294901760
        %6724 = vmatprep.subr.mxu0 %v6723
        %v6725 = vand.u32 %v393, 4294901760
        %6726 = vmatpush1.msra.mxu0 %v6725
        %v6727 = vand.u32 %v398, 4294901760
        %6728 = vmatprep.subr.mxu0 %v6727
        %v6729 = vand.u32 %v397, 4294901760
        %6730 = vmatpush1.msra.mxu0 %v6729
        %v6731 = vand.u32 %v402, 4294901760
        %6732 = vmatprep.subr.mxu0 %v6731
        %v6733 = vand.u32 %v401, 4294901760
        %6734 = vmatpush1.msra.mxu0 %v6733
        %v6735 = vand.u32 %v406, 4294901760
        %6736 = vmatprep.subr.mxu0 %v6735
        %v6737 = vand.u32 %v405, 4294901760
        %6738 = vmatpush1.msra.mxu0 %v6737
        %6739 = vmatprep.subr.mxu0 0.0
        %6740 = vmatpush1.msra.mxu0 0.0
        %6741 = vmatprep.subr.mxu0 0.0
        %6742 = vmatpush1.msra.mxu0 0.0
        %6743 = vmatprep.subr.mxu0 0.0
        %6744 = vmatpush1.msra.mxu0 0.0
        %6745 = vmatprep.subr.mxu0 0.0
        %6746 = vmatpush1.msra.mxu0 0.0
        %6747 = vmatprep.subr.mxu0 0.0
        %6748 = vmatpush1.msra.mxu0 0.0
        %6749 = vmatprep.subr.mxu0 0.0
        %6750 = vmatpush1.msra.mxu0 0.0
        %6751 = vmatprep.subr.mxu0 0.0
        %6752 = vmatpush1.msra.mxu0 0.0
        %6753 = vmatprep.subr.mxu0 0.0
        %6754 = vmatpush1.msra.mxu0 0.0
        %6755 = vmatprep.subr.mxu0 0.0
        %6756 = vmatpush1.msra.mxu0 0.0
        %6757 = vmatprep.subr.mxu0 0.0
        %6758 = vmatpush1.msra.mxu0 0.0
        %6759 = vmatprep.subr.mxu0 0.0
        %6760 = vmatpush1.msra.mxu0 0.0
        %6761 = vmatprep.subr.mxu0 0.0
        %6762 = vmatpush1.msra.mxu0 0.0
        %6763 = vmatprep.subr.mxu0 0.0
        %6764 = vmatpush1.msra.mxu0 0.0
        %6765 = vmatprep.subr.mxu0 0.0
        %6766 = vmatpush1.msra.mxu0 0.0
        %6767 = vmatprep.subr.mxu0 0.0
        %6768 = vmatpush1.msra.mxu0 0.0
        %6769 = vmatprep.subr.mxu0 0.0
        %6770 = vmatpush1.msra.mxu0 0.0
        %6771 = vmatprep.subr.mxu0 0.0
        %6772 = vmatpush1.msra.mxu0 0.0
        %6773 = vmatprep.subr.mxu0 0.0
        %6774 = vmatpush1.msra.mxu0 0.0
        %6775 = vmatprep.subr.mxu0 0.0
        %6776 = vmatpush1.msra.mxu0 0.0
        %6777 = vmatprep.subr.mxu0 0.0
        %6778 = vmatpush1.msra.mxu0 0.0
        %6779 = vmatprep.subr.mxu0 0.0
        %6780 = vmatpush1.msra.mxu0 0.0
        %6781 = vmatprep.subr.mxu0 0.0
        %6782 = vmatpush1.msra.mxu0 0.0
        %6783 = vmatprep.subr.mxu0 0.0
        %6784 = vmatpush1.msra.mxu0 0.0
        %6785 = vmatprep.subr.mxu0 0.0
        %6786 = vmatpush1.msra.mxu0 0.0
        %6787 = vmatprep.subr.mxu0 0.0
        %6788 = vmatpush1.msra.mxu0 0.0
        %6789 = vmatprep.subr.mxu0 0.0
        %6790 = vmatpush1.msra.mxu0 0.0
        %6791 = vmatprep.subr.mxu0 0.0
        %6792 = vmatpush1.msra.mxu0 0.0
        %6793 = vmatprep.subr.mxu0 0.0
        %6794 = vmatpush1.msra.mxu0 0.0
        %6795 = vmatprep.mubr.f32.mxu0 0.0
        %v6796 = vand.u32 %v5893, 4294901760
        %v6797 = vsub.f32 %v5893, %v6796
        %v6798 = vand.u32 %v6797, 4294901760
        %6799 = vmatmul.mubr.f32.gmra.mrb[0].mxu0 %v6798
        %v6800 = vpop.f32.mrb[0].mxu0
        %v6801 = vadd.f32 %v6719, %v6800
        %v6802 = vpop.f32.mrb[0].mxu0
        %v6803 = vadd.f32 %v6721, %v6802
        %6804 = vdwg.mxu0
        %v6805 = vand.u32 %v394, 4294901760
        %v6806 = vsub.f32 %v394, %v6805
        %v6807 = vand.u32 %v6806, 4294901760
        %6808 = vmatprep.subr.mxu0 %v6807
        %v6809 = vand.u32 %v393, 4294901760
        %v6810 = vsub.f32 %v393, %v6809
        %v6811 = vand.u32 %v6810, 4294901760
        %6812 = vmatpush1.msra.mxu0 %v6811
        %v6813 = vand.u32 %v398, 4294901760
        %v6814 = vsub.f32 %v398, %v6813
        %v6815 = vand.u32 %v6814, 4294901760
        %6816 = vmatprep.subr.mxu0 %v6815
        %v6817 = vand.u32 %v397, 4294901760
        %v6818 = vsub.f32 %v397, %v6817
        %v6819 = vand.u32 %v6818, 4294901760
        %6820 = vmatpush1.msra.mxu0 %v6819
        %v6821 = vand.u32 %v402, 4294901760
        %v6822 = vsub.f32 %v402, %v6821
        %v6823 = vand.u32 %v6822, 4294901760
        %6824 = vmatprep.subr.mxu0 %v6823
        %v6825 = vand.u32 %v401, 4294901760
        %v6826 = vsub.f32 %v401, %v6825
        %v6827 = vand.u32 %v6826, 4294901760
        %6828 = vmatpush1.msra.mxu0 %v6827
        %v6829 = vand.u32 %v406, 4294901760
        %v6830 = vsub.f32 %v406, %v6829
        %v6831 = vand.u32 %v6830, 4294901760
        %6832 = vmatprep.subr.mxu0 %v6831
        %v6833 = vand.u32 %v405, 4294901760
        %v6834 = vsub.f32 %v405, %v6833
        %v6835 = vand.u32 %v6834, 4294901760
        %6836 = vmatpush1.msra.mxu0 %v6835
        %6837 = vmatprep.subr.mxu0 0.0
        %6838 = vmatpush1.msra.mxu0 0.0
        %6839 = vmatprep.subr.mxu0 0.0
        %6840 = vmatpush1.msra.mxu0 0.0
        %6841 = vmatprep.subr.mxu0 0.0
        %6842 = vmatpush1.msra.mxu0 0.0
        %6843 = vmatprep.subr.mxu0 0.0
        %6844 = vmatpush1.msra.mxu0 0.0
        %6845 = vmatprep.subr.mxu0 0.0
        %6846 = vmatpush1.msra.mxu0 0.0
        %6847 = vmatprep.subr.mxu0 0.0
        %6848 = vmatpush1.msra.mxu0 0.0
        %6849 = vmatprep.subr.mxu0 0.0
        %6850 = vmatpush1.msra.mxu0 0.0
        %6851 = vmatprep.subr.mxu0 0.0
        %6852 = vmatpush1.msra.mxu0 0.0
        %6853 = vmatprep.subr.mxu0 0.0
        %6854 = vmatpush1.msra.mxu0 0.0
        %6855 = vmatprep.subr.mxu0 0.0
        %6856 = vmatpush1.msra.mxu0 0.0
        %6857 = vmatprep.subr.mxu0 0.0
        %6858 = vmatpush1.msra.mxu0 0.0
        %6859 = vmatprep.subr.mxu0 0.0
        %6860 = vmatpush1.msra.mxu0 0.0
        %6861 = vmatprep.subr.mxu0 0.0
        %6862 = vmatpush1.msra.mxu0 0.0
        %6863 = vmatprep.subr.mxu0 0.0
        %6864 = vmatpush1.msra.mxu0 0.0
        %6865 = vmatprep.subr.mxu0 0.0
        %6866 = vmatpush1.msra.mxu0 0.0
        %6867 = vmatprep.subr.mxu0 0.0
        %6868 = vmatpush1.msra.mxu0 0.0
        %6869 = vmatprep.subr.mxu0 0.0
        %6870 = vmatpush1.msra.mxu0 0.0
        %6871 = vmatprep.subr.mxu0 0.0
        %6872 = vmatpush1.msra.mxu0 0.0
        %6873 = vmatprep.subr.mxu0 0.0
        %6874 = vmatpush1.msra.mxu0 0.0
        %6875 = vmatprep.subr.mxu0 0.0
        %6876 = vmatpush1.msra.mxu0 0.0
        %6877 = vmatprep.subr.mxu0 0.0
        %6878 = vmatpush1.msra.mxu0 0.0
        %6879 = vmatprep.subr.mxu0 0.0
        %6880 = vmatpush1.msra.mxu0 0.0
        %6881 = vmatprep.subr.mxu0 0.0
        %6882 = vmatpush1.msra.mxu0 0.0
        %6883 = vmatprep.subr.mxu0 0.0
        %6884 = vmatpush1.msra.mxu0 0.0
        %6885 = vmatprep.subr.mxu0 0.0
        %6886 = vmatpush1.msra.mxu0 0.0
        %6887 = vmatprep.subr.mxu0 0.0
        %6888 = vmatpush1.msra.mxu0 0.0
        %6889 = vmatprep.subr.mxu0 0.0
        %6890 = vmatpush1.msra.mxu0 0.0
        %6891 = vmatprep.subr.mxu0 0.0
        %6892 = vmatpush1.msra.mxu0 0.0
        %6893 = vmatprep.mubr.f32.mxu0 0.0
        %v6894 = vand.u32 %v5893, 4294901760
        %6895 = vmatmul.mubr.f32.gmra.mrb[0].mxu0 %v6894
        %v6896 = vpop.f32.mrb[0].mxu0
        %v6897 = vadd.f32 %v6801, %v6896
        %v6898 = vpop.f32.mrb[0].mxu0
        %v6899 = vadd.f32 %v6803, %v6898
        %6900 = vdwg.mxu0
        %v6901 = vand.u32 %v394, 4294901760
        %6902 = vmatprep.subr.mxu0 %v6901
        %v6903 = vand.u32 %v393, 4294901760
        %6904 = vmatpush1.msra.mxu0 %v6903
        %v6905 = vand.u32 %v398, 4294901760
        %6906 = vmatprep.subr.mxu0 %v6905
        %v6907 = vand.u32 %v397, 4294901760
        %6908 = vmatpush1.msra.mxu0 %v6907
        %v6909 = vand.u32 %v402, 4294901760
        %6910 = vmatprep.subr.mxu0 %v6909
        %v6911 = vand.u32 %v401, 4294901760
        %6912 = vmatpush1.msra.mxu0 %v6911
        %v6913 = vand.u32 %v406, 4294901760
        %6914 = vmatprep.subr.mxu0 %v6913
        %v6915 = vand.u32 %v405, 4294901760
        %6916 = vmatpush1.msra.mxu0 %v6915
        %6917 = vmatprep.subr.mxu0 0.0
        %6918 = vmatpush1.msra.mxu0 0.0
        %6919 = vmatprep.subr.mxu0 0.0
        %6920 = vmatpush1.msra.mxu0 0.0
        %6921 = vmatprep.subr.mxu0 0.0
        %6922 = vmatpush1.msra.mxu0 0.0
        %6923 = vmatprep.subr.mxu0 0.0
        %6924 = vmatpush1.msra.mxu0 0.0
        %6925 = vmatprep.subr.mxu0 0.0
        %6926 = vmatpush1.msra.mxu0 0.0
        %6927 = vmatprep.subr.mxu0 0.0
        %6928 = vmatpush1.msra.mxu0 0.0
        %6929 = vmatprep.subr.mxu0 0.0
        %6930 = vmatpush1.msra.mxu0 0.0
        %6931 = vmatprep.subr.mxu0 0.0
        %6932 = vmatpush1.msra.mxu0 0.0
        %6933 = vmatprep.subr.mxu0 0.0
        %6934 = vmatpush1.msra.mxu0 0.0
        %6935 = vmatprep.subr.mxu0 0.0
        %6936 = vmatpush1.msra.mxu0 0.0
        %6937 = vmatprep.subr.mxu0 0.0
        %6938 = vmatpush1.msra.mxu0 0.0
        %6939 = vmatprep.subr.mxu0 0.0
        %6940 = vmatpush1.msra.mxu0 0.0
        %6941 = vmatprep.subr.mxu0 0.0
        %6942 = vmatpush1.msra.mxu0 0.0
        %6943 = vmatprep.subr.mxu0 0.0
        %6944 = vmatpush1.msra.mxu0 0.0
        %6945 = vmatprep.subr.mxu0 0.0
        %6946 = vmatpush1.msra.mxu0 0.0
        %6947 = vmatprep.subr.mxu0 0.0
        %6948 = vmatpush1.msra.mxu0 0.0
        %6949 = vmatprep.subr.mxu0 0.0
        %6950 = vmatpush1.msra.mxu0 0.0
        %6951 = vmatprep.subr.mxu0 0.0
        %6952 = vmatpush1.msra.mxu0 0.0
        %6953 = vmatprep.subr.mxu0 0.0
        %6954 = vmatpush1.msra.mxu0 0.0
        %6955 = vmatprep.subr.mxu0 0.0
        %6956 = vmatpush1.msra.mxu0 0.0
        %6957 = vmatprep.subr.mxu0 0.0
        %6958 = vmatpush1.msra.mxu0 0.0
        %6959 = vmatprep.subr.mxu0 0.0
        %6960 = vmatpush1.msra.mxu0 0.0
        %6961 = vmatprep.subr.mxu0 0.0
        %6962 = vmatpush1.msra.mxu0 0.0
        %6963 = vmatprep.subr.mxu0 0.0
        %6964 = vmatpush1.msra.mxu0 0.0
        %6965 = vmatprep.subr.mxu0 0.0
        %6966 = vmatpush1.msra.mxu0 0.0
        %6967 = vmatprep.subr.mxu0 0.0
        %6968 = vmatpush1.msra.mxu0 0.0
        %6969 = vmatprep.subr.mxu0 0.0
        %6970 = vmatpush1.msra.mxu0 0.0
        %6971 = vmatprep.subr.mxu0 0.0
        %6972 = vmatpush1.msra.mxu0 0.0
        %6973 = vmatprep.mubr.f32.mxu0 0.0
        %v6974 = vand.u32 %v5893, 4294901760
        %6975 = vmatmul.mubr.f32.gmra.mrb[0].mxu0 %v6974
        %v6976 = vpop.f32.mrb[0].mxu0
        %v6977 = vadd.f32 %v6897, %v6976
        %v6978 = vpop.f32.mrb[0].mxu0
        %v6979 = vadd.f32 %v6899, %v6978
        %6980 = vdwg.mxu0
        %v6981 = vmul.f32 %v872, %v5345
        %v6982 = vmul.f32 %v874, %v5347
        %v6983 = vmul.f32 %v1337, %v5888
        %v6984 = vmul.f32 %v1339, %v5890
        %v6985 = vadd.f32 %v6981, %v6434
        %v6986 = vadd.f32 %v6982, %v6436
        %v6987 = vadd.f32 %v6983, %v6977
        %v6988 = vadd.f32 %v6984, %v6979
        %v6993 = vcombine.low %v6985, %v6986
        %v6994 = vcombine.low %v6987, %v6988
        %6997 = vst [vmem:[%s274] sm:$0xff] %v6993
        %6998 = vst [vmem:[%s274 + $0x8] sm:$0xff] %v6994
        %vm6999 = vcmask 1043456
        %v7000 = vsel %vm6999, %v6985, 0.0
        %v7001 = vsel %vm6999, %v6986, 0.0
        %v7002 = vadd.f32 %v7000, %v7001
        %v7003 = vsel %vm6999, %v6987, 0.0
        %v7004 = vadd.f32 %v7002, %v7003
        %v7005 = vsel %vm6999, %v6988, 0.0
        %v7006 = vadd.f32 %v7004, %v7005
        %7007 = vadd.xlane.f32.xlu0 %v7006
        %v7008 = vpop.xlane.xlu0 %7007
        %vm7009 = vcmask 3072
        %7010 = vst.msk [vmem:[%s313] sm:$0xf] %vm7009, %v7008
        %v7011 = vmul.f32 %v6985, %v6985
        %v7012 = vmul.f32 %v6986, %v6986
        %v7013 = vmul.f32 %v6987, %v6987
        %v7014 = vmul.f32 %v6988, %v6988
        %v7015 = vsel %vm6999, %v7011, 0.0
        %v7016 = vsel %vm6999, %v7012, 0.0
        %v7017 = vadd.f32 %v7015, %v7016
        %v7018 = vsel %vm6999, %v7013, 0.0
        %v7019 = vadd.f32 %v7017, %v7018
        %v7020 = vsel %vm6999, %v7014, 0.0
        %v7021 = vadd.f32 %v7019, %v7020
        %7022 = vadd.xlane.f32.xlu0 %v7021
        %v7023 = vpop.xlane.xlu0 %7022
        %7024 = vst.msk [vmem:[%s321] sm:$0xf] %vm7009, %v7023
        %s7025 = sand.u32 %s134, 1
        %s7026 = scalar_lea.sflag [#allocation3], %s7025
        %s7027 = sand.u32 %s134, 1
        %s7028 = smul.addr %s7027, 16
        %s7029 = scalar_lea.vmem [#allocation2], %s7028
        %p7030 = scmp.lt.s32.totalorder %s25, 1
        %s7031 = scalar_select %p7030, %s25, 1
        %p7032 = scmp.lt.s32.totalorder %s26, 1
        %s7033 = scalar_select %p7032, %s26, 1
        %s7034 = smul.addr %s7031, 2
        %s7035 = sadd.s32 %s7033, %s7034
        %s7036 = smul.addr %s7035, 4
        %s7037 = scalar_lea.vmem %s5, %s7036
        %p7038 = scmp.lt.s32.totalorder %s25, 1
        %s7039 = scalar_select %p7038, %s25, 1
        %p7040 = scmp.lt.s32.totalorder %s26, 1
        %s7041 = scalar_select %p7040, %s26, 1
        %s7042 = smul.addr %s7039, 2
        %s7043 = sadd.s32 %s7041, %s7042
        %s7044 = smul.addr %s7043, 4
        %s7045 = scalar_lea.vmem %s6, %s7044
        // Predicated region
        $region37: #{tpu_custom_call.1} parent=35 // pred_check
          %p7046 = pneg %p144
        $region38: #{tpu_custom_call.1} parent=35 // pred_check_branch
          %7048 = sbr.rel (%p7046) target = $region40
        $region39: #{tpu_custom_call.1} parent=35 // pred_region
          %s7049 = smul.u32 4, %s26
          %s7051 = ssub.s32 256, 256
          %7052 = vsyncadd %s7026, %s7051
          %s7053 = smul.addr %s25, 8
          %s7054 = sadd.s32 %s7049, %s7053
          %s7055 = smul.addr %s7054, 64
          %s7056 = scalar_lea.hbm %s4, %s7055
          %s7058 = sshll.u32 %s7029, 4
          %s7059 = int_to_ptr.vmem [resolvable:$true] %s7058
          %7061 = dma.vmem_to_hbm [thread:$0]  %s7059, 256, %s7056, %s7026
        $region40: #{tpu_custom_call.1} parent=35 // pred_fallthru
          _
        // Predicated region
        $region41: #{tpu_custom_call.1} parent=35 // pred_check
          %p7062 = pneg %p172
        $region42: #{tpu_custom_call.1} parent=35 // pred_check_branch
          %7064 = sbr.rel (%p7062) target = $region44
        $region43: #{tpu_custom_call.1} parent=35 // pred_region
          _
        $region44: #{tpu_custom_call.1} parent=35 // pred_fallthru
          _
        // Predicated region
        $region45: #{tpu_custom_call.1} parent=35 // pred_check
          %p7065 = pneg %p200
        $region46: #{tpu_custom_call.1} parent=35 // pred_check_branch
          %7067 = sbr.rel (%p7065) target = $region48
        $region47: #{tpu_custom_call.1} parent=35 // pred_region
          _
        $region48: #{tpu_custom_call.1} parent=35 // pred_fallthru
          _
      $region36: #{tpu_custom_call.1} parent=5 // pred_fallthru
        _
      %p7068 = scmp.le.s32.totalorder 2, %s16
      // Predicated region
      $region49: #{tpu_custom_call.1} parent=5 // pred_check
        %p7069 = pneg %p7068
      $region50: #{tpu_custom_call.1} parent=5 // pred_check_branch
        %7071 = sbr.rel (%p7069) target = $region52
      $region51: #{tpu_custom_call.1} parent=5 // pred_region
        %s7072 = ssub.s32 %s16, 2
        // Predicated region
        $region53: #{tpu_custom_call.1} parent=51 // pred_check
          %p7073 = pneg %p150
        $region54: #{tpu_custom_call.1} parent=51 // pred_check_branch
          %7075 = sbr.rel (%p7073) target = $region56
        $region55: #{tpu_custom_call.1} parent=51 // pred_region
          %s7076 = sand.u32 %s135, 1
          %s7077 = scalar_lea.sflag [#allocation3], %s7076
          %s7078 = sand.u32 %s135, 1
          %s7079 = smul.addr %s7078, 16
          %s7080 = scalar_lea.vmem [#allocation2], %s7079
          %7081 = dma.done %s7077, 256
        $region56: #{tpu_custom_call.1} parent=51 // pred_fallthru
          _
        // Predicated region
        $region57: #{tpu_custom_call.1} parent=51 // pred_check
          %p7082 = pneg %p178
        $region58: #{tpu_custom_call.1} parent=51 // pred_check_branch
          %7084 = sbr.rel (%p7082) target = $region60
        $region59: #{tpu_custom_call.1} parent=51 // pred_region
          %p7085 = scmp.lt.s32.totalorder %s27, 1
          %s7086 = scalar_select %p7085, %s27, 1
          %p7087 = scmp.lt.s32.totalorder %s28, 1
          %s7088 = scalar_select %p7087, %s28, 1
          %s7089 = smul.addr %s7086, 2
          %s7090 = sadd.s32 %s7088, %s7089
          %s7091 = smul.addr %s7090, 4
          %s7092 = scalar_lea.vmem %s5, %s7091
        $region60: #{tpu_custom_call.1} parent=51 // pred_fallthru
          _
        // Predicated region
        $region61: #{tpu_custom_call.1} parent=51 // pred_check
          %p7093 = pneg %p206
        $region62: #{tpu_custom_call.1} parent=51 // pred_check_branch
          %7095 = sbr.rel (%p7093) target = $region64
        $region63: #{tpu_custom_call.1} parent=51 // pred_region
          %p7096 = scmp.lt.s32.totalorder %s27, 1
          %s7097 = scalar_select %p7096, %s27, 1
          %p7098 = scmp.lt.s32.totalorder %s28, 1
          %s7099 = scalar_select %p7098, %s28, 1
          %s7100 = smul.addr %s7097, 2
          %s7101 = sadd.s32 %s7099, %s7100
          %s7102 = smul.addr %s7101, 4
          %s7103 = scalar_lea.vmem %s6, %s7102
        $region64: #{tpu_custom_call.1} parent=51 // pred_fallthru
          _
      $region52: #{tpu_custom_call.1} parent=5 // pred_fallthru
        _
    $region6: #{tpu_custom_call.1} parent=1 // loop_footer
      %s20 = sadd.s32 1, %s16
    $region7: #{tpu_custom_call.1} parent=1 // loop_footer_branch
      %15 = sbr.rel target = $region3
    $region8: #{tpu_custom_call.1} parent=1 // loop_exit
      _
    %7104 = vsyncpa [#allocation3], 1
    %s7105 = scalar_lea.sflag [#allocation3], 1
    %7106 = vsyncpa %s7105, 1

</llo_original>
